<compile_context>
chip_gen: v7x
topology: tpu7x:2x2x1
jax: 0.10.0
libtpu: 0.0.40
codegen_flags: <defaults>
</compile_context>

<pallas_src>
import numpy as np
import jax
import jax.numpy as jnp
from jax.experimental import pallas as pl
from jax.experimental.pallas import tpu as pltpu

BATCH = 4            # forced by Self_Attn's reshape(3, 4) / reshape(100, 4)
IN_FEATURES = 65536  # forced by nn.Linear(65536, hidden_size)
HIDDEN = 256
EPS = 1e-5
TK = 16384           # K tile for l10: int8 weight block = 4 MiB (x2 buffers)
KC = 1024            # in-kernel dequant chunk (bf16 intermediate = 512 KiB)

SLAB_WIDTH = 256     # all packed params have <= 256 columns


def _round8(n):
    return ((n + 7) // 8) * 8


# (name, rows, cols) of every small parameter packed into the f32 slab.
SLAB_SPEC = (
    ("scale10", 1, 256), ("b10", 1, 256), ("g1", 1, 256), ("be1", 1, 256),
    ("w12", 256, 31), ("b12", 1, 31), ("g2", 1, 31), ("be2", 1, 31),
    ("a_w2", 512, 256), ("a_b2", 1, 256),
    ("a_w3", 256, 128), ("a_b3", 1, 128),
    ("a_w4", 128, 64), ("a_b4", 1, 64),
    ("a_w5", 64, 31), ("a_b5", 1, 31),
    ("a_wq", 31, 3), ("a_bq", 1, 3),
    ("a_wk", 31, 3), ("a_bk", 1, 3),
    ("a_wv", 31, 100), ("a_bv", 1, 100),
    ("a_w6", 100, 128), ("a_b6", 1, 128),
    ("a_w7", 128, 64), ("a_b7", 1, 64),
    ("a_w8", 64, 32), ("a_b8", 1, 32),
    ("a_w9", 32, 30), ("a_b9", 1, 30),
    ("w13", 30, 128), ("b13", 1, 128), ("g3", 1, 128), ("be3", 1, 128),
    ("w14", 128, 64), ("b14", 1, 64), ("g4", 1, 64), ("be4", 1, 64),
    ("w15", 64, 31), ("b15", 1, 31), ("g5", 1, 31), ("be5", 1, 31),
    ("w22", 31, 20), ("b22", 1, 20),
    ("e1", 100, 4), ("e2", 4, 100), ("bd_mask", 100, 100),
)

SLAB_LAYOUT = {}
_row = 0
for _name, _r, _c in SLAB_SPEC:
    SLAB_LAYOUT[_name] = (_row, _r, _c)
    _row += _round8(_r)          # 8-row align every entry (aligned sublane loads)
SLAB_ROWS = _row


# ----------------------------- in-kernel helpers ----------------------------
def _leaky(x):
    return jnp.where(x > 0, x, 0.1 * x)          # nn.LeakyReLU(0.1)


def _relu(x):
    return jnp.maximum(x, 0.0)


def _bn(x, gamma, beta):
    # BatchNorm1d, training mode: biased batch stats over the batch axis.
    mean = jnp.mean(x, axis=0, keepdims=True)
    var = jnp.mean((x - mean) ** 2, axis=0, keepdims=True)
    return (x - mean) * jax.lax.rsqrt(var + EPS) * gamma + beta


def _mm(a, b):
    return jnp.dot(a, b, preferred_element_type=jnp.float32)


def _reshape_tiny(x, new_shape):
    """Row-major reshape of a tiny 2-D array without a Mosaic reshape.

    out[i, j] = x[a, b]  where  a * C_in + b == i * C_out + j.
    Built as a sum of one-hot masked broadcasts (12 terms for (4,3)->(3,4)).
    """
    r_in, c_in = x.shape
    r_out, c_out = new_shape
    assert r_in * c_in == r_out * c_out
    flat = (c_out * jax.lax.broadcasted_iota(jnp.int32, new_shape, 0)
            + jax.lax.broadcasted_iota(jnp.int32, new_shape, 1))
    out = jnp.zeros(new_shape, jnp.float32)
    for a in range(r_in):
        for b in range(c_in):
            out = out + jnp.where(flat == (a * c_in + b),
                                  x[a:a + 1, b:b + 1], 0.0)
    return out


# --------------------------- single fused kernel -----------------------------
def _fused_kernel(x_ref, w_ref, slab_ref, aw1_ref, ab1_ref, out_ref, acc_ref):
    k = pl.program_id(0)

    @pl.when(k == 0)
    def _():
        acc_ref[...] = jnp.zeros_like(acc_ref)

    # Hot path: int8 weights streamed from HBM, dequantized chunk-by-chunk to
    # bf16 (values in [-127,127] are exact in bf16) and fed to the MXU with
    # f32 accumulation.  The per-column scale is applied once in the epilogue.
    partial = jnp.zeros((BATCH, HIDDEN), jnp.float32)
    for c in range(TK // KC):
        xc = x_ref[:, c * KC:(c + 1) * KC]                       # bf16 (4, KC)
        wc = w_ref[c * KC:(c + 1) * KC, :].astype(jnp.bfloat16)  # (KC, 256)
        partial = partial + jnp.dot(xc, wc, preferred_element_type=jnp.float32)
    acc_ref[...] += partial

    @pl.when(k == pl.num_programs(0) - 1)
    def _():
        def g(name):
            r0, r, c = SLAB_LAYOUT[name]
            return slab_ref[r0:r0 + r, 0:c]

        # l10 dequant-scale + bias, batch1 + leaky, l12, batch2 + leaky
        x = acc_ref[...] * g("scale10") + g("b10")
        x = _leaky(_bn(x, g("g1"), g("be1")))
        x = _mm(x, g("w12")) + g("b12")
        x = _leaky(_bn(x, g("g2"), g("be2")))

        # Self_Attn (attn1) trunk
        x = _relu(_mm(x, aw1_ref[...]) + ab1_ref[...])
        x = _relu(_mm(x, g("a_w2")) + g("a_b2"))
        x = _relu(_mm(x, g("a_w3")) + g("a_b3"))
        x = _relu(_mm(x, g("a_w4")) + g("a_b4"))
        x = _mm(x, g("a_w5")) + g("a_b5")
        pq = _relu(_mm(x, g("a_wq")) + g("a_bq"))                 # (4, 3)
        pk = _relu(_mm(x, g("a_wk")) + g("a_bk"))                 # (4, 3)
        pv = _relu(_mm(x, g("a_wv")) + g("a_bv"))                 # (4, 100)

        pk_r = _reshape_tiny(pk, (3, 4))                          # .reshape(3,4)
        energy = _mm(pq, pk_r)                                    # (4, 4)
        energy = energy - jnp.max(energy, axis=-1, keepdims=True)
        p = jnp.exp(energy)
        attn = p / jnp.sum(p, axis=-1, keepdims=True)             # softmax(-1)

        # torch:  (pv.reshape(100,4) @ attn).view(4,100)
        # ==  pv @ M  with  M[c,c'] = attn[c%4, c'%4] * [c//4 == c'//4].
        # e1 (100,4), e2 (4,100), bd_mask (100,100) are precomputed constants.
        m = _mm(_mm(g("e1"), attn), g("e2")) * g("bd_mask")       # (100, 100)
        o1 = _mm(pv, m)                                           # (4, 100)

        o1 = _relu(_mm(o1, g("a_w6")) + g("a_b6"))
        o1 = _relu(_mm(o1, g("a_w7")) + g("a_b7"))
        o1 = _relu(_mm(o1, g("a_w8")) + g("a_b8"))
        o1 = _mm(o1, g("a_w9")) + g("a_b9")                       # (4, 30)

        # Discriminator tail
        y = _mm(o1, g("w13")) + g("b13")
        y = _leaky(_bn(y, g("g3"), g("be3")))
        y = _mm(y, g("w14")) + g("b14")
        y = _leaky(_bn(y, g("g4"), g("be4")))
        y = _mm(y, g("w15")) + g("b15")
        y = _leaky(_bn(y, g("g5"), g("be5")))
        y = _mm(y, g("w22")) + g("b22")
        out_ref[...] = jax.nn.sigmoid(y)                          # (4, 20)


# --------------------------------- wrapper -----------------------------------
def discriminator_forward(x1, packed):
    assert IN_FEATURES % TK == 0 and TK % KC == 0
    nk = IN_FEATURES // TK
    x_bf = x1.astype(jnp.bfloat16)       # cast once; kernel streams bf16

    slab = packed["slab"]
    cost = pl.CostEstimate(
        flops=2 * BATCH * IN_FEATURES * HIDDEN + 2_000_000,
        transcendentals=1024,
        bytes_accessed=(IN_FEATURES * HIDDEN * 1      # int8 weights
                        + BATCH * IN_FEATURES * 2     # bf16 activations
                        + slab.size * 4
                        + 31 * 512 * 4 + 512 * 4      # a_w1 / a_b1
                        + BATCH * 20 * 4),
    )

    return pl.pallas_call(
        _fused_kernel,
        out_shape=jax.ShapeDtypeStruct((BATCH, 20), jnp.float32),
        grid_spec=pltpu.PrefetchScalarGridSpec(
            num_scalar_prefetch=0,
            grid=(nk,),
            in_specs=[
                pl.BlockSpec((BATCH, TK), lambda k: (0, k)),        # x (bf16)
                pl.BlockSpec((TK, HIDDEN), lambda k: (k, 0)),       # w10 (int8)
                pl.BlockSpec((SLAB_ROWS, SLAB_WIDTH), lambda k: (0, 0)),
                pl.BlockSpec((31, 512), lambda k: (0, 0)),          # attn.l1 W
                pl.BlockSpec((1, 512), lambda k: (0, 0)),           # attn.l1 b
            ],
            out_specs=pl.BlockSpec((BATCH, 20), lambda k: (0, 0)),
            scratch_shapes=[pltpu.VMEM((BATCH, HIDDEN), jnp.float32)],
        ),
        compiler_params=pltpu.CompilerParams(
            dimension_semantics=("arbitrary",),        # K is a reduction axis
            vmem_limit_bytes=32 * 1024 * 1024,         # covers v5e default / v7x 64MiB
        ),
        cost_estimate=cost,
    )(x_bf, packed["w10_q"], slab, packed["a_w1"], packed["a_b1"])


# ------------------------------- parameters ----------------------------------
def init_params(key):
    keys = list(jax.random.split(key, 24))
    it = iter(keys)

    def lin(fan_in, fan_out):
        kw, kb = jax.random.split(next(it))
        bound = 1.0 / np.sqrt(fan_in)
        w = jax.random.uniform(kw, (fan_in, fan_out), jnp.float32, -bound, bound)
        b = jax.random.uniform(kb, (1, fan_out), jnp.float32, -bound, bound)
        return w, b

    def bn(n):
        return jnp.ones((1, n), jnp.float32), jnp.zeros((1, n), jnp.float32)

    p = {}
    p["w10"], p["b10"] = lin(IN_FEATURES, HIDDEN)
    # int8 symmetric quantization of w10 with a per-output-column scale.
    amax = jnp.max(jnp.abs(p["w10"]), axis=0, keepdims=True)
    p["scale10"] = jnp.maximum(amax, 1e-8) / 127.0
    p["w10_q"] = jnp.clip(jnp.round(p["w10"] / p["scale10"]),
                          -127.0, 127.0).astype(jnp.int8)
    p["g1"], p["be1"] = bn(HIDDEN)
    p["w12"], p["b12"] = lin(HIDDEN, 31)
    p["g2"], p["be2"] = bn(31)
    # Self_Attn (attn1)
    p["a_w1"], p["a_b1"] = lin(31, 512)
    p["a_w2"], p["a_b2"] = lin(512, 256)
    p["a_w3"], p["a_b3"] = lin(256, 128)
    p["a_w4"], p["a_b4"] = lin(128, 64)
    p["a_w5"], p["a_b5"] = lin(64, 31)
    p["a_wq"], p["a_bq"] = lin(31, 3)
    p["a_wk"], p["a_bk"] = lin(31, 3)
    p["a_wv"], p["a_bv"] = lin(31, 100)
    p["a_w6"], p["a_b6"] = lin(100, 128)
    p["a_w7"], p["a_b7"] = lin(128, 64)
    p["a_w8"], p["a_b8"] = lin(64, 32)
    p["a_w9"], p["a_b9"] = lin(32, 30)
    # Discriminator tail
    p["w13"], p["b13"] = lin(30, 128)
    p["g3"], p["be3"] = bn(128)
    p["w14"], p["b14"] = lin(128, 64)
    p["g4"], p["be4"] = bn(64)
    p["w15"], p["b15"] = lin(64, 31)
    p["g5"], p["be5"] = bn(31)
    p["w22"], p["b22"] = lin(31, 20)
    # Precomputed constants for the reshape-free attention application.
    idx = np.arange(100)
    p["e1"] = jnp.asarray((idx[:, None] % 4 == np.arange(4)[None, :])
                          .astype(np.float32))                      # (100, 4)
    p["e2"] = jnp.asarray((np.arange(4)[:, None] == idx[None, :] % 4)
                          .astype(np.float32))                      # (4, 100)
    p["bd_mask"] = jnp.asarray(((idx[:, None] // 4) == (idx[None, :] // 4))
                               .astype(np.float32))                 # (100, 100)
    # NOTE: l16..l21, batch6, attn2 and Self_Attn.gamma are unused in forward().
    return p


def pack_params(p):
    """Pack all small params into one row-padded (SLAB_ROWS, 256) f32 slab."""
    slab = np.zeros((SLAB_ROWS, SLAB_WIDTH), np.float32)
    for name, r, c in SLAB_SPEC:
        r0 = SLAB_LAYOUT[name][0]
        slab[r0:r0 + r, :c] = np.asarray(p[name], np.float32).reshape(r, c)
    return {
        "w10_q": p["w10_q"],               # int8 (65536, 256)
        "slab": jnp.asarray(slab),         # f32  (SLAB_ROWS, 256)
        "a_w1": p["a_w1"],                 # f32  (31, 512)
        "a_b1": p["a_b1"],                 # f32  (1, 512)
    }


# ------------------------------ pure-JAX reference ---------------------------
def reference_forward(x1, p):
    # Models the same int8 weight quantization (and bf16 rounding of the l10
    # input) that the kernel uses; everything else is f32.
    xq = x1.astype(jnp.bfloat16).astype(jnp.float32)
    w10 = p["w10_q"].astype(jnp.float32) * p["scale10"]
    x = xq @ w10 + p["b10"]
    x = _leaky(_bn(x, p["g1"], p["be1"]))
    x = x @ p["w12"] + p["b12"]
    x = _leaky(_bn(x, p["g2"], p["be2"]))
    # Self_Attn (literal torch semantics, incl. the reshapes)
    x = _relu(x @ p["a_w1"] + p["a_b1"])
    x = _relu(x @ p["a_w2"] + p["a_b2"])
    x = _relu(x @ p["a_w3"] + p["a_b3"])
    x = _relu(x @ p["a_w4"] + p["a_b4"])
    x = x @ p["a_w5"] + p["a_b5"]
    pq = _relu(x @ p["a_wq"] + p["a_bq"])
    pk = _relu(x @ p["a_wk"] + p["a_bk"]).reshape(3, 4)
    attn = jax.nn.softmax(pq @ pk, axis=-1)
    pv = _relu(x @ p["a_wv"] + p["a_bv"]).reshape(100, 4)
    o1 = (pv @ attn).reshape(4, 100)
    o1 = _relu(o1 @ p["a_w6"] + p["a_b6"])
    o1 = _relu(o1 @ p["a_w7"] + p["a_b7"])
    o1 = _relu(o1 @ p["a_w8"] + p["a_b8"])
    o1 = o1 @ p["a_w9"] + p["a_b9"]
    # tail
    x = o1 @ p["w13"] + p["b13"]
    x = _leaky(_bn(x, p["g3"], p["be3"]))
    x = x @ p["w14"] + p["b14"]
    x = _leaky(_bn(x, p["g4"], p["be4"]))
    x = x @ p["w15"] + p["b15"]
    x = _leaky(_bn(x, p["g5"], p["be5"]))
    x = x @ p["w22"] + p["b22"]
    return jax.nn.sigmoid(x)


if __name__ == "__main__":
    key = jax.random.PRNGKey(0)
    kp, kx = jax.random.split(key)
    params = init_params(kp)
    packed = pack_params(params)
    x1 = jax.random.normal(kx, (BATCH, IN_FEATURES), dtype=jnp.float32)

    fwd = jax.jit(discriminator_forward)
    out = jax.block_until_ready(fwd(x1, packed))
    assert out.shape == (BATCH, 20) and out.dtype == jnp.float32

    ref = reference_forward(x1, params)
    np.testing.assert_allclose(np.asarray(out), np.asarray(ref),
                               rtol=2e-3, atol=2e-3)
    print("KERNEL_OK")
</pallas_src>

<mosaic_0001>
module attributes {stable_mosaic.version = 11 : i64} {
  func.func @_fused_kernel(%arg0: i32, %arg1: memref<4x16384xbf16, #tpu.memory_space<vmem>>, %arg2: memref<16384x256xi8, #tpu.memory_space<vmem>>, %arg3: memref<2336x256xf32, #tpu.memory_space<vmem>>, %arg4: memref<31x512xf32, #tpu.memory_space<vmem>>, %arg5: memref<1x512xf32, #tpu.memory_space<vmem>>, %arg6: memref<4x20xf32, #tpu.memory_space<vmem>>, %arg7: memref<4x256xf32, #tpu.memory_space<vmem>>) attributes {dimension_semantics = [#tpu.dimension_semantics<arbitrary>], iteration_bounds = array<i64: 4>, scalar_prefetch = 0 : i64, scratch_operands = 1 : i64, tpu.core_type = #tpu.core_type<tc>, window_params = [{transform_indices = @transform_0, window_bounds = array<i64: 4, 16384>}, {transform_indices = @transform_1, window_bounds = array<i64: 16384, 256>}, {pipeline_mode = #tpu.pipeline_mode<synchronous>, transform_indices = @transform_2, window_bounds = array<i64: 2336, 256>}, {pipeline_mode = #tpu.pipeline_mode<synchronous>, transform_indices = @transform_3, window_bounds = array<i64: 31, 512>}, {pipeline_mode = #tpu.pipeline_mode<synchronous>, transform_indices = @transform_4, window_bounds = array<i64: 1, 512>}, {pipeline_mode = #tpu.pipeline_mode<synchronous>, transform_indices = @transform_5, window_bounds = array<i64: 4, 20>}]} {
    %c0_i32 = arith.constant 0 : i32
    %0 = arith.cmpi eq, %arg0, %c0_i32 : i32
    %1 = arith.extui %0 : i1 to i32
    %c0_i32_0 = arith.constant 0 : i32
    %2 = arith.cmpi ne, %1, %c0_i32_0 : i32
    scf.if %2 {
      %cst_70 = arith.constant 0.000000e+00 : f32
      %90 = vector.broadcast %cst_70 : f32 to vector<4x256xf32>
      %c0_71 = arith.constant 0 : index
      %c0_72 = arith.constant 0 : index
      %91 = vector.load %arg7[%c0_71, %c0_72] : memref<4x256xf32, #tpu.memory_space<vmem>>, vector<4x256xf32>
      tpu.vector_store %arg7[%c0_71, %c0_72], %90 {strides = array<i32>} : memref<4x256xf32, #tpu.memory_space<vmem>>, vector<4x256xf32>,
    } else {
    }
    %cst = arith.constant 0.000000e+00 : f32
    %3 = vector.broadcast %cst : f32 to vector<4x256xf32>
    %c0 = arith.constant 0 : index
    %c0_1 = arith.constant 0 : index
    %4 = vector.load %arg1[%c0, %c0_1] : memref<4x16384xbf16, #tpu.memory_space<vmem>>, vector<4x1024xbf16>
    %c0_2 = arith.constant 0 : index
    %c0_3 = arith.constant 0 : index
    %5 = vector.load %arg2[%c0_2, %c0_3] : memref<16384x256xi8, #tpu.memory_space<vmem>>, vector<1024x256xi8>
    %6 = arith.sitofp %5 : vector<1024x256xi8> to vector<1024x256xbf16>
    %cst_4 = arith.constant dense<0.000000e+00> : vector<4x256xf32>
    %7 = tpu.matmul %4, %6, %cst_4 {dimension_numbers = #tpu.dot_dimension_numbers<[1], [0], [0], [1], [0, 0, 1, 1], [], []>} : vector<4x1024xbf16>, vector<1024x256xbf16>, vector<4x256xf32> -> vector<4x256xf32>
    %8 = arith.addf %3, %7 : vector<4x256xf32>
    %c0_5 = arith.constant 0 : index
    %c1024 = arith.constant 1024 : index
    %9 = vector.load %arg1[%c0_5, %c1024] : memref<4x16384xbf16, #tpu.memory_space<vmem>>, vector<4x1024xbf16>
    %c1024_6 = arith.constant 1024 : index
    %c0_7 = arith.constant 0 : index
    %10 = vector.load %arg2[%c1024_6, %c0_7] : memref<16384x256xi8, #tpu.memory_space<vmem>>, vector<1024x256xi8>
    %11 = arith.sitofp %10 : vector<1024x256xi8> to vector<1024x256xbf16>
    %cst_8 = arith.constant dense<0.000000e+00> : vector<4x256xf32>
    %12 = tpu.matmul %9, %11, %cst_8 {dimension_numbers = #tpu.dot_dimension_numbers<[1], [0], [0], [1], [0, 0, 1, 1], [], []>} : vector<4x1024xbf16>, vector<1024x256xbf16>, vector<4x256xf32> -> vector<4x256xf32>
    %13 = arith.addf %8, %12 : vector<4x256xf32>
    %c0_9 = arith.constant 0 : index
    %c2048 = arith.constant 2048 : index
    %14 = vector.load %arg1[%c0_9, %c2048] : memref<4x16384xbf16, #tpu.memory_space<vmem>>, vector<4x1024xbf16>
    %c2048_10 = arith.constant 2048 : index
    %c0_11 = arith.constant 0 : index
    %15 = vector.load %arg2[%c2048_10, %c0_11] : memref<16384x256xi8, #tpu.memory_space<vmem>>, vector<1024x256xi8>
    %16 = arith.sitofp %15 : vector<1024x256xi8> to vector<1024x256xbf16>
    %cst_12 = arith.constant dense<0.000000e+00> : vector<4x256xf32>
    %17 = tpu.matmul %14, %16, %cst_12 {dimension_numbers = #tpu.dot_dimension_numbers<[1], [0], [0], [1], [0, 0, 1, 1], [], []>} : vector<4x1024xbf16>, vector<1024x256xbf16>, vector<4x256xf32> -> vector<4x256xf32>
    %18 = arith.addf %13, %17 : vector<4x256xf32>
    %c0_13 = arith.constant 0 : index
    %c3072 = arith.constant 3072 : index
    %19 = vector.load %arg1[%c0_13, %c3072] : memref<4x16384xbf16, #tpu.memory_space<vmem>>, vector<4x1024xbf16>
    %c3072_14 = arith.constant 3072 : index
    %c0_15 = arith.constant 0 : index
    %20 = vector.load %arg2[%c3072_14, %c0_15] : memref<16384x256xi8, #tpu.memory_space<vmem>>, vector<1024x256xi8>
    %21 = arith.sitofp %20 : vector<1024x256xi8> to vector<1024x256xbf16>
    %cst_16 = arith.constant dense<0.000000e+00> : vector<4x256xf32>
    %22 = tpu.matmul %19, %21, %cst_16 {dimension_numbers = #tpu.dot_dimension_numbers<[1], [0], [0], [1], [0, 0, 1, 1], [], []>} : vector<4x1024xbf16>, vector<1024x256xbf16>, vector<4x256xf32> -> vector<4x256xf32>
    %23 = arith.addf %18, %22 : vector<4x256xf32>
    %c0_17 = arith.constant 0 : index
    %c4096 = arith.constant 4096 : index
    %24 = vector.load %arg1[%c0_17, %c4096] : memref<4x16384xbf16, #tpu.memory_space<vmem>>, vector<4x1024xbf16>
    %c4096_18 = arith.constant 4096 : index
    %c0_19 = arith.constant 0 : index
    %25 = vector.load %arg2[%c4096_18, %c0_19] : memref<16384x256xi8, #tpu.memory_space<vmem>>, vector<1024x256xi8>
    %26 = arith.sitofp %25 : vector<1024x256xi8> to vector<1024x256xbf16>
    %cst_20 = arith.constant dense<0.000000e+00> : vector<4x256xf32>
    %27 = tpu.matmul %24, %26, %cst_20 {dimension_numbers = #tpu.dot_dimension_numbers<[1], [0], [0], [1], [0, 0, 1, 1], [], []>} : vector<4x1024xbf16>, vector<1024x256xbf16>, vector<4x256xf32> -> vector<4x256xf32>
    %28 = arith.addf %23, %27 : vector<4x256xf32>
    %c0_21 = arith.constant 0 : index
    %c5120 = arith.constant 5120 : index
    %29 = vector.load %arg1[%c0_21, %c5120] : memref<4x16384xbf16, #tpu.memory_space<vmem>>, vector<4x1024xbf16>
    %c5120_22 = arith.constant 5120 : index
    %c0_23 = arith.constant 0 : index
    %30 = vector.load %arg2[%c5120_22, %c0_23] : memref<16384x256xi8, #tpu.memory_space<vmem>>, vector<1024x256xi8>
    %31 = arith.sitofp %30 : vector<1024x256xi8> to vector<1024x256xbf16>
    %cst_24 = arith.constant dense<0.000000e+00> : vector<4x256xf32>
    %32 = tpu.matmul %29, %31, %cst_24 {dimension_numbers = #tpu.dot_dimension_numbers<[1], [0], [0], [1], [0, 0, 1, 1], [], []>} : vector<4x1024xbf16>, vector<1024x256xbf16>, vector<4x256xf32> -> vector<4x256xf32>
    %33 = arith.addf %28, %32 : vector<4x256xf32>
    %c0_25 = arith.constant 0 : index
    %c6144 = arith.constant 6144 : index
    %34 = vector.load %arg1[%c0_25, %c6144] : memref<4x16384xbf16, #tpu.memory_space<vmem>>, vector<4x1024xbf16>
    %c6144_26 = arith.constant 6144 : index
    %c0_27 = arith.constant 0 : index
    %35 = vector.load %arg2[%c6144_26, %c0_27] : memref<16384x256xi8, #tpu.memory_space<vmem>>, vector<1024x256xi8>
    %36 = arith.sitofp %35 : vector<1024x256xi8> to vector<1024x256xbf16>
    %cst_28 = arith.constant dense<0.000000e+00> : vector<4x256xf32>
    %37 = tpu.matmul %34, %36, %cst_28 {dimension_numbers = #tpu.dot_dimension_numbers<[1], [0], [0], [1], [0, 0, 1, 1], [], []>} : vector<4x1024xbf16>, vector<1024x256xbf16>, vector<4x256xf32> -> vector<4x256xf32>
    %38 = arith.addf %33, %37 : vector<4x256xf32>
    %c0_29 = arith.constant 0 : index
    %c7168 = arith.constant 7168 : index
    %39 = vector.load %arg1[%c0_29, %c7168] : memref<4x16384xbf16, #tpu.memory_space<vmem>>, vector<4x1024xbf16>
    %c7168_30 = arith.constant 7168 : index
    %c0_31 = arith.constant 0 : index
    %40 = vector.load %arg2[%c7168_30, %c0_31] : memref<16384x256xi8, #tpu.memory_space<vmem>>, vector<1024x256xi8>
    %41 = arith.sitofp %40 : vector<1024x256xi8> to vector<1024x256xbf16>
    %cst_32 = arith.constant dense<0.000000e+00> : vector<4x256xf32>
    %42 = tpu.matmul %39, %41, %cst_32 {dimension_numbers = #tpu.dot_dimension_numbers<[1], [0], [0], [1], [0, 0, 1, 1], [], []>} : vector<4x1024xbf16>, vector<1024x256xbf16>, vector<4x256xf32> -> vector<4x256xf32>
    %43 = arith.addf %38, %42 : vector<4x256xf32>
    %c0_33 = arith.constant 0 : index
    %c8192 = arith.constant 8192 : index
    %44 = vector.load %arg1[%c0_33, %c8192] : memref<4x16384xbf16, #tpu.memory_space<vmem>>, vector<4x1024xbf16>
    %c8192_34 = arith.constant 8192 : index
    %c0_35 = arith.constant 0 : index
    %45 = vector.load %arg2[%c8192_34, %c0_35] : memref<16384x256xi8, #tpu.memory_space<vmem>>, vector<1024x256xi8>
    %46 = arith.sitofp %45 : vector<1024x256xi8> to vector<1024x256xbf16>
    %cst_36 = arith.constant dense<0.000000e+00> : vector<4x256xf32>
    %47 = tpu.matmul %44, %46, %cst_36 {dimension_numbers = #tpu.dot_dimension_numbers<[1], [0], [0], [1], [0, 0, 1, 1], [], []>} : vector<4x1024xbf16>, vector<1024x256xbf16>, vector<4x256xf32> -> vector<4x256xf32>
    %48 = arith.addf %43, %47 : vector<4x256xf32>
    %c0_37 = arith.constant 0 : index
    %c9216 = arith.constant 9216 : index
    %49 = vector.load %arg1[%c0_37, %c9216] : memref<4x16384xbf16, #tpu.memory_space<vmem>>, vector<4x1024xbf16>
    %c9216_38 = arith.constant 9216 : index
    %c0_39 = arith.constant 0 : index
    %50 = vector.load %arg2[%c9216_38, %c0_39] : memref<16384x256xi8, #tpu.memory_space<vmem>>, vector<1024x256xi8>
    %51 = arith.sitofp %50 : vector<1024x256xi8> to vector<1024x256xbf16>
    %cst_40 = arith.constant dense<0.000000e+00> : vector<4x256xf32>
    %52 = tpu.matmul %49, %51, %cst_40 {dimension_numbers = #tpu.dot_dimension_numbers<[1], [0], [0], [1], [0, 0, 1, 1], [], []>} : vector<4x1024xbf16>, vector<1024x256xbf16>, vector<4x256xf32> -> vector<4x256xf32>
    %53 = arith.addf %48, %52 : vector<4x256xf32>
    %c0_41 = arith.constant 0 : index
    %c10240 = arith.constant 10240 : index
    %54 = vector.load %arg1[%c0_41, %c10240] : memref<4x16384xbf16, #tpu.memory_space<vmem>>, vector<4x1024xbf16>
    %c10240_42 = arith.constant 10240 : index
    %c0_43 = arith.constant 0 : index
    %55 = vector.load %arg2[%c10240_42, %c0_43] : memref<16384x256xi8, #tpu.memory_space<vmem>>, vector<1024x256xi8>
    %56 = arith.sitofp %55 : vector<1024x256xi8> to vector<1024x256xbf16>
    %cst_44 = arith.constant dense<0.000000e+00> : vector<4x256xf32>
    %57 = tpu.matmul %54, %56, %cst_44 {dimension_numbers = #tpu.dot_dimension_numbers<[1], [0], [0], [1], [0, 0, 1, 1], [], []>} : vector<4x1024xbf16>, vector<1024x256xbf16>, vector<4x256xf32> -> vector<4x256xf32>
    %58 = arith.addf %53, %57 : vector<4x256xf32>
    %c0_45 = arith.constant 0 : index
    %c11264 = arith.constant 11264 : index
    %59 = vector.load %arg1[%c0_45, %c11264] : memref<4x16384xbf16, #tpu.memory_space<vmem>>, vector<4x1024xbf16>
    %c11264_46 = arith.constant 11264 : index
    %c0_47 = arith.constant 0 : index
    %60 = vector.load %arg2[%c11264_46, %c0_47] : memref<16384x256xi8, #tpu.memory_space<vmem>>, vector<1024x256xi8>
    %61 = arith.sitofp %60 : vector<1024x256xi8> to vector<1024x256xbf16>
    %cst_48 = arith.constant dense<0.000000e+00> : vector<4x256xf32>
    %62 = tpu.matmul %59, %61, %cst_48 {dimension_numbers = #tpu.dot_dimension_numbers<[1], [0], [0], [1], [0, 0, 1, 1], [], []>} : vector<4x1024xbf16>, vector<1024x256xbf16>, vector<4x256xf32> -> vector<4x256xf32>
    %63 = arith.addf %58, %62 : vector<4x256xf32>
    %c0_49 = arith.constant 0 : index
    %c12288 = arith.constant 12288 : index
    %64 = vector.load %arg1[%c0_49, %c12288] : memref<4x16384xbf16, #tpu.memory_space<vmem>>, vector<4x1024xbf16>
    %c12288_50 = arith.constant 12288 : index
    %c0_51 = arith.constant 0 : index
    %65 = vector.load %arg2[%c12288_50, %c0_51] : memref<16384x256xi8, #tpu.memory_space<vmem>>, vector<1024x256xi8>
    %66 = arith.sitofp %65 : vector<1024x256xi8> to vector<1024x256xbf16>
    %cst_52 = arith.constant dense<0.000000e+00> : vector<4x256xf32>
    %67 = tpu.matmul %64, %66, %cst_52 {dimension_numbers = #tpu.dot_dimension_numbers<[1], [0], [0], [1], [0, 0, 1, 1], [], []>} : vector<4x1024xbf16>, vector<1024x256xbf16>, vector<4x256xf32> -> vector<4x256xf32>
    %68 = arith.addf %63, %67 : vector<4x256xf32>
    %c0_53 = arith.constant 0 : index
    %c13312 = arith.constant 13312 : index
    %69 = vector.load %arg1[%c0_53, %c13312] : memref<4x16384xbf16, #tpu.memory_space<vmem>>, vector<4x1024xbf16>
    %c13312_54 = arith.constant 13312 : index
    %c0_55 = arith.constant 0 : index
    %70 = vector.load %arg2[%c13312_54, %c0_55] : memref<16384x256xi8, #tpu.memory_space<vmem>>, vector<1024x256xi8>
    %71 = arith.sitofp %70 : vector<1024x256xi8> to vector<1024x256xbf16>
    %cst_56 = arith.constant dense<0.000000e+00> : vector<4x256xf32>
    %72 = tpu.matmul %69, %71, %cst_56 {dimension_numbers = #tpu.dot_dimension_numbers<[1], [0], [0], [1], [0, 0, 1, 1], [], []>} : vector<4x1024xbf16>, vector<1024x256xbf16>, vector<4x256xf32> -> vector<4x256xf32>
    %73 = arith.addf %68, %72 : vector<4x256xf32>
    %c0_57 = arith.constant 0 : index
    %c14336 = arith.constant 14336 : index
    %74 = vector.load %arg1[%c0_57, %c14336] : memref<4x16384xbf16, #tpu.memory_space<vmem>>, vector<4x1024xbf16>
    %c14336_58 = arith.constant 14336 : index
    %c0_59 = arith.constant 0 : index
    %75 = vector.load %arg2[%c14336_58, %c0_59] : memref<16384x256xi8, #tpu.memory_space<vmem>>, vector<1024x256xi8>
    %76 = arith.sitofp %75 : vector<1024x256xi8> to vector<1024x256xbf16>
    %cst_60 = arith.constant dense<0.000000e+00> : vector<4x256xf32>
    %77 = tpu.matmul %74, %76, %cst_60 {dimension_numbers = #tpu.dot_dimension_numbers<[1], [0], [0], [1], [0, 0, 1, 1], [], []>} : vector<4x1024xbf16>, vector<1024x256xbf16>, vector<4x256xf32> -> vector<4x256xf32>
    %78 = arith.addf %73, %77 : vector<4x256xf32>
    %c0_61 = arith.constant 0 : index
    %c15360 = arith.constant 15360 : index
    %79 = vector.load %arg1[%c0_61, %c15360] : memref<4x16384xbf16, #tpu.memory_space<vmem>>, vector<4x1024xbf16>
    %c15360_62 = arith.constant 15360 : index
    %c0_63 = arith.constant 0 : index
    %80 = vector.load %arg2[%c15360_62, %c0_63] : memref<16384x256xi8, #tpu.memory_space<vmem>>, vector<1024x256xi8>
    %81 = arith.sitofp %80 : vector<1024x256xi8> to vector<1024x256xbf16>
    %cst_64 = arith.constant dense<0.000000e+00> : vector<4x256xf32>
    %82 = tpu.matmul %79, %81, %cst_64 {dimension_numbers = #tpu.dot_dimension_numbers<[1], [0], [0], [1], [0, 0, 1, 1], [], []>} : vector<4x1024xbf16>, vector<1024x256xbf16>, vector<4x256xf32> -> vector<4x256xf32>
    %83 = arith.addf %78, %82 : vector<4x256xf32>
    %c0_65 = arith.constant 0 : index
    %c0_66 = arith.constant 0 : index
    %84 = vector.load %arg7[%c0_65, %c0_66] : memref<4x256xf32, #tpu.memory_space<vmem>>, vector<4x256xf32>
    %85 = arith.addf %84, %83 : vector<4x256xf32>
    %c0_67 = arith.constant 0 : index
    %c0_68 = arith.constant 0 : index
    %86 = vector.load %arg7[%c0_67, %c0_68] : memref<4x256xf32, #tpu.memory_space<vmem>>, vector<4x256xf32>
    tpu.vector_store %arg7[%c0_67, %c0_68], %85 {strides = array<i32>} : memref<4x256xf32, #tpu.memory_space<vmem>>, vector<4x256xf32>,
    %c3_i32 = arith.constant 3 : i32
    %87 = arith.cmpi eq, %arg0, %c3_i32 : i32
    %88 = arith.extui %87 : i1 to i32
    %c0_i32_69 = arith.constant 0 : i32
    %89 = arith.cmpi ne, %88, %c0_i32_69 : i32
    scf.if %89 {
      %c0_70 = arith.constant 0 : index
      %c0_71 = arith.constant 0 : index
      %90 = vector.load %arg7[%c0_70, %c0_71] : memref<4x256xf32, #tpu.memory_space<vmem>>, vector<4x256xf32>
      %c0_72 = arith.constant 0 : index
      %c0_73 = arith.constant 0 : index
      %91 = vector.load %arg3[%c0_72, %c0_73] : memref<2336x256xf32, #tpu.memory_space<vmem>>, vector<1x256xf32>
      %92 = vector.broadcast %91 : vector<1x256xf32> to vector<4x256xf32>
      %93 = arith.mulf %90, %92 : vector<4x256xf32>
      %c8 = arith.constant 8 : index
      %c0_74 = arith.constant 0 : index
      %94 = vector.load %arg3[%c8, %c0_74] : memref<2336x256xf32, #tpu.memory_space<vmem>>, vector<1x256xf32>
      %95 = vector.broadcast %94 : vector<1x256xf32> to vector<4x256xf32>
      %96 = arith.addf %93, %95 : vector<4x256xf32>
      %c16 = arith.constant 16 : index
      %c0_75 = arith.constant 0 : index
      %97 = vector.load %arg3[%c16, %c0_75] : memref<2336x256xf32, #tpu.memory_space<vmem>>, vector<1x256xf32>
      %c24 = arith.constant 24 : index
      %c0_76 = arith.constant 0 : index
      %98 = vector.load %arg3[%c24, %c0_76] : memref<2336x256xf32, #tpu.memory_space<vmem>>, vector<1x256xf32>
      %cst_77 = arith.constant dense<0.000000e+00> : vector<256xf32>
      %99 = vector.multi_reduction <add>, %96, %cst_77 [0] : vector<4x256xf32> to vector<256xf32>
      %100 = vector.shape_cast %99 : vector<256xf32> to vector<1x256xf32>
      %cst_78 = arith.constant 4.000000e+00 : f32
      %101 = vector.broadcast %cst_78 : f32 to vector<1x256xf32>
      %102 = arith.divf %100, %101 : vector<1x256xf32>
      %103 = vector.broadcast %102 : vector<1x256xf32> to vector<4x256xf32>
      %104 = arith.subf %96, %103 : vector<4x256xf32>
      %105 = arith.mulf %104, %104 : vector<4x256xf32>
      %cst_79 = arith.constant dense<0.000000e+00> : vector<256xf32>
      %106 = vector.multi_reduction <add>, %105, %cst_79 [0] : vector<4x256xf32> to vector<256xf32>
      %107 = vector.shape_cast %106 : vector<256xf32> to vector<1x256xf32>
      %cst_80 = arith.constant 4.000000e+00 : f32
      %108 = vector.broadcast %cst_80 : f32 to vector<1x256xf32>
      %109 = arith.divf %107, %108 : vector<1x256xf32>
      %110 = vector.broadcast %102 : vector<1x256xf32> to vector<4x256xf32>
      %111 = arith.subf %96, %110 : vector<4x256xf32>
      %cst_81 = arith.constant 9.99999974E-6 : f32
      %112 = vector.broadcast %cst_81 : f32 to vector<1x256xf32>
      %113 = arith.addf %109, %112 : vector<1x256xf32>
      %114 = math.rsqrt %113 : vector<1x256xf32>
      %115 = vector.broadcast %114 : vector<1x256xf32> to vector<4x256xf32>
      %116 = arith.mulf %111, %115 : vector<4x256xf32>
      %117 = vector.broadcast %97 : vector<1x256xf32> to vector<4x256xf32>
      %118 = arith.mulf %116, %117 : vector<4x256xf32>
      %119 = vector.broadcast %98 : vector<1x256xf32> to vector<4x256xf32>
      %120 = arith.addf %118, %119 : vector<4x256xf32>
      %cst_82 = arith.constant 0.000000e+00 : f32
      %121 = vector.broadcast %cst_82 : f32 to vector<4x256xf32>
      %122 = arith.cmpf ogt, %120, %121 : vector<4x256xf32>
      %cst_83 = arith.constant 1.000000e-01 : f32
      %123 = vector.broadcast %cst_83 : f32 to vector<4x256xf32>
      %124 = arith.mulf %123, %120 : vector<4x256xf32>
      %125 = arith.select %122, %120, %124 : vector<4x256xi1>, vector<4x256xf32>
      %c32 = arith.constant 32 : index
      %c0_84 = arith.constant 0 : index
      %126 = vector.load %arg3[%c32, %c0_84] : memref<2336x256xf32, #tpu.memory_space<vmem>>, vector<256x31xf32>
      %cst_85 = arith.constant dense<0.000000e+00> : vector<4x31xf32>
      %127 = tpu.matmul %125, %126, %cst_85 {dimension_numbers = #tpu.dot_dimension_numbers<[1], [0], [0], [1], [0, 0, 1, 1], [], []>} : vector<4x256xf32>, vector<256x31xf32>, vector<4x31xf32> -> vector<4x31xf32>
      %c288 = arith.constant 288 : index
      %c0_86 = arith.constant 0 : index
      %128 = vector.load %arg3[%c288, %c0_86] : memref<2336x256xf32, #tpu.memory_space<vmem>>, vector<1x31xf32>
      %129 = vector.broadcast %128 : vector<1x31xf32> to vector<4x31xf32>
      %130 = arith.addf %127, %129 : vector<4x31xf32>
      %c296 = arith.constant 296 : index
      %c0_87 = arith.constant 0 : index
      %131 = vector.load %arg3[%c296, %c0_87] : memref<2336x256xf32, #tpu.memory_space<vmem>>, vector<1x31xf32>
      %c304 = arith.constant 304 : index
      %c0_88 = arith.constant 0 : index
      %132 = vector.load %arg3[%c304, %c0_88] : memref<2336x256xf32, #tpu.memory_space<vmem>>, vector<1x31xf32>
      %cst_89 = arith.constant dense<0.000000e+00> : vector<31xf32>
      %133 = vector.multi_reduction <add>, %130, %cst_89 [0] : vector<4x31xf32> to vector<31xf32>
      %134 = vector.shape_cast %133 : vector<31xf32> to vector<1x31xf32>
      %cst_90 = arith.constant 4.000000e+00 : f32
      %135 = vector.broadcast %cst_90 : f32 to vector<1x31xf32>
      %136 = arith.divf %134, %135 : vector<1x31xf32>
      %137 = vector.broadcast %136 : vector<1x31xf32> to vector<4x31xf32>
      %138 = arith.subf %130, %137 : vector<4x31xf32>
      %139 = arith.mulf %138, %138 : vector<4x31xf32>
      %cst_91 = arith.constant dense<0.000000e+00> : vector<31xf32>
      %140 = vector.multi_reduction <add>, %139, %cst_91 [0] : vector<4x31xf32> to vector<31xf32>
      %141 = vector.shape_cast %140 : vector<31xf32> to vector<1x31xf32>
      %cst_92 = arith.constant 4.000000e+00 : f32
      %142 = vector.broadcast %cst_92 : f32 to vector<1x31xf32>
      %143 = arith.divf %141, %142 : vector<1x31xf32>
      %144 = vector.broadcast %136 : vector<1x31xf32> to vector<4x31xf32>
      %145 = arith.subf %130, %144 : vector<4x31xf32>
      %cst_93 = arith.constant 9.99999974E-6 : f32
      %146 = vector.broadcast %cst_93 : f32 to vector<1x31xf32>
      %147 = arith.addf %143, %146 : vector<1x31xf32>
      %148 = math.rsqrt %147 : vector<1x31xf32>
      %149 = vector.broadcast %148 : vector<1x31xf32> to vector<4x31xf32>
      %150 = arith.mulf %145, %149 : vector<4x31xf32>
      %151 = vector.broadcast %131 : vector<1x31xf32> to vector<4x31xf32>
      %152 = arith.mulf %150, %151 : vector<4x31xf32>
      %153 = vector.broadcast %132 : vector<1x31xf32> to vector<4x31xf32>
      %154 = arith.addf %152, %153 : vector<4x31xf32>
      %cst_94 = arith.constant 0.000000e+00 : f32
      %155 = vector.broadcast %cst_94 : f32 to vector<4x31xf32>
      %156 = arith.cmpf ogt, %154, %155 : vector<4x31xf32>
      %cst_95 = arith.constant 1.000000e-01 : f32
      %157 = vector.broadcast %cst_95 : f32 to vector<4x31xf32>
      %158 = arith.mulf %157, %154 : vector<4x31xf32>
      %159 = arith.select %156, %154, %158 : vector<4x31xi1>, vector<4x31xf32>
      %c0_96 = arith.constant 0 : index
      %c0_97 = arith.constant 0 : index
      %160 = vector.load %arg4[%c0_96, %c0_97] : memref<31x512xf32, #tpu.memory_space<vmem>>, vector<31x512xf32>
      %cst_98 = arith.constant dense<0.000000e+00> : vector<4x512xf32>
      %161 = tpu.matmul %159, %160, %cst_98 {dimension_numbers = #tpu.dot_dimension_numbers<[1], [0], [0], [1], [0, 0, 1, 1], [], []>} : vector<4x31xf32>, vector<31x512xf32>, vector<4x512xf32> -> vector<4x512xf32>
      %c0_99 = arith.constant 0 : index
      %c0_100 = arith.constant 0 : index
      %162 = vector.load %arg5[%c0_99, %c0_100] : memref<1x512xf32, #tpu.memory_space<vmem>>, vector<1x512xf32>
      %163 = vector.broadcast %162 : vector<1x512xf32> to vector<4x512xf32>
      %164 = arith.addf %161, %163 : vector<4x512xf32>
      %cst_101 = arith.constant 0.000000e+00 : f32
      %165 = vector.broadcast %cst_101 : f32 to vector<4x512xf32>
      %166 = arith.maximumf %164, %165 : vector<4x512xf32>
      %c312 = arith.constant 312 : index
      %c0_102 = arith.constant 0 : index
      %167 = vector.load %arg3[%c312, %c0_102] : memref<2336x256xf32, #tpu.memory_space<vmem>>, vector<512x256xf32>
      %cst_103 = arith.constant dense<0.000000e+00> : vector<4x256xf32>
      %168 = tpu.matmul %166, %167, %cst_103 {dimension_numbers = #tpu.dot_dimension_numbers<[1], [0], [0], [1], [0, 0, 1, 1], [], []>} : vector<4x512xf32>, vector<512x256xf32>, vector<4x256xf32> -> vector<4x256xf32>
      %c824 = arith.constant 824 : index
      %c0_104 = arith.constant 0 : index
      %169 = vector.load %arg3[%c824, %c0_104] : memref<2336x256xf32, #tpu.memory_space<vmem>>, vector<1x256xf32>
      %170 = vector.broadcast %169 : vector<1x256xf32> to vector<4x256xf32>
      %171 = arith.addf %168, %170 : vector<4x256xf32>
      %cst_105 = arith.constant 0.000000e+00 : f32
      %172 = vector.broadcast %cst_105 : f32 to vector<4x256xf32>
      %173 = arith.maximumf %171, %172 : vector<4x256xf32>
      %c832 = arith.constant 832 : index
      %c0_106 = arith.constant 0 : index
      %174 = vector.load %arg3[%c832, %c0_106] : memref<2336x256xf32, #tpu.memory_space<vmem>>, vector<256x128xf32>
      %cst_107 = arith.constant dense<0.000000e+00> : vector<4x128xf32>
      %175 = tpu.matmul %173, %174, %cst_107 {dimension_numbers = #tpu.dot_dimension_numbers<[1], [0], [0], [1], [0, 0, 1, 1], [], []>} : vector<4x256xf32>, vector<256x128xf32>, vector<4x128xf32> -> vector<4x128xf32>
      %c1088 = arith.constant 1088 : index
      %c0_108 = arith.constant 0 : index
      %176 = vector.load %arg3[%c1088, %c0_108] : memref<2336x256xf32, #tpu.memory_space<vmem>>, vector<1x128xf32>
      %177 = vector.broadcast %176 : vector<1x128xf32> to vector<4x128xf32>
      %178 = arith.addf %175, %177 : vector<4x128xf32>
      %cst_109 = arith.constant 0.000000e+00 : f32
      %179 = vector.broadcast %cst_109 : f32 to vector<4x128xf32>
      %180 = arith.maximumf %178, %179 : vector<4x128xf32>
      %c1096 = arith.constant 1096 : index
      %c0_110 = arith.constant 0 : index
      %181 = vector.load %arg3[%c1096, %c0_110] : memref<2336x256xf32, #tpu.memory_space<vmem>>, vector<128x64xf32>
      %cst_111 = arith.constant dense<0.000000e+00> : vector<4x64xf32>
      %182 = tpu.matmul %180, %181, %cst_111 {dimension_numbers = #tpu.dot_dimension_numbers<[1], [0], [0], [1], [0, 0, 1, 1], [], []>} : vector<4x128xf32>, vector<128x64xf32>, vector<4x64xf32> -> vector<4x64xf32>
      %c1224 = arith.constant 1224 : index
      %c0_112 = arith.constant 0 : index
      %183 = vector.load %arg3[%c1224, %c0_112] : memref<2336x256xf32, #tpu.memory_space<vmem>>, vector<1x64xf32>
      %184 = vector.broadcast %183 : vector<1x64xf32> to vector<4x64xf32>
      %185 = arith.addf %182, %184 : vector<4x64xf32>
      %cst_113 = arith.constant 0.000000e+00 : f32
      %186 = vector.broadcast %cst_113 : f32 to vector<4x64xf32>
      %187 = arith.maximumf %185, %186 : vector<4x64xf32>
      %c1232 = arith.constant 1232 : index
      %c0_114 = arith.constant 0 : index
      %188 = vector.load %arg3[%c1232, %c0_114] : memref<2336x256xf32, #tpu.memory_space<vmem>>, vector<64x31xf32>
      %cst_115 = arith.constant dense<0.000000e+00> : vector<4x31xf32>
      %189 = tpu.matmul %187, %188, %cst_115 {dimension_numbers = #tpu.dot_dimension_numbers<[1], [0], [0], [1], [0, 0, 1, 1], [], []>} : vector<4x64xf32>, vector<64x31xf32>, vector<4x31xf32> -> vector<4x31xf32>
      %c1296 = arith.constant 1296 : index
      %c0_116 = arith.constant 0 : index
      %190 = vector.load %arg3[%c1296, %c0_116] : memref<2336x256xf32, #tpu.memory_space<vmem>>, vector<1x31xf32>
      %191 = vector.broadcast %190 : vector<1x31xf32> to vector<4x31xf32>
      %192 = arith.addf %189, %191 : vector<4x31xf32>
      %c1304 = arith.constant 1304 : index
      %c0_117 = arith.constant 0 : index
      %193 = vector.load %arg3[%c1304, %c0_117] : memref<2336x256xf32, #tpu.memory_space<vmem>>, vector<31x3xf32>
      %cst_118 = arith.constant dense<0.000000e+00> : vector<4x3xf32>
      %194 = tpu.matmul %192, %193, %cst_118 {dimension_numbers = #tpu.dot_dimension_numbers<[1], [0], [0], [1], [0, 0, 1, 1], [], []>} : vector<4x31xf32>, vector<31x3xf32>, vector<4x3xf32> -> vector<4x3xf32>
      %c1336 = arith.constant 1336 : index
      %c0_119 = arith.constant 0 : index
      %195 = vector.load %arg3[%c1336, %c0_119] : memref<2336x256xf32, #tpu.memory_space<vmem>>, vector<1x3xf32>
      %196 = vector.broadcast %195 : vector<1x3xf32> to vector<4x3xf32>
      %197 = arith.addf %194, %196 : vector<4x3xf32>
      %cst_120 = arith.constant 0.000000e+00 : f32
      %198 = vector.broadcast %cst_120 : f32 to vector<4x3xf32>
      %199 = arith.maximumf %197, %198 : vector<4x3xf32>
      %c1344 = arith.constant 1344 : index
      %c0_121 = arith.constant 0 : index
      %200 = vector.load %arg3[%c1344, %c0_121] : memref<2336x256xf32, #tpu.memory_space<vmem>>, vector<31x3xf32>
      %cst_122 = arith.constant dense<0.000000e+00> : vector<4x3xf32>
      %201 = tpu.matmul %192, %200, %cst_122 {dimension_numbers = #tpu.dot_dimension_numbers<[1], [0], [0], [1], [0, 0, 1, 1], [], []>} : vector<4x31xf32>, vector<31x3xf32>, vector<4x3xf32> -> vector<4x3xf32>
      %c1376 = arith.constant 1376 : index
      %c0_123 = arith.constant 0 : index
      %202 = vector.load %arg3[%c1376, %c0_123] : memref<2336x256xf32, #tpu.memory_space<vmem>>, vector<1x3xf32>
      %203 = vector.broadcast %202 : vector<1x3xf32> to vector<4x3xf32>
      %204 = arith.addf %201, %203 : vector<4x3xf32>
      %cst_124 = arith.constant 0.000000e+00 : f32
      %205 = vector.broadcast %cst_124 : f32 to vector<4x3xf32>
      %206 = arith.maximumf %204, %205 : vector<4x3xf32>
      %c1384 = arith.constant 1384 : index
      %c0_125 = arith.constant 0 : index
      %207 = vector.load %arg3[%c1384, %c0_125] : memref<2336x256xf32, #tpu.memory_space<vmem>>, vector<31x100xf32>
      %cst_126 = arith.constant dense<0.000000e+00> : vector<4x100xf32>
      %208 = tpu.matmul %192, %207, %cst_126 {dimension_numbers = #tpu.dot_dimension_numbers<[1], [0], [0], [1], [0, 0, 1, 1], [], []>} : vector<4x31xf32>, vector<31x100xf32>, vector<4x100xf32> -> vector<4x100xf32>
      %c1416 = arith.constant 1416 : index
      %c0_127 = arith.constant 0 : index
      %209 = vector.load %arg3[%c1416, %c0_127] : memref<2336x256xf32, #tpu.memory_space<vmem>>, vector<1x100xf32>
      %210 = vector.broadcast %209 : vector<1x100xf32> to vector<4x100xf32>
      %211 = arith.addf %208, %210 : vector<4x100xf32>
      %cst_128 = arith.constant 0.000000e+00 : f32
      %212 = vector.broadcast %cst_128 : f32 to vector<4x100xf32>
      %213 = arith.maximumf %211, %212 : vector<4x100xf32>
      %214 = tpu.iota {dimensions = array<i32: 0>} : vector<3x4xi32>
      %c4_i32 = arith.constant 4 : i32
      %215 = vector.broadcast %c4_i32 : i32 to vector<3x4xi32>
      %216 = arith.muli %215, %214 : vector<3x4xi32>
      %217 = tpu.iota {dimensions = array<i32: 1>} : vector<3x4xi32>
      %218 = arith.addi %216, %217 : vector<3x4xi32>
      %cst_129 = arith.constant 0.000000e+00 : f32
      %219 = vector.broadcast %cst_129 : f32 to vector<3x4xf32>
      %c0_i32_130 = arith.constant 0 : i32
      %220 = vector.broadcast %c0_i32_130 : i32 to vector<3x4xi32>
      %221 = arith.cmpi eq, %218, %220 : vector<3x4xi32>
      %222 = vector.extract_strided_slice %206 {offsets = [0, 0], sizes = [1, 1], strides = [1, 1]} : vector<4x3xf32> to vector<1x1xf32>
      %cst_131 = arith.constant 0.000000e+00 : f32
      %223 = vector.shape_cast %222 : vector<1x1xf32> to vector<1x1xf32>
      %224 = vector.broadcast %223 : vector<1x1xf32> to vector<3x4xf32>
      %225 = vector.broadcast %cst_131 : f32 to vector<3x4xf32>
      %226 = arith.select %221, %224, %225 : vector<3x4xi1>, vector<3x4xf32>
      %227 = arith.addf %219, %226 : vector<3x4xf32>
      %c1_i32 = arith.constant 1 : i32
      %228 = vector.broadcast %c1_i32 : i32 to vector<3x4xi32>
      %229 = arith.cmpi eq, %218, %228 : vector<3x4xi32>
      %230 = vector.extract_strided_slice %206 {offsets = [0, 1], sizes = [1, 1], strides = [1, 1]} : vector<4x3xf32> to vector<1x1xf32>
      %cst_132 = arith.constant 0.000000e+00 : f32
      %231 = vector.shape_cast %230 : vector<1x1xf32> to vector<1x1xf32>
      %232 = vector.broadcast %231 : vector<1x1xf32> to vector<3x4xf32>
      %233 = vector.broadcast %cst_132 : f32 to vector<3x4xf32>
      %234 = arith.select %229, %232, %233 : vector<3x4xi1>, vector<3x4xf32>
      %235 = arith.addf %227, %234 : vector<3x4xf32>
      %c2_i32 = arith.constant 2 : i32
      %236 = vector.broadcast %c2_i32 : i32 to vector<3x4xi32>
      %237 = arith.cmpi eq, %218, %236 : vector<3x4xi32>
      %238 = vector.extract_strided_slice %206 {offsets = [0, 2], sizes = [1, 1], strides = [1, 1]} : vector<4x3xf32> to vector<1x1xf32>
      %cst_133 = arith.constant 0.000000e+00 : f32
      %239 = vector.shape_cast %238 : vector<1x1xf32> to vector<1x1xf32>
      %240 = vector.broadcast %239 : vector<1x1xf32> to vector<3x4xf32>
      %241 = vector.broadcast %cst_133 : f32 to vector<3x4xf32>
      %242 = arith.select %237, %240, %241 : vector<3x4xi1>, vector<3x4xf32>
      %243 = arith.addf %235, %242 : vector<3x4xf32>
      %c3_i32_134 = arith.constant 3 : i32
      %244 = vector.broadcast %c3_i32_134 : i32 to vector<3x4xi32>
      %245 = arith.cmpi eq, %218, %244 : vector<3x4xi32>
      %246 = vector.extract_strided_slice %206 {offsets = [1, 0], sizes = [1, 1], strides = [1, 1]} : vector<4x3xf32> to vector<1x1xf32>
      %cst_135 = arith.constant 0.000000e+00 : f32
      %247 = vector.shape_cast %246 : vector<1x1xf32> to vector<1x1xf32>
      %248 = vector.broadcast %247 : vector<1x1xf32> to vector<3x4xf32>
      %249 = vector.broadcast %cst_135 : f32 to vector<3x4xf32>
      %250 = arith.select %245, %248, %249 : vector<3x4xi1>, vector<3x4xf32>
      %251 = arith.addf %243, %250 : vector<3x4xf32>
      %c4_i32_136 = arith.constant 4 : i32
      %252 = vector.broadcast %c4_i32_136 : i32 to vector<3x4xi32>
      %253 = arith.cmpi eq, %218, %252 : vector<3x4xi32>
      %254 = vector.extract_strided_slice %206 {offsets = [1, 1], sizes = [1, 1], strides = [1, 1]} : vector<4x3xf32> to vector<1x1xf32>
      %cst_137 = arith.constant 0.000000e+00 : f32
      %255 = vector.shape_cast %254 : vector<1x1xf32> to vector<1x1xf32>
      %256 = vector.broadcast %255 : vector<1x1xf32> to vector<3x4xf32>
      %257 = vector.broadcast %cst_137 : f32 to vector<3x4xf32>
      %258 = arith.select %253, %256, %257 : vector<3x4xi1>, vector<3x4xf32>
      %259 = arith.addf %251, %258 : vector<3x4xf32>
      %c5_i32 = arith.constant 5 : i32
      %260 = vector.broadcast %c5_i32 : i32 to vector<3x4xi32>
      %261 = arith.cmpi eq, %218, %260 : vector<3x4xi32>
      %262 = vector.extract_strided_slice %206 {offsets = [1, 2], sizes = [1, 1], strides = [1, 1]} : vector<4x3xf32> to vector<1x1xf32>
      %cst_138 = arith.constant 0.000000e+00 : f32
      %263 = vector.shape_cast %262 : vector<1x1xf32> to vector<1x1xf32>
      %264 = vector.broadcast %263 : vector<1x1xf32> to vector<3x4xf32>
      %265 = vector.broadcast %cst_138 : f32 to vector<3x4xf32>
      %266 = arith.select %261, %264, %265 : vector<3x4xi1>, vector<3x4xf32>
      %267 = arith.addf %259, %266 : vector<3x4xf32>
      %c6_i32 = arith.constant 6 : i32
      %268 = vector.broadcast %c6_i32 : i32 to vector<3x4xi32>
      %269 = arith.cmpi eq, %218, %268 : vector<3x4xi32>
      %270 = vector.extract_strided_slice %206 {offsets = [2, 0], sizes = [1, 1], strides = [1, 1]} : vector<4x3xf32> to vector<1x1xf32>
      %cst_139 = arith.constant 0.000000e+00 : f32
      %271 = vector.shape_cast %270 : vector<1x1xf32> to vector<1x1xf32>
      %272 = vector.broadcast %271 : vector<1x1xf32> to vector<3x4xf32>
      %273 = vector.broadcast %cst_139 : f32 to vector<3x4xf32>
      %274 = arith.select %269, %272, %273 : vector<3x4xi1>, vector<3x4xf32>
      %275 = arith.addf %267, %274 : vector<3x4xf32>
      %c7_i32 = arith.constant 7 : i32
      %276 = vector.broadcast %c7_i32 : i32 to vector<3x4xi32>
      %277 = arith.cmpi eq, %218, %276 : vector<3x4xi32>
      %278 = vector.extract_strided_slice %206 {offsets = [2, 1], sizes = [1, 1], strides = [1, 1]} : vector<4x3xf32> to vector<1x1xf32>
      %cst_140 = arith.constant 0.000000e+00 : f32
      %279 = vector.shape_cast %278 : vector<1x1xf32> to vector<1x1xf32>
      %280 = vector.broadcast %279 : vector<1x1xf32> to vector<3x4xf32>
      %281 = vector.broadcast %cst_140 : f32 to vector<3x4xf32>
      %282 = arith.select %277, %280, %281 : vector<3x4xi1>, vector<3x4xf32>
      %283 = arith.addf %275, %282 : vector<3x4xf32>
      %c8_i32 = arith.constant 8 : i32
      %284 = vector.broadcast %c8_i32 : i32 to vector<3x4xi32>
      %285 = arith.cmpi eq, %218, %284 : vector<3x4xi32>
      %286 = vector.extract_strided_slice %206 {offsets = [2, 2], sizes = [1, 1], strides = [1, 1]} : vector<4x3xf32> to vector<1x1xf32>
      %cst_141 = arith.constant 0.000000e+00 : f32
      %287 = vector.shape_cast %286 : vector<1x1xf32> to vector<1x1xf32>
      %288 = vector.broadcast %287 : vector<1x1xf32> to vector<3x4xf32>
      %289 = vector.broadcast %cst_141 : f32 to vector<3x4xf32>
      %290 = arith.select %285, %288, %289 : vector<3x4xi1>, vector<3x4xf32>
      %291 = arith.addf %283, %290 : vector<3x4xf32>
      %c9_i32 = arith.constant 9 : i32
      %292 = vector.broadcast %c9_i32 : i32 to vector<3x4xi32>
      %293 = arith.cmpi eq, %218, %292 : vector<3x4xi32>
      %294 = vector.extract_strided_slice %206 {offsets = [3, 0], sizes = [1, 1], strides = [1, 1]} : vector<4x3xf32> to vector<1x1xf32>
      %cst_142 = arith.constant 0.000000e+00 : f32
      %295 = vector.shape_cast %294 : vector<1x1xf32> to vector<1x1xf32>
      %296 = vector.broadcast %295 : vector<1x1xf32> to vector<3x4xf32>
      %297 = vector.broadcast %cst_142 : f32 to vector<3x4xf32>
      %298 = arith.select %293, %296, %297 : vector<3x4xi1>, vector<3x4xf32>
      %299 = arith.addf %291, %298 : vector<3x4xf32>
      %c10_i32 = arith.constant 10 : i32
      %300 = vector.broadcast %c10_i32 : i32 to vector<3x4xi32>
      %301 = arith.cmpi eq, %218, %300 : vector<3x4xi32>
      %302 = vector.extract_strided_slice %206 {offsets = [3, 1], sizes = [1, 1], strides = [1, 1]} : vector<4x3xf32> to vector<1x1xf32>
      %cst_143 = arith.constant 0.000000e+00 : f32
      %303 = vector.shape_cast %302 : vector<1x1xf32> to vector<1x1xf32>
      %304 = vector.broadcast %303 : vector<1x1xf32> to vector<3x4xf32>
      %305 = vector.broadcast %cst_143 : f32 to vector<3x4xf32>
      %306 = arith.select %301, %304, %305 : vector<3x4xi1>, vector<3x4xf32>
      %307 = arith.addf %299, %306 : vector<3x4xf32>
      %c11_i32 = arith.constant 11 : i32
      %308 = vector.broadcast %c11_i32 : i32 to vector<3x4xi32>
      %309 = arith.cmpi eq, %218, %308 : vector<3x4xi32>
      %310 = vector.extract_strided_slice %206 {offsets = [3, 2], sizes = [1, 1], strides = [1, 1]} : vector<4x3xf32> to vector<1x1xf32>
      %cst_144 = arith.constant 0.000000e+00 : f32
      %311 = vector.shape_cast %310 : vector<1x1xf32> to vector<1x1xf32>
      %312 = vector.broadcast %311 : vector<1x1xf32> to vector<3x4xf32>
      %313 = vector.broadcast %cst_144 : f32 to vector<3x4xf32>
      %314 = arith.select %309, %312, %313 : vector<3x4xi1>, vector<3x4xf32>
      %315 = arith.addf %307, %314 : vector<3x4xf32>
      %cst_145 = arith.constant dense<0.000000e+00> : vector<4x4xf32>
      %316 = tpu.matmul %199, %315, %cst_145 {dimension_numbers = #tpu.dot_dimension_numbers<[1], [0], [0], [1], [0, 0, 1, 1], [], []>} : vector<4x3xf32>, vector<3x4xf32>, vector<4x4xf32> -> vector<4x4xf32>
      %cst_146 = arith.constant dense<0xFF800000> : vector<4xf32>
      %317 = vector.multi_reduction <maximumf>, %316, %cst_146 [1] : vector<4x4xf32> to vector<4xf32>
      %318 = vector.shape_cast %317 : vector<4xf32> to vector<4x1xf32>
      %319 = vector.broadcast %318 : vector<4x1xf32> to vector<4x4xf32>
      %320 = arith.subf %316, %319 : vector<4x4xf32>
      %321 = math.exp %320 : vector<4x4xf32>
      %cst_147 = arith.constant dense<0.000000e+00> : vector<4xf32>
      %322 = vector.multi_reduction <add>, %321, %cst_147 [1] : vector<4x4xf32> to vector<4xf32>
      %323 = vector.shape_cast %322 : vector<4xf32> to vector<4x1xf32>
      %324 = vector.broadcast %323 : vector<4x1xf32> to vector<4x4xf32>
      %325 = arith.divf %321, %324 : vector<4x4xf32>
      %c2120 = arith.constant 2120 : index
      %c0_148 = arith.constant 0 : index
      %326 = vector.load %arg3[%c2120, %c0_148] : memref<2336x256xf32, #tpu.memory_space<vmem>>, vector<100x4xf32>
      %cst_149 = arith.constant dense<0.000000e+00> : vector<100x4xf32>
      %327 = tpu.matmul %326, %325, %cst_149 {dimension_numbers = #tpu.dot_dimension_numbers<[1], [0], [0], [1], [0, 0, 1, 1], [], []>} : vector<100x4xf32>, vector<4x4xf32>, vector<100x4xf32> -> vector<100x4xf32>
      %c2224 = arith.constant 2224 : index
      %c0_150 = arith.constant 0 : index
      %328 = vector.load %arg3[%c2224, %c0_150] : memref<2336x256xf32, #tpu.memory_space<vmem>>, vector<4x100xf32>
      %cst_151 = arith.constant dense<0.000000e+00> : vector<100x100xf32>
      %329 = tpu.matmul %327, %328, %cst_151 {dimension_numbers = #tpu.dot_dimension_numbers<[1], [0], [0], [1], [0, 0, 1, 1], [], []>} : vector<100x4xf32>, vector<4x100xf32>, vector<100x100xf32> -> vector<100x100xf32>
      %c2232 = arith.constant 2232 : index
      %c0_152 = arith.constant 0 : index
      %330 = vector.load %arg3[%c2232, %c0_152] : memref<2336x256xf32, #tpu.memory_space<vmem>>, vector<100x100xf32>
      %331 = arith.mulf %329, %330 : vector<100x100xf32>
      %cst_153 = arith.constant dense<0.000000e+00> : vector<4x100xf32>
      %332 = tpu.matmul %213, %331, %cst_153 {dimension_numbers = #tpu.dot_dimension_numbers<[1], [0], [0], [1], [0, 0, 1, 1], [], []>} : vector<4x100xf32>, vector<100x100xf32>, vector<4x100xf32> -> vector<4x100xf32>
      %c1424 = arith.constant 1424 : index
      %c0_154 = arith.constant 0 : index
      %333 = vector.load %arg3[%c1424, %c0_154] : memref<2336x256xf32, #tpu.memory_space<vmem>>, vector<100x128xf32>
      %cst_155 = arith.constant dense<0.000000e+00> : vector<4x128xf32>
      %334 = tpu.matmul %332, %333, %cst_155 {dimension_numbers = #tpu.dot_dimension_numbers<[1], [0], [0], [1], [0, 0, 1, 1], [], []>} : vector<4x100xf32>, vector<100x128xf32>, vector<4x128xf32> -> vector<4x128xf32>
      %c1528 = arith.constant 1528 : index
      %c0_156 = arith.constant 0 : index
      %335 = vector.load %arg3[%c1528, %c0_156] : memref<2336x256xf32, #tpu.memory_space<vmem>>, vector<1x128xf32>
      %336 = vector.broadcast %335 : vector<1x128xf32> to vector<4x128xf32>
      %337 = arith.addf %334, %336 : vector<4x128xf32>
      %cst_157 = arith.constant 0.000000e+00 : f32
      %338 = vector.broadcast %cst_157 : f32 to vector<4x128xf32>
      %339 = arith.maximumf %337, %338 : vector<4x128xf32>
      %c1536 = arith.constant 1536 : index
      %c0_158 = arith.constant 0 : index
      %340 = vector.load %arg3[%c1536, %c0_158] : memref<2336x256xf32, #tpu.memory_space<vmem>>, vector<128x64xf32>
      %cst_159 = arith.constant dense<0.000000e+00> : vector<4x64xf32>
      %341 = tpu.matmul %339, %340, %cst_159 {dimension_numbers = #tpu.dot_dimension_numbers<[1], [0], [0], [1], [0, 0, 1, 1], [], []>} : vector<4x128xf32>, vector<128x64xf32>, vector<4x64xf32> -> vector<4x64xf32>
      %c1664 = arith.constant 1664 : index
      %c0_160 = arith.constant 0 : index
      %342 = vector.load %arg3[%c1664, %c0_160] : memref<2336x256xf32, #tpu.memory_space<vmem>>, vector<1x64xf32>
      %343 = vector.broadcast %342 : vector<1x64xf32> to vector<4x64xf32>
      %344 = arith.addf %341, %343 : vector<4x64xf32>
      %cst_161 = arith.constant 0.000000e+00 : f32
      %345 = vector.broadcast %cst_161 : f32 to vector<4x64xf32>
      %346 = arith.maximumf %344, %345 : vector<4x64xf32>
      %c1672 = arith.constant 1672 : index
      %c0_162 = arith.constant 0 : index
      %347 = vector.load %arg3[%c1672, %c0_162] : memref<2336x256xf32, #tpu.memory_space<vmem>>, vector<64x32xf32>
      %cst_163 = arith.constant dense<0.000000e+00> : vector<4x32xf32>
      %348 = tpu.matmul %346, %347, %cst_163 {dimension_numbers = #tpu.dot_dimension_numbers<[1], [0], [0], [1], [0, 0, 1, 1], [], []>} : vector<4x64xf32>, vector<64x32xf32>, vector<4x32xf32> -> vector<4x32xf32>
      %c1736 = arith.constant 1736 : index
      %c0_164 = arith.constant 0 : index
      %349 = vector.load %arg3[%c1736, %c0_164] : memref<2336x256xf32, #tpu.memory_space<vmem>>, vector<1x32xf32>
      %350 = vector.broadcast %349 : vector<1x32xf32> to vector<4x32xf32>
      %351 = arith.addf %348, %350 : vector<4x32xf32>
      %cst_165 = arith.constant 0.000000e+00 : f32
      %352 = vector.broadcast %cst_165 : f32 to vector<4x32xf32>
      %353 = arith.maximumf %351, %352 : vector<4x32xf32>
      %c1744 = arith.constant 1744 : index
      %c0_166 = arith.constant 0 : index
      %354 = vector.load %arg3[%c1744, %c0_166] : memref<2336x256xf32, #tpu.memory_space<vmem>>, vector<32x30xf32>
      %cst_167 = arith.constant dense<0.000000e+00> : vector<4x30xf32>
      %355 = tpu.matmul %353, %354, %cst_167 {dimension_numbers = #tpu.dot_dimension_numbers<[1], [0], [0], [1], [0, 0, 1, 1], [], []>} : vector<4x32xf32>, vector<32x30xf32>, vector<4x30xf32> -> vector<4x30xf32>
      %c1776 = arith.constant 1776 : index
      %c0_168 = arith.constant 0 : index
      %356 = vector.load %arg3[%c1776, %c0_168] : memref<2336x256xf32, #tpu.memory_space<vmem>>, vector<1x30xf32>
      %357 = vector.broadcast %356 : vector<1x30xf32> to vector<4x30xf32>
      %358 = arith.addf %355, %357 : vector<4x30xf32>
      %c1784 = arith.constant 1784 : index
      %c0_169 = arith.constant 0 : index
      %359 = vector.load %arg3[%c1784, %c0_169] : memref<2336x256xf32, #tpu.memory_space<vmem>>, vector<30x128xf32>
      %cst_170 = arith.constant dense<0.000000e+00> : vector<4x128xf32>
      %360 = tpu.matmul %358, %359, %cst_170 {dimension_numbers = #tpu.dot_dimension_numbers<[1], [0], [0], [1], [0, 0, 1, 1], [], []>} : vector<4x30xf32>, vector<30x128xf32>, vector<4x128xf32> -> vector<4x128xf32>
      %c1816 = arith.constant 1816 : index
      %c0_171 = arith.constant 0 : index
      %361 = vector.load %arg3[%c1816, %c0_171] : memref<2336x256xf32, #tpu.memory_space<vmem>>, vector<1x128xf32>
      %362 = vector.broadcast %361 : vector<1x128xf32> to vector<4x128xf32>
      %363 = arith.addf %360, %362 : vector<4x128xf32>
      %c1824 = arith.constant 1824 : index
      %c0_172 = arith.constant 0 : index
      %364 = vector.load %arg3[%c1824, %c0_172] : memref<2336x256xf32, #tpu.memory_space<vmem>>, vector<1x128xf32>
      %c1832 = arith.constant 1832 : index
      %c0_173 = arith.constant 0 : index
      %365 = vector.load %arg3[%c1832, %c0_173] : memref<2336x256xf32, #tpu.memory_space<vmem>>, vector<1x128xf32>
      %cst_174 = arith.constant dense<0.000000e+00> : vector<128xf32>
      %366 = vector.multi_reduction <add>, %363, %cst_174 [0] : vector<4x128xf32> to vector<128xf32>
      %367 = vector.shape_cast %366 : vector<128xf32> to vector<1x128xf32>
      %cst_175 = arith.constant 4.000000e+00 : f32
      %368 = vector.broadcast %cst_175 : f32 to vector<1x128xf32>
      %369 = arith.divf %367, %368 : vector<1x128xf32>
      %370 = vector.broadcast %369 : vector<1x128xf32> to vector<4x128xf32>
      %371 = arith.subf %363, %370 : vector<4x128xf32>
      %372 = arith.mulf %371, %371 : vector<4x128xf32>
      %cst_176 = arith.constant dense<0.000000e+00> : vector<128xf32>
      %373 = vector.multi_reduction <add>, %372, %cst_176 [0] : vector<4x128xf32> to vector<128xf32>
      %374 = vector.shape_cast %373 : vector<128xf32> to vector<1x128xf32>
      %cst_177 = arith.constant 4.000000e+00 : f32
      %375 = vector.broadcast %cst_177 : f32 to vector<1x128xf32>
      %376 = arith.divf %374, %375 : vector<1x128xf32>
      %377 = vector.broadcast %369 : vector<1x128xf32> to vector<4x128xf32>
      %378 = arith.subf %363, %377 : vector<4x128xf32>
      %cst_178 = arith.constant 9.99999974E-6 : f32
      %379 = vector.broadcast %cst_178 : f32 to vector<1x128xf32>
      %380 = arith.addf %376, %379 : vector<1x128xf32>
      %381 = math.rsqrt %380 : vector<1x128xf32>
      %382 = vector.broadcast %381 : vector<1x128xf32> to vector<4x128xf32>
      %383 = arith.mulf %378, %382 : vector<4x128xf32>
      %384 = vector.broadcast %364 : vector<1x128xf32> to vector<4x128xf32>
      %385 = arith.mulf %383, %384 : vector<4x128xf32>
      %386 = vector.broadcast %365 : vector<1x128xf32> to vector<4x128xf32>
      %387 = arith.addf %385, %386 : vector<4x128xf32>
      %cst_179 = arith.constant 0.000000e+00 : f32
      %388 = vector.broadcast %cst_179 : f32 to vector<4x128xf32>
      %389 = arith.cmpf ogt, %387, %388 : vector<4x128xf32>
      %cst_180 = arith.constant 1.000000e-01 : f32
      %390 = vector.broadcast %cst_180 : f32 to vector<4x128xf32>
      %391 = arith.mulf %390, %387 : vector<4x128xf32>
      %392 = arith.select %389, %387, %391 : vector<4x128xi1>, vector<4x128xf32>
      %c1840 = arith.constant 1840 : index
      %c0_181 = arith.constant 0 : index
      %393 = vector.load %arg3[%c1840, %c0_181] : memref<2336x256xf32, #tpu.memory_space<vmem>>, vector<128x64xf32>
      %cst_182 = arith.constant dense<0.000000e+00> : vector<4x64xf32>
      %394 = tpu.matmul %392, %393, %cst_182 {dimension_numbers = #tpu.dot_dimension_numbers<[1], [0], [0], [1], [0, 0, 1, 1], [], []>} : vector<4x128xf32>, vector<128x64xf32>, vector<4x64xf32> -> vector<4x64xf32>
      %c1968 = arith.constant 1968 : index
      %c0_183 = arith.constant 0 : index
      %395 = vector.load %arg3[%c1968, %c0_183] : memref<2336x256xf32, #tpu.memory_space<vmem>>, vector<1x64xf32>
      %396 = vector.broadcast %395 : vector<1x64xf32> to vector<4x64xf32>
      %397 = arith.addf %394, %396 : vector<4x64xf32>
      %c1976 = arith.constant 1976 : index
      %c0_184 = arith.constant 0 : index
      %398 = vector.load %arg3[%c1976, %c0_184] : memref<2336x256xf32, #tpu.memory_space<vmem>>, vector<1x64xf32>
      %c1984 = arith.constant 1984 : index
      %c0_185 = arith.constant 0 : index
      %399 = vector.load %arg3[%c1984, %c0_185] : memref<2336x256xf32, #tpu.memory_space<vmem>>, vector<1x64xf32>
      %cst_186 = arith.constant dense<0.000000e+00> : vector<64xf32>
      %400 = vector.multi_reduction <add>, %397, %cst_186 [0] : vector<4x64xf32> to vector<64xf32>
      %401 = vector.shape_cast %400 : vector<64xf32> to vector<1x64xf32>
      %cst_187 = arith.constant 4.000000e+00 : f32
      %402 = vector.broadcast %cst_187 : f32 to vector<1x64xf32>
      %403 = arith.divf %401, %402 : vector<1x64xf32>
      %404 = vector.broadcast %403 : vector<1x64xf32> to vector<4x64xf32>
      %405 = arith.subf %397, %404 : vector<4x64xf32>
      %406 = arith.mulf %405, %405 : vector<4x64xf32>
      %cst_188 = arith.constant dense<0.000000e+00> : vector<64xf32>
      %407 = vector.multi_reduction <add>, %406, %cst_188 [0] : vector<4x64xf32> to vector<64xf32>
      %408 = vector.shape_cast %407 : vector<64xf32> to vector<1x64xf32>
      %cst_189 = arith.constant 4.000000e+00 : f32
      %409 = vector.broadcast %cst_189 : f32 to vector<1x64xf32>
      %410 = arith.divf %408, %409 : vector<1x64xf32>
      %411 = vector.broadcast %403 : vector<1x64xf32> to vector<4x64xf32>
      %412 = arith.subf %397, %411 : vector<4x64xf32>
      %cst_190 = arith.constant 9.99999974E-6 : f32
      %413 = vector.broadcast %cst_190 : f32 to vector<1x64xf32>
      %414 = arith.addf %410, %413 : vector<1x64xf32>
      %415 = math.rsqrt %414 : vector<1x64xf32>
      %416 = vector.broadcast %415 : vector<1x64xf32> to vector<4x64xf32>
      %417 = arith.mulf %412, %416 : vector<4x64xf32>
      %418 = vector.broadcast %398 : vector<1x64xf32> to vector<4x64xf32>
      %419 = arith.mulf %417, %418 : vector<4x64xf32>
      %420 = vector.broadcast %399 : vector<1x64xf32> to vector<4x64xf32>
      %421 = arith.addf %419, %420 : vector<4x64xf32>
      %cst_191 = arith.constant 0.000000e+00 : f32
      %422 = vector.broadcast %cst_191 : f32 to vector<4x64xf32>
      %423 = arith.cmpf ogt, %421, %422 : vector<4x64xf32>
      %cst_192 = arith.constant 1.000000e-01 : f32
      %424 = vector.broadcast %cst_192 : f32 to vector<4x64xf32>
      %425 = arith.mulf %424, %421 : vector<4x64xf32>
      %426 = arith.select %423, %421, %425 : vector<4x64xi1>, vector<4x64xf32>
      %c1992 = arith.constant 1992 : index
      %c0_193 = arith.constant 0 : index
      %427 = vector.load %arg3[%c1992, %c0_193] : memref<2336x256xf32, #tpu.memory_space<vmem>>, vector<64x31xf32>
      %cst_194 = arith.constant dense<0.000000e+00> : vector<4x31xf32>
      %428 = tpu.matmul %426, %427, %cst_194 {dimension_numbers = #tpu.dot_dimension_numbers<[1], [0], [0], [1], [0, 0, 1, 1], [], []>} : vector<4x64xf32>, vector<64x31xf32>, vector<4x31xf32> -> vector<4x31xf32>
      %c2056 = arith.constant 2056 : index
      %c0_195 = arith.constant 0 : index
      %429 = vector.load %arg3[%c2056, %c0_195] : memref<2336x256xf32, #tpu.memory_space<vmem>>, vector<1x31xf32>
      %430 = vector.broadcast %429 : vector<1x31xf32> to vector<4x31xf32>
      %431 = arith.addf %428, %430 : vector<4x31xf32>
      %c2064 = arith.constant 2064 : index
      %c0_196 = arith.constant 0 : index
      %432 = vector.load %arg3[%c2064, %c0_196] : memref<2336x256xf32, #tpu.memory_space<vmem>>, vector<1x31xf32>
      %c2072 = arith.constant 2072 : index
      %c0_197 = arith.constant 0 : index
      %433 = vector.load %arg3[%c2072, %c0_197] : memref<2336x256xf32, #tpu.memory_space<vmem>>, vector<1x31xf32>
      %cst_198 = arith.constant dense<0.000000e+00> : vector<31xf32>
      %434 = vector.multi_reduction <add>, %431, %cst_198 [0] : vector<4x31xf32> to vector<31xf32>
      %435 = vector.shape_cast %434 : vector<31xf32> to vector<1x31xf32>
      %cst_199 = arith.constant 4.000000e+00 : f32
      %436 = vector.broadcast %cst_199 : f32 to vector<1x31xf32>
      %437 = arith.divf %435, %436 : vector<1x31xf32>
      %438 = vector.broadcast %437 : vector<1x31xf32> to vector<4x31xf32>
      %439 = arith.subf %431, %438 : vector<4x31xf32>
      %440 = arith.mulf %439, %439 : vector<4x31xf32>
      %cst_200 = arith.constant dense<0.000000e+00> : vector<31xf32>
      %441 = vector.multi_reduction <add>, %440, %cst_200 [0] : vector<4x31xf32> to vector<31xf32>
      %442 = vector.shape_cast %441 : vector<31xf32> to vector<1x31xf32>
      %cst_201 = arith.constant 4.000000e+00 : f32
      %443 = vector.broadcast %cst_201 : f32 to vector<1x31xf32>
      %444 = arith.divf %442, %443 : vector<1x31xf32>
      %445 = vector.broadcast %437 : vector<1x31xf32> to vector<4x31xf32>
      %446 = arith.subf %431, %445 : vector<4x31xf32>
      %cst_202 = arith.constant 9.99999974E-6 : f32
      %447 = vector.broadcast %cst_202 : f32 to vector<1x31xf32>
      %448 = arith.addf %444, %447 : vector<1x31xf32>
      %449 = math.rsqrt %448 : vector<1x31xf32>
      %450 = vector.broadcast %449 : vector<1x31xf32> to vector<4x31xf32>
      %451 = arith.mulf %446, %450 : vector<4x31xf32>
      %452 = vector.broadcast %432 : vector<1x31xf32> to vector<4x31xf32>
      %453 = arith.mulf %451, %452 : vector<4x31xf32>
      %454 = vector.broadcast %433 : vector<1x31xf32> to vector<4x31xf32>
      %455 = arith.addf %453, %454 : vector<4x31xf32>
      %cst_203 = arith.constant 0.000000e+00 : f32
      %456 = vector.broadcast %cst_203 : f32 to vector<4x31xf32>
      %457 = arith.cmpf ogt, %455, %456 : vector<4x31xf32>
      %cst_204 = arith.constant 1.000000e-01 : f32
      %458 = vector.broadcast %cst_204 : f32 to vector<4x31xf32>
      %459 = arith.mulf %458, %455 : vector<4x31xf32>
      %460 = arith.select %457, %455, %459 : vector<4x31xi1>, vector<4x31xf32>
      %c2080 = arith.constant 2080 : index
      %c0_205 = arith.constant 0 : index
      %461 = vector.load %arg3[%c2080, %c0_205] : memref<2336x256xf32, #tpu.memory_space<vmem>>, vector<31x20xf32>
      %cst_206 = arith.constant dense<0.000000e+00> : vector<4x20xf32>
      %462 = tpu.matmul %460, %461, %cst_206 {dimension_numbers = #tpu.dot_dimension_numbers<[1], [0], [0], [1], [0, 0, 1, 1], [], []>} : vector<4x31xf32>, vector<31x20xf32>, vector<4x20xf32> -> vector<4x20xf32>
      %c2112 = arith.constant 2112 : index
      %c0_207 = arith.constant 0 : index
      %463 = vector.load %arg3[%c2112, %c0_207] : memref<2336x256xf32, #tpu.memory_space<vmem>>, vector<1x20xf32>
      %464 = vector.broadcast %463 : vector<1x20xf32> to vector<4x20xf32>
      %465 = arith.addf %462, %464 : vector<4x20xf32>
      %466 = arith.negf %465 : vector<4x20xf32>
      %467 = math.exp %466 : vector<4x20xf32>
      %cst_208 = arith.constant 1.000000e+00 : f32
      %468 = vector.broadcast %cst_208 : f32 to vector<4x20xf32>
      %469 = arith.addf %468, %467 : vector<4x20xf32>
      %470 = arith.divf %468, %469 : vector<4x20xf32>
      %c0_209 = arith.constant 0 : index
      %c0_210 = arith.constant 0 : index
      %471 = vector.load %arg6[%c0_209, %c0_210] : memref<4x20xf32, #tpu.memory_space<vmem>>, vector<4x20xf32>
      tpu.vector_store %arg6[%c0_209, %c0_210], %470 {strides = array<i32>} : memref<4x20xf32, #tpu.memory_space<vmem>>, vector<4x20xf32>,
    } else {
    }
    return
  }
  func.func @transform_0(%arg0: i32) -> (i32, i32) {
    %c0_i32 = arith.constant 0 : i32
    %c0_i32_0 = arith.constant 0 : i32
    return %c0_i32, %arg0 : i32, i32
  }
  func.func @transform_1(%arg0: i32) -> (i32, i32) {
    %c0_i32 = arith.constant 0 : i32
    %c0_i32_0 = arith.constant 0 : i32
    return %arg0, %c0_i32 : i32, i32
  }
  func.func @transform_2(%arg0: i32) -> (i32, i32) {
    %c0_i32 = arith.constant 0 : i32
    %c0_i32_0 = arith.constant 0 : i32
    %c0_i32_1 = arith.constant 0 : i32
    return %c0_i32, %c0_i32_0 : i32, i32
  }
  func.func @transform_3(%arg0: i32) -> (i32, i32) {
    %c0_i32 = arith.constant 0 : i32
    %c0_i32_0 = arith.constant 0 : i32
    %c0_i32_1 = arith.constant 0 : i32
    return %c0_i32, %c0_i32_0 : i32, i32
  }
  func.func @transform_4(%arg0: i32) -> (i32, i32) {
    %c0_i32 = arith.constant 0 : i32
    %c0_i32_0 = arith.constant 0 : i32
    %c0_i32_1 = arith.constant 0 : i32
    return %c0_i32, %c0_i32_0 : i32, i32
  }
  func.func @transform_5(%arg0: i32) -> (i32, i32) {
    %c0_i32 = arith.constant 0 : i32
    %c0_i32_0 = arith.constant 0 : i32
    %c0_i32_1 = arith.constant 0 : i32
    return %c0_i32, %c0_i32_0 : i32, i32
  }
}

</mosaic_0001>

<llo_original>
// kernel: discriminator_forward.1
$region0: #{discriminator_forward.1}
  #allocation0 [shape = 'u32[]', space=smem, size = 0x4, offset = 0x4, fixed_abs, tag = 'smem constant byte address 0x4 - core index']
  #allocation1 [shape = 'u32[144,128]{1,0:T(1,128)}', space=vmem, size = 0x12000, scoped, tag = 'internal scratch']
  #allocation2 [shape = 'f32[4,256]{1,0:T(4,128)}', space=vmem, size = 0x1000, scoped, tag = 'scratch operand']
  %s0 = inlined_call_operand.vmem [shape: bf16[4,65536], index: 0, kind: input, shape index: {}]
  %s1 = inlined_call_operand.hbm [shape: s8[65536,256], index: 1, kind: input, shape index: {}]
  %s2 = inlined_call_operand.hbm [shape: f32[2336,256], index: 2, kind: input, shape index: {}]
  %s3 = inlined_call_operand.hbm [shape: f32[31,512], index: 3, kind: input, shape index: {}]
  %s4 = inlined_call_operand.hbm [shape: f32[1,512], index: 4, kind: input, shape index: {}]
  %s5 = inlined_call_operand.hbm [shape: f32[4,20], index: 5, kind: output, shape index: {}]
  %s6 = sld [smem:[#allocation0]]
  $region77: #{discriminator_forward.1} parent=0
    _
  %s8 = ssub.s32 1, %s6
  %s9 = scalar_select 0, %s8, %s6
  $region1: #{discriminator_forward.1} parent=0
    #allocation3 [shape = 'u8[8388608]{0}', space=vmem, size = 0x800000, scoped, tag = 'input window, operand 1']
    #allocation4 [shape = 's32[2]{0}', space=sflag, size = 0x8, scoped, tag = 'scoped memory for discriminator_forward.1']
    #allocation5 [shape = 's32[2]{0}', space=sflag, size = 0x8, scoped, tag = 'scoped memory for discriminator_forward.1']
    #allocation6 [shape = 'u8[2392064]{0}', space=vmem, size = 0x248000, scoped, tag = 'input window, operand 2, single buffered']
    #allocation7 [shape = 's32[1]{0}', space=sflag, size = 0x4, scoped, tag = 'scoped memory for discriminator_forward.1']
    #allocation8 [shape = 'u8[65536]{0}', space=vmem, size = 0x10000, scoped, tag = 'input window, operand 3, single buffered']
    #allocation9 [shape = 'u8[2048]{0}', space=vmem, size = 0x800, scoped, tag = 'input window, operand 4, single buffered']
    #allocation10 [shape = 's32[1]{0}', space=sflag, size = 0x4, scoped, tag = 'scoped memory for discriminator_forward.1']
    #allocation11 [shape = 'u8[2048]{0}', space=vmem, size = 0x800, scoped, tag = 'output window, operand 0, single buffered']
    %10 = vsyncpa [#allocation4], 0
    %s11 = scalar_lea.sflag [#allocation4], 1
    %12 = vsyncpa %s11, 0
    %13 = vsyncpa [#allocation7], 0
    %14 = vsyncpa [#allocation10], 0
    %15 = vsyncpa [#allocation5], 0
    loop: start=0, step=1, limit=6
    $region2: #{discriminator_forward.1} parent=1 // loop_pre_header
      _
    $region3: #{discriminator_forward.1} parent=1 // loop_header
      %s17 = sphi 0, %s21
      %p18 = scmp.ge.s32.totalorder %s17, 6
      %s27 = sphi 0, %s29
      %s30 = sphi 0, %s27
      %s31 = sphi 0, %s30
      %s47 = sphi 0, %s31
      %s53 = sphi 0, %s55
      %s56 = sphi 0, %s53
      %s57 = sphi 0, %s56
      %s73 = sphi 0, %s57
      %s77 = sphi 0, %s77
      %s79 = sphi 0, %s77
      %s80 = sphi 0, %s79
      %s94 = sphi 0, %s80
      %s98 = sphi 0, %s98
      %s100 = sphi 0, %s98
      %s101 = sphi 0, %s100
      %s115 = sphi 0, %s101
      %s119 = sphi 0, %s119
      %s121 = sphi 0, %s119
      %s122 = sphi 0, %s121
      %s136 = sphi 0, %s122
      %s140 = sphi 0, %s140
      %s142 = sphi 0, %s140
      %s143 = sphi 0, %s142
      %s157 = sphi 0, %s143
    $region4: #{discriminator_forward.1} parent=1 // loop_header_branch
      %20 = sbr.rel (%p18) target = $region8
    $region5: #{discriminator_forward.1} parent=1 // loop_body
      %s22 = ssub.s32 %s17, 1
      %s23 = ssub.s32 %s17, 2
      %s24 = sadd.s32 %s17, 1
      %s25 = ssub.s32 %s17, %s24
      %p26 = scmp.eq.s32.totalorder %s25, 0
      %s28 = sadd.s32 %s27, 1
      %s29 = scalar_select %p26, %s27, %s28
      %p32 = pneg %p26
      %p33 = scmp.eq.s32.totalorder %s17, 3
      %p34 = por %p32, %p33
      %p35 = scmp.ne.s32.totalorder %s27, %s30
      %p36 = scmp.eq.s32.totalorder %s17, 0
      %p37 = por %p35, %p36
      %p38 = scmp.ne.s32.totalorder %s27, %s30
      %p39 = scmp.eq.s32.totalorder %s22, 3
      %p40 = por %p38, %p39
      %p41 = scmp.ne.s32.totalorder %s30, %s31
      %p42 = scmp.eq.s32.totalorder %s22, 0
      %p43 = por %p41, %p42
      %p44 = scmp.ne.s32.totalorder %s30, %s31
      %p45 = scmp.eq.s32.totalorder %s23, 3
      %p46 = por %p44, %p45
      %p48 = scmp.ne.s32.totalorder %s31, %s47
      %p49 = scmp.eq.s32.totalorder %s23, 0
      %p50 = por %p48, %p49
      %s51 = ssub.s32 %s17, %s24
      %p52 = scmp.eq.s32.totalorder %s51, 0
      %s54 = sadd.s32 %s53, 1
      %s55 = scalar_select %p52, %s53, %s54
      %p58 = pneg %p52
      %p59 = scmp.eq.s32.totalorder %s17, 3
      %p60 = por %p58, %p59
      %p61 = scmp.ne.s32.totalorder %s53, %s56
      %p62 = scmp.eq.s32.totalorder %s17, 0
      %p63 = por %p61, %p62
      %p64 = scmp.ne.s32.totalorder %s53, %s56
      %p65 = scmp.eq.s32.totalorder %s22, 3
      %p66 = por %p64, %p65
      %p67 = scmp.ne.s32.totalorder %s56, %s57
      %p68 = scmp.eq.s32.totalorder %s22, 0
      %p69 = por %p67, %p68
      %p70 = scmp.ne.s32.totalorder %s56, %s57
      %p71 = scmp.eq.s32.totalorder %s23, 3
      %p72 = por %p70, %p71
      %p74 = scmp.ne.s32.totalorder %s57, %s73
      %p75 = scmp.eq.s32.totalorder %s23, 0
      %p76 = por %p74, %p75
      %s78 = sadd.s32 %s77, 1
      %p81 = scmp.eq.s32.totalorder %s17, 3
      %p82 = scmp.ne.s32.totalorder %s77, %s79
      %p83 = scmp.eq.s32.totalorder %s17, 0
      %p84 = por %p82, %p83
      %p85 = scmp.ne.s32.totalorder %s77, %s79
      %p86 = scmp.eq.s32.totalorder %s22, 3
      %p87 = por %p85, %p86
      %p88 = scmp.ne.s32.totalorder %s79, %s80
      %p89 = scmp.eq.s32.totalorder %s22, 0
      %p90 = por %p88, %p89
      %p91 = scmp.ne.s32.totalorder %s79, %s80
      %p92 = scmp.eq.s32.totalorder %s23, 3
      %p93 = por %p91, %p92
      %p95 = scmp.ne.s32.totalorder %s80, %s94
      %p96 = scmp.eq.s32.totalorder %s23, 0
      %p97 = por %p95, %p96
      %s99 = sadd.s32 %s98, 1
      %p102 = scmp.eq.s32.totalorder %s17, 3
      %p103 = scmp.ne.s32.totalorder %s98, %s100
      %p104 = scmp.eq.s32.totalorder %s17, 0
      %p105 = por %p103, %p104
      %p106 = scmp.ne.s32.totalorder %s98, %s100
      %p107 = scmp.eq.s32.totalorder %s22, 3
      %p108 = por %p106, %p107
      %p109 = scmp.ne.s32.totalorder %s100, %s101
      %p110 = scmp.eq.s32.totalorder %s22, 0
      %p111 = por %p109, %p110
      %p112 = scmp.ne.s32.totalorder %s100, %s101
      %p113 = scmp.eq.s32.totalorder %s23, 3
      %p114 = por %p112, %p113
      %p116 = scmp.ne.s32.totalorder %s101, %s115
      %p117 = scmp.eq.s32.totalorder %s23, 0
      %p118 = por %p116, %p117
      %s120 = sadd.s32 %s119, 1
      %p123 = scmp.eq.s32.totalorder %s17, 3
      %p124 = scmp.ne.s32.totalorder %s119, %s121
      %p125 = scmp.eq.s32.totalorder %s17, 0
      %p126 = por %p124, %p125
      %p127 = scmp.ne.s32.totalorder %s119, %s121
      %p128 = scmp.eq.s32.totalorder %s22, 3
      %p129 = por %p127, %p128
      %p130 = scmp.ne.s32.totalorder %s121, %s122
      %p131 = scmp.eq.s32.totalorder %s22, 0
      %p132 = por %p130, %p131
      %p133 = scmp.ne.s32.totalorder %s121, %s122
      %p134 = scmp.eq.s32.totalorder %s23, 3
      %p135 = por %p133, %p134
      %p137 = scmp.ne.s32.totalorder %s122, %s136
      %p138 = scmp.eq.s32.totalorder %s23, 0
      %p139 = por %p137, %p138
      %s141 = sadd.s32 %s140, 1
      %p144 = scmp.eq.s32.totalorder %s17, 3
      %p145 = scmp.ne.s32.totalorder %s140, %s142
      %p146 = scmp.eq.s32.totalorder %s17, 0
      %p147 = por %p145, %p146
      %p148 = scmp.ne.s32.totalorder %s140, %s142
      %p149 = scmp.eq.s32.totalorder %s22, 3
      %p150 = por %p148, %p149
      %p151 = scmp.ne.s32.totalorder %s142, %s143
      %p152 = scmp.eq.s32.totalorder %s22, 0
      %p153 = por %p151, %p152
      %p154 = scmp.ne.s32.totalorder %s142, %s143
      %p155 = scmp.eq.s32.totalorder %s23, 3
      %p156 = por %p154, %p155
      %p158 = scmp.ne.s32.totalorder %s143, %s157
      %p159 = scmp.eq.s32.totalorder %s23, 0
      %p160 = por %p158, %p159
      %p161 = scmp.le.s32.totalorder 1, %s17
      %p162 = scmp.lt.s32.totalorder %s17, 5
      %p163 = pnand %p161, %p162
      %p164 = pneg %p163
      // Predicated region
      $region9: #{discriminator_forward.1} parent=5 // pred_check
        _
      $region10: #{discriminator_forward.1} parent=5 // pred_check_branch
        %166 = sbr.rel (%p163) target = $region12
      $region11: #{discriminator_forward.1} parent=5 // pred_region
        %s167 = ssub.s32 %s17, 1
        // Predicated region
        $region13: #{discriminator_forward.1} parent=11 // pred_check
          %p168 = pneg %p90
        $region14: #{discriminator_forward.1} parent=11 // pred_check_branch
          %170 = sbr.rel (%p168) target = $region16
        $region15: #{discriminator_forward.1} parent=11 // pred_region
          %s172 = ssub.s32 74752, 74752
          %173 = vsyncadd [#allocation7], %s172
          %s174 = sshll.u32 [#allocation6], 4
          %s175 = int_to_ptr.vmem [resolvable:$true] %s174
          %180 = dma.hbm_to_vmem [thread:$0]  %s2, 74752, %s175, [#allocation7], 256, 256, 16
        $region16: #{discriminator_forward.1} parent=11 // pred_fallthru
          _
        // Predicated region
        $region17: #{discriminator_forward.1} parent=11 // pred_check
          %p181 = pneg %p111
        $region18: #{discriminator_forward.1} parent=11 // pred_check_branch
          %183 = sbr.rel (%p181) target = $region20
        $region19: #{discriminator_forward.1} parent=11 // pred_region
          %s185 = ssub.s32 2048, 2048
          %186 = vsyncadd [#allocation7], %s185
          %s187 = sshll.u32 [#allocation8], 4
          %s188 = int_to_ptr.vmem [resolvable:$true] %s187
          %193 = dma.hbm_to_vmem [thread:$0]  %s3, 2048, %s188, [#allocation7], 512, 512, 32
        $region20: #{discriminator_forward.1} parent=11 // pred_fallthru
          _
        // Predicated region
        $region21: #{discriminator_forward.1} parent=11 // pred_check
          %p194 = pneg %p132
        $region22: #{discriminator_forward.1} parent=11 // pred_check_branch
          %196 = sbr.rel (%p194) target = $region24
        $region23: #{discriminator_forward.1} parent=11 // pred_region
          %s198 = ssub.s32 64, 64
          %199 = vsyncadd [#allocation10], %s198
          %s201 = sshll.u32 [#allocation9], 4
          %s202 = int_to_ptr.vmem [resolvable:$true] %s201
          %204 = dma.hbm_to_vmem [thread:$0]  %s4, 64, %s202, [#allocation10]
        $region24: #{discriminator_forward.1} parent=11 // pred_fallthru
          _
      $region12: #{discriminator_forward.1} parent=5 // pred_fallthru
        _
      %p205 = scmp.lt.s32.totalorder %s17, 4
      // Predicated region
      $region25: #{discriminator_forward.1} parent=5 // pred_check
        %p206 = pneg %p205
      $region26: #{discriminator_forward.1} parent=5 // pred_check_branch
        %208 = sbr.rel (%p206) target = $region28
      $region27: #{discriminator_forward.1} parent=5 // pred_region
        // Predicated region
        $region29: #{discriminator_forward.1} parent=27 // pred_check
          %p209 = pneg %p37
        $region30: #{discriminator_forward.1} parent=27 // pred_check_branch
          %211 = sbr.rel (%p209) target = $region32
        $region31: #{discriminator_forward.1} parent=27 // pred_region
          %s212 = smul.u32 128, %s17
          %p213 = scmp.lt.s32.totalorder %s212, 511
          %s214 = scalar_select %p213, %s212, 511
          %s215 = smul.addr %s214, 2
          %s216 = scalar_lea.vmem %s0, %s215
          %s217 = smul.u32 128, %s17
        $region32: #{discriminator_forward.1} parent=27 // pred_fallthru
          _
        // Predicated region
        $region33: #{discriminator_forward.1} parent=27 // pred_check
          %p218 = pneg %p63
        $region34: #{discriminator_forward.1} parent=27 // pred_check_branch
          %220 = sbr.rel (%p218) target = $region36
        $region35: #{discriminator_forward.1} parent=27 // pred_region
          %s221 = sand.u32 %s53, 1
          %s222 = scalar_lea.sflag [#allocation4], %s221
          %s223 = sand.u32 %s53, 1
          %s224 = smul.addr %s223, 8192
          %s225 = scalar_lea.vmem [#allocation3], %s224
          %s226 = smul.u32 512, %s17
          %s228 = ssub.s32 131072, 131072
          %229 = vsyncadd %s222, %s228
          %s230 = smul.addr %s226, 2
          %s231 = smul.addr %s230, 128
          %s232 = scalar_lea.hbm %s1, %s231
          %s233 = sshll.u32 %s225, 4
          %s234 = int_to_ptr.vmem [resolvable:$true] %s233
          %239 = dma.hbm_to_vmem [thread:$0]  %s232, 131072, %s234, %s222, 256, 256, 16
        $region36: #{discriminator_forward.1} parent=27 // pred_fallthru
          _
      $region28: #{discriminator_forward.1} parent=5 // pred_fallthru
        _
      %p240 = scmp.le.s32.totalorder 1, %s17
      %p241 = scmp.lt.s32.totalorder %s17, 5
      %p242 = pnand %p240, %p241
      %p243 = pneg %p242
      // Predicated region
      $region37: #{discriminator_forward.1} parent=5 // pred_check
        _
      $region38: #{discriminator_forward.1} parent=5 // pred_check_branch
        %245 = sbr.rel (%p242) target = $region40
      $region39: #{discriminator_forward.1} parent=5 // pred_region
        %s246 = ssub.s32 %s17, 1
        %s247 = sand.u32 %s56, 1
        %s248 = scalar_lea.sflag [#allocation4], %s247
        %s249 = sand.u32 %s56, 1
        %s250 = smul.addr %s249, 8192
        %s251 = scalar_lea.vmem [#allocation3], %s250
        // Predicated region
        $region41: #{discriminator_forward.1} parent=39 // pred_check
          %p252 = pneg %p69
        $region42: #{discriminator_forward.1} parent=39 // pred_check_branch
          %254 = sbr.rel (%p252) target = $region44
        $region43: #{discriminator_forward.1} parent=39 // pred_region
          %255 = dma.done %s248, 131072
        $region44: #{discriminator_forward.1} parent=39 // pred_fallthru
          _
        // Predicated region
        $region45: #{discriminator_forward.1} parent=39 // pred_check
          %p256 = pneg %p90
        $region46: #{discriminator_forward.1} parent=39 // pred_check_branch
          %258 = sbr.rel (%p256) target = $region48
        $region47: #{discriminator_forward.1} parent=39 // pred_region
          %259 = dma.done [#allocation7], 74752
        $region48: #{discriminator_forward.1} parent=39 // pred_fallthru
          _
        // Predicated region
        $region49: #{discriminator_forward.1} parent=39 // pred_check
          %p260 = pneg %p111
        $region50: #{discriminator_forward.1} parent=39 // pred_check_branch
          %262 = sbr.rel (%p260) target = $region52
        $region51: #{discriminator_forward.1} parent=39 // pred_region
          %263 = dma.done [#allocation7], 2048
        $region52: #{discriminator_forward.1} parent=39 // pred_fallthru
          _
        // Predicated region
        $region53: #{discriminator_forward.1} parent=39 // pred_check
          %p264 = pneg %p132
        $region54: #{discriminator_forward.1} parent=39 // pred_check_branch
          %266 = sbr.rel (%p264) target = $region56
        $region55: #{discriminator_forward.1} parent=39 // pred_region
          %267 = dma.done [#allocation10], 64
        $region56: #{discriminator_forward.1} parent=39 // pred_fallthru
          _
        %s268 = smul.u32 128, %s22
        %p269 = scmp.lt.s32.totalorder %s268, 511
        %s270 = scalar_select %p269, %s268, 511
        %s271 = smul.addr %s270, 2
        %s272 = scalar_lea.vmem %s0, %s271
        %p273 = pneg %p43
        %p274 = pneg %p40
        %s275 = sand.u32 %s56, 1
        %s276 = scalar_lea.sflag [#allocation4], %s275
        %s277 = sand.u32 %s56, 1
        %s278 = smul.addr %s277, 8192
        %s279 = scalar_lea.vmem [#allocation3], %s278
        %p280 = pneg %p69
        %p281 = pneg %p66
        %p282 = pneg %p90
        %p283 = pneg %p87
        %p284 = pneg %p111
        %p285 = pneg %p108
        %p286 = pneg %p132
        %p287 = pneg %p129
        %p288 = pneg %p153
        %p289 = pneg %p150
        %s290 = smul.u32 128, %s22
        %p291 = scmp.lt.s32.totalorder %s290, 511
        %s292 = scalar_select %p291, %s290, 511
        %s293 = smul.addr %s292, 2
        %s294 = scalar_lea.vmem %s0, %s293
        %s295 = smul.u32 128, %s22
        %s296 = smul.u32 512, %s22
        %p297 = scmp.eq.s32.totalorder %s22, 0
        // Predicated region
        $region57: #{discriminator_forward.1} parent=39 // pred_check
          %p298 = pneg %p297
        $region58: #{discriminator_forward.1} parent=39 // pred_check_branch
          %300 = sbr.rel (%p298) target = $region60
        $region59: #{discriminator_forward.1} parent=39 // pred_region
          %301 = vst [vmem:[#allocation2] sm:$0xff] 0.0
        $region60: #{discriminator_forward.1} parent=39 // pred_fallthru
          _
        %v302 = vld [vmem:[%s294] sm:$0xff]
        %v303 = vld [vmem:[%s294 + $0x8] sm:$0xff]
        %v304 = vld [vmem:[%s251] sm:$0xff]
        %v305 = vld [vmem:[%s251 + $0x8] sm:$0xff]
        %v306 = vld [vmem:[%s251 + $0x10] sm:$0xff]
        %v307 = vld [vmem:[%s251 + $0x18] sm:$0xff]
        %v308 = vld [vmem:[%s251 + $0x20] sm:$0xff]
        %v309 = vld [vmem:[%s251 + $0x28] sm:$0xff]
        %v310 = vld [vmem:[%s251 + $0x30] sm:$0xff]
        %v311 = vld [vmem:[%s251 + $0x38] sm:$0xff]
        %v312 = vld [vmem:[%s251 + $0x40] sm:$0xff]
        %v313 = vld [vmem:[%s251 + $0x48] sm:$0xff]
        %v314 = vld [vmem:[%s251 + $0x50] sm:$0xff]
        %v315 = vld [vmem:[%s251 + $0x58] sm:$0xff]
        %v316 = vld [vmem:[%s251 + $0x60] sm:$0xff]
        %v317 = vld [vmem:[%s251 + $0x68] sm:$0xff]
        %v318 = vld [vmem:[%s251 + $0x70] sm:$0xff]
        %v319 = vld [vmem:[%s251 + $0x78] sm:$0xff]
        %v320 = vld [vmem:[%s251 + $0x80] sm:$0xff]
        %v321 = vld [vmem:[%s251 + $0x88] sm:$0xff]
        %v322 = vld [vmem:[%s251 + $0x90] sm:$0xff]
        %v323 = vld [vmem:[%s251 + $0x98] sm:$0xff]
        %v324 = vld [vmem:[%s251 + $0xa0] sm:$0xff]
        %v325 = vld [vmem:[%s251 + $0xa8] sm:$0xff]
        %v326 = vld [vmem:[%s251 + $0xb0] sm:$0xff]
        %v327 = vld [vmem:[%s251 + $0xb8] sm:$0xff]
        %v328 = vld [vmem:[%s251 + $0xc0] sm:$0xff]
        %v329 = vld [vmem:[%s251 + $0xc8] sm:$0xff]
        %v330 = vld [vmem:[%s251 + $0xd0] sm:$0xff]
        %v331 = vld [vmem:[%s251 + $0xd8] sm:$0xff]
        %v332 = vld [vmem:[%s251 + $0xe0] sm:$0xff]
        %v333 = vld [vmem:[%s251 + $0xe8] sm:$0xff]
        %v334 = vld [vmem:[%s251 + $0xf0] sm:$0xff]
        %v335 = vld [vmem:[%s251 + $0xf8] sm:$0xff]
        %v336 = vld [vmem:[%s251 + $0x100] sm:$0xff]
        %v337 = vld [vmem:[%s251 + $0x108] sm:$0xff]
        %v338 = vld [vmem:[%s251 + $0x110] sm:$0xff]
        %v339 = vld [vmem:[%s251 + $0x118] sm:$0xff]
        %v340 = vld [vmem:[%s251 + $0x120] sm:$0xff]
        %v341 = vld [vmem:[%s251 + $0x128] sm:$0xff]
        %v342 = vld [vmem:[%s251 + $0x130] sm:$0xff]
        %v343 = vld [vmem:[%s251 + $0x138] sm:$0xff]
        %v344 = vld [vmem:[%s251 + $0x140] sm:$0xff]
        %v345 = vld [vmem:[%s251 + $0x148] sm:$0xff]
        %v346 = vld [vmem:[%s251 + $0x150] sm:$0xff]
        %v347 = vld [vmem:[%s251 + $0x158] sm:$0xff]
        %v348 = vld [vmem:[%s251 + $0x160] sm:$0xff]
        %v349 = vld [vmem:[%s251 + $0x168] sm:$0xff]
        %v350 = vld [vmem:[%s251 + $0x170] sm:$0xff]
        %v351 = vld [vmem:[%s251 + $0x178] sm:$0xff]
        %v352 = vld [vmem:[%s251 + $0x180] sm:$0xff]
        %v353 = vld [vmem:[%s251 + $0x188] sm:$0xff]
        %v354 = vld [vmem:[%s251 + $0x190] sm:$0xff]
        %v355 = vld [vmem:[%s251 + $0x198] sm:$0xff]
        %v356 = vld [vmem:[%s251 + $0x1a0] sm:$0xff]
        %v357 = vld [vmem:[%s251 + $0x1a8] sm:$0xff]
        %v358 = vld [vmem:[%s251 + $0x1b0] sm:$0xff]
        %v359 = vld [vmem:[%s251 + $0x1b8] sm:$0xff]
        %v360 = vld [vmem:[%s251 + $0x1c0] sm:$0xff]
        %v361 = vld [vmem:[%s251 + $0x1c8] sm:$0xff]
        %v362 = vld [vmem:[%s251 + $0x1d0] sm:$0xff]
        %v363 = vld [vmem:[%s251 + $0x1d8] sm:$0xff]
        %v364 = vld [vmem:[%s251 + $0x1e0] sm:$0xff]
        %v365 = vld [vmem:[%s251 + $0x1e8] sm:$0xff]
        %v366 = vld [vmem:[%s251 + $0x1f0] sm:$0xff]
        %v367 = vld [vmem:[%s251 + $0x1f8] sm:$0xff]
        %v368 = vunpack.c.l.s8.bf16 %v304
        %v369 = vunpack.c.l.s8.bf16 %v305
        %v370 = vunpack.c.h.s8.bf16 %v304
        %v371 = vunpack.c.h.s8.bf16 %v305
        %v372 = vunpack.c.l.s8.bf16 %v306
        %v373 = vunpack.c.l.s8.bf16 %v307
        %v374 = vunpack.c.h.s8.bf16 %v306
        %v375 = vunpack.c.h.s8.bf16 %v307
        %v376 = vunpack.c.l.s8.bf16 %v308
        %v377 = vunpack.c.l.s8.bf16 %v309
        %v378 = vunpack.c.h.s8.bf16 %v308
        %v379 = vunpack.c.h.s8.bf16 %v309
        %v380 = vunpack.c.l.s8.bf16 %v310
        %v381 = vunpack.c.l.s8.bf16 %v311
        %v382 = vunpack.c.h.s8.bf16 %v310
        %v383 = vunpack.c.h.s8.bf16 %v311
        %v384 = vunpack.c.l.s8.bf16 %v312
        %v385 = vunpack.c.l.s8.bf16 %v313
        %v386 = vunpack.c.h.s8.bf16 %v312
        %v387 = vunpack.c.h.s8.bf16 %v313
        %v388 = vunpack.c.l.s8.bf16 %v314
        %v389 = vunpack.c.l.s8.bf16 %v315
        %v390 = vunpack.c.h.s8.bf16 %v314
        %v391 = vunpack.c.h.s8.bf16 %v315
        %v392 = vunpack.c.l.s8.bf16 %v316
        %v393 = vunpack.c.l.s8.bf16 %v317
        %v394 = vunpack.c.h.s8.bf16 %v316
        %v395 = vunpack.c.h.s8.bf16 %v317
        %v396 = vunpack.c.l.s8.bf16 %v318
        %v397 = vunpack.c.l.s8.bf16 %v319
        %v398 = vunpack.c.h.s8.bf16 %v318
        %v399 = vunpack.c.h.s8.bf16 %v319
        %v400 = vunpack.c.l.s8.bf16 %v320
        %v401 = vunpack.c.l.s8.bf16 %v321
        %v402 = vunpack.c.h.s8.bf16 %v320
        %v403 = vunpack.c.h.s8.bf16 %v321
        %v404 = vunpack.c.l.s8.bf16 %v322
        %v405 = vunpack.c.l.s8.bf16 %v323
        %v406 = vunpack.c.h.s8.bf16 %v322
        %v407 = vunpack.c.h.s8.bf16 %v323
        %v408 = vunpack.c.l.s8.bf16 %v324
        %v409 = vunpack.c.l.s8.bf16 %v325
        %v410 = vunpack.c.h.s8.bf16 %v324
        %v411 = vunpack.c.h.s8.bf16 %v325
        %v412 = vunpack.c.l.s8.bf16 %v326
        %v413 = vunpack.c.l.s8.bf16 %v327
        %v414 = vunpack.c.h.s8.bf16 %v326
        %v415 = vunpack.c.h.s8.bf16 %v327
        %v416 = vunpack.c.l.s8.bf16 %v328
        %v417 = vunpack.c.l.s8.bf16 %v329
        %v418 = vunpack.c.h.s8.bf16 %v328
        %v419 = vunpack.c.h.s8.bf16 %v329
        %v420 = vunpack.c.l.s8.bf16 %v330
        %v421 = vunpack.c.l.s8.bf16 %v331
        %v422 = vunpack.c.h.s8.bf16 %v330
        %v423 = vunpack.c.h.s8.bf16 %v331
        %v424 = vunpack.c.l.s8.bf16 %v332
        %v425 = vunpack.c.l.s8.bf16 %v333
        %v426 = vunpack.c.h.s8.bf16 %v332
        %v427 = vunpack.c.h.s8.bf16 %v333
        %v428 = vunpack.c.l.s8.bf16 %v334
        %v429 = vunpack.c.l.s8.bf16 %v335
        %v430 = vunpack.c.h.s8.bf16 %v334
        %v431 = vunpack.c.h.s8.bf16 %v335
        %v432 = vunpack.c.l.s8.bf16 %v336
        %v433 = vunpack.c.l.s8.bf16 %v337
        %v434 = vunpack.c.h.s8.bf16 %v336
        %v435 = vunpack.c.h.s8.bf16 %v337
        %v436 = vunpack.c.l.s8.bf16 %v338
        %v437 = vunpack.c.l.s8.bf16 %v339
        %v438 = vunpack.c.h.s8.bf16 %v338
        %v439 = vunpack.c.h.s8.bf16 %v339
        %v440 = vunpack.c.l.s8.bf16 %v340
        %v441 = vunpack.c.l.s8.bf16 %v341
        %v442 = vunpack.c.h.s8.bf16 %v340
        %v443 = vunpack.c.h.s8.bf16 %v341
        %v444 = vunpack.c.l.s8.bf16 %v342
        %v445 = vunpack.c.l.s8.bf16 %v343
        %v446 = vunpack.c.h.s8.bf16 %v342
        %v447 = vunpack.c.h.s8.bf16 %v343
        %v448 = vunpack.c.l.s8.bf16 %v344
        %v449 = vunpack.c.l.s8.bf16 %v345
        %v450 = vunpack.c.h.s8.bf16 %v344
        %v451 = vunpack.c.h.s8.bf16 %v345
        %v452 = vunpack.c.l.s8.bf16 %v346
        %v453 = vunpack.c.l.s8.bf16 %v347
        %v454 = vunpack.c.h.s8.bf16 %v346
        %v455 = vunpack.c.h.s8.bf16 %v347
        %v456 = vunpack.c.l.s8.bf16 %v348
        %v457 = vunpack.c.l.s8.bf16 %v349
        %v458 = vunpack.c.h.s8.bf16 %v348
        %v459 = vunpack.c.h.s8.bf16 %v349
        %v460 = vunpack.c.l.s8.bf16 %v350
        %v461 = vunpack.c.l.s8.bf16 %v351
        %v462 = vunpack.c.h.s8.bf16 %v350
        %v463 = vunpack.c.h.s8.bf16 %v351
        %v464 = vunpack.c.l.s8.bf16 %v352
        %v465 = vunpack.c.l.s8.bf16 %v353
        %v466 = vunpack.c.h.s8.bf16 %v352
        %v467 = vunpack.c.h.s8.bf16 %v353
        %v468 = vunpack.c.l.s8.bf16 %v354
        %v469 = vunpack.c.l.s8.bf16 %v355
        %v470 = vunpack.c.h.s8.bf16 %v354
        %v471 = vunpack.c.h.s8.bf16 %v355
        %v472 = vunpack.c.l.s8.bf16 %v356
        %v473 = vunpack.c.l.s8.bf16 %v357
        %v474 = vunpack.c.h.s8.bf16 %v356
        %v475 = vunpack.c.h.s8.bf16 %v357
        %v476 = vunpack.c.l.s8.bf16 %v358
        %v477 = vunpack.c.l.s8.bf16 %v359
        %v478 = vunpack.c.h.s8.bf16 %v358
        %v479 = vunpack.c.h.s8.bf16 %v359
        %v480 = vunpack.c.l.s8.bf16 %v360
        %v481 = vunpack.c.l.s8.bf16 %v361
        %v482 = vunpack.c.h.s8.bf16 %v360
        %v483 = vunpack.c.h.s8.bf16 %v361
        %v484 = vunpack.c.l.s8.bf16 %v362
        %v485 = vunpack.c.l.s8.bf16 %v363
        %v486 = vunpack.c.h.s8.bf16 %v362
        %v487 = vunpack.c.h.s8.bf16 %v363
        %v488 = vunpack.c.l.s8.bf16 %v364
        %v489 = vunpack.c.l.s8.bf16 %v365
        %v490 = vunpack.c.h.s8.bf16 %v364
        %v491 = vunpack.c.h.s8.bf16 %v365
        %v492 = vunpack.c.l.s8.bf16 %v366
        %v493 = vunpack.c.l.s8.bf16 %v367
        %v494 = vunpack.c.h.s8.bf16 %v366
        %v495 = vunpack.c.h.s8.bf16 %v367
        %v496 = vld [vmem:[%s294 + $0x10] sm:$0xff]
        %v497 = vld [vmem:[%s294 + $0x18] sm:$0xff]
        %v498 = vld [vmem:[%s251 + $0x200] sm:$0xff]
        %v499 = vld [vmem:[%s251 + $0x208] sm:$0xff]
        %v500 = vld [vmem:[%s251 + $0x210] sm:$0xff]
        %v501 = vld [vmem:[%s251 + $0x218] sm:$0xff]
        %v502 = vld [vmem:[%s251 + $0x220] sm:$0xff]
        %v503 = vld [vmem:[%s251 + $0x228] sm:$0xff]
        %v504 = vld [vmem:[%s251 + $0x230] sm:$0xff]
        %v505 = vld [vmem:[%s251 + $0x238] sm:$0xff]
        %v506 = vld [vmem:[%s251 + $0x240] sm:$0xff]
        %v507 = vld [vmem:[%s251 + $0x248] sm:$0xff]
        %v508 = vld [vmem:[%s251 + $0x250] sm:$0xff]
        %v509 = vld [vmem:[%s251 + $0x258] sm:$0xff]
        %v510 = vld [vmem:[%s251 + $0x260] sm:$0xff]
        %v511 = vld [vmem:[%s251 + $0x268] sm:$0xff]
        %v512 = vld [vmem:[%s251 + $0x270] sm:$0xff]
        %v513 = vld [vmem:[%s251 + $0x278] sm:$0xff]
        %v514 = vld [vmem:[%s251 + $0x280] sm:$0xff]
        %v515 = vld [vmem:[%s251 + $0x288] sm:$0xff]
        %v516 = vld [vmem:[%s251 + $0x290] sm:$0xff]
        %v517 = vld [vmem:[%s251 + $0x298] sm:$0xff]
        %v518 = vld [vmem:[%s251 + $0x2a0] sm:$0xff]
        %v519 = vld [vmem:[%s251 + $0x2a8] sm:$0xff]
        %v520 = vld [vmem:[%s251 + $0x2b0] sm:$0xff]
        %v521 = vld [vmem:[%s251 + $0x2b8] sm:$0xff]
        %v522 = vld [vmem:[%s251 + $0x2c0] sm:$0xff]
        %v523 = vld [vmem:[%s251 + $0x2c8] sm:$0xff]
        %v524 = vld [vmem:[%s251 + $0x2d0] sm:$0xff]
        %v525 = vld [vmem:[%s251 + $0x2d8] sm:$0xff]
        %v526 = vld [vmem:[%s251 + $0x2e0] sm:$0xff]
        %v527 = vld [vmem:[%s251 + $0x2e8] sm:$0xff]
        %v528 = vld [vmem:[%s251 + $0x2f0] sm:$0xff]
        %v529 = vld [vmem:[%s251 + $0x2f8] sm:$0xff]
        %v530 = vld [vmem:[%s251 + $0x300] sm:$0xff]
        %v531 = vld [vmem:[%s251 + $0x308] sm:$0xff]
        %v532 = vld [vmem:[%s251 + $0x310] sm:$0xff]
        %v533 = vld [vmem:[%s251 + $0x318] sm:$0xff]
        %v534 = vld [vmem:[%s251 + $0x320] sm:$0xff]
        %v535 = vld [vmem:[%s251 + $0x328] sm:$0xff]
        %v536 = vld [vmem:[%s251 + $0x330] sm:$0xff]
        %v537 = vld [vmem:[%s251 + $0x338] sm:$0xff]
        %v538 = vld [vmem:[%s251 + $0x340] sm:$0xff]
        %v539 = vld [vmem:[%s251 + $0x348] sm:$0xff]
        %v540 = vld [vmem:[%s251 + $0x350] sm:$0xff]
        %v541 = vld [vmem:[%s251 + $0x358] sm:$0xff]
        %v542 = vld [vmem:[%s251 + $0x360] sm:$0xff]
        %v543 = vld [vmem:[%s251 + $0x368] sm:$0xff]
        %v544 = vld [vmem:[%s251 + $0x370] sm:$0xff]
        %v545 = vld [vmem:[%s251 + $0x378] sm:$0xff]
        %v546 = vld [vmem:[%s251 + $0x380] sm:$0xff]
        %v547 = vld [vmem:[%s251 + $0x388] sm:$0xff]
        %v548 = vld [vmem:[%s251 + $0x390] sm:$0xff]
        %v549 = vld [vmem:[%s251 + $0x398] sm:$0xff]
        %v550 = vld [vmem:[%s251 + $0x3a0] sm:$0xff]
        %v551 = vld [vmem:[%s251 + $0x3a8] sm:$0xff]
        %v552 = vld [vmem:[%s251 + $0x3b0] sm:$0xff]
        %v553 = vld [vmem:[%s251 + $0x3b8] sm:$0xff]
        %v554 = vld [vmem:[%s251 + $0x3c0] sm:$0xff]
        %v555 = vld [vmem:[%s251 + $0x3c8] sm:$0xff]
        %v556 = vld [vmem:[%s251 + $0x3d0] sm:$0xff]
        %v557 = vld [vmem:[%s251 + $0x3d8] sm:$0xff]
        %v558 = vld [vmem:[%s251 + $0x3e0] sm:$0xff]
        %v559 = vld [vmem:[%s251 + $0x3e8] sm:$0xff]
        %v560 = vld [vmem:[%s251 + $0x3f0] sm:$0xff]
        %v561 = vld [vmem:[%s251 + $0x3f8] sm:$0xff]
        %v562 = vunpack.c.l.s8.bf16 %v498
        %v563 = vunpack.c.l.s8.bf16 %v499
        %v564 = vunpack.c.h.s8.bf16 %v498
        %v565 = vunpack.c.h.s8.bf16 %v499
        %v566 = vunpack.c.l.s8.bf16 %v500
        %v567 = vunpack.c.l.s8.bf16 %v501
        %v568 = vunpack.c.h.s8.bf16 %v500
        %v569 = vunpack.c.h.s8.bf16 %v501
        %v570 = vunpack.c.l.s8.bf16 %v502
        %v571 = vunpack.c.l.s8.bf16 %v503
        %v572 = vunpack.c.h.s8.bf16 %v502
        %v573 = vunpack.c.h.s8.bf16 %v503
        %v574 = vunpack.c.l.s8.bf16 %v504
        %v575 = vunpack.c.l.s8.bf16 %v505
        %v576 = vunpack.c.h.s8.bf16 %v504
        %v577 = vunpack.c.h.s8.bf16 %v505
        %v578 = vunpack.c.l.s8.bf16 %v506
        %v579 = vunpack.c.l.s8.bf16 %v507
        %v580 = vunpack.c.h.s8.bf16 %v506
        %v581 = vunpack.c.h.s8.bf16 %v507
        %v582 = vunpack.c.l.s8.bf16 %v508
        %v583 = vunpack.c.l.s8.bf16 %v509
        %v584 = vunpack.c.h.s8.bf16 %v508
        %v585 = vunpack.c.h.s8.bf16 %v509
        %v586 = vunpack.c.l.s8.bf16 %v510
        %v587 = vunpack.c.l.s8.bf16 %v511
        %v588 = vunpack.c.h.s8.bf16 %v510
        %v589 = vunpack.c.h.s8.bf16 %v511
        %v590 = vunpack.c.l.s8.bf16 %v512
        %v591 = vunpack.c.l.s8.bf16 %v513
        %v592 = vunpack.c.h.s8.bf16 %v512
        %v593 = vunpack.c.h.s8.bf16 %v513
        %v594 = vunpack.c.l.s8.bf16 %v514
        %v595 = vunpack.c.l.s8.bf16 %v515
        %v596 = vunpack.c.h.s8.bf16 %v514
        %v597 = vunpack.c.h.s8.bf16 %v515
        %v598 = vunpack.c.l.s8.bf16 %v516
        %v599 = vunpack.c.l.s8.bf16 %v517
        %v600 = vunpack.c.h.s8.bf16 %v516
        %v601 = vunpack.c.h.s8.bf16 %v517
        %v602 = vunpack.c.l.s8.bf16 %v518
        %v603 = vunpack.c.l.s8.bf16 %v519
        %v604 = vunpack.c.h.s8.bf16 %v518
        %v605 = vunpack.c.h.s8.bf16 %v519
        %v606 = vunpack.c.l.s8.bf16 %v520
        %v607 = vunpack.c.l.s8.bf16 %v521
        %v608 = vunpack.c.h.s8.bf16 %v520
        %v609 = vunpack.c.h.s8.bf16 %v521
        %v610 = vunpack.c.l.s8.bf16 %v522
        %v611 = vunpack.c.l.s8.bf16 %v523
        %v612 = vunpack.c.h.s8.bf16 %v522
        %v613 = vunpack.c.h.s8.bf16 %v523
        %v614 = vunpack.c.l.s8.bf16 %v524
        %v615 = vunpack.c.l.s8.bf16 %v525
        %v616 = vunpack.c.h.s8.bf16 %v524
        %v617 = vunpack.c.h.s8.bf16 %v525
        %v618 = vunpack.c.l.s8.bf16 %v526
        %v619 = vunpack.c.l.s8.bf16 %v527
        %v620 = vunpack.c.h.s8.bf16 %v526
        %v621 = vunpack.c.h.s8.bf16 %v527
        %v622 = vunpack.c.l.s8.bf16 %v528
        %v623 = vunpack.c.l.s8.bf16 %v529
        %v624 = vunpack.c.h.s8.bf16 %v528
        %v625 = vunpack.c.h.s8.bf16 %v529
        %v626 = vunpack.c.l.s8.bf16 %v530
        %v627 = vunpack.c.l.s8.bf16 %v531
        %v628 = vunpack.c.h.s8.bf16 %v530
        %v629 = vunpack.c.h.s8.bf16 %v531
        %v630 = vunpack.c.l.s8.bf16 %v532
        %v631 = vunpack.c.l.s8.bf16 %v533
        %v632 = vunpack.c.h.s8.bf16 %v532
        %v633 = vunpack.c.h.s8.bf16 %v533
        %v634 = vunpack.c.l.s8.bf16 %v534
        %v635 = vunpack.c.l.s8.bf16 %v535
        %v636 = vunpack.c.h.s8.bf16 %v534
        %v637 = vunpack.c.h.s8.bf16 %v535
        %v638 = vunpack.c.l.s8.bf16 %v536
        %v639 = vunpack.c.l.s8.bf16 %v537
        %v640 = vunpack.c.h.s8.bf16 %v536
        %v641 = vunpack.c.h.s8.bf16 %v537
        %v642 = vunpack.c.l.s8.bf16 %v538
        %v643 = vunpack.c.l.s8.bf16 %v539
        %v644 = vunpack.c.h.s8.bf16 %v538
        %v645 = vunpack.c.h.s8.bf16 %v539
        %v646 = vunpack.c.l.s8.bf16 %v540
        %v647 = vunpack.c.l.s8.bf16 %v541
        %v648 = vunpack.c.h.s8.bf16 %v540
        %v649 = vunpack.c.h.s8.bf16 %v541
        %v650 = vunpack.c.l.s8.bf16 %v542
        %v651 = vunpack.c.l.s8.bf16 %v543
        %v652 = vunpack.c.h.s8.bf16 %v542
        %v653 = vunpack.c.h.s8.bf16 %v543
        %v654 = vunpack.c.l.s8.bf16 %v544
        %v655 = vunpack.c.l.s8.bf16 %v545
        %v656 = vunpack.c.h.s8.bf16 %v544
        %v657 = vunpack.c.h.s8.bf16 %v545
        %v658 = vunpack.c.l.s8.bf16 %v546
        %v659 = vunpack.c.l.s8.bf16 %v547
        %v660 = vunpack.c.h.s8.bf16 %v546
        %v661 = vunpack.c.h.s8.bf16 %v547
        %v662 = vunpack.c.l.s8.bf16 %v548
        %v663 = vunpack.c.l.s8.bf16 %v549
        %v664 = vunpack.c.h.s8.bf16 %v548
        %v665 = vunpack.c.h.s8.bf16 %v549
        %v666 = vunpack.c.l.s8.bf16 %v550
        %v667 = vunpack.c.l.s8.bf16 %v551
        %v668 = vunpack.c.h.s8.bf16 %v550
        %v669 = vunpack.c.h.s8.bf16 %v551
        %v670 = vunpack.c.l.s8.bf16 %v552
        %v671 = vunpack.c.l.s8.bf16 %v553
        %v672 = vunpack.c.h.s8.bf16 %v552
        %v673 = vunpack.c.h.s8.bf16 %v553
        %v674 = vunpack.c.l.s8.bf16 %v554
        %v675 = vunpack.c.l.s8.bf16 %v555
        %v676 = vunpack.c.h.s8.bf16 %v554
        %v677 = vunpack.c.h.s8.bf16 %v555
        %v678 = vunpack.c.l.s8.bf16 %v556
        %v679 = vunpack.c.l.s8.bf16 %v557
        %v680 = vunpack.c.h.s8.bf16 %v556
        %v681 = vunpack.c.h.s8.bf16 %v557
        %v682 = vunpack.c.l.s8.bf16 %v558
        %v683 = vunpack.c.l.s8.bf16 %v559
        %v684 = vunpack.c.h.s8.bf16 %v558
        %v685 = vunpack.c.h.s8.bf16 %v559
        %v686 = vunpack.c.l.s8.bf16 %v560
        %v687 = vunpack.c.l.s8.bf16 %v561
        %v688 = vunpack.c.h.s8.bf16 %v560
        %v689 = vunpack.c.h.s8.bf16 %v561
        %v692 = vcombine.high %v496, %v496
        %v694 = vunpack.c.l.s4 1983009808
        %v695 = vunpack.c.0.s8 %v694
        %v696 = vlaneseq
        %v697 = vshrl.u32 %v696, 7
        %v698 = vsub.s32 %v695, %v697
        %v699 = vrot.slane %v496, %v698
        %v701 = vunpack.c.l.s4 1983009808
        %v702 = vunpack.c.0.s8 %v701
        %v703 = vlaneseq
        %v704 = vshrl.u32 %v703, 7
        %v705 = vsub.s32 %v702, %v704
        %v706 = vrot.slane %v692, %v705
        %v707 = vcombine.high %v699, %v699
        %v708 = vcombine.high %v706, %v706
        %v709 = vcombine.high %v497, %v497
        %v711 = vunpack.c.l.s4 1983009808
        %v712 = vunpack.c.0.s8 %v711
        %v713 = vlaneseq
        %v714 = vshrl.u32 %v713, 7
        %v715 = vsub.s32 %v712, %v714
        %v716 = vrot.slane %v497, %v715
        %v718 = vunpack.c.l.s4 1983009808
        %v719 = vunpack.c.0.s8 %v718
        %v720 = vlaneseq
        %v721 = vshrl.u32 %v720, 7
        %v722 = vsub.s32 %v719, %v721
        %v723 = vrot.slane %v709, %v722
        %v724 = vcombine.high %v716, %v716
        %v725 = vcombine.high %v723, %v723
        %734 = vmatprep.subr.bf16.mxu0 %v563
        %735 = vmatpush1.bf16.msra.mxu0 %v562
        %736 = vmatprep.subr.bf16.mxu0 %v565
        %737 = vmatpush1.bf16.msra.mxu0 %v564
        %738 = vmatprep.subr.bf16.mxu0 %v567
        %739 = vmatpush1.bf16.msra.mxu0 %v566
        %740 = vmatprep.subr.bf16.mxu0 %v569
        %741 = vmatpush1.bf16.msra.mxu0 %v568
        %742 = vmatprep.subr.bf16.mxu0 %v571
        %743 = vmatpush1.bf16.msra.mxu0 %v570
        %744 = vmatprep.subr.bf16.mxu0 %v573
        %745 = vmatpush1.bf16.msra.mxu0 %v572
        %746 = vmatprep.subr.bf16.mxu0 %v575
        %747 = vmatpush1.bf16.msra.mxu0 %v574
        %748 = vmatprep.subr.bf16.mxu0 %v577
        %749 = vmatpush1.bf16.msra.mxu0 %v576
        %750 = vmatprep.subr.bf16.mxu0 %v579
        %751 = vmatpush1.bf16.msra.mxu0 %v578
        %752 = vmatprep.subr.bf16.mxu0 %v581
        %753 = vmatpush1.bf16.msra.mxu0 %v580
        %754 = vmatprep.subr.bf16.mxu0 %v583
        %755 = vmatpush1.bf16.msra.mxu0 %v582
        %756 = vmatprep.subr.bf16.mxu0 %v585
        %757 = vmatpush1.bf16.msra.mxu0 %v584
        %758 = vmatprep.subr.bf16.mxu0 %v587
        %759 = vmatpush1.bf16.msra.mxu0 %v586
        %760 = vmatprep.subr.bf16.mxu0 %v589
        %761 = vmatpush1.bf16.msra.mxu0 %v588
        %762 = vmatprep.subr.bf16.mxu0 %v591
        %763 = vmatpush1.bf16.msra.mxu0 %v590
        %764 = vmatprep.subr.bf16.mxu0 %v593
        %765 = vmatpush1.bf16.msra.mxu0 %v592
        %766 = vmatprep.mubr.bf16.mxu0 %v707
        %767 = vmatmul.mubr.bf16.gmra.mrb[0].mxu0 %v699
        %v768 = vpop.f32.mrb[0].mxu0
        %v769 = vadd.f32 0.0, %v768
        %v770 = vpop.f32.mrb[0].mxu0
        %v771 = vadd.f32 0.0, %v770
        %v772 = vpop.f32.mrb[0].mxu0
        %v773 = vpop.f32.mrb[0].mxu0
        %774 = vdwg.mxu0
        %775 = vmatprep.subr.bf16.mxu0 %v595
        %776 = vmatpush1.bf16.msra.mxu0 %v594
        %777 = vmatprep.subr.bf16.mxu0 %v597
        %778 = vmatpush1.bf16.msra.mxu0 %v596
        %779 = vmatprep.subr.bf16.mxu0 %v599
        %780 = vmatpush1.bf16.msra.mxu0 %v598
        %781 = vmatprep.subr.bf16.mxu0 %v601
        %782 = vmatpush1.bf16.msra.mxu0 %v600
        %783 = vmatprep.subr.bf16.mxu0 %v603
        %784 = vmatpush1.bf16.msra.mxu0 %v602
        %785 = vmatprep.subr.bf16.mxu0 %v605
        %786 = vmatpush1.bf16.msra.mxu0 %v604
        %787 = vmatprep.subr.bf16.mxu0 %v607
        %788 = vmatpush1.bf16.msra.mxu0 %v606
        %789 = vmatprep.subr.bf16.mxu0 %v609
        %790 = vmatpush1.bf16.msra.mxu0 %v608
        %791 = vmatprep.subr.bf16.mxu0 %v611
        %792 = vmatpush1.bf16.msra.mxu0 %v610
        %793 = vmatprep.subr.bf16.mxu0 %v613
        %794 = vmatpush1.bf16.msra.mxu0 %v612
        %795 = vmatprep.subr.bf16.mxu0 %v615
        %796 = vmatpush1.bf16.msra.mxu0 %v614
        %797 = vmatprep.subr.bf16.mxu0 %v617
        %798 = vmatpush1.bf16.msra.mxu0 %v616
        %799 = vmatprep.subr.bf16.mxu0 %v619
        %800 = vmatpush1.bf16.msra.mxu0 %v618
        %801 = vmatprep.subr.bf16.mxu0 %v621
        %802 = vmatpush1.bf16.msra.mxu0 %v620
        %803 = vmatprep.subr.bf16.mxu0 %v623
        %804 = vmatpush1.bf16.msra.mxu0 %v622
        %805 = vmatprep.subr.bf16.mxu0 %v625
        %806 = vmatpush1.bf16.msra.mxu0 %v624
        %807 = vmatprep.mubr.bf16.mxu0 %v708
        %808 = vmatmul.mubr.bf16.gmra.mrb[0].mxu0 %v706
        %v809 = vpop.f32.mrb[0].mxu0
        %v810 = vadd.f32 %v769, %v809
        %v811 = vpop.f32.mrb[0].mxu0
        %v812 = vadd.f32 %v771, %v811
        %v813 = vpop.f32.mrb[0].mxu0
        %v814 = vpop.f32.mrb[0].mxu0
        %815 = vdwg.mxu0
        %816 = vmatprep.subr.bf16.mxu0 %v627
        %817 = vmatpush1.bf16.msra.mxu0 %v626
        %818 = vmatprep.subr.bf16.mxu0 %v629
        %819 = vmatpush1.bf16.msra.mxu0 %v628
        %820 = vmatprep.subr.bf16.mxu0 %v631
        %821 = vmatpush1.bf16.msra.mxu0 %v630
        %822 = vmatprep.subr.bf16.mxu0 %v633
        %823 = vmatpush1.bf16.msra.mxu0 %v632
        %824 = vmatprep.subr.bf16.mxu0 %v635
        %825 = vmatpush1.bf16.msra.mxu0 %v634
        %826 = vmatprep.subr.bf16.mxu0 %v637
        %827 = vmatpush1.bf16.msra.mxu0 %v636
        %828 = vmatprep.subr.bf16.mxu0 %v639
        %829 = vmatpush1.bf16.msra.mxu0 %v638
        %830 = vmatprep.subr.bf16.mxu0 %v641
        %831 = vmatpush1.bf16.msra.mxu0 %v640
        %832 = vmatprep.subr.bf16.mxu0 %v643
        %833 = vmatpush1.bf16.msra.mxu0 %v642
        %834 = vmatprep.subr.bf16.mxu0 %v645
        %835 = vmatpush1.bf16.msra.mxu0 %v644
        %836 = vmatprep.subr.bf16.mxu0 %v647
        %837 = vmatpush1.bf16.msra.mxu0 %v646
        %838 = vmatprep.subr.bf16.mxu0 %v649
        %839 = vmatpush1.bf16.msra.mxu0 %v648
        %840 = vmatprep.subr.bf16.mxu0 %v651
        %841 = vmatpush1.bf16.msra.mxu0 %v650
        %842 = vmatprep.subr.bf16.mxu0 %v653
        %843 = vmatpush1.bf16.msra.mxu0 %v652
        %844 = vmatprep.subr.bf16.mxu0 %v655
        %845 = vmatpush1.bf16.msra.mxu0 %v654
        %846 = vmatprep.subr.bf16.mxu0 %v657
        %847 = vmatpush1.bf16.msra.mxu0 %v656
        %848 = vmatprep.mubr.bf16.mxu0 %v724
        %849 = vmatmul.mubr.bf16.gmra.mrb[0].mxu0 %v716
        %v850 = vpop.f32.mrb[0].mxu0
        %v851 = vadd.f32 %v810, %v850
        %v852 = vpop.f32.mrb[0].mxu0
        %v853 = vadd.f32 %v812, %v852
        %v854 = vpop.f32.mrb[0].mxu0
        %v855 = vpop.f32.mrb[0].mxu0
        %856 = vdwg.mxu0
        %857 = vmatprep.subr.bf16.mxu0 %v659
        %858 = vmatpush1.bf16.msra.mxu0 %v658
        %859 = vmatprep.subr.bf16.mxu0 %v661
        %860 = vmatpush1.bf16.msra.mxu0 %v660
        %861 = vmatprep.subr.bf16.mxu0 %v663
        %862 = vmatpush1.bf16.msra.mxu0 %v662
        %863 = vmatprep.subr.bf16.mxu0 %v665
        %864 = vmatpush1.bf16.msra.mxu0 %v664
        %865 = vmatprep.subr.bf16.mxu0 %v667
        %866 = vmatpush1.bf16.msra.mxu0 %v666
        %867 = vmatprep.subr.bf16.mxu0 %v669
        %868 = vmatpush1.bf16.msra.mxu0 %v668
        %869 = vmatprep.subr.bf16.mxu0 %v671
        %870 = vmatpush1.bf16.msra.mxu0 %v670
        %871 = vmatprep.subr.bf16.mxu0 %v673
        %872 = vmatpush1.bf16.msra.mxu0 %v672
        %873 = vmatprep.subr.bf16.mxu0 %v675
        %874 = vmatpush1.bf16.msra.mxu0 %v674
        %875 = vmatprep.subr.bf16.mxu0 %v677
        %876 = vmatpush1.bf16.msra.mxu0 %v676
        %877 = vmatprep.subr.bf16.mxu0 %v679
        %878 = vmatpush1.bf16.msra.mxu0 %v678
        %879 = vmatprep.subr.bf16.mxu0 %v681
        %880 = vmatpush1.bf16.msra.mxu0 %v680
        %881 = vmatprep.subr.bf16.mxu0 %v683
        %882 = vmatpush1.bf16.msra.mxu0 %v682
        %883 = vmatprep.subr.bf16.mxu0 %v685
        %884 = vmatpush1.bf16.msra.mxu0 %v684
        %885 = vmatprep.subr.bf16.mxu0 %v687
        %886 = vmatpush1.bf16.msra.mxu0 %v686
        %887 = vmatprep.subr.bf16.mxu0 %v689
        %888 = vmatpush1.bf16.msra.mxu0 %v688
        %889 = vmatprep.mubr.bf16.mxu0 %v725
        %890 = vmatmul.mubr.bf16.gmra.mrb[0].mxu0 %v723
        %v891 = vpop.f32.mrb[0].mxu0
        %v892 = vadd.f32 %v851, %v891
        %v893 = vpop.f32.mrb[0].mxu0
        %v894 = vadd.f32 %v853, %v893
        %v895 = vpop.f32.mrb[0].mxu0
        %v896 = vpop.f32.mrb[0].mxu0
        %897 = vdwg.mxu0
        %v900 = vcombine.high %v302, %v302
        %v902 = vunpack.c.l.s4 1983009808
        %v903 = vunpack.c.0.s8 %v902
        %v904 = vlaneseq
        %v905 = vshrl.u32 %v904, 7
        %v906 = vsub.s32 %v903, %v905
        %v907 = vrot.slane %v302, %v906
        %v909 = vunpack.c.l.s4 1983009808
        %v910 = vunpack.c.0.s8 %v909
        %v911 = vlaneseq
        %v912 = vshrl.u32 %v911, 7
        %v913 = vsub.s32 %v910, %v912
        %v914 = vrot.slane %v900, %v913
        %v915 = vcombine.high %v907, %v907
        %v916 = vcombine.high %v914, %v914
        %v917 = vcombine.high %v303, %v303
        %v919 = vunpack.c.l.s4 1983009808
        %v920 = vunpack.c.0.s8 %v919
        %v921 = vlaneseq
        %v922 = vshrl.u32 %v921, 7
        %v923 = vsub.s32 %v920, %v922
        %v924 = vrot.slane %v303, %v923
        %v926 = vunpack.c.l.s4 1983009808
        %v927 = vunpack.c.0.s8 %v926
        %v928 = vlaneseq
        %v929 = vshrl.u32 %v928, 7
        %v930 = vsub.s32 %v927, %v929
        %v931 = vrot.slane %v917, %v930
        %v932 = vcombine.high %v924, %v924
        %v933 = vcombine.high %v931, %v931
        %942 = vmatprep.subr.bf16.mxu0 %v369
        %943 = vmatpush1.bf16.msra.mxu0 %v368
        %944 = vmatprep.subr.bf16.mxu0 %v371
        %945 = vmatpush1.bf16.msra.mxu0 %v370
        %946 = vmatprep.subr.bf16.mxu0 %v373
        %947 = vmatpush1.bf16.msra.mxu0 %v372
        %948 = vmatprep.subr.bf16.mxu0 %v375
        %949 = vmatpush1.bf16.msra.mxu0 %v374
        %950 = vmatprep.subr.bf16.mxu0 %v377
        %951 = vmatpush1.bf16.msra.mxu0 %v376
        %952 = vmatprep.subr.bf16.mxu0 %v379
        %953 = vmatpush1.bf16.msra.mxu0 %v378
        %954 = vmatprep.subr.bf16.mxu0 %v381
        %955 = vmatpush1.bf16.msra.mxu0 %v380
        %956 = vmatprep.subr.bf16.mxu0 %v383
        %957 = vmatpush1.bf16.msra.mxu0 %v382
        %958 = vmatprep.subr.bf16.mxu0 %v385
        %959 = vmatpush1.bf16.msra.mxu0 %v384
        %960 = vmatprep.subr.bf16.mxu0 %v387
        %961 = vmatpush1.bf16.msra.mxu0 %v386
        %962 = vmatprep.subr.bf16.mxu0 %v389
        %963 = vmatpush1.bf16.msra.mxu0 %v388
        %964 = vmatprep.subr.bf16.mxu0 %v391
        %965 = vmatpush1.bf16.msra.mxu0 %v390
        %966 = vmatprep.subr.bf16.mxu0 %v393
        %967 = vmatpush1.bf16.msra.mxu0 %v392
        %968 = vmatprep.subr.bf16.mxu0 %v395
        %969 = vmatpush1.bf16.msra.mxu0 %v394
        %970 = vmatprep.subr.bf16.mxu0 %v397
        %971 = vmatpush1.bf16.msra.mxu0 %v396
        %972 = vmatprep.subr.bf16.mxu0 %v399
        %973 = vmatpush1.bf16.msra.mxu0 %v398
        %974 = vmatprep.mubr.bf16.mxu0 %v915
        %975 = vmatmul.mubr.bf16.gmra.mrb[0].mxu0 %v907
        %v976 = vpop.f32.mrb[0].mxu0
        %v977 = vadd.f32 %v892, %v976
        %v978 = vpop.f32.mrb[0].mxu0
        %v979 = vadd.f32 %v894, %v978
        %v980 = vpop.f32.mrb[0].mxu0
        %v981 = vpop.f32.mrb[0].mxu0
        %982 = vdwg.mxu0
        %983 = vmatprep.subr.bf16.mxu0 %v401
        %984 = vmatpush1.bf16.msra.mxu0 %v400
        %985 = vmatprep.subr.bf16.mxu0 %v403
        %986 = vmatpush1.bf16.msra.mxu0 %v402
        %987 = vmatprep.subr.bf16.mxu0 %v405
        %988 = vmatpush1.bf16.msra.mxu0 %v404
        %989 = vmatprep.subr.bf16.mxu0 %v407
        %990 = vmatpush1.bf16.msra.mxu0 %v406
        %991 = vmatprep.subr.bf16.mxu0 %v409
        %992 = vmatpush1.bf16.msra.mxu0 %v408
        %993 = vmatprep.subr.bf16.mxu0 %v411
        %994 = vmatpush1.bf16.msra.mxu0 %v410
        %995 = vmatprep.subr.bf16.mxu0 %v413
        %996 = vmatpush1.bf16.msra.mxu0 %v412
        %997 = vmatprep.subr.bf16.mxu0 %v415
        %998 = vmatpush1.bf16.msra.mxu0 %v414
        %999 = vmatprep.subr.bf16.mxu0 %v417
        %1000 = vmatpush1.bf16.msra.mxu0 %v416
        %1001 = vmatprep.subr.bf16.mxu0 %v419
        %1002 = vmatpush1.bf16.msra.mxu0 %v418
        %1003 = vmatprep.subr.bf16.mxu0 %v421
        %1004 = vmatpush1.bf16.msra.mxu0 %v420
        %1005 = vmatprep.subr.bf16.mxu0 %v423
        %1006 = vmatpush1.bf16.msra.mxu0 %v422
        %1007 = vmatprep.subr.bf16.mxu0 %v425
        %1008 = vmatpush1.bf16.msra.mxu0 %v424
        %1009 = vmatprep.subr.bf16.mxu0 %v427
        %1010 = vmatpush1.bf16.msra.mxu0 %v426
        %1011 = vmatprep.subr.bf16.mxu0 %v429
        %1012 = vmatpush1.bf16.msra.mxu0 %v428
        %1013 = vmatprep.subr.bf16.mxu0 %v431
        %1014 = vmatpush1.bf16.msra.mxu0 %v430
        %1015 = vmatprep.mubr.bf16.mxu0 %v916
        %1016 = vmatmul.mubr.bf16.gmra.mrb[0].mxu0 %v914
        %v1017 = vpop.f32.mrb[0].mxu0
        %v1018 = vadd.f32 %v977, %v1017
        %v1019 = vpop.f32.mrb[0].mxu0
        %v1020 = vadd.f32 %v979, %v1019
        %v1021 = vpop.f32.mrb[0].mxu0
        %v1022 = vpop.f32.mrb[0].mxu0
        %1023 = vdwg.mxu0
        %1024 = vmatprep.subr.bf16.mxu0 %v433
        %1025 = vmatpush1.bf16.msra.mxu0 %v432
        %1026 = vmatprep.subr.bf16.mxu0 %v435
        %1027 = vmatpush1.bf16.msra.mxu0 %v434
        %1028 = vmatprep.subr.bf16.mxu0 %v437
        %1029 = vmatpush1.bf16.msra.mxu0 %v436
        %1030 = vmatprep.subr.bf16.mxu0 %v439
        %1031 = vmatpush1.bf16.msra.mxu0 %v438
        %1032 = vmatprep.subr.bf16.mxu0 %v441
        %1033 = vmatpush1.bf16.msra.mxu0 %v440
        %1034 = vmatprep.subr.bf16.mxu0 %v443
        %1035 = vmatpush1.bf16.msra.mxu0 %v442
        %1036 = vmatprep.subr.bf16.mxu0 %v445
        %1037 = vmatpush1.bf16.msra.mxu0 %v444
        %1038 = vmatprep.subr.bf16.mxu0 %v447
        %1039 = vmatpush1.bf16.msra.mxu0 %v446
        %1040 = vmatprep.subr.bf16.mxu0 %v449
        %1041 = vmatpush1.bf16.msra.mxu0 %v448
        %1042 = vmatprep.subr.bf16.mxu0 %v451
        %1043 = vmatpush1.bf16.msra.mxu0 %v450
        %1044 = vmatprep.subr.bf16.mxu0 %v453
        %1045 = vmatpush1.bf16.msra.mxu0 %v452
        %1046 = vmatprep.subr.bf16.mxu0 %v455
        %1047 = vmatpush1.bf16.msra.mxu0 %v454
        %1048 = vmatprep.subr.bf16.mxu0 %v457
        %1049 = vmatpush1.bf16.msra.mxu0 %v456
        %1050 = vmatprep.subr.bf16.mxu0 %v459
        %1051 = vmatpush1.bf16.msra.mxu0 %v458
        %1052 = vmatprep.subr.bf16.mxu0 %v461
        %1053 = vmatpush1.bf16.msra.mxu0 %v460
        %1054 = vmatprep.subr.bf16.mxu0 %v463
        %1055 = vmatpush1.bf16.msra.mxu0 %v462
        %1056 = vmatprep.mubr.bf16.mxu0 %v932
        %1057 = vmatmul.mubr.bf16.gmra.mrb[0].mxu0 %v924
        %v1058 = vpop.f32.mrb[0].mxu0
        %v1059 = vadd.f32 %v1018, %v1058
        %v1060 = vpop.f32.mrb[0].mxu0
        %v1061 = vadd.f32 %v1020, %v1060
        %v1062 = vpop.f32.mrb[0].mxu0
        %v1063 = vpop.f32.mrb[0].mxu0
        %1064 = vdwg.mxu0
        %1065 = vmatprep.subr.bf16.mxu0 %v465
        %1066 = vmatpush1.bf16.msra.mxu0 %v464
        %1067 = vmatprep.subr.bf16.mxu0 %v467
        %1068 = vmatpush1.bf16.msra.mxu0 %v466
        %1069 = vmatprep.subr.bf16.mxu0 %v469
        %1070 = vmatpush1.bf16.msra.mxu0 %v468
        %1071 = vmatprep.subr.bf16.mxu0 %v471
        %1072 = vmatpush1.bf16.msra.mxu0 %v470
        %1073 = vmatprep.subr.bf16.mxu0 %v473
        %1074 = vmatpush1.bf16.msra.mxu0 %v472
        %1075 = vmatprep.subr.bf16.mxu0 %v475
        %1076 = vmatpush1.bf16.msra.mxu0 %v474
        %1077 = vmatprep.subr.bf16.mxu0 %v477
        %1078 = vmatpush1.bf16.msra.mxu0 %v476
        %1079 = vmatprep.subr.bf16.mxu0 %v479
        %1080 = vmatpush1.bf16.msra.mxu0 %v478
        %1081 = vmatprep.subr.bf16.mxu0 %v481
        %1082 = vmatpush1.bf16.msra.mxu0 %v480
        %1083 = vmatprep.subr.bf16.mxu0 %v483
        %1084 = vmatpush1.bf16.msra.mxu0 %v482
        %1085 = vmatprep.subr.bf16.mxu0 %v485
        %1086 = vmatpush1.bf16.msra.mxu0 %v484
        %1087 = vmatprep.subr.bf16.mxu0 %v487
        %1088 = vmatpush1.bf16.msra.mxu0 %v486
        %1089 = vmatprep.subr.bf16.mxu0 %v489
        %1090 = vmatpush1.bf16.msra.mxu0 %v488
        %1091 = vmatprep.subr.bf16.mxu0 %v491
        %1092 = vmatpush1.bf16.msra.mxu0 %v490
        %1093 = vmatprep.subr.bf16.mxu0 %v493
        %1094 = vmatpush1.bf16.msra.mxu0 %v492
        %1095 = vmatprep.subr.bf16.mxu0 %v495
        %1096 = vmatpush1.bf16.msra.mxu0 %v494
        %1097 = vmatprep.mubr.bf16.mxu0 %v933
        %1098 = vmatmul.mubr.bf16.gmra.mrb[0].mxu0 %v931
        %v1099 = vpop.f32.mrb[0].mxu0
        %v1100 = vadd.f32 %v1059, %v1099
        %v1101 = vpop.f32.mrb[0].mxu0
        %v1102 = vadd.f32 %v1061, %v1101
        %v1103 = vpop.f32.mrb[0].mxu0
        %v1104 = vpop.f32.mrb[0].mxu0
        %1105 = vdwg.mxu0
        %v1106 = vld [vmem:[%s294 + $0x20] sm:$0xff]
        %v1107 = vld [vmem:[%s294 + $0x28] sm:$0xff]
        %v1108 = vld [vmem:[%s251 + $0x400] sm:$0xff]
        %v1109 = vld [vmem:[%s251 + $0x408] sm:$0xff]
        %v1110 = vld [vmem:[%s251 + $0x410] sm:$0xff]
        %v1111 = vld [vmem:[%s251 + $0x418] sm:$0xff]
        %v1112 = vld [vmem:[%s251 + $0x420] sm:$0xff]
        %v1113 = vld [vmem:[%s251 + $0x428] sm:$0xff]
        %v1114 = vld [vmem:[%s251 + $0x430] sm:$0xff]
        %v1115 = vld [vmem:[%s251 + $0x438] sm:$0xff]
        %v1116 = vld [vmem:[%s251 + $0x440] sm:$0xff]
        %v1117 = vld [vmem:[%s251 + $0x448] sm:$0xff]
        %v1118 = vld [vmem:[%s251 + $0x450] sm:$0xff]
        %v1119 = vld [vmem:[%s251 + $0x458] sm:$0xff]
        %v1120 = vld [vmem:[%s251 + $0x460] sm:$0xff]
        %v1121 = vld [vmem:[%s251 + $0x468] sm:$0xff]
        %v1122 = vld [vmem:[%s251 + $0x470] sm:$0xff]
        %v1123 = vld [vmem:[%s251 + $0x478] sm:$0xff]
        %v1124 = vld [vmem:[%s251 + $0x480] sm:$0xff]
        %v1125 = vld [vmem:[%s251 + $0x488] sm:$0xff]
        %v1126 = vld [vmem:[%s251 + $0x490] sm:$0xff]
        %v1127 = vld [vmem:[%s251 + $0x498] sm:$0xff]
        %v1128 = vld [vmem:[%s251 + $0x4a0] sm:$0xff]
        %v1129 = vld [vmem:[%s251 + $0x4a8] sm:$0xff]
        %v1130 = vld [vmem:[%s251 + $0x4b0] sm:$0xff]
        %v1131 = vld [vmem:[%s251 + $0x4b8] sm:$0xff]
        %v1132 = vld [vmem:[%s251 + $0x4c0] sm:$0xff]
        %v1133 = vld [vmem:[%s251 + $0x4c8] sm:$0xff]
        %v1134 = vld [vmem:[%s251 + $0x4d0] sm:$0xff]
        %v1135 = vld [vmem:[%s251 + $0x4d8] sm:$0xff]
        %v1136 = vld [vmem:[%s251 + $0x4e0] sm:$0xff]
        %v1137 = vld [vmem:[%s251 + $0x4e8] sm:$0xff]
        %v1138 = vld [vmem:[%s251 + $0x4f0] sm:$0xff]
        %v1139 = vld [vmem:[%s251 + $0x4f8] sm:$0xff]
        %v1140 = vld [vmem:[%s251 + $0x500] sm:$0xff]
        %v1141 = vld [vmem:[%s251 + $0x508] sm:$0xff]
        %v1142 = vld [vmem:[%s251 + $0x510] sm:$0xff]
        %v1143 = vld [vmem:[%s251 + $0x518] sm:$0xff]
        %v1144 = vld [vmem:[%s251 + $0x520] sm:$0xff]
        %v1145 = vld [vmem:[%s251 + $0x528] sm:$0xff]
        %v1146 = vld [vmem:[%s251 + $0x530] sm:$0xff]
        %v1147 = vld [vmem:[%s251 + $0x538] sm:$0xff]
        %v1148 = vld [vmem:[%s251 + $0x540] sm:$0xff]
        %v1149 = vld [vmem:[%s251 + $0x548] sm:$0xff]
        %v1150 = vld [vmem:[%s251 + $0x550] sm:$0xff]
        %v1151 = vld [vmem:[%s251 + $0x558] sm:$0xff]
        %v1152 = vld [vmem:[%s251 + $0x560] sm:$0xff]
        %v1153 = vld [vmem:[%s251 + $0x568] sm:$0xff]
        %v1154 = vld [vmem:[%s251 + $0x570] sm:$0xff]
        %v1155 = vld [vmem:[%s251 + $0x578] sm:$0xff]
        %v1156 = vld [vmem:[%s251 + $0x580] sm:$0xff]
        %v1157 = vld [vmem:[%s251 + $0x588] sm:$0xff]
        %v1158 = vld [vmem:[%s251 + $0x590] sm:$0xff]
        %v1159 = vld [vmem:[%s251 + $0x598] sm:$0xff]
        %v1160 = vld [vmem:[%s251 + $0x5a0] sm:$0xff]
        %v1161 = vld [vmem:[%s251 + $0x5a8] sm:$0xff]
        %v1162 = vld [vmem:[%s251 + $0x5b0] sm:$0xff]
        %v1163 = vld [vmem:[%s251 + $0x5b8] sm:$0xff]
        %v1164 = vld [vmem:[%s251 + $0x5c0] sm:$0xff]
        %v1165 = vld [vmem:[%s251 + $0x5c8] sm:$0xff]
        %v1166 = vld [vmem:[%s251 + $0x5d0] sm:$0xff]
        %v1167 = vld [vmem:[%s251 + $0x5d8] sm:$0xff]
        %v1168 = vld [vmem:[%s251 + $0x5e0] sm:$0xff]
        %v1169 = vld [vmem:[%s251 + $0x5e8] sm:$0xff]
        %v1170 = vld [vmem:[%s251 + $0x5f0] sm:$0xff]
        %v1171 = vld [vmem:[%s251 + $0x5f8] sm:$0xff]
        %v1172 = vunpack.c.l.s8.bf16 %v1108
        %v1173 = vunpack.c.l.s8.bf16 %v1109
        %v1174 = vunpack.c.h.s8.bf16 %v1108
        %v1175 = vunpack.c.h.s8.bf16 %v1109
        %v1176 = vunpack.c.l.s8.bf16 %v1110
        %v1177 = vunpack.c.l.s8.bf16 %v1111
        %v1178 = vunpack.c.h.s8.bf16 %v1110
        %v1179 = vunpack.c.h.s8.bf16 %v1111
        %v1180 = vunpack.c.l.s8.bf16 %v1112
        %v1181 = vunpack.c.l.s8.bf16 %v1113
        %v1182 = vunpack.c.h.s8.bf16 %v1112
        %v1183 = vunpack.c.h.s8.bf16 %v1113
        %v1184 = vunpack.c.l.s8.bf16 %v1114
        %v1185 = vunpack.c.l.s8.bf16 %v1115
        %v1186 = vunpack.c.h.s8.bf16 %v1114
        %v1187 = vunpack.c.h.s8.bf16 %v1115
        %v1188 = vunpack.c.l.s8.bf16 %v1116
        %v1189 = vunpack.c.l.s8.bf16 %v1117
        %v1190 = vunpack.c.h.s8.bf16 %v1116
        %v1191 = vunpack.c.h.s8.bf16 %v1117
        %v1192 = vunpack.c.l.s8.bf16 %v1118
        %v1193 = vunpack.c.l.s8.bf16 %v1119
        %v1194 = vunpack.c.h.s8.bf16 %v1118
        %v1195 = vunpack.c.h.s8.bf16 %v1119
        %v1196 = vunpack.c.l.s8.bf16 %v1120
        %v1197 = vunpack.c.l.s8.bf16 %v1121
        %v1198 = vunpack.c.h.s8.bf16 %v1120
        %v1199 = vunpack.c.h.s8.bf16 %v1121
        %v1200 = vunpack.c.l.s8.bf16 %v1122
        %v1201 = vunpack.c.l.s8.bf16 %v1123
        %v1202 = vunpack.c.h.s8.bf16 %v1122
        %v1203 = vunpack.c.h.s8.bf16 %v1123
        %v1204 = vunpack.c.l.s8.bf16 %v1124
        %v1205 = vunpack.c.l.s8.bf16 %v1125
        %v1206 = vunpack.c.h.s8.bf16 %v1124
        %v1207 = vunpack.c.h.s8.bf16 %v1125
        %v1208 = vunpack.c.l.s8.bf16 %v1126
        %v1209 = vunpack.c.l.s8.bf16 %v1127
        %v1210 = vunpack.c.h.s8.bf16 %v1126
        %v1211 = vunpack.c.h.s8.bf16 %v1127
        %v1212 = vunpack.c.l.s8.bf16 %v1128
        %v1213 = vunpack.c.l.s8.bf16 %v1129
        %v1214 = vunpack.c.h.s8.bf16 %v1128
        %v1215 = vunpack.c.h.s8.bf16 %v1129
        %v1216 = vunpack.c.l.s8.bf16 %v1130
        %v1217 = vunpack.c.l.s8.bf16 %v1131
        %v1218 = vunpack.c.h.s8.bf16 %v1130
        %v1219 = vunpack.c.h.s8.bf16 %v1131
        %v1220 = vunpack.c.l.s8.bf16 %v1132
        %v1221 = vunpack.c.l.s8.bf16 %v1133
        %v1222 = vunpack.c.h.s8.bf16 %v1132
        %v1223 = vunpack.c.h.s8.bf16 %v1133
        %v1224 = vunpack.c.l.s8.bf16 %v1134
        %v1225 = vunpack.c.l.s8.bf16 %v1135
        %v1226 = vunpack.c.h.s8.bf16 %v1134
        %v1227 = vunpack.c.h.s8.bf16 %v1135
        %v1228 = vunpack.c.l.s8.bf16 %v1136
        %v1229 = vunpack.c.l.s8.bf16 %v1137
        %v1230 = vunpack.c.h.s8.bf16 %v1136
        %v1231 = vunpack.c.h.s8.bf16 %v1137
        %v1232 = vunpack.c.l.s8.bf16 %v1138
        %v1233 = vunpack.c.l.s8.bf16 %v1139
        %v1234 = vunpack.c.h.s8.bf16 %v1138
        %v1235 = vunpack.c.h.s8.bf16 %v1139
        %v1236 = vunpack.c.l.s8.bf16 %v1140
        %v1237 = vunpack.c.l.s8.bf16 %v1141
        %v1238 = vunpack.c.h.s8.bf16 %v1140
        %v1239 = vunpack.c.h.s8.bf16 %v1141
        %v1240 = vunpack.c.l.s8.bf16 %v1142
        %v1241 = vunpack.c.l.s8.bf16 %v1143
        %v1242 = vunpack.c.h.s8.bf16 %v1142
        %v1243 = vunpack.c.h.s8.bf16 %v1143
        %v1244 = vunpack.c.l.s8.bf16 %v1144
        %v1245 = vunpack.c.l.s8.bf16 %v1145
        %v1246 = vunpack.c.h.s8.bf16 %v1144
        %v1247 = vunpack.c.h.s8.bf16 %v1145
        %v1248 = vunpack.c.l.s8.bf16 %v1146
        %v1249 = vunpack.c.l.s8.bf16 %v1147
        %v1250 = vunpack.c.h.s8.bf16 %v1146
        %v1251 = vunpack.c.h.s8.bf16 %v1147
        %v1252 = vunpack.c.l.s8.bf16 %v1148
        %v1253 = vunpack.c.l.s8.bf16 %v1149
        %v1254 = vunpack.c.h.s8.bf16 %v1148
        %v1255 = vunpack.c.h.s8.bf16 %v1149
        %v1256 = vunpack.c.l.s8.bf16 %v1150
        %v1257 = vunpack.c.l.s8.bf16 %v1151
        %v1258 = vunpack.c.h.s8.bf16 %v1150
        %v1259 = vunpack.c.h.s8.bf16 %v1151
        %v1260 = vunpack.c.l.s8.bf16 %v1152
        %v1261 = vunpack.c.l.s8.bf16 %v1153
        %v1262 = vunpack.c.h.s8.bf16 %v1152
        %v1263 = vunpack.c.h.s8.bf16 %v1153
        %v1264 = vunpack.c.l.s8.bf16 %v1154
        %v1265 = vunpack.c.l.s8.bf16 %v1155
        %v1266 = vunpack.c.h.s8.bf16 %v1154
        %v1267 = vunpack.c.h.s8.bf16 %v1155
        %v1268 = vunpack.c.l.s8.bf16 %v1156
        %v1269 = vunpack.c.l.s8.bf16 %v1157
        %v1270 = vunpack.c.h.s8.bf16 %v1156
        %v1271 = vunpack.c.h.s8.bf16 %v1157
        %v1272 = vunpack.c.l.s8.bf16 %v1158
        %v1273 = vunpack.c.l.s8.bf16 %v1159
        %v1274 = vunpack.c.h.s8.bf16 %v1158
        %v1275 = vunpack.c.h.s8.bf16 %v1159
        %v1276 = vunpack.c.l.s8.bf16 %v1160
        %v1277 = vunpack.c.l.s8.bf16 %v1161
        %v1278 = vunpack.c.h.s8.bf16 %v1160
        %v1279 = vunpack.c.h.s8.bf16 %v1161
        %v1280 = vunpack.c.l.s8.bf16 %v1162
        %v1281 = vunpack.c.l.s8.bf16 %v1163
        %v1282 = vunpack.c.h.s8.bf16 %v1162
        %v1283 = vunpack.c.h.s8.bf16 %v1163
        %v1284 = vunpack.c.l.s8.bf16 %v1164
        %v1285 = vunpack.c.l.s8.bf16 %v1165
        %v1286 = vunpack.c.h.s8.bf16 %v1164
        %v1287 = vunpack.c.h.s8.bf16 %v1165
        %v1288 = vunpack.c.l.s8.bf16 %v1166
        %v1289 = vunpack.c.l.s8.bf16 %v1167
        %v1290 = vunpack.c.h.s8.bf16 %v1166
        %v1291 = vunpack.c.h.s8.bf16 %v1167
        %v1292 = vunpack.c.l.s8.bf16 %v1168
        %v1293 = vunpack.c.l.s8.bf16 %v1169
        %v1294 = vunpack.c.h.s8.bf16 %v1168
        %v1295 = vunpack.c.h.s8.bf16 %v1169
        %v1296 = vunpack.c.l.s8.bf16 %v1170
        %v1297 = vunpack.c.l.s8.bf16 %v1171
        %v1298 = vunpack.c.h.s8.bf16 %v1170
        %v1299 = vunpack.c.h.s8.bf16 %v1171
        %v1302 = vcombine.high %v1106, %v1106
        %v1304 = vunpack.c.l.s4 1983009808
        %v1305 = vunpack.c.0.s8 %v1304
        %v1306 = vlaneseq
        %v1307 = vshrl.u32 %v1306, 7
        %v1308 = vsub.s32 %v1305, %v1307
        %v1309 = vrot.slane %v1106, %v1308
        %v1311 = vunpack.c.l.s4 1983009808
        %v1312 = vunpack.c.0.s8 %v1311
        %v1313 = vlaneseq
        %v1314 = vshrl.u32 %v1313, 7
        %v1315 = vsub.s32 %v1312, %v1314
        %v1316 = vrot.slane %v1302, %v1315
        %v1317 = vcombine.high %v1309, %v1309
        %v1318 = vcombine.high %v1316, %v1316
        %v1319 = vcombine.high %v1107, %v1107
        %v1321 = vunpack.c.l.s4 1983009808
        %v1322 = vunpack.c.0.s8 %v1321
        %v1323 = vlaneseq
        %v1324 = vshrl.u32 %v1323, 7
        %v1325 = vsub.s32 %v1322, %v1324
        %v1326 = vrot.slane %v1107, %v1325
        %v1328 = vunpack.c.l.s4 1983009808
        %v1329 = vunpack.c.0.s8 %v1328
        %v1330 = vlaneseq
        %v1331 = vshrl.u32 %v1330, 7
        %v1332 = vsub.s32 %v1329, %v1331
        %v1333 = vrot.slane %v1319, %v1332
        %v1334 = vcombine.high %v1326, %v1326
        %v1335 = vcombine.high %v1333, %v1333
        %1344 = vmatprep.subr.bf16.mxu0 %v1173
        %1345 = vmatpush1.bf16.msra.mxu0 %v1172
        %1346 = vmatprep.subr.bf16.mxu0 %v1175
        %1347 = vmatpush1.bf16.msra.mxu0 %v1174
        %1348 = vmatprep.subr.bf16.mxu0 %v1177
        %1349 = vmatpush1.bf16.msra.mxu0 %v1176
        %1350 = vmatprep.subr.bf16.mxu0 %v1179
        %1351 = vmatpush1.bf16.msra.mxu0 %v1178
        %1352 = vmatprep.subr.bf16.mxu0 %v1181
        %1353 = vmatpush1.bf16.msra.mxu0 %v1180
        %1354 = vmatprep.subr.bf16.mxu0 %v1183
        %1355 = vmatpush1.bf16.msra.mxu0 %v1182
        %1356 = vmatprep.subr.bf16.mxu0 %v1185
        %1357 = vmatpush1.bf16.msra.mxu0 %v1184
        %1358 = vmatprep.subr.bf16.mxu0 %v1187
        %1359 = vmatpush1.bf16.msra.mxu0 %v1186
        %1360 = vmatprep.subr.bf16.mxu0 %v1189
        %1361 = vmatpush1.bf16.msra.mxu0 %v1188
        %1362 = vmatprep.subr.bf16.mxu0 %v1191
        %1363 = vmatpush1.bf16.msra.mxu0 %v1190
        %1364 = vmatprep.subr.bf16.mxu0 %v1193
        %1365 = vmatpush1.bf16.msra.mxu0 %v1192
        %1366 = vmatprep.subr.bf16.mxu0 %v1195
        %1367 = vmatpush1.bf16.msra.mxu0 %v1194
        %1368 = vmatprep.subr.bf16.mxu0 %v1197
        %1369 = vmatpush1.bf16.msra.mxu0 %v1196
        %1370 = vmatprep.subr.bf16.mxu0 %v1199
        %1371 = vmatpush1.bf16.msra.mxu0 %v1198
        %1372 = vmatprep.subr.bf16.mxu0 %v1201
        %1373 = vmatpush1.bf16.msra.mxu0 %v1200
        %1374 = vmatprep.subr.bf16.mxu0 %v1203
        %1375 = vmatpush1.bf16.msra.mxu0 %v1202
        %1376 = vmatprep.mubr.bf16.mxu0 %v1317
        %1377 = vmatmul.mubr.bf16.gmra.mrb[0].mxu0 %v1309
        %v1378 = vpop.f32.mrb[0].mxu0
        %v1379 = vadd.f32 0.0, %v1378
        %v1380 = vpop.f32.mrb[0].mxu0
        %v1381 = vadd.f32 0.0, %v1380
        %v1382 = vpop.f32.mrb[0].mxu0
        %v1383 = vpop.f32.mrb[0].mxu0
        %1384 = vdwg.mxu0
        %1385 = vmatprep.subr.bf16.mxu0 %v1205
        %1386 = vmatpush1.bf16.msra.mxu0 %v1204
        %1387 = vmatprep.subr.bf16.mxu0 %v1207
        %1388 = vmatpush1.bf16.msra.mxu0 %v1206
        %1389 = vmatprep.subr.bf16.mxu0 %v1209
        %1390 = vmatpush1.bf16.msra.mxu0 %v1208
        %1391 = vmatprep.subr.bf16.mxu0 %v1211
        %1392 = vmatpush1.bf16.msra.mxu0 %v1210
        %1393 = vmatprep.subr.bf16.mxu0 %v1213
        %1394 = vmatpush1.bf16.msra.mxu0 %v1212
        %1395 = vmatprep.subr.bf16.mxu0 %v1215
        %1396 = vmatpush1.bf16.msra.mxu0 %v1214
        %1397 = vmatprep.subr.bf16.mxu0 %v1217
        %1398 = vmatpush1.bf16.msra.mxu0 %v1216
        %1399 = vmatprep.subr.bf16.mxu0 %v1219
        %1400 = vmatpush1.bf16.msra.mxu0 %v1218
        %1401 = vmatprep.subr.bf16.mxu0 %v1221
        %1402 = vmatpush1.bf16.msra.mxu0 %v1220
        %1403 = vmatprep.subr.bf16.mxu0 %v1223
        %1404 = vmatpush1.bf16.msra.mxu0 %v1222
        %1405 = vmatprep.subr.bf16.mxu0 %v1225
        %1406 = vmatpush1.bf16.msra.mxu0 %v1224
        %1407 = vmatprep.subr.bf16.mxu0 %v1227
        %1408 = vmatpush1.bf16.msra.mxu0 %v1226
        %1409 = vmatprep.subr.bf16.mxu0 %v1229
        %1410 = vmatpush1.bf16.msra.mxu0 %v1228
        %1411 = vmatprep.subr.bf16.mxu0 %v1231
        %1412 = vmatpush1.bf16.msra.mxu0 %v1230
        %1413 = vmatprep.subr.bf16.mxu0 %v1233
        %1414 = vmatpush1.bf16.msra.mxu0 %v1232
        %1415 = vmatprep.subr.bf16.mxu0 %v1235
        %1416 = vmatpush1.bf16.msra.mxu0 %v1234
        %1417 = vmatprep.mubr.bf16.mxu0 %v1318
        %1418 = vmatmul.mubr.bf16.gmra.mrb[0].mxu0 %v1316
        %v1419 = vpop.f32.mrb[0].mxu0
        %v1420 = vadd.f32 %v1379, %v1419
        %v1421 = vpop.f32.mrb[0].mxu0
        %v1422 = vadd.f32 %v1381, %v1421
        %v1423 = vpop.f32.mrb[0].mxu0
        %v1424 = vpop.f32.mrb[0].mxu0
        %1425 = vdwg.mxu0
        %1426 = vmatprep.subr.bf16.mxu0 %v1237
        %1427 = vmatpush1.bf16.msra.mxu0 %v1236
        %1428 = vmatprep.subr.bf16.mxu0 %v1239
        %1429 = vmatpush1.bf16.msra.mxu0 %v1238
        %1430 = vmatprep.subr.bf16.mxu0 %v1241
        %1431 = vmatpush1.bf16.msra.mxu0 %v1240
        %1432 = vmatprep.subr.bf16.mxu0 %v1243
        %1433 = vmatpush1.bf16.msra.mxu0 %v1242
        %1434 = vmatprep.subr.bf16.mxu0 %v1245
        %1435 = vmatpush1.bf16.msra.mxu0 %v1244
        %1436 = vmatprep.subr.bf16.mxu0 %v1247
        %1437 = vmatpush1.bf16.msra.mxu0 %v1246
        %1438 = vmatprep.subr.bf16.mxu0 %v1249
        %1439 = vmatpush1.bf16.msra.mxu0 %v1248
        %1440 = vmatprep.subr.bf16.mxu0 %v1251
        %1441 = vmatpush1.bf16.msra.mxu0 %v1250
        %1442 = vmatprep.subr.bf16.mxu0 %v1253
        %1443 = vmatpush1.bf16.msra.mxu0 %v1252
        %1444 = vmatprep.subr.bf16.mxu0 %v1255
        %1445 = vmatpush1.bf16.msra.mxu0 %v1254
        %1446 = vmatprep.subr.bf16.mxu0 %v1257
        %1447 = vmatpush1.bf16.msra.mxu0 %v1256
        %1448 = vmatprep.subr.bf16.mxu0 %v1259
        %1449 = vmatpush1.bf16.msra.mxu0 %v1258
        %1450 = vmatprep.subr.bf16.mxu0 %v1261
        %1451 = vmatpush1.bf16.msra.mxu0 %v1260
        %1452 = vmatprep.subr.bf16.mxu0 %v1263
        %1453 = vmatpush1.bf16.msra.mxu0 %v1262
        %1454 = vmatprep.subr.bf16.mxu0 %v1265
        %1455 = vmatpush1.bf16.msra.mxu0 %v1264
        %1456 = vmatprep.subr.bf16.mxu0 %v1267
        %1457 = vmatpush1.bf16.msra.mxu0 %v1266
        %1458 = vmatprep.mubr.bf16.mxu0 %v1334
        %1459 = vmatmul.mubr.bf16.gmra.mrb[0].mxu0 %v1326
        %v1460 = vpop.f32.mrb[0].mxu0
        %v1461 = vadd.f32 %v1420, %v1460
        %v1462 = vpop.f32.mrb[0].mxu0
        %v1463 = vadd.f32 %v1422, %v1462
        %v1464 = vpop.f32.mrb[0].mxu0
        %v1465 = vpop.f32.mrb[0].mxu0
        %1466 = vdwg.mxu0
        %1467 = vmatprep.subr.bf16.mxu0 %v1269
        %1468 = vmatpush1.bf16.msra.mxu0 %v1268
        %1469 = vmatprep.subr.bf16.mxu0 %v1271
        %1470 = vmatpush1.bf16.msra.mxu0 %v1270
        %1471 = vmatprep.subr.bf16.mxu0 %v1273
        %1472 = vmatpush1.bf16.msra.mxu0 %v1272
        %1473 = vmatprep.subr.bf16.mxu0 %v1275
        %1474 = vmatpush1.bf16.msra.mxu0 %v1274
        %1475 = vmatprep.subr.bf16.mxu0 %v1277
        %1476 = vmatpush1.bf16.msra.mxu0 %v1276
        %1477 = vmatprep.subr.bf16.mxu0 %v1279
        %1478 = vmatpush1.bf16.msra.mxu0 %v1278
        %1479 = vmatprep.subr.bf16.mxu0 %v1281
        %1480 = vmatpush1.bf16.msra.mxu0 %v1280
        %1481 = vmatprep.subr.bf16.mxu0 %v1283
        %1482 = vmatpush1.bf16.msra.mxu0 %v1282
        %1483 = vmatprep.subr.bf16.mxu0 %v1285
        %1484 = vmatpush1.bf16.msra.mxu0 %v1284
        %1485 = vmatprep.subr.bf16.mxu0 %v1287
        %1486 = vmatpush1.bf16.msra.mxu0 %v1286
        %1487 = vmatprep.subr.bf16.mxu0 %v1289
        %1488 = vmatpush1.bf16.msra.mxu0 %v1288
        %1489 = vmatprep.subr.bf16.mxu0 %v1291
        %1490 = vmatpush1.bf16.msra.mxu0 %v1290
        %1491 = vmatprep.subr.bf16.mxu0 %v1293
        %1492 = vmatpush1.bf16.msra.mxu0 %v1292
        %1493 = vmatprep.subr.bf16.mxu0 %v1295
        %1494 = vmatpush1.bf16.msra.mxu0 %v1294
        %1495 = vmatprep.subr.bf16.mxu0 %v1297
        %1496 = vmatpush1.bf16.msra.mxu0 %v1296
        %1497 = vmatprep.subr.bf16.mxu0 %v1299
        %1498 = vmatpush1.bf16.msra.mxu0 %v1298
        %1499 = vmatprep.mubr.bf16.mxu0 %v1335
        %1500 = vmatmul.mubr.bf16.gmra.mrb[0].mxu0 %v1333
        %v1501 = vpop.f32.mrb[0].mxu0
        %v1502 = vadd.f32 %v1461, %v1501
        %v1503 = vpop.f32.mrb[0].mxu0
        %v1504 = vadd.f32 %v1463, %v1503
        %v1505 = vpop.f32.mrb[0].mxu0
        %v1506 = vpop.f32.mrb[0].mxu0
        %1507 = vdwg.mxu0
        %v1508 = vadd.f32 %v1100, %v1502
        %v1509 = vadd.f32 %v1102, %v1504
        %v1510 = vld [vmem:[%s294 + $0x30] sm:$0xff]
        %v1511 = vld [vmem:[%s294 + $0x38] sm:$0xff]
        %v1512 = vld [vmem:[%s251 + $0x600] sm:$0xff]
        %v1513 = vld [vmem:[%s251 + $0x608] sm:$0xff]
        %v1514 = vld [vmem:[%s251 + $0x610] sm:$0xff]
        %v1515 = vld [vmem:[%s251 + $0x618] sm:$0xff]
        %v1516 = vld [vmem:[%s251 + $0x620] sm:$0xff]
        %v1517 = vld [vmem:[%s251 + $0x628] sm:$0xff]
        %v1518 = vld [vmem:[%s251 + $0x630] sm:$0xff]
        %v1519 = vld [vmem:[%s251 + $0x638] sm:$0xff]
        %v1520 = vld [vmem:[%s251 + $0x640] sm:$0xff]
        %v1521 = vld [vmem:[%s251 + $0x648] sm:$0xff]
        %v1522 = vld [vmem:[%s251 + $0x650] sm:$0xff]
        %v1523 = vld [vmem:[%s251 + $0x658] sm:$0xff]
        %v1524 = vld [vmem:[%s251 + $0x660] sm:$0xff]
        %v1525 = vld [vmem:[%s251 + $0x668] sm:$0xff]
        %v1526 = vld [vmem:[%s251 + $0x670] sm:$0xff]
        %v1527 = vld [vmem:[%s251 + $0x678] sm:$0xff]
        %v1528 = vld [vmem:[%s251 + $0x680] sm:$0xff]
        %v1529 = vld [vmem:[%s251 + $0x688] sm:$0xff]
        %v1530 = vld [vmem:[%s251 + $0x690] sm:$0xff]
        %v1531 = vld [vmem:[%s251 + $0x698] sm:$0xff]
        %v1532 = vld [vmem:[%s251 + $0x6a0] sm:$0xff]
        %v1533 = vld [vmem:[%s251 + $0x6a8] sm:$0xff]
        %v1534 = vld [vmem:[%s251 + $0x6b0] sm:$0xff]
        %v1535 = vld [vmem:[%s251 + $0x6b8] sm:$0xff]
        %v1536 = vld [vmem:[%s251 + $0x6c0] sm:$0xff]
        %v1537 = vld [vmem:[%s251 + $0x6c8] sm:$0xff]
        %v1538 = vld [vmem:[%s251 + $0x6d0] sm:$0xff]
        %v1539 = vld [vmem:[%s251 + $0x6d8] sm:$0xff]
        %v1540 = vld [vmem:[%s251 + $0x6e0] sm:$0xff]
        %v1541 = vld [vmem:[%s251 + $0x6e8] sm:$0xff]
        %v1542 = vld [vmem:[%s251 + $0x6f0] sm:$0xff]
        %v1543 = vld [vmem:[%s251 + $0x6f8] sm:$0xff]
        %v1544 = vld [vmem:[%s251 + $0x700] sm:$0xff]
        %v1545 = vld [vmem:[%s251 + $0x708] sm:$0xff]
        %v1546 = vld [vmem:[%s251 + $0x710] sm:$0xff]
        %v1547 = vld [vmem:[%s251 + $0x718] sm:$0xff]
        %v1548 = vld [vmem:[%s251 + $0x720] sm:$0xff]
        %v1549 = vld [vmem:[%s251 + $0x728] sm:$0xff]
        %v1550 = vld [vmem:[%s251 + $0x730] sm:$0xff]
        %v1551 = vld [vmem:[%s251 + $0x738] sm:$0xff]
        %v1552 = vld [vmem:[%s251 + $0x740] sm:$0xff]
        %v1553 = vld [vmem:[%s251 + $0x748] sm:$0xff]
        %v1554 = vld [vmem:[%s251 + $0x750] sm:$0xff]
        %v1555 = vld [vmem:[%s251 + $0x758] sm:$0xff]
        %v1556 = vld [vmem:[%s251 + $0x760] sm:$0xff]
        %v1557 = vld [vmem:[%s251 + $0x768] sm:$0xff]
        %v1558 = vld [vmem:[%s251 + $0x770] sm:$0xff]
        %v1559 = vld [vmem:[%s251 + $0x778] sm:$0xff]
        %v1560 = vld [vmem:[%s251 + $0x780] sm:$0xff]
        %v1561 = vld [vmem:[%s251 + $0x788] sm:$0xff]
        %v1562 = vld [vmem:[%s251 + $0x790] sm:$0xff]
        %v1563 = vld [vmem:[%s251 + $0x798] sm:$0xff]
        %v1564 = vld [vmem:[%s251 + $0x7a0] sm:$0xff]
        %v1565 = vld [vmem:[%s251 + $0x7a8] sm:$0xff]
        %v1566 = vld [vmem:[%s251 + $0x7b0] sm:$0xff]
        %v1567 = vld [vmem:[%s251 + $0x7b8] sm:$0xff]
        %v1568 = vld [vmem:[%s251 + $0x7c0] sm:$0xff]
        %v1569 = vld [vmem:[%s251 + $0x7c8] sm:$0xff]
        %v1570 = vld [vmem:[%s251 + $0x7d0] sm:$0xff]
        %v1571 = vld [vmem:[%s251 + $0x7d8] sm:$0xff]
        %v1572 = vld [vmem:[%s251 + $0x7e0] sm:$0xff]
        %v1573 = vld [vmem:[%s251 + $0x7e8] sm:$0xff]
        %v1574 = vld [vmem:[%s251 + $0x7f0] sm:$0xff]
        %v1575 = vld [vmem:[%s251 + $0x7f8] sm:$0xff]
        %v1576 = vunpack.c.l.s8.bf16 %v1512
        %v1577 = vunpack.c.l.s8.bf16 %v1513
        %v1578 = vunpack.c.h.s8.bf16 %v1512
        %v1579 = vunpack.c.h.s8.bf16 %v1513
        %v1580 = vunpack.c.l.s8.bf16 %v1514
        %v1581 = vunpack.c.l.s8.bf16 %v1515
        %v1582 = vunpack.c.h.s8.bf16 %v1514
        %v1583 = vunpack.c.h.s8.bf16 %v1515
        %v1584 = vunpack.c.l.s8.bf16 %v1516
        %v1585 = vunpack.c.l.s8.bf16 %v1517
        %v1586 = vunpack.c.h.s8.bf16 %v1516
        %v1587 = vunpack.c.h.s8.bf16 %v1517
        %v1588 = vunpack.c.l.s8.bf16 %v1518
        %v1589 = vunpack.c.l.s8.bf16 %v1519
        %v1590 = vunpack.c.h.s8.bf16 %v1518
        %v1591 = vunpack.c.h.s8.bf16 %v1519
        %v1592 = vunpack.c.l.s8.bf16 %v1520
        %v1593 = vunpack.c.l.s8.bf16 %v1521
        %v1594 = vunpack.c.h.s8.bf16 %v1520
        %v1595 = vunpack.c.h.s8.bf16 %v1521
        %v1596 = vunpack.c.l.s8.bf16 %v1522
        %v1597 = vunpack.c.l.s8.bf16 %v1523
        %v1598 = vunpack.c.h.s8.bf16 %v1522
        %v1599 = vunpack.c.h.s8.bf16 %v1523
        %v1600 = vunpack.c.l.s8.bf16 %v1524
        %v1601 = vunpack.c.l.s8.bf16 %v1525
        %v1602 = vunpack.c.h.s8.bf16 %v1524
        %v1603 = vunpack.c.h.s8.bf16 %v1525
        %v1604 = vunpack.c.l.s8.bf16 %v1526
        %v1605 = vunpack.c.l.s8.bf16 %v1527
        %v1606 = vunpack.c.h.s8.bf16 %v1526
        %v1607 = vunpack.c.h.s8.bf16 %v1527
        %v1608 = vunpack.c.l.s8.bf16 %v1528
        %v1609 = vunpack.c.l.s8.bf16 %v1529
        %v1610 = vunpack.c.h.s8.bf16 %v1528
        %v1611 = vunpack.c.h.s8.bf16 %v1529
        %v1612 = vunpack.c.l.s8.bf16 %v1530
        %v1613 = vunpack.c.l.s8.bf16 %v1531
        %v1614 = vunpack.c.h.s8.bf16 %v1530
        %v1615 = vunpack.c.h.s8.bf16 %v1531
        %v1616 = vunpack.c.l.s8.bf16 %v1532
        %v1617 = vunpack.c.l.s8.bf16 %v1533
        %v1618 = vunpack.c.h.s8.bf16 %v1532
        %v1619 = vunpack.c.h.s8.bf16 %v1533
        %v1620 = vunpack.c.l.s8.bf16 %v1534
        %v1621 = vunpack.c.l.s8.bf16 %v1535
        %v1622 = vunpack.c.h.s8.bf16 %v1534
        %v1623 = vunpack.c.h.s8.bf16 %v1535
        %v1624 = vunpack.c.l.s8.bf16 %v1536
        %v1625 = vunpack.c.l.s8.bf16 %v1537
        %v1626 = vunpack.c.h.s8.bf16 %v1536
        %v1627 = vunpack.c.h.s8.bf16 %v1537
        %v1628 = vunpack.c.l.s8.bf16 %v1538
        %v1629 = vunpack.c.l.s8.bf16 %v1539
        %v1630 = vunpack.c.h.s8.bf16 %v1538
        %v1631 = vunpack.c.h.s8.bf16 %v1539
        %v1632 = vunpack.c.l.s8.bf16 %v1540
        %v1633 = vunpack.c.l.s8.bf16 %v1541
        %v1634 = vunpack.c.h.s8.bf16 %v1540
        %v1635 = vunpack.c.h.s8.bf16 %v1541
        %v1636 = vunpack.c.l.s8.bf16 %v1542
        %v1637 = vunpack.c.l.s8.bf16 %v1543
        %v1638 = vunpack.c.h.s8.bf16 %v1542
        %v1639 = vunpack.c.h.s8.bf16 %v1543
        %v1640 = vunpack.c.l.s8.bf16 %v1544
        %v1641 = vunpack.c.l.s8.bf16 %v1545
        %v1642 = vunpack.c.h.s8.bf16 %v1544
        %v1643 = vunpack.c.h.s8.bf16 %v1545
        %v1644 = vunpack.c.l.s8.bf16 %v1546
        %v1645 = vunpack.c.l.s8.bf16 %v1547
        %v1646 = vunpack.c.h.s8.bf16 %v1546
        %v1647 = vunpack.c.h.s8.bf16 %v1547
        %v1648 = vunpack.c.l.s8.bf16 %v1548
        %v1649 = vunpack.c.l.s8.bf16 %v1549
        %v1650 = vunpack.c.h.s8.bf16 %v1548
        %v1651 = vunpack.c.h.s8.bf16 %v1549
        %v1652 = vunpack.c.l.s8.bf16 %v1550
        %v1653 = vunpack.c.l.s8.bf16 %v1551
        %v1654 = vunpack.c.h.s8.bf16 %v1550
        %v1655 = vunpack.c.h.s8.bf16 %v1551
        %v1656 = vunpack.c.l.s8.bf16 %v1552
        %v1657 = vunpack.c.l.s8.bf16 %v1553
        %v1658 = vunpack.c.h.s8.bf16 %v1552
        %v1659 = vunpack.c.h.s8.bf16 %v1553
        %v1660 = vunpack.c.l.s8.bf16 %v1554
        %v1661 = vunpack.c.l.s8.bf16 %v1555
        %v1662 = vunpack.c.h.s8.bf16 %v1554
        %v1663 = vunpack.c.h.s8.bf16 %v1555
        %v1664 = vunpack.c.l.s8.bf16 %v1556
        %v1665 = vunpack.c.l.s8.bf16 %v1557
        %v1666 = vunpack.c.h.s8.bf16 %v1556
        %v1667 = vunpack.c.h.s8.bf16 %v1557
        %v1668 = vunpack.c.l.s8.bf16 %v1558
        %v1669 = vunpack.c.l.s8.bf16 %v1559
        %v1670 = vunpack.c.h.s8.bf16 %v1558
        %v1671 = vunpack.c.h.s8.bf16 %v1559
        %v1672 = vunpack.c.l.s8.bf16 %v1560
        %v1673 = vunpack.c.l.s8.bf16 %v1561
        %v1674 = vunpack.c.h.s8.bf16 %v1560
        %v1675 = vunpack.c.h.s8.bf16 %v1561
        %v1676 = vunpack.c.l.s8.bf16 %v1562
        %v1677 = vunpack.c.l.s8.bf16 %v1563
        %v1678 = vunpack.c.h.s8.bf16 %v1562
        %v1679 = vunpack.c.h.s8.bf16 %v1563
        %v1680 = vunpack.c.l.s8.bf16 %v1564
        %v1681 = vunpack.c.l.s8.bf16 %v1565
        %v1682 = vunpack.c.h.s8.bf16 %v1564
        %v1683 = vunpack.c.h.s8.bf16 %v1565
        %v1684 = vunpack.c.l.s8.bf16 %v1566
        %v1685 = vunpack.c.l.s8.bf16 %v1567
        %v1686 = vunpack.c.h.s8.bf16 %v1566
        %v1687 = vunpack.c.h.s8.bf16 %v1567
        %v1688 = vunpack.c.l.s8.bf16 %v1568
        %v1689 = vunpack.c.l.s8.bf16 %v1569
        %v1690 = vunpack.c.h.s8.bf16 %v1568
        %v1691 = vunpack.c.h.s8.bf16 %v1569
        %v1692 = vunpack.c.l.s8.bf16 %v1570
        %v1693 = vunpack.c.l.s8.bf16 %v1571
        %v1694 = vunpack.c.h.s8.bf16 %v1570
        %v1695 = vunpack.c.h.s8.bf16 %v1571
        %v1696 = vunpack.c.l.s8.bf16 %v1572
        %v1697 = vunpack.c.l.s8.bf16 %v1573
        %v1698 = vunpack.c.h.s8.bf16 %v1572
        %v1699 = vunpack.c.h.s8.bf16 %v1573
        %v1700 = vunpack.c.l.s8.bf16 %v1574
        %v1701 = vunpack.c.l.s8.bf16 %v1575
        %v1702 = vunpack.c.h.s8.bf16 %v1574
        %v1703 = vunpack.c.h.s8.bf16 %v1575
        %v1706 = vcombine.high %v1510, %v1510
        %v1708 = vunpack.c.l.s4 1983009808
        %v1709 = vunpack.c.0.s8 %v1708
        %v1710 = vlaneseq
        %v1711 = vshrl.u32 %v1710, 7
        %v1712 = vsub.s32 %v1709, %v1711
        %v1713 = vrot.slane %v1510, %v1712
        %v1715 = vunpack.c.l.s4 1983009808
        %v1716 = vunpack.c.0.s8 %v1715
        %v1717 = vlaneseq
        %v1718 = vshrl.u32 %v1717, 7
        %v1719 = vsub.s32 %v1716, %v1718
        %v1720 = vrot.slane %v1706, %v1719
        %v1721 = vcombine.high %v1713, %v1713
        %v1722 = vcombine.high %v1720, %v1720
        %v1723 = vcombine.high %v1511, %v1511
        %v1725 = vunpack.c.l.s4 1983009808
        %v1726 = vunpack.c.0.s8 %v1725
        %v1727 = vlaneseq
        %v1728 = vshrl.u32 %v1727, 7
        %v1729 = vsub.s32 %v1726, %v1728
        %v1730 = vrot.slane %v1511, %v1729
        %v1732 = vunpack.c.l.s4 1983009808
        %v1733 = vunpack.c.0.s8 %v1732
        %v1734 = vlaneseq
        %v1735 = vshrl.u32 %v1734, 7
        %v1736 = vsub.s32 %v1733, %v1735
        %v1737 = vrot.slane %v1723, %v1736
        %v1738 = vcombine.high %v1730, %v1730
        %v1739 = vcombine.high %v1737, %v1737
        %1748 = vmatprep.subr.bf16.mxu0 %v1577
        %1749 = vmatpush1.bf16.msra.mxu0 %v1576
        %1750 = vmatprep.subr.bf16.mxu0 %v1579
        %1751 = vmatpush1.bf16.msra.mxu0 %v1578
        %1752 = vmatprep.subr.bf16.mxu0 %v1581
        %1753 = vmatpush1.bf16.msra.mxu0 %v1580
        %1754 = vmatprep.subr.bf16.mxu0 %v1583
        %1755 = vmatpush1.bf16.msra.mxu0 %v1582
        %1756 = vmatprep.subr.bf16.mxu0 %v1585
        %1757 = vmatpush1.bf16.msra.mxu0 %v1584
        %1758 = vmatprep.subr.bf16.mxu0 %v1587
        %1759 = vmatpush1.bf16.msra.mxu0 %v1586
        %1760 = vmatprep.subr.bf16.mxu0 %v1589
        %1761 = vmatpush1.bf16.msra.mxu0 %v1588
        %1762 = vmatprep.subr.bf16.mxu0 %v1591
        %1763 = vmatpush1.bf16.msra.mxu0 %v1590
        %1764 = vmatprep.subr.bf16.mxu0 %v1593
        %1765 = vmatpush1.bf16.msra.mxu0 %v1592
        %1766 = vmatprep.subr.bf16.mxu0 %v1595
        %1767 = vmatpush1.bf16.msra.mxu0 %v1594
        %1768 = vmatprep.subr.bf16.mxu0 %v1597
        %1769 = vmatpush1.bf16.msra.mxu0 %v1596
        %1770 = vmatprep.subr.bf16.mxu0 %v1599
        %1771 = vmatpush1.bf16.msra.mxu0 %v1598
        %1772 = vmatprep.subr.bf16.mxu0 %v1601
        %1773 = vmatpush1.bf16.msra.mxu0 %v1600
        %1774 = vmatprep.subr.bf16.mxu0 %v1603
        %1775 = vmatpush1.bf16.msra.mxu0 %v1602
        %1776 = vmatprep.subr.bf16.mxu0 %v1605
        %1777 = vmatpush1.bf16.msra.mxu0 %v1604
        %1778 = vmatprep.subr.bf16.mxu0 %v1607
        %1779 = vmatpush1.bf16.msra.mxu0 %v1606
        %1780 = vmatprep.mubr.bf16.mxu0 %v1721
        %1781 = vmatmul.mubr.bf16.gmra.mrb[0].mxu0 %v1713
        %v1782 = vpop.f32.mrb[0].mxu0
        %v1783 = vadd.f32 0.0, %v1782
        %v1784 = vpop.f32.mrb[0].mxu0
        %v1785 = vadd.f32 0.0, %v1784
        %v1786 = vpop.f32.mrb[0].mxu0
        %v1787 = vpop.f32.mrb[0].mxu0
        %1788 = vdwg.mxu0
        %1789 = vmatprep.subr.bf16.mxu0 %v1609
        %1790 = vmatpush1.bf16.msra.mxu0 %v1608
        %1791 = vmatprep.subr.bf16.mxu0 %v1611
        %1792 = vmatpush1.bf16.msra.mxu0 %v1610
        %1793 = vmatprep.subr.bf16.mxu0 %v1613
        %1794 = vmatpush1.bf16.msra.mxu0 %v1612
        %1795 = vmatprep.subr.bf16.mxu0 %v1615
        %1796 = vmatpush1.bf16.msra.mxu0 %v1614
        %1797 = vmatprep.subr.bf16.mxu0 %v1617
        %1798 = vmatpush1.bf16.msra.mxu0 %v1616
        %1799 = vmatprep.subr.bf16.mxu0 %v1619
        %1800 = vmatpush1.bf16.msra.mxu0 %v1618
        %1801 = vmatprep.subr.bf16.mxu0 %v1621
        %1802 = vmatpush1.bf16.msra.mxu0 %v1620
        %1803 = vmatprep.subr.bf16.mxu0 %v1623
        %1804 = vmatpush1.bf16.msra.mxu0 %v1622
        %1805 = vmatprep.subr.bf16.mxu0 %v1625
        %1806 = vmatpush1.bf16.msra.mxu0 %v1624
        %1807 = vmatprep.subr.bf16.mxu0 %v1627
        %1808 = vmatpush1.bf16.msra.mxu0 %v1626
        %1809 = vmatprep.subr.bf16.mxu0 %v1629
        %1810 = vmatpush1.bf16.msra.mxu0 %v1628
        %1811 = vmatprep.subr.bf16.mxu0 %v1631
        %1812 = vmatpush1.bf16.msra.mxu0 %v1630
        %1813 = vmatprep.subr.bf16.mxu0 %v1633
        %1814 = vmatpush1.bf16.msra.mxu0 %v1632
        %1815 = vmatprep.subr.bf16.mxu0 %v1635
        %1816 = vmatpush1.bf16.msra.mxu0 %v1634
        %1817 = vmatprep.subr.bf16.mxu0 %v1637
        %1818 = vmatpush1.bf16.msra.mxu0 %v1636
        %1819 = vmatprep.subr.bf16.mxu0 %v1639
        %1820 = vmatpush1.bf16.msra.mxu0 %v1638
        %1821 = vmatprep.mubr.bf16.mxu0 %v1722
        %1822 = vmatmul.mubr.bf16.gmra.mrb[0].mxu0 %v1720
        %v1823 = vpop.f32.mrb[0].mxu0
        %v1824 = vadd.f32 %v1783, %v1823
        %v1825 = vpop.f32.mrb[0].mxu0
        %v1826 = vadd.f32 %v1785, %v1825
        %v1827 = vpop.f32.mrb[0].mxu0
        %v1828 = vpop.f32.mrb[0].mxu0
        %1829 = vdwg.mxu0
        %1830 = vmatprep.subr.bf16.mxu0 %v1641
        %1831 = vmatpush1.bf16.msra.mxu0 %v1640
        %1832 = vmatprep.subr.bf16.mxu0 %v1643
        %1833 = vmatpush1.bf16.msra.mxu0 %v1642
        %1834 = vmatprep.subr.bf16.mxu0 %v1645
        %1835 = vmatpush1.bf16.msra.mxu0 %v1644
        %1836 = vmatprep.subr.bf16.mxu0 %v1647
        %1837 = vmatpush1.bf16.msra.mxu0 %v1646
        %1838 = vmatprep.subr.bf16.mxu0 %v1649
        %1839 = vmatpush1.bf16.msra.mxu0 %v1648
        %1840 = vmatprep.subr.bf16.mxu0 %v1651
        %1841 = vmatpush1.bf16.msra.mxu0 %v1650
        %1842 = vmatprep.subr.bf16.mxu0 %v1653
        %1843 = vmatpush1.bf16.msra.mxu0 %v1652
        %1844 = vmatprep.subr.bf16.mxu0 %v1655
        %1845 = vmatpush1.bf16.msra.mxu0 %v1654
        %1846 = vmatprep.subr.bf16.mxu0 %v1657
        %1847 = vmatpush1.bf16.msra.mxu0 %v1656
        %1848 = vmatprep.subr.bf16.mxu0 %v1659
        %1849 = vmatpush1.bf16.msra.mxu0 %v1658
        %1850 = vmatprep.subr.bf16.mxu0 %v1661
        %1851 = vmatpush1.bf16.msra.mxu0 %v1660
        %1852 = vmatprep.subr.bf16.mxu0 %v1663
        %1853 = vmatpush1.bf16.msra.mxu0 %v1662
        %1854 = vmatprep.subr.bf16.mxu0 %v1665
        %1855 = vmatpush1.bf16.msra.mxu0 %v1664
        %1856 = vmatprep.subr.bf16.mxu0 %v1667
        %1857 = vmatpush1.bf16.msra.mxu0 %v1666
        %1858 = vmatprep.subr.bf16.mxu0 %v1669
        %1859 = vmatpush1.bf16.msra.mxu0 %v1668
        %1860 = vmatprep.subr.bf16.mxu0 %v1671
        %1861 = vmatpush1.bf16.msra.mxu0 %v1670
        %1862 = vmatprep.mubr.bf16.mxu0 %v1738
        %1863 = vmatmul.mubr.bf16.gmra.mrb[0].mxu0 %v1730
        %v1864 = vpop.f32.mrb[0].mxu0
        %v1865 = vadd.f32 %v1824, %v1864
        %v1866 = vpop.f32.mrb[0].mxu0
        %v1867 = vadd.f32 %v1826, %v1866
        %v1868 = vpop.f32.mrb[0].mxu0
        %v1869 = vpop.f32.mrb[0].mxu0
        %1870 = vdwg.mxu0
        %1871 = vmatprep.subr.bf16.mxu0 %v1673
        %1872 = vmatpush1.bf16.msra.mxu0 %v1672
        %1873 = vmatprep.subr.bf16.mxu0 %v1675
        %1874 = vmatpush1.bf16.msra.mxu0 %v1674
        %1875 = vmatprep.subr.bf16.mxu0 %v1677
        %1876 = vmatpush1.bf16.msra.mxu0 %v1676
        %1877 = vmatprep.subr.bf16.mxu0 %v1679
        %1878 = vmatpush1.bf16.msra.mxu0 %v1678
        %1879 = vmatprep.subr.bf16.mxu0 %v1681
        %1880 = vmatpush1.bf16.msra.mxu0 %v1680
        %1881 = vmatprep.subr.bf16.mxu0 %v1683
        %1882 = vmatpush1.bf16.msra.mxu0 %v1682
        %1883 = vmatprep.subr.bf16.mxu0 %v1685
        %1884 = vmatpush1.bf16.msra.mxu0 %v1684
        %1885 = vmatprep.subr.bf16.mxu0 %v1687
        %1886 = vmatpush1.bf16.msra.mxu0 %v1686
        %1887 = vmatprep.subr.bf16.mxu0 %v1689
        %1888 = vmatpush1.bf16.msra.mxu0 %v1688
        %1889 = vmatprep.subr.bf16.mxu0 %v1691
        %1890 = vmatpush1.bf16.msra.mxu0 %v1690
        %1891 = vmatprep.subr.bf16.mxu0 %v1693
        %1892 = vmatpush1.bf16.msra.mxu0 %v1692
        %1893 = vmatprep.subr.bf16.mxu0 %v1695
        %1894 = vmatpush1.bf16.msra.mxu0 %v1694
        %1895 = vmatprep.subr.bf16.mxu0 %v1697
        %1896 = vmatpush1.bf16.msra.mxu0 %v1696
        %1897 = vmatprep.subr.bf16.mxu0 %v1699
        %1898 = vmatpush1.bf16.msra.mxu0 %v1698
        %1899 = vmatprep.subr.bf16.mxu0 %v1701
        %1900 = vmatpush1.bf16.msra.mxu0 %v1700
        %1901 = vmatprep.subr.bf16.mxu0 %v1703
        %1902 = vmatpush1.bf16.msra.mxu0 %v1702
        %1903 = vmatprep.mubr.bf16.mxu0 %v1739
        %1904 = vmatmul.mubr.bf16.gmra.mrb[0].mxu0 %v1737
        %v1905 = vpop.f32.mrb[0].mxu0
        %v1906 = vadd.f32 %v1865, %v1905
        %v1907 = vpop.f32.mrb[0].mxu0
        %v1908 = vadd.f32 %v1867, %v1907
        %v1909 = vpop.f32.mrb[0].mxu0
        %v1910 = vpop.f32.mrb[0].mxu0
        %1911 = vdwg.mxu0
        %v1912 = vadd.f32 %v1508, %v1906
        %v1913 = vadd.f32 %v1509, %v1908
        %v1914 = vld [vmem:[%s294 + $0x40] sm:$0xff]
        %v1915 = vld [vmem:[%s294 + $0x48] sm:$0xff]
        %v1916 = vld [vmem:[%s251 + $0x800] sm:$0xff]
        %v1917 = vld [vmem:[%s251 + $0x808] sm:$0xff]
        %v1918 = vld [vmem:[%s251 + $0x810] sm:$0xff]
        %v1919 = vld [vmem:[%s251 + $0x818] sm:$0xff]
        %v1920 = vld [vmem:[%s251 + $0x820] sm:$0xff]
        %v1921 = vld [vmem:[%s251 + $0x828] sm:$0xff]
        %v1922 = vld [vmem:[%s251 + $0x830] sm:$0xff]
        %v1923 = vld [vmem:[%s251 + $0x838] sm:$0xff]
        %v1924 = vld [vmem:[%s251 + $0x840] sm:$0xff]
        %v1925 = vld [vmem:[%s251 + $0x848] sm:$0xff]
        %v1926 = vld [vmem:[%s251 + $0x850] sm:$0xff]
        %v1927 = vld [vmem:[%s251 + $0x858] sm:$0xff]
        %v1928 = vld [vmem:[%s251 + $0x860] sm:$0xff]
        %v1929 = vld [vmem:[%s251 + $0x868] sm:$0xff]
        %v1930 = vld [vmem:[%s251 + $0x870] sm:$0xff]
        %v1931 = vld [vmem:[%s251 + $0x878] sm:$0xff]
        %v1932 = vld [vmem:[%s251 + $0x880] sm:$0xff]
        %v1933 = vld [vmem:[%s251 + $0x888] sm:$0xff]
        %v1934 = vld [vmem:[%s251 + $0x890] sm:$0xff]
        %v1935 = vld [vmem:[%s251 + $0x898] sm:$0xff]
        %v1936 = vld [vmem:[%s251 + $0x8a0] sm:$0xff]
        %v1937 = vld [vmem:[%s251 + $0x8a8] sm:$0xff]
        %v1938 = vld [vmem:[%s251 + $0x8b0] sm:$0xff]
        %v1939 = vld [vmem:[%s251 + $0x8b8] sm:$0xff]
        %v1940 = vld [vmem:[%s251 + $0x8c0] sm:$0xff]
        %v1941 = vld [vmem:[%s251 + $0x8c8] sm:$0xff]
        %v1942 = vld [vmem:[%s251 + $0x8d0] sm:$0xff]
        %v1943 = vld [vmem:[%s251 + $0x8d8] sm:$0xff]
        %v1944 = vld [vmem:[%s251 + $0x8e0] sm:$0xff]
        %v1945 = vld [vmem:[%s251 + $0x8e8] sm:$0xff]
        %v1946 = vld [vmem:[%s251 + $0x8f0] sm:$0xff]
        %v1947 = vld [vmem:[%s251 + $0x8f8] sm:$0xff]
        %v1948 = vld [vmem:[%s251 + $0x900] sm:$0xff]
        %v1949 = vld [vmem:[%s251 + $0x908] sm:$0xff]
        %v1950 = vld [vmem:[%s251 + $0x910] sm:$0xff]
        %v1951 = vld [vmem:[%s251 + $0x918] sm:$0xff]
        %v1952 = vld [vmem:[%s251 + $0x920] sm:$0xff]
        %v1953 = vld [vmem:[%s251 + $0x928] sm:$0xff]
        %v1954 = vld [vmem:[%s251 + $0x930] sm:$0xff]
        %v1955 = vld [vmem:[%s251 + $0x938] sm:$0xff]
        %v1956 = vld [vmem:[%s251 + $0x940] sm:$0xff]
        %v1957 = vld [vmem:[%s251 + $0x948] sm:$0xff]
        %v1958 = vld [vmem:[%s251 + $0x950] sm:$0xff]
        %v1959 = vld [vmem:[%s251 + $0x958] sm:$0xff]
        %v1960 = vld [vmem:[%s251 + $0x960] sm:$0xff]
        %v1961 = vld [vmem:[%s251 + $0x968] sm:$0xff]
        %v1962 = vld [vmem:[%s251 + $0x970] sm:$0xff]
        %v1963 = vld [vmem:[%s251 + $0x978] sm:$0xff]
        %v1964 = vld [vmem:[%s251 + $0x980] sm:$0xff]
        %v1965 = vld [vmem:[%s251 + $0x988] sm:$0xff]
        %v1966 = vld [vmem:[%s251 + $0x990] sm:$0xff]
        %v1967 = vld [vmem:[%s251 + $0x998] sm:$0xff]
        %v1968 = vld [vmem:[%s251 + $0x9a0] sm:$0xff]
        %v1969 = vld [vmem:[%s251 + $0x9a8] sm:$0xff]
        %v1970 = vld [vmem:[%s251 + $0x9b0] sm:$0xff]
        %v1971 = vld [vmem:[%s251 + $0x9b8] sm:$0xff]
        %v1972 = vld [vmem:[%s251 + $0x9c0] sm:$0xff]
        %v1973 = vld [vmem:[%s251 + $0x9c8] sm:$0xff]
        %v1974 = vld [vmem:[%s251 + $0x9d0] sm:$0xff]
        %v1975 = vld [vmem:[%s251 + $0x9d8] sm:$0xff]
        %v1976 = vld [vmem:[%s251 + $0x9e0] sm:$0xff]
        %v1977 = vld [vmem:[%s251 + $0x9e8] sm:$0xff]
        %v1978 = vld [vmem:[%s251 + $0x9f0] sm:$0xff]
        %v1979 = vld [vmem:[%s251 + $0x9f8] sm:$0xff]
        %v1980 = vunpack.c.l.s8.bf16 %v1916
        %v1981 = vunpack.c.l.s8.bf16 %v1917
        %v1982 = vunpack.c.h.s8.bf16 %v1916
        %v1983 = vunpack.c.h.s8.bf16 %v1917
        %v1984 = vunpack.c.l.s8.bf16 %v1918
        %v1985 = vunpack.c.l.s8.bf16 %v1919
        %v1986 = vunpack.c.h.s8.bf16 %v1918
        %v1987 = vunpack.c.h.s8.bf16 %v1919
        %v1988 = vunpack.c.l.s8.bf16 %v1920
        %v1989 = vunpack.c.l.s8.bf16 %v1921
        %v1990 = vunpack.c.h.s8.bf16 %v1920
        %v1991 = vunpack.c.h.s8.bf16 %v1921
        %v1992 = vunpack.c.l.s8.bf16 %v1922
        %v1993 = vunpack.c.l.s8.bf16 %v1923
        %v1994 = vunpack.c.h.s8.bf16 %v1922
        %v1995 = vunpack.c.h.s8.bf16 %v1923
        %v1996 = vunpack.c.l.s8.bf16 %v1924
        %v1997 = vunpack.c.l.s8.bf16 %v1925
        %v1998 = vunpack.c.h.s8.bf16 %v1924
        %v1999 = vunpack.c.h.s8.bf16 %v1925
        %v2000 = vunpack.c.l.s8.bf16 %v1926
        %v2001 = vunpack.c.l.s8.bf16 %v1927
        %v2002 = vunpack.c.h.s8.bf16 %v1926
        %v2003 = vunpack.c.h.s8.bf16 %v1927
        %v2004 = vunpack.c.l.s8.bf16 %v1928
        %v2005 = vunpack.c.l.s8.bf16 %v1929
        %v2006 = vunpack.c.h.s8.bf16 %v1928
        %v2007 = vunpack.c.h.s8.bf16 %v1929
        %v2008 = vunpack.c.l.s8.bf16 %v1930
        %v2009 = vunpack.c.l.s8.bf16 %v1931
        %v2010 = vunpack.c.h.s8.bf16 %v1930
        %v2011 = vunpack.c.h.s8.bf16 %v1931
        %v2012 = vunpack.c.l.s8.bf16 %v1932
        %v2013 = vunpack.c.l.s8.bf16 %v1933
        %v2014 = vunpack.c.h.s8.bf16 %v1932
        %v2015 = vunpack.c.h.s8.bf16 %v1933
        %v2016 = vunpack.c.l.s8.bf16 %v1934
        %v2017 = vunpack.c.l.s8.bf16 %v1935
        %v2018 = vunpack.c.h.s8.bf16 %v1934
        %v2019 = vunpack.c.h.s8.bf16 %v1935
        %v2020 = vunpack.c.l.s8.bf16 %v1936
        %v2021 = vunpack.c.l.s8.bf16 %v1937
        %v2022 = vunpack.c.h.s8.bf16 %v1936
        %v2023 = vunpack.c.h.s8.bf16 %v1937
        %v2024 = vunpack.c.l.s8.bf16 %v1938
        %v2025 = vunpack.c.l.s8.bf16 %v1939
        %v2026 = vunpack.c.h.s8.bf16 %v1938
        %v2027 = vunpack.c.h.s8.bf16 %v1939
        %v2028 = vunpack.c.l.s8.bf16 %v1940
        %v2029 = vunpack.c.l.s8.bf16 %v1941
        %v2030 = vunpack.c.h.s8.bf16 %v1940
        %v2031 = vunpack.c.h.s8.bf16 %v1941
        %v2032 = vunpack.c.l.s8.bf16 %v1942
        %v2033 = vunpack.c.l.s8.bf16 %v1943
        %v2034 = vunpack.c.h.s8.bf16 %v1942
        %v2035 = vunpack.c.h.s8.bf16 %v1943
        %v2036 = vunpack.c.l.s8.bf16 %v1944
        %v2037 = vunpack.c.l.s8.bf16 %v1945
        %v2038 = vunpack.c.h.s8.bf16 %v1944
        %v2039 = vunpack.c.h.s8.bf16 %v1945
        %v2040 = vunpack.c.l.s8.bf16 %v1946
        %v2041 = vunpack.c.l.s8.bf16 %v1947
        %v2042 = vunpack.c.h.s8.bf16 %v1946
        %v2043 = vunpack.c.h.s8.bf16 %v1947
        %v2044 = vunpack.c.l.s8.bf16 %v1948
        %v2045 = vunpack.c.l.s8.bf16 %v1949
        %v2046 = vunpack.c.h.s8.bf16 %v1948
        %v2047 = vunpack.c.h.s8.bf16 %v1949
        %v2048 = vunpack.c.l.s8.bf16 %v1950
        %v2049 = vunpack.c.l.s8.bf16 %v1951
        %v2050 = vunpack.c.h.s8.bf16 %v1950
        %v2051 = vunpack.c.h.s8.bf16 %v1951
        %v2052 = vunpack.c.l.s8.bf16 %v1952
        %v2053 = vunpack.c.l.s8.bf16 %v1953
        %v2054 = vunpack.c.h.s8.bf16 %v1952
        %v2055 = vunpack.c.h.s8.bf16 %v1953
        %v2056 = vunpack.c.l.s8.bf16 %v1954
        %v2057 = vunpack.c.l.s8.bf16 %v1955
        %v2058 = vunpack.c.h.s8.bf16 %v1954
        %v2059 = vunpack.c.h.s8.bf16 %v1955
        %v2060 = vunpack.c.l.s8.bf16 %v1956
        %v2061 = vunpack.c.l.s8.bf16 %v1957
        %v2062 = vunpack.c.h.s8.bf16 %v1956
        %v2063 = vunpack.c.h.s8.bf16 %v1957
        %v2064 = vunpack.c.l.s8.bf16 %v1958
        %v2065 = vunpack.c.l.s8.bf16 %v1959
        %v2066 = vunpack.c.h.s8.bf16 %v1958
        %v2067 = vunpack.c.h.s8.bf16 %v1959
        %v2068 = vunpack.c.l.s8.bf16 %v1960
        %v2069 = vunpack.c.l.s8.bf16 %v1961
        %v2070 = vunpack.c.h.s8.bf16 %v1960
        %v2071 = vunpack.c.h.s8.bf16 %v1961
        %v2072 = vunpack.c.l.s8.bf16 %v1962
        %v2073 = vunpack.c.l.s8.bf16 %v1963
        %v2074 = vunpack.c.h.s8.bf16 %v1962
        %v2075 = vunpack.c.h.s8.bf16 %v1963
        %v2076 = vunpack.c.l.s8.bf16 %v1964
        %v2077 = vunpack.c.l.s8.bf16 %v1965
        %v2078 = vunpack.c.h.s8.bf16 %v1964
        %v2079 = vunpack.c.h.s8.bf16 %v1965
        %v2080 = vunpack.c.l.s8.bf16 %v1966
        %v2081 = vunpack.c.l.s8.bf16 %v1967
        %v2082 = vunpack.c.h.s8.bf16 %v1966
        %v2083 = vunpack.c.h.s8.bf16 %v1967
        %v2084 = vunpack.c.l.s8.bf16 %v1968
        %v2085 = vunpack.c.l.s8.bf16 %v1969
        %v2086 = vunpack.c.h.s8.bf16 %v1968
        %v2087 = vunpack.c.h.s8.bf16 %v1969
        %v2088 = vunpack.c.l.s8.bf16 %v1970
        %v2089 = vunpack.c.l.s8.bf16 %v1971
        %v2090 = vunpack.c.h.s8.bf16 %v1970
        %v2091 = vunpack.c.h.s8.bf16 %v1971
        %v2092 = vunpack.c.l.s8.bf16 %v1972
        %v2093 = vunpack.c.l.s8.bf16 %v1973
        %v2094 = vunpack.c.h.s8.bf16 %v1972
        %v2095 = vunpack.c.h.s8.bf16 %v1973
        %v2096 = vunpack.c.l.s8.bf16 %v1974
        %v2097 = vunpack.c.l.s8.bf16 %v1975
        %v2098 = vunpack.c.h.s8.bf16 %v1974
        %v2099 = vunpack.c.h.s8.bf16 %v1975
        %v2100 = vunpack.c.l.s8.bf16 %v1976
        %v2101 = vunpack.c.l.s8.bf16 %v1977
        %v2102 = vunpack.c.h.s8.bf16 %v1976
        %v2103 = vunpack.c.h.s8.bf16 %v1977
        %v2104 = vunpack.c.l.s8.bf16 %v1978
        %v2105 = vunpack.c.l.s8.bf16 %v1979
        %v2106 = vunpack.c.h.s8.bf16 %v1978
        %v2107 = vunpack.c.h.s8.bf16 %v1979
        %v2110 = vcombine.high %v1914, %v1914
        %v2112 = vunpack.c.l.s4 1983009808
        %v2113 = vunpack.c.0.s8 %v2112
        %v2114 = vlaneseq
        %v2115 = vshrl.u32 %v2114, 7
        %v2116 = vsub.s32 %v2113, %v2115
        %v2117 = vrot.slane %v1914, %v2116
        %v2119 = vunpack.c.l.s4 1983009808
        %v2120 = vunpack.c.0.s8 %v2119
        %v2121 = vlaneseq
        %v2122 = vshrl.u32 %v2121, 7
        %v2123 = vsub.s32 %v2120, %v2122
        %v2124 = vrot.slane %v2110, %v2123
        %v2125 = vcombine.high %v2117, %v2117
        %v2126 = vcombine.high %v2124, %v2124
        %v2127 = vcombine.high %v1915, %v1915
        %v2129 = vunpack.c.l.s4 1983009808
        %v2130 = vunpack.c.0.s8 %v2129
        %v2131 = vlaneseq
        %v2132 = vshrl.u32 %v2131, 7
        %v2133 = vsub.s32 %v2130, %v2132
        %v2134 = vrot.slane %v1915, %v2133
        %v2136 = vunpack.c.l.s4 1983009808
        %v2137 = vunpack.c.0.s8 %v2136
        %v2138 = vlaneseq
        %v2139 = vshrl.u32 %v2138, 7
        %v2140 = vsub.s32 %v2137, %v2139
        %v2141 = vrot.slane %v2127, %v2140
        %v2142 = vcombine.high %v2134, %v2134
        %v2143 = vcombine.high %v2141, %v2141
        %2152 = vmatprep.subr.bf16.mxu0 %v1981
        %2153 = vmatpush1.bf16.msra.mxu0 %v1980
        %2154 = vmatprep.subr.bf16.mxu0 %v1983
        %2155 = vmatpush1.bf16.msra.mxu0 %v1982
        %2156 = vmatprep.subr.bf16.mxu0 %v1985
        %2157 = vmatpush1.bf16.msra.mxu0 %v1984
        %2158 = vmatprep.subr.bf16.mxu0 %v1987
        %2159 = vmatpush1.bf16.msra.mxu0 %v1986
        %2160 = vmatprep.subr.bf16.mxu0 %v1989
        %2161 = vmatpush1.bf16.msra.mxu0 %v1988
        %2162 = vmatprep.subr.bf16.mxu0 %v1991
        %2163 = vmatpush1.bf16.msra.mxu0 %v1990
        %2164 = vmatprep.subr.bf16.mxu0 %v1993
        %2165 = vmatpush1.bf16.msra.mxu0 %v1992
        %2166 = vmatprep.subr.bf16.mxu0 %v1995
        %2167 = vmatpush1.bf16.msra.mxu0 %v1994
        %2168 = vmatprep.subr.bf16.mxu0 %v1997
        %2169 = vmatpush1.bf16.msra.mxu0 %v1996
        %2170 = vmatprep.subr.bf16.mxu0 %v1999
        %2171 = vmatpush1.bf16.msra.mxu0 %v1998
        %2172 = vmatprep.subr.bf16.mxu0 %v2001
        %2173 = vmatpush1.bf16.msra.mxu0 %v2000
        %2174 = vmatprep.subr.bf16.mxu0 %v2003
        %2175 = vmatpush1.bf16.msra.mxu0 %v2002
        %2176 = vmatprep.subr.bf16.mxu0 %v2005
        %2177 = vmatpush1.bf16.msra.mxu0 %v2004
        %2178 = vmatprep.subr.bf16.mxu0 %v2007
        %2179 = vmatpush1.bf16.msra.mxu0 %v2006
        %2180 = vmatprep.subr.bf16.mxu0 %v2009
        %2181 = vmatpush1.bf16.msra.mxu0 %v2008
        %2182 = vmatprep.subr.bf16.mxu0 %v2011
        %2183 = vmatpush1.bf16.msra.mxu0 %v2010
        %2184 = vmatprep.mubr.bf16.mxu0 %v2125
        %2185 = vmatmul.mubr.bf16.gmra.mrb[0].mxu0 %v2117
        %v2186 = vpop.f32.mrb[0].mxu0
        %v2187 = vadd.f32 0.0, %v2186
        %v2188 = vpop.f32.mrb[0].mxu0
        %v2189 = vadd.f32 0.0, %v2188
        %v2190 = vpop.f32.mrb[0].mxu0
        %v2191 = vpop.f32.mrb[0].mxu0
        %2192 = vdwg.mxu0
        %2193 = vmatprep.subr.bf16.mxu0 %v2013
        %2194 = vmatpush1.bf16.msra.mxu0 %v2012
        %2195 = vmatprep.subr.bf16.mxu0 %v2015
        %2196 = vmatpush1.bf16.msra.mxu0 %v2014
        %2197 = vmatprep.subr.bf16.mxu0 %v2017
        %2198 = vmatpush1.bf16.msra.mxu0 %v2016
        %2199 = vmatprep.subr.bf16.mxu0 %v2019
        %2200 = vmatpush1.bf16.msra.mxu0 %v2018
        %2201 = vmatprep.subr.bf16.mxu0 %v2021
        %2202 = vmatpush1.bf16.msra.mxu0 %v2020
        %2203 = vmatprep.subr.bf16.mxu0 %v2023
        %2204 = vmatpush1.bf16.msra.mxu0 %v2022
        %2205 = vmatprep.subr.bf16.mxu0 %v2025
        %2206 = vmatpush1.bf16.msra.mxu0 %v2024
        %2207 = vmatprep.subr.bf16.mxu0 %v2027
        %2208 = vmatpush1.bf16.msra.mxu0 %v2026
        %2209 = vmatprep.subr.bf16.mxu0 %v2029
        %2210 = vmatpush1.bf16.msra.mxu0 %v2028
        %2211 = vmatprep.subr.bf16.mxu0 %v2031
        %2212 = vmatpush1.bf16.msra.mxu0 %v2030
        %2213 = vmatprep.subr.bf16.mxu0 %v2033
        %2214 = vmatpush1.bf16.msra.mxu0 %v2032
        %2215 = vmatprep.subr.bf16.mxu0 %v2035
        %2216 = vmatpush1.bf16.msra.mxu0 %v2034
        %2217 = vmatprep.subr.bf16.mxu0 %v2037
        %2218 = vmatpush1.bf16.msra.mxu0 %v2036
        %2219 = vmatprep.subr.bf16.mxu0 %v2039
        %2220 = vmatpush1.bf16.msra.mxu0 %v2038
        %2221 = vmatprep.subr.bf16.mxu0 %v2041
        %2222 = vmatpush1.bf16.msra.mxu0 %v2040
        %2223 = vmatprep.subr.bf16.mxu0 %v2043
        %2224 = vmatpush1.bf16.msra.mxu0 %v2042
        %2225 = vmatprep.mubr.bf16.mxu0 %v2126
        %2226 = vmatmul.mubr.bf16.gmra.mrb[0].mxu0 %v2124
        %v2227 = vpop.f32.mrb[0].mxu0
        %v2228 = vadd.f32 %v2187, %v2227
        %v2229 = vpop.f32.mrb[0].mxu0
        %v2230 = vadd.f32 %v2189, %v2229
        %v2231 = vpop.f32.mrb[0].mxu0
        %v2232 = vpop.f32.mrb[0].mxu0
        %2233 = vdwg.mxu0
        %2234 = vmatprep.subr.bf16.mxu0 %v2045
        %2235 = vmatpush1.bf16.msra.mxu0 %v2044
        %2236 = vmatprep.subr.bf16.mxu0 %v2047
        %2237 = vmatpush1.bf16.msra.mxu0 %v2046
        %2238 = vmatprep.subr.bf16.mxu0 %v2049
        %2239 = vmatpush1.bf16.msra.mxu0 %v2048
        %2240 = vmatprep.subr.bf16.mxu0 %v2051
        %2241 = vmatpush1.bf16.msra.mxu0 %v2050
        %2242 = vmatprep.subr.bf16.mxu0 %v2053
        %2243 = vmatpush1.bf16.msra.mxu0 %v2052
        %2244 = vmatprep.subr.bf16.mxu0 %v2055
        %2245 = vmatpush1.bf16.msra.mxu0 %v2054
        %2246 = vmatprep.subr.bf16.mxu0 %v2057
        %2247 = vmatpush1.bf16.msra.mxu0 %v2056
        %2248 = vmatprep.subr.bf16.mxu0 %v2059
        %2249 = vmatpush1.bf16.msra.mxu0 %v2058
        %2250 = vmatprep.subr.bf16.mxu0 %v2061
        %2251 = vmatpush1.bf16.msra.mxu0 %v2060
        %2252 = vmatprep.subr.bf16.mxu0 %v2063
        %2253 = vmatpush1.bf16.msra.mxu0 %v2062
        %2254 = vmatprep.subr.bf16.mxu0 %v2065
        %2255 = vmatpush1.bf16.msra.mxu0 %v2064
        %2256 = vmatprep.subr.bf16.mxu0 %v2067
        %2257 = vmatpush1.bf16.msra.mxu0 %v2066
        %2258 = vmatprep.subr.bf16.mxu0 %v2069
        %2259 = vmatpush1.bf16.msra.mxu0 %v2068
        %2260 = vmatprep.subr.bf16.mxu0 %v2071
        %2261 = vmatpush1.bf16.msra.mxu0 %v2070
        %2262 = vmatprep.subr.bf16.mxu0 %v2073
        %2263 = vmatpush1.bf16.msra.mxu0 %v2072
        %2264 = vmatprep.subr.bf16.mxu0 %v2075
        %2265 = vmatpush1.bf16.msra.mxu0 %v2074
        %2266 = vmatprep.mubr.bf16.mxu0 %v2142
        %2267 = vmatmul.mubr.bf16.gmra.mrb[0].mxu0 %v2134
        %v2268 = vpop.f32.mrb[0].mxu0
        %v2269 = vadd.f32 %v2228, %v2268
        %v2270 = vpop.f32.mrb[0].mxu0
        %v2271 = vadd.f32 %v2230, %v2270
        %v2272 = vpop.f32.mrb[0].mxu0
        %v2273 = vpop.f32.mrb[0].mxu0
        %2274 = vdwg.mxu0
        %2275 = vmatprep.subr.bf16.mxu0 %v2077
        %2276 = vmatpush1.bf16.msra.mxu0 %v2076
        %2277 = vmatprep.subr.bf16.mxu0 %v2079
        %2278 = vmatpush1.bf16.msra.mxu0 %v2078
        %2279 = vmatprep.subr.bf16.mxu0 %v2081
        %2280 = vmatpush1.bf16.msra.mxu0 %v2080
        %2281 = vmatprep.subr.bf16.mxu0 %v2083
        %2282 = vmatpush1.bf16.msra.mxu0 %v2082
        %2283 = vmatprep.subr.bf16.mxu0 %v2085
        %2284 = vmatpush1.bf16.msra.mxu0 %v2084
        %2285 = vmatprep.subr.bf16.mxu0 %v2087
        %2286 = vmatpush1.bf16.msra.mxu0 %v2086
        %2287 = vmatprep.subr.bf16.mxu0 %v2089
        %2288 = vmatpush1.bf16.msra.mxu0 %v2088
        %2289 = vmatprep.subr.bf16.mxu0 %v2091
        %2290 = vmatpush1.bf16.msra.mxu0 %v2090
        %2291 = vmatprep.subr.bf16.mxu0 %v2093
        %2292 = vmatpush1.bf16.msra.mxu0 %v2092
        %2293 = vmatprep.subr.bf16.mxu0 %v2095
        %2294 = vmatpush1.bf16.msra.mxu0 %v2094
        %2295 = vmatprep.subr.bf16.mxu0 %v2097
        %2296 = vmatpush1.bf16.msra.mxu0 %v2096
        %2297 = vmatprep.subr.bf16.mxu0 %v2099
        %2298 = vmatpush1.bf16.msra.mxu0 %v2098
        %2299 = vmatprep.subr.bf16.mxu0 %v2101
        %2300 = vmatpush1.bf16.msra.mxu0 %v2100
        %2301 = vmatprep.subr.bf16.mxu0 %v2103
        %2302 = vmatpush1.bf16.msra.mxu0 %v2102
        %2303 = vmatprep.subr.bf16.mxu0 %v2105
        %2304 = vmatpush1.bf16.msra.mxu0 %v2104
        %2305 = vmatprep.subr.bf16.mxu0 %v2107
        %2306 = vmatpush1.bf16.msra.mxu0 %v2106
        %2307 = vmatprep.mubr.bf16.mxu0 %v2143
        %2308 = vmatmul.mubr.bf16.gmra.mrb[0].mxu0 %v2141
        %v2309 = vpop.f32.mrb[0].mxu0
        %v2310 = vadd.f32 %v2269, %v2309
        %v2311 = vpop.f32.mrb[0].mxu0
        %v2312 = vadd.f32 %v2271, %v2311
        %v2313 = vpop.f32.mrb[0].mxu0
        %v2314 = vpop.f32.mrb[0].mxu0
        %2315 = vdwg.mxu0
        %v2316 = vadd.f32 %v1912, %v2310
        %v2317 = vadd.f32 %v1913, %v2312
        %v2318 = vld [vmem:[%s294 + $0x50] sm:$0xff]
        %v2319 = vld [vmem:[%s294 + $0x58] sm:$0xff]
        %v2320 = vld [vmem:[%s251 + $0xa00] sm:$0xff]
        %v2321 = vld [vmem:[%s251 + $0xa08] sm:$0xff]
        %v2322 = vld [vmem:[%s251 + $0xa10] sm:$0xff]
        %v2323 = vld [vmem:[%s251 + $0xa18] sm:$0xff]
        %v2324 = vld [vmem:[%s251 + $0xa20] sm:$0xff]
        %v2325 = vld [vmem:[%s251 + $0xa28] sm:$0xff]
        %v2326 = vld [vmem:[%s251 + $0xa30] sm:$0xff]
        %v2327 = vld [vmem:[%s251 + $0xa38] sm:$0xff]
        %v2328 = vld [vmem:[%s251 + $0xa40] sm:$0xff]
        %v2329 = vld [vmem:[%s251 + $0xa48] sm:$0xff]
        %v2330 = vld [vmem:[%s251 + $0xa50] sm:$0xff]
        %v2331 = vld [vmem:[%s251 + $0xa58] sm:$0xff]
        %v2332 = vld [vmem:[%s251 + $0xa60] sm:$0xff]
        %v2333 = vld [vmem:[%s251 + $0xa68] sm:$0xff]
        %v2334 = vld [vmem:[%s251 + $0xa70] sm:$0xff]
        %v2335 = vld [vmem:[%s251 + $0xa78] sm:$0xff]
        %v2336 = vld [vmem:[%s251 + $0xa80] sm:$0xff]
        %v2337 = vld [vmem:[%s251 + $0xa88] sm:$0xff]
        %v2338 = vld [vmem:[%s251 + $0xa90] sm:$0xff]
        %v2339 = vld [vmem:[%s251 + $0xa98] sm:$0xff]
        %v2340 = vld [vmem:[%s251 + $0xaa0] sm:$0xff]
        %v2341 = vld [vmem:[%s251 + $0xaa8] sm:$0xff]
        %v2342 = vld [vmem:[%s251 + $0xab0] sm:$0xff]
        %v2343 = vld [vmem:[%s251 + $0xab8] sm:$0xff]
        %v2344 = vld [vmem:[%s251 + $0xac0] sm:$0xff]
        %v2345 = vld [vmem:[%s251 + $0xac8] sm:$0xff]
        %v2346 = vld [vmem:[%s251 + $0xad0] sm:$0xff]
        %v2347 = vld [vmem:[%s251 + $0xad8] sm:$0xff]
        %v2348 = vld [vmem:[%s251 + $0xae0] sm:$0xff]
        %v2349 = vld [vmem:[%s251 + $0xae8] sm:$0xff]
        %v2350 = vld [vmem:[%s251 + $0xaf0] sm:$0xff]
        %v2351 = vld [vmem:[%s251 + $0xaf8] sm:$0xff]
        %v2352 = vld [vmem:[%s251 + $0xb00] sm:$0xff]
        %v2353 = vld [vmem:[%s251 + $0xb08] sm:$0xff]
        %v2354 = vld [vmem:[%s251 + $0xb10] sm:$0xff]
        %v2355 = vld [vmem:[%s251 + $0xb18] sm:$0xff]
        %v2356 = vld [vmem:[%s251 + $0xb20] sm:$0xff]
        %v2357 = vld [vmem:[%s251 + $0xb28] sm:$0xff]
        %v2358 = vld [vmem:[%s251 + $0xb30] sm:$0xff]
        %v2359 = vld [vmem:[%s251 + $0xb38] sm:$0xff]
        %v2360 = vld [vmem:[%s251 + $0xb40] sm:$0xff]
        %v2361 = vld [vmem:[%s251 + $0xb48] sm:$0xff]
        %v2362 = vld [vmem:[%s251 + $0xb50] sm:$0xff]
        %v2363 = vld [vmem:[%s251 + $0xb58] sm:$0xff]
        %v2364 = vld [vmem:[%s251 + $0xb60] sm:$0xff]
        %v2365 = vld [vmem:[%s251 + $0xb68] sm:$0xff]
        %v2366 = vld [vmem:[%s251 + $0xb70] sm:$0xff]
        %v2367 = vld [vmem:[%s251 + $0xb78] sm:$0xff]
        %v2368 = vld [vmem:[%s251 + $0xb80] sm:$0xff]
        %v2369 = vld [vmem:[%s251 + $0xb88] sm:$0xff]
        %v2370 = vld [vmem:[%s251 + $0xb90] sm:$0xff]
        %v2371 = vld [vmem:[%s251 + $0xb98] sm:$0xff]
        %v2372 = vld [vmem:[%s251 + $0xba0] sm:$0xff]
        %v2373 = vld [vmem:[%s251 + $0xba8] sm:$0xff]
        %v2374 = vld [vmem:[%s251 + $0xbb0] sm:$0xff]
        %v2375 = vld [vmem:[%s251 + $0xbb8] sm:$0xff]
        %v2376 = vld [vmem:[%s251 + $0xbc0] sm:$0xff]
        %v2377 = vld [vmem:[%s251 + $0xbc8] sm:$0xff]
        %v2378 = vld [vmem:[%s251 + $0xbd0] sm:$0xff]
        %v2379 = vld [vmem:[%s251 + $0xbd8] sm:$0xff]
        %v2380 = vld [vmem:[%s251 + $0xbe0] sm:$0xff]
        %v2381 = vld [vmem:[%s251 + $0xbe8] sm:$0xff]
        %v2382 = vld [vmem:[%s251 + $0xbf0] sm:$0xff]
        %v2383 = vld [vmem:[%s251 + $0xbf8] sm:$0xff]
        %v2384 = vunpack.c.l.s8.bf16 %v2320
        %v2385 = vunpack.c.l.s8.bf16 %v2321
        %v2386 = vunpack.c.h.s8.bf16 %v2320
        %v2387 = vunpack.c.h.s8.bf16 %v2321
        %v2388 = vunpack.c.l.s8.bf16 %v2322
        %v2389 = vunpack.c.l.s8.bf16 %v2323
        %v2390 = vunpack.c.h.s8.bf16 %v2322
        %v2391 = vunpack.c.h.s8.bf16 %v2323
        %v2392 = vunpack.c.l.s8.bf16 %v2324
        %v2393 = vunpack.c.l.s8.bf16 %v2325
        %v2394 = vunpack.c.h.s8.bf16 %v2324
        %v2395 = vunpack.c.h.s8.bf16 %v2325
        %v2396 = vunpack.c.l.s8.bf16 %v2326
        %v2397 = vunpack.c.l.s8.bf16 %v2327
        %v2398 = vunpack.c.h.s8.bf16 %v2326
        %v2399 = vunpack.c.h.s8.bf16 %v2327
        %v2400 = vunpack.c.l.s8.bf16 %v2328
        %v2401 = vunpack.c.l.s8.bf16 %v2329
        %v2402 = vunpack.c.h.s8.bf16 %v2328
        %v2403 = vunpack.c.h.s8.bf16 %v2329
        %v2404 = vunpack.c.l.s8.bf16 %v2330
        %v2405 = vunpack.c.l.s8.bf16 %v2331
        %v2406 = vunpack.c.h.s8.bf16 %v2330
        %v2407 = vunpack.c.h.s8.bf16 %v2331
        %v2408 = vunpack.c.l.s8.bf16 %v2332
        %v2409 = vunpack.c.l.s8.bf16 %v2333
        %v2410 = vunpack.c.h.s8.bf16 %v2332
        %v2411 = vunpack.c.h.s8.bf16 %v2333
        %v2412 = vunpack.c.l.s8.bf16 %v2334
        %v2413 = vunpack.c.l.s8.bf16 %v2335
        %v2414 = vunpack.c.h.s8.bf16 %v2334
        %v2415 = vunpack.c.h.s8.bf16 %v2335
        %v2416 = vunpack.c.l.s8.bf16 %v2336
        %v2417 = vunpack.c.l.s8.bf16 %v2337
        %v2418 = vunpack.c.h.s8.bf16 %v2336
        %v2419 = vunpack.c.h.s8.bf16 %v2337
        %v2420 = vunpack.c.l.s8.bf16 %v2338
        %v2421 = vunpack.c.l.s8.bf16 %v2339
        %v2422 = vunpack.c.h.s8.bf16 %v2338
        %v2423 = vunpack.c.h.s8.bf16 %v2339
        %v2424 = vunpack.c.l.s8.bf16 %v2340
        %v2425 = vunpack.c.l.s8.bf16 %v2341
        %v2426 = vunpack.c.h.s8.bf16 %v2340
        %v2427 = vunpack.c.h.s8.bf16 %v2341
        %v2428 = vunpack.c.l.s8.bf16 %v2342
        %v2429 = vunpack.c.l.s8.bf16 %v2343
        %v2430 = vunpack.c.h.s8.bf16 %v2342
        %v2431 = vunpack.c.h.s8.bf16 %v2343
        %v2432 = vunpack.c.l.s8.bf16 %v2344
        %v2433 = vunpack.c.l.s8.bf16 %v2345
        %v2434 = vunpack.c.h.s8.bf16 %v2344
        %v2435 = vunpack.c.h.s8.bf16 %v2345
        %v2436 = vunpack.c.l.s8.bf16 %v2346
        %v2437 = vunpack.c.l.s8.bf16 %v2347
        %v2438 = vunpack.c.h.s8.bf16 %v2346
        %v2439 = vunpack.c.h.s8.bf16 %v2347
        %v2440 = vunpack.c.l.s8.bf16 %v2348
        %v2441 = vunpack.c.l.s8.bf16 %v2349
        %v2442 = vunpack.c.h.s8.bf16 %v2348
        %v2443 = vunpack.c.h.s8.bf16 %v2349
        %v2444 = vunpack.c.l.s8.bf16 %v2350
        %v2445 = vunpack.c.l.s8.bf16 %v2351
        %v2446 = vunpack.c.h.s8.bf16 %v2350
        %v2447 = vunpack.c.h.s8.bf16 %v2351
        %v2448 = vunpack.c.l.s8.bf16 %v2352
        %v2449 = vunpack.c.l.s8.bf16 %v2353
        %v2450 = vunpack.c.h.s8.bf16 %v2352
        %v2451 = vunpack.c.h.s8.bf16 %v2353
        %v2452 = vunpack.c.l.s8.bf16 %v2354
        %v2453 = vunpack.c.l.s8.bf16 %v2355
        %v2454 = vunpack.c.h.s8.bf16 %v2354
        %v2455 = vunpack.c.h.s8.bf16 %v2355
        %v2456 = vunpack.c.l.s8.bf16 %v2356
        %v2457 = vunpack.c.l.s8.bf16 %v2357
        %v2458 = vunpack.c.h.s8.bf16 %v2356
        %v2459 = vunpack.c.h.s8.bf16 %v2357
        %v2460 = vunpack.c.l.s8.bf16 %v2358
        %v2461 = vunpack.c.l.s8.bf16 %v2359
        %v2462 = vunpack.c.h.s8.bf16 %v2358
        %v2463 = vunpack.c.h.s8.bf16 %v2359
        %v2464 = vunpack.c.l.s8.bf16 %v2360
        %v2465 = vunpack.c.l.s8.bf16 %v2361
        %v2466 = vunpack.c.h.s8.bf16 %v2360
        %v2467 = vunpack.c.h.s8.bf16 %v2361
        %v2468 = vunpack.c.l.s8.bf16 %v2362
        %v2469 = vunpack.c.l.s8.bf16 %v2363
        %v2470 = vunpack.c.h.s8.bf16 %v2362
        %v2471 = vunpack.c.h.s8.bf16 %v2363
        %v2472 = vunpack.c.l.s8.bf16 %v2364
        %v2473 = vunpack.c.l.s8.bf16 %v2365
        %v2474 = vunpack.c.h.s8.bf16 %v2364
        %v2475 = vunpack.c.h.s8.bf16 %v2365
        %v2476 = vunpack.c.l.s8.bf16 %v2366
        %v2477 = vunpack.c.l.s8.bf16 %v2367
        %v2478 = vunpack.c.h.s8.bf16 %v2366
        %v2479 = vunpack.c.h.s8.bf16 %v2367
        %v2480 = vunpack.c.l.s8.bf16 %v2368
        %v2481 = vunpack.c.l.s8.bf16 %v2369
        %v2482 = vunpack.c.h.s8.bf16 %v2368
        %v2483 = vunpack.c.h.s8.bf16 %v2369
        %v2484 = vunpack.c.l.s8.bf16 %v2370
        %v2485 = vunpack.c.l.s8.bf16 %v2371
        %v2486 = vunpack.c.h.s8.bf16 %v2370
        %v2487 = vunpack.c.h.s8.bf16 %v2371
        %v2488 = vunpack.c.l.s8.bf16 %v2372
        %v2489 = vunpack.c.l.s8.bf16 %v2373
        %v2490 = vunpack.c.h.s8.bf16 %v2372
        %v2491 = vunpack.c.h.s8.bf16 %v2373
        %v2492 = vunpack.c.l.s8.bf16 %v2374
        %v2493 = vunpack.c.l.s8.bf16 %v2375
        %v2494 = vunpack.c.h.s8.bf16 %v2374
        %v2495 = vunpack.c.h.s8.bf16 %v2375
        %v2496 = vunpack.c.l.s8.bf16 %v2376
        %v2497 = vunpack.c.l.s8.bf16 %v2377
        %v2498 = vunpack.c.h.s8.bf16 %v2376
        %v2499 = vunpack.c.h.s8.bf16 %v2377
        %v2500 = vunpack.c.l.s8.bf16 %v2378
        %v2501 = vunpack.c.l.s8.bf16 %v2379
        %v2502 = vunpack.c.h.s8.bf16 %v2378
        %v2503 = vunpack.c.h.s8.bf16 %v2379
        %v2504 = vunpack.c.l.s8.bf16 %v2380
        %v2505 = vunpack.c.l.s8.bf16 %v2381
        %v2506 = vunpack.c.h.s8.bf16 %v2380
        %v2507 = vunpack.c.h.s8.bf16 %v2381
        %v2508 = vunpack.c.l.s8.bf16 %v2382
        %v2509 = vunpack.c.l.s8.bf16 %v2383
        %v2510 = vunpack.c.h.s8.bf16 %v2382
        %v2511 = vunpack.c.h.s8.bf16 %v2383
        %v2514 = vcombine.high %v2318, %v2318
        %v2516 = vunpack.c.l.s4 1983009808
        %v2517 = vunpack.c.0.s8 %v2516
        %v2518 = vlaneseq
        %v2519 = vshrl.u32 %v2518, 7
        %v2520 = vsub.s32 %v2517, %v2519
        %v2521 = vrot.slane %v2318, %v2520
        %v2523 = vunpack.c.l.s4 1983009808
        %v2524 = vunpack.c.0.s8 %v2523
        %v2525 = vlaneseq
        %v2526 = vshrl.u32 %v2525, 7
        %v2527 = vsub.s32 %v2524, %v2526
        %v2528 = vrot.slane %v2514, %v2527
        %v2529 = vcombine.high %v2521, %v2521
        %v2530 = vcombine.high %v2528, %v2528
        %v2531 = vcombine.high %v2319, %v2319
        %v2533 = vunpack.c.l.s4 1983009808
        %v2534 = vunpack.c.0.s8 %v2533
        %v2535 = vlaneseq
        %v2536 = vshrl.u32 %v2535, 7
        %v2537 = vsub.s32 %v2534, %v2536
        %v2538 = vrot.slane %v2319, %v2537
        %v2540 = vunpack.c.l.s4 1983009808
        %v2541 = vunpack.c.0.s8 %v2540
        %v2542 = vlaneseq
        %v2543 = vshrl.u32 %v2542, 7
        %v2544 = vsub.s32 %v2541, %v2543
        %v2545 = vrot.slane %v2531, %v2544
        %v2546 = vcombine.high %v2538, %v2538
        %v2547 = vcombine.high %v2545, %v2545
        %2556 = vmatprep.subr.bf16.mxu0 %v2385
        %2557 = vmatpush1.bf16.msra.mxu0 %v2384
        %2558 = vmatprep.subr.bf16.mxu0 %v2387
        %2559 = vmatpush1.bf16.msra.mxu0 %v2386
        %2560 = vmatprep.subr.bf16.mxu0 %v2389
        %2561 = vmatpush1.bf16.msra.mxu0 %v2388
        %2562 = vmatprep.subr.bf16.mxu0 %v2391
        %2563 = vmatpush1.bf16.msra.mxu0 %v2390
        %2564 = vmatprep.subr.bf16.mxu0 %v2393
        %2565 = vmatpush1.bf16.msra.mxu0 %v2392
        %2566 = vmatprep.subr.bf16.mxu0 %v2395
        %2567 = vmatpush1.bf16.msra.mxu0 %v2394
        %2568 = vmatprep.subr.bf16.mxu0 %v2397
        %2569 = vmatpush1.bf16.msra.mxu0 %v2396
        %2570 = vmatprep.subr.bf16.mxu0 %v2399
        %2571 = vmatpush1.bf16.msra.mxu0 %v2398
        %2572 = vmatprep.subr.bf16.mxu0 %v2401
        %2573 = vmatpush1.bf16.msra.mxu0 %v2400
        %2574 = vmatprep.subr.bf16.mxu0 %v2403
        %2575 = vmatpush1.bf16.msra.mxu0 %v2402
        %2576 = vmatprep.subr.bf16.mxu0 %v2405
        %2577 = vmatpush1.bf16.msra.mxu0 %v2404
        %2578 = vmatprep.subr.bf16.mxu0 %v2407
        %2579 = vmatpush1.bf16.msra.mxu0 %v2406
        %2580 = vmatprep.subr.bf16.mxu0 %v2409
        %2581 = vmatpush1.bf16.msra.mxu0 %v2408
        %2582 = vmatprep.subr.bf16.mxu0 %v2411
        %2583 = vmatpush1.bf16.msra.mxu0 %v2410
        %2584 = vmatprep.subr.bf16.mxu0 %v2413
        %2585 = vmatpush1.bf16.msra.mxu0 %v2412
        %2586 = vmatprep.subr.bf16.mxu0 %v2415
        %2587 = vmatpush1.bf16.msra.mxu0 %v2414
        %2588 = vmatprep.mubr.bf16.mxu0 %v2529
        %2589 = vmatmul.mubr.bf16.gmra.mrb[0].mxu0 %v2521
        %v2590 = vpop.f32.mrb[0].mxu0
        %v2591 = vadd.f32 0.0, %v2590
        %v2592 = vpop.f32.mrb[0].mxu0
        %v2593 = vadd.f32 0.0, %v2592
        %v2594 = vpop.f32.mrb[0].mxu0
        %v2595 = vpop.f32.mrb[0].mxu0
        %2596 = vdwg.mxu0
        %2597 = vmatprep.subr.bf16.mxu0 %v2417
        %2598 = vmatpush1.bf16.msra.mxu0 %v2416
        %2599 = vmatprep.subr.bf16.mxu0 %v2419
        %2600 = vmatpush1.bf16.msra.mxu0 %v2418
        %2601 = vmatprep.subr.bf16.mxu0 %v2421
        %2602 = vmatpush1.bf16.msra.mxu0 %v2420
        %2603 = vmatprep.subr.bf16.mxu0 %v2423
        %2604 = vmatpush1.bf16.msra.mxu0 %v2422
        %2605 = vmatprep.subr.bf16.mxu0 %v2425
        %2606 = vmatpush1.bf16.msra.mxu0 %v2424
        %2607 = vmatprep.subr.bf16.mxu0 %v2427
        %2608 = vmatpush1.bf16.msra.mxu0 %v2426
        %2609 = vmatprep.subr.bf16.mxu0 %v2429
        %2610 = vmatpush1.bf16.msra.mxu0 %v2428
        %2611 = vmatprep.subr.bf16.mxu0 %v2431
        %2612 = vmatpush1.bf16.msra.mxu0 %v2430
        %2613 = vmatprep.subr.bf16.mxu0 %v2433
        %2614 = vmatpush1.bf16.msra.mxu0 %v2432
        %2615 = vmatprep.subr.bf16.mxu0 %v2435
        %2616 = vmatpush1.bf16.msra.mxu0 %v2434
        %2617 = vmatprep.subr.bf16.mxu0 %v2437
        %2618 = vmatpush1.bf16.msra.mxu0 %v2436
        %2619 = vmatprep.subr.bf16.mxu0 %v2439
        %2620 = vmatpush1.bf16.msra.mxu0 %v2438
        %2621 = vmatprep.subr.bf16.mxu0 %v2441
        %2622 = vmatpush1.bf16.msra.mxu0 %v2440
        %2623 = vmatprep.subr.bf16.mxu0 %v2443
        %2624 = vmatpush1.bf16.msra.mxu0 %v2442
        %2625 = vmatprep.subr.bf16.mxu0 %v2445
        %2626 = vmatpush1.bf16.msra.mxu0 %v2444
        %2627 = vmatprep.subr.bf16.mxu0 %v2447
        %2628 = vmatpush1.bf16.msra.mxu0 %v2446
        %2629 = vmatprep.mubr.bf16.mxu0 %v2530
        %2630 = vmatmul.mubr.bf16.gmra.mrb[0].mxu0 %v2528
        %v2631 = vpop.f32.mrb[0].mxu0
        %v2632 = vadd.f32 %v2591, %v2631
        %v2633 = vpop.f32.mrb[0].mxu0
        %v2634 = vadd.f32 %v2593, %v2633
        %v2635 = vpop.f32.mrb[0].mxu0
        %v2636 = vpop.f32.mrb[0].mxu0
        %2637 = vdwg.mxu0
        %2638 = vmatprep.subr.bf16.mxu0 %v2449
        %2639 = vmatpush1.bf16.msra.mxu0 %v2448
        %2640 = vmatprep.subr.bf16.mxu0 %v2451
        %2641 = vmatpush1.bf16.msra.mxu0 %v2450
        %2642 = vmatprep.subr.bf16.mxu0 %v2453
        %2643 = vmatpush1.bf16.msra.mxu0 %v2452
        %2644 = vmatprep.subr.bf16.mxu0 %v2455
        %2645 = vmatpush1.bf16.msra.mxu0 %v2454
        %2646 = vmatprep.subr.bf16.mxu0 %v2457
        %2647 = vmatpush1.bf16.msra.mxu0 %v2456
        %2648 = vmatprep.subr.bf16.mxu0 %v2459
        %2649 = vmatpush1.bf16.msra.mxu0 %v2458
        %2650 = vmatprep.subr.bf16.mxu0 %v2461
        %2651 = vmatpush1.bf16.msra.mxu0 %v2460
        %2652 = vmatprep.subr.bf16.mxu0 %v2463
        %2653 = vmatpush1.bf16.msra.mxu0 %v2462
        %2654 = vmatprep.subr.bf16.mxu0 %v2465
        %2655 = vmatpush1.bf16.msra.mxu0 %v2464
        %2656 = vmatprep.subr.bf16.mxu0 %v2467
        %2657 = vmatpush1.bf16.msra.mxu0 %v2466
        %2658 = vmatprep.subr.bf16.mxu0 %v2469
        %2659 = vmatpush1.bf16.msra.mxu0 %v2468
        %2660 = vmatprep.subr.bf16.mxu0 %v2471
        %2661 = vmatpush1.bf16.msra.mxu0 %v2470
        %2662 = vmatprep.subr.bf16.mxu0 %v2473
        %2663 = vmatpush1.bf16.msra.mxu0 %v2472
        %2664 = vmatprep.subr.bf16.mxu0 %v2475
        %2665 = vmatpush1.bf16.msra.mxu0 %v2474
        %2666 = vmatprep.subr.bf16.mxu0 %v2477
        %2667 = vmatpush1.bf16.msra.mxu0 %v2476
        %2668 = vmatprep.subr.bf16.mxu0 %v2479
        %2669 = vmatpush1.bf16.msra.mxu0 %v2478
        %2670 = vmatprep.mubr.bf16.mxu0 %v2546
        %2671 = vmatmul.mubr.bf16.gmra.mrb[0].mxu0 %v2538
        %v2672 = vpop.f32.mrb[0].mxu0
        %v2673 = vadd.f32 %v2632, %v2672
        %v2674 = vpop.f32.mrb[0].mxu0
        %v2675 = vadd.f32 %v2634, %v2674
        %v2676 = vpop.f32.mrb[0].mxu0
        %v2677 = vpop.f32.mrb[0].mxu0
        %2678 = vdwg.mxu0
        %2679 = vmatprep.subr.bf16.mxu0 %v2481
        %2680 = vmatpush1.bf16.msra.mxu0 %v2480
        %2681 = vmatprep.subr.bf16.mxu0 %v2483
        %2682 = vmatpush1.bf16.msra.mxu0 %v2482
        %2683 = vmatprep.subr.bf16.mxu0 %v2485
        %2684 = vmatpush1.bf16.msra.mxu0 %v2484
        %2685 = vmatprep.subr.bf16.mxu0 %v2487
        %2686 = vmatpush1.bf16.msra.mxu0 %v2486
        %2687 = vmatprep.subr.bf16.mxu0 %v2489
        %2688 = vmatpush1.bf16.msra.mxu0 %v2488
        %2689 = vmatprep.subr.bf16.mxu0 %v2491
        %2690 = vmatpush1.bf16.msra.mxu0 %v2490
        %2691 = vmatprep.subr.bf16.mxu0 %v2493
        %2692 = vmatpush1.bf16.msra.mxu0 %v2492
        %2693 = vmatprep.subr.bf16.mxu0 %v2495
        %2694 = vmatpush1.bf16.msra.mxu0 %v2494
        %2695 = vmatprep.subr.bf16.mxu0 %v2497
        %2696 = vmatpush1.bf16.msra.mxu0 %v2496
        %2697 = vmatprep.subr.bf16.mxu0 %v2499
        %2698 = vmatpush1.bf16.msra.mxu0 %v2498
        %2699 = vmatprep.subr.bf16.mxu0 %v2501
        %2700 = vmatpush1.bf16.msra.mxu0 %v2500
        %2701 = vmatprep.subr.bf16.mxu0 %v2503
        %2702 = vmatpush1.bf16.msra.mxu0 %v2502
        %2703 = vmatprep.subr.bf16.mxu0 %v2505
        %2704 = vmatpush1.bf16.msra.mxu0 %v2504
        %2705 = vmatprep.subr.bf16.mxu0 %v2507
        %2706 = vmatpush1.bf16.msra.mxu0 %v2506
        %2707 = vmatprep.subr.bf16.mxu0 %v2509
        %2708 = vmatpush1.bf16.msra.mxu0 %v2508
        %2709 = vmatprep.subr.bf16.mxu0 %v2511
        %2710 = vmatpush1.bf16.msra.mxu0 %v2510
        %2711 = vmatprep.mubr.bf16.mxu0 %v2547
        %2712 = vmatmul.mubr.bf16.gmra.mrb[0].mxu0 %v2545
        %v2713 = vpop.f32.mrb[0].mxu0
        %v2714 = vadd.f32 %v2673, %v2713
        %v2715 = vpop.f32.mrb[0].mxu0
        %v2716 = vadd.f32 %v2675, %v2715
        %v2717 = vpop.f32.mrb[0].mxu0
        %v2718 = vpop.f32.mrb[0].mxu0
        %2719 = vdwg.mxu0
        %v2720 = vadd.f32 %v2316, %v2714
        %v2721 = vadd.f32 %v2317, %v2716
        %v2722 = vld [vmem:[%s294 + $0x60] sm:$0xff]
        %v2723 = vld [vmem:[%s294 + $0x68] sm:$0xff]
        %v2724 = vld [vmem:[%s251 + $0xc00] sm:$0xff]
        %v2725 = vld [vmem:[%s251 + $0xc08] sm:$0xff]
        %v2726 = vld [vmem:[%s251 + $0xc10] sm:$0xff]
        %v2727 = vld [vmem:[%s251 + $0xc18] sm:$0xff]
        %v2728 = vld [vmem:[%s251 + $0xc20] sm:$0xff]
        %v2729 = vld [vmem:[%s251 + $0xc28] sm:$0xff]
        %v2730 = vld [vmem:[%s251 + $0xc30] sm:$0xff]
        %v2731 = vld [vmem:[%s251 + $0xc38] sm:$0xff]
        %v2732 = vld [vmem:[%s251 + $0xc40] sm:$0xff]
        %v2733 = vld [vmem:[%s251 + $0xc48] sm:$0xff]
        %v2734 = vld [vmem:[%s251 + $0xc50] sm:$0xff]
        %v2735 = vld [vmem:[%s251 + $0xc58] sm:$0xff]
        %v2736 = vld [vmem:[%s251 + $0xc60] sm:$0xff]
        %v2737 = vld [vmem:[%s251 + $0xc68] sm:$0xff]
        %v2738 = vld [vmem:[%s251 + $0xc70] sm:$0xff]
        %v2739 = vld [vmem:[%s251 + $0xc78] sm:$0xff]
        %v2740 = vld [vmem:[%s251 + $0xc80] sm:$0xff]
        %v2741 = vld [vmem:[%s251 + $0xc88] sm:$0xff]
        %v2742 = vld [vmem:[%s251 + $0xc90] sm:$0xff]
        %v2743 = vld [vmem:[%s251 + $0xc98] sm:$0xff]
        %v2744 = vld [vmem:[%s251 + $0xca0] sm:$0xff]
        %v2745 = vld [vmem:[%s251 + $0xca8] sm:$0xff]
        %v2746 = vld [vmem:[%s251 + $0xcb0] sm:$0xff]
        %v2747 = vld [vmem:[%s251 + $0xcb8] sm:$0xff]
        %v2748 = vld [vmem:[%s251 + $0xcc0] sm:$0xff]
        %v2749 = vld [vmem:[%s251 + $0xcc8] sm:$0xff]
        %v2750 = vld [vmem:[%s251 + $0xcd0] sm:$0xff]
        %v2751 = vld [vmem:[%s251 + $0xcd8] sm:$0xff]
        %v2752 = vld [vmem:[%s251 + $0xce0] sm:$0xff]
        %v2753 = vld [vmem:[%s251 + $0xce8] sm:$0xff]
        %v2754 = vld [vmem:[%s251 + $0xcf0] sm:$0xff]
        %v2755 = vld [vmem:[%s251 + $0xcf8] sm:$0xff]
        %v2756 = vld [vmem:[%s251 + $0xd00] sm:$0xff]
        %v2757 = vld [vmem:[%s251 + $0xd08] sm:$0xff]
        %v2758 = vld [vmem:[%s251 + $0xd10] sm:$0xff]
        %v2759 = vld [vmem:[%s251 + $0xd18] sm:$0xff]
        %v2760 = vld [vmem:[%s251 + $0xd20] sm:$0xff]
        %v2761 = vld [vmem:[%s251 + $0xd28] sm:$0xff]
        %v2762 = vld [vmem:[%s251 + $0xd30] sm:$0xff]
        %v2763 = vld [vmem:[%s251 + $0xd38] sm:$0xff]
        %v2764 = vld [vmem:[%s251 + $0xd40] sm:$0xff]
        %v2765 = vld [vmem:[%s251 + $0xd48] sm:$0xff]
        %v2766 = vld [vmem:[%s251 + $0xd50] sm:$0xff]
        %v2767 = vld [vmem:[%s251 + $0xd58] sm:$0xff]
        %v2768 = vld [vmem:[%s251 + $0xd60] sm:$0xff]
        %v2769 = vld [vmem:[%s251 + $0xd68] sm:$0xff]
        %v2770 = vld [vmem:[%s251 + $0xd70] sm:$0xff]
        %v2771 = vld [vmem:[%s251 + $0xd78] sm:$0xff]
        %v2772 = vld [vmem:[%s251 + $0xd80] sm:$0xff]
        %v2773 = vld [vmem:[%s251 + $0xd88] sm:$0xff]
        %v2774 = vld [vmem:[%s251 + $0xd90] sm:$0xff]
        %v2775 = vld [vmem:[%s251 + $0xd98] sm:$0xff]
        %v2776 = vld [vmem:[%s251 + $0xda0] sm:$0xff]
        %v2777 = vld [vmem:[%s251 + $0xda8] sm:$0xff]
        %v2778 = vld [vmem:[%s251 + $0xdb0] sm:$0xff]
        %v2779 = vld [vmem:[%s251 + $0xdb8] sm:$0xff]
        %v2780 = vld [vmem:[%s251 + $0xdc0] sm:$0xff]
        %v2781 = vld [vmem:[%s251 + $0xdc8] sm:$0xff]
        %v2782 = vld [vmem:[%s251 + $0xdd0] sm:$0xff]
        %v2783 = vld [vmem:[%s251 + $0xdd8] sm:$0xff]
        %v2784 = vld [vmem:[%s251 + $0xde0] sm:$0xff]
        %v2785 = vld [vmem:[%s251 + $0xde8] sm:$0xff]
        %v2786 = vld [vmem:[%s251 + $0xdf0] sm:$0xff]
        %v2787 = vld [vmem:[%s251 + $0xdf8] sm:$0xff]
        %v2788 = vunpack.c.l.s8.bf16 %v2724
        %v2789 = vunpack.c.l.s8.bf16 %v2725
        %v2790 = vunpack.c.h.s8.bf16 %v2724
        %v2791 = vunpack.c.h.s8.bf16 %v2725
        %v2792 = vunpack.c.l.s8.bf16 %v2726
        %v2793 = vunpack.c.l.s8.bf16 %v2727
        %v2794 = vunpack.c.h.s8.bf16 %v2726
        %v2795 = vunpack.c.h.s8.bf16 %v2727
        %v2796 = vunpack.c.l.s8.bf16 %v2728
        %v2797 = vunpack.c.l.s8.bf16 %v2729
        %v2798 = vunpack.c.h.s8.bf16 %v2728
        %v2799 = vunpack.c.h.s8.bf16 %v2729
        %v2800 = vunpack.c.l.s8.bf16 %v2730
        %v2801 = vunpack.c.l.s8.bf16 %v2731
        %v2802 = vunpack.c.h.s8.bf16 %v2730
        %v2803 = vunpack.c.h.s8.bf16 %v2731
        %v2804 = vunpack.c.l.s8.bf16 %v2732
        %v2805 = vunpack.c.l.s8.bf16 %v2733
        %v2806 = vunpack.c.h.s8.bf16 %v2732
        %v2807 = vunpack.c.h.s8.bf16 %v2733
        %v2808 = vunpack.c.l.s8.bf16 %v2734
        %v2809 = vunpack.c.l.s8.bf16 %v2735
        %v2810 = vunpack.c.h.s8.bf16 %v2734
        %v2811 = vunpack.c.h.s8.bf16 %v2735
        %v2812 = vunpack.c.l.s8.bf16 %v2736
        %v2813 = vunpack.c.l.s8.bf16 %v2737
        %v2814 = vunpack.c.h.s8.bf16 %v2736
        %v2815 = vunpack.c.h.s8.bf16 %v2737
        %v2816 = vunpack.c.l.s8.bf16 %v2738
        %v2817 = vunpack.c.l.s8.bf16 %v2739
        %v2818 = vunpack.c.h.s8.bf16 %v2738
        %v2819 = vunpack.c.h.s8.bf16 %v2739
        %v2820 = vunpack.c.l.s8.bf16 %v2740
        %v2821 = vunpack.c.l.s8.bf16 %v2741
        %v2822 = vunpack.c.h.s8.bf16 %v2740
        %v2823 = vunpack.c.h.s8.bf16 %v2741
        %v2824 = vunpack.c.l.s8.bf16 %v2742
        %v2825 = vunpack.c.l.s8.bf16 %v2743
        %v2826 = vunpack.c.h.s8.bf16 %v2742
        %v2827 = vunpack.c.h.s8.bf16 %v2743
        %v2828 = vunpack.c.l.s8.bf16 %v2744
        %v2829 = vunpack.c.l.s8.bf16 %v2745
        %v2830 = vunpack.c.h.s8.bf16 %v2744
        %v2831 = vunpack.c.h.s8.bf16 %v2745
        %v2832 = vunpack.c.l.s8.bf16 %v2746
        %v2833 = vunpack.c.l.s8.bf16 %v2747
        %v2834 = vunpack.c.h.s8.bf16 %v2746
        %v2835 = vunpack.c.h.s8.bf16 %v2747
        %v2836 = vunpack.c.l.s8.bf16 %v2748
        %v2837 = vunpack.c.l.s8.bf16 %v2749
        %v2838 = vunpack.c.h.s8.bf16 %v2748
        %v2839 = vunpack.c.h.s8.bf16 %v2749
        %v2840 = vunpack.c.l.s8.bf16 %v2750
        %v2841 = vunpack.c.l.s8.bf16 %v2751
        %v2842 = vunpack.c.h.s8.bf16 %v2750
        %v2843 = vunpack.c.h.s8.bf16 %v2751
        %v2844 = vunpack.c.l.s8.bf16 %v2752
        %v2845 = vunpack.c.l.s8.bf16 %v2753
        %v2846 = vunpack.c.h.s8.bf16 %v2752
        %v2847 = vunpack.c.h.s8.bf16 %v2753
        %v2848 = vunpack.c.l.s8.bf16 %v2754
        %v2849 = vunpack.c.l.s8.bf16 %v2755
        %v2850 = vunpack.c.h.s8.bf16 %v2754
        %v2851 = vunpack.c.h.s8.bf16 %v2755
        %v2852 = vunpack.c.l.s8.bf16 %v2756
        %v2853 = vunpack.c.l.s8.bf16 %v2757
        %v2854 = vunpack.c.h.s8.bf16 %v2756
        %v2855 = vunpack.c.h.s8.bf16 %v2757
        %v2856 = vunpack.c.l.s8.bf16 %v2758
        %v2857 = vunpack.c.l.s8.bf16 %v2759
        %v2858 = vunpack.c.h.s8.bf16 %v2758
        %v2859 = vunpack.c.h.s8.bf16 %v2759
        %v2860 = vunpack.c.l.s8.bf16 %v2760
        %v2861 = vunpack.c.l.s8.bf16 %v2761
        %v2862 = vunpack.c.h.s8.bf16 %v2760
        %v2863 = vunpack.c.h.s8.bf16 %v2761
        %v2864 = vunpack.c.l.s8.bf16 %v2762
        %v2865 = vunpack.c.l.s8.bf16 %v2763
        %v2866 = vunpack.c.h.s8.bf16 %v2762
        %v2867 = vunpack.c.h.s8.bf16 %v2763
        %v2868 = vunpack.c.l.s8.bf16 %v2764
        %v2869 = vunpack.c.l.s8.bf16 %v2765
        %v2870 = vunpack.c.h.s8.bf16 %v2764
        %v2871 = vunpack.c.h.s8.bf16 %v2765
        %v2872 = vunpack.c.l.s8.bf16 %v2766
        %v2873 = vunpack.c.l.s8.bf16 %v2767
        %v2874 = vunpack.c.h.s8.bf16 %v2766
        %v2875 = vunpack.c.h.s8.bf16 %v2767
        %v2876 = vunpack.c.l.s8.bf16 %v2768
        %v2877 = vunpack.c.l.s8.bf16 %v2769
        %v2878 = vunpack.c.h.s8.bf16 %v2768
        %v2879 = vunpack.c.h.s8.bf16 %v2769
        %v2880 = vunpack.c.l.s8.bf16 %v2770
        %v2881 = vunpack.c.l.s8.bf16 %v2771
        %v2882 = vunpack.c.h.s8.bf16 %v2770
        %v2883 = vunpack.c.h.s8.bf16 %v2771
        %v2884 = vunpack.c.l.s8.bf16 %v2772
        %v2885 = vunpack.c.l.s8.bf16 %v2773
        %v2886 = vunpack.c.h.s8.bf16 %v2772
        %v2887 = vunpack.c.h.s8.bf16 %v2773
        %v2888 = vunpack.c.l.s8.bf16 %v2774
        %v2889 = vunpack.c.l.s8.bf16 %v2775
        %v2890 = vunpack.c.h.s8.bf16 %v2774
        %v2891 = vunpack.c.h.s8.bf16 %v2775
        %v2892 = vunpack.c.l.s8.bf16 %v2776
        %v2893 = vunpack.c.l.s8.bf16 %v2777
        %v2894 = vunpack.c.h.s8.bf16 %v2776
        %v2895 = vunpack.c.h.s8.bf16 %v2777
        %v2896 = vunpack.c.l.s8.bf16 %v2778
        %v2897 = vunpack.c.l.s8.bf16 %v2779
        %v2898 = vunpack.c.h.s8.bf16 %v2778
        %v2899 = vunpack.c.h.s8.bf16 %v2779
        %v2900 = vunpack.c.l.s8.bf16 %v2780
        %v2901 = vunpack.c.l.s8.bf16 %v2781
        %v2902 = vunpack.c.h.s8.bf16 %v2780
        %v2903 = vunpack.c.h.s8.bf16 %v2781
        %v2904 = vunpack.c.l.s8.bf16 %v2782
        %v2905 = vunpack.c.l.s8.bf16 %v2783
        %v2906 = vunpack.c.h.s8.bf16 %v2782
        %v2907 = vunpack.c.h.s8.bf16 %v2783
        %v2908 = vunpack.c.l.s8.bf16 %v2784
        %v2909 = vunpack.c.l.s8.bf16 %v2785
        %v2910 = vunpack.c.h.s8.bf16 %v2784
        %v2911 = vunpack.c.h.s8.bf16 %v2785
        %v2912 = vunpack.c.l.s8.bf16 %v2786
        %v2913 = vunpack.c.l.s8.bf16 %v2787
        %v2914 = vunpack.c.h.s8.bf16 %v2786
        %v2915 = vunpack.c.h.s8.bf16 %v2787
        %v2918 = vcombine.high %v2722, %v2722
        %v2920 = vunpack.c.l.s4 1983009808
        %v2921 = vunpack.c.0.s8 %v2920
        %v2922 = vlaneseq
        %v2923 = vshrl.u32 %v2922, 7
        %v2924 = vsub.s32 %v2921, %v2923
        %v2925 = vrot.slane %v2722, %v2924
        %v2927 = vunpack.c.l.s4 1983009808
        %v2928 = vunpack.c.0.s8 %v2927
        %v2929 = vlaneseq
        %v2930 = vshrl.u32 %v2929, 7
        %v2931 = vsub.s32 %v2928, %v2930
        %v2932 = vrot.slane %v2918, %v2931
        %v2933 = vcombine.high %v2925, %v2925
        %v2934 = vcombine.high %v2932, %v2932
        %v2935 = vcombine.high %v2723, %v2723
        %v2937 = vunpack.c.l.s4 1983009808
        %v2938 = vunpack.c.0.s8 %v2937
        %v2939 = vlaneseq
        %v2940 = vshrl.u32 %v2939, 7
        %v2941 = vsub.s32 %v2938, %v2940
        %v2942 = vrot.slane %v2723, %v2941
        %v2944 = vunpack.c.l.s4 1983009808
        %v2945 = vunpack.c.0.s8 %v2944
        %v2946 = vlaneseq
        %v2947 = vshrl.u32 %v2946, 7
        %v2948 = vsub.s32 %v2945, %v2947
        %v2949 = vrot.slane %v2935, %v2948
        %v2950 = vcombine.high %v2942, %v2942
        %v2951 = vcombine.high %v2949, %v2949
        %2960 = vmatprep.subr.bf16.mxu0 %v2789
        %2961 = vmatpush1.bf16.msra.mxu0 %v2788
        %2962 = vmatprep.subr.bf16.mxu0 %v2791
        %2963 = vmatpush1.bf16.msra.mxu0 %v2790
        %2964 = vmatprep.subr.bf16.mxu0 %v2793
        %2965 = vmatpush1.bf16.msra.mxu0 %v2792
        %2966 = vmatprep.subr.bf16.mxu0 %v2795
        %2967 = vmatpush1.bf16.msra.mxu0 %v2794
        %2968 = vmatprep.subr.bf16.mxu0 %v2797
        %2969 = vmatpush1.bf16.msra.mxu0 %v2796
        %2970 = vmatprep.subr.bf16.mxu0 %v2799
        %2971 = vmatpush1.bf16.msra.mxu0 %v2798
        %2972 = vmatprep.subr.bf16.mxu0 %v2801
        %2973 = vmatpush1.bf16.msra.mxu0 %v2800
        %2974 = vmatprep.subr.bf16.mxu0 %v2803
        %2975 = vmatpush1.bf16.msra.mxu0 %v2802
        %2976 = vmatprep.subr.bf16.mxu0 %v2805
        %2977 = vmatpush1.bf16.msra.mxu0 %v2804
        %2978 = vmatprep.subr.bf16.mxu0 %v2807
        %2979 = vmatpush1.bf16.msra.mxu0 %v2806
        %2980 = vmatprep.subr.bf16.mxu0 %v2809
        %2981 = vmatpush1.bf16.msra.mxu0 %v2808
        %2982 = vmatprep.subr.bf16.mxu0 %v2811
        %2983 = vmatpush1.bf16.msra.mxu0 %v2810
        %2984 = vmatprep.subr.bf16.mxu0 %v2813
        %2985 = vmatpush1.bf16.msra.mxu0 %v2812
        %2986 = vmatprep.subr.bf16.mxu0 %v2815
        %2987 = vmatpush1.bf16.msra.mxu0 %v2814
        %2988 = vmatprep.subr.bf16.mxu0 %v2817
        %2989 = vmatpush1.bf16.msra.mxu0 %v2816
        %2990 = vmatprep.subr.bf16.mxu0 %v2819
        %2991 = vmatpush1.bf16.msra.mxu0 %v2818
        %2992 = vmatprep.mubr.bf16.mxu0 %v2933
        %2993 = vmatmul.mubr.bf16.gmra.mrb[0].mxu0 %v2925
        %v2994 = vpop.f32.mrb[0].mxu0
        %v2995 = vadd.f32 0.0, %v2994
        %v2996 = vpop.f32.mrb[0].mxu0
        %v2997 = vadd.f32 0.0, %v2996
        %v2998 = vpop.f32.mrb[0].mxu0
        %v2999 = vpop.f32.mrb[0].mxu0
        %3000 = vdwg.mxu0
        %3001 = vmatprep.subr.bf16.mxu0 %v2821
        %3002 = vmatpush1.bf16.msra.mxu0 %v2820
        %3003 = vmatprep.subr.bf16.mxu0 %v2823
        %3004 = vmatpush1.bf16.msra.mxu0 %v2822
        %3005 = vmatprep.subr.bf16.mxu0 %v2825
        %3006 = vmatpush1.bf16.msra.mxu0 %v2824
        %3007 = vmatprep.subr.bf16.mxu0 %v2827
        %3008 = vmatpush1.bf16.msra.mxu0 %v2826
        %3009 = vmatprep.subr.bf16.mxu0 %v2829
        %3010 = vmatpush1.bf16.msra.mxu0 %v2828
        %3011 = vmatprep.subr.bf16.mxu0 %v2831
        %3012 = vmatpush1.bf16.msra.mxu0 %v2830
        %3013 = vmatprep.subr.bf16.mxu0 %v2833
        %3014 = vmatpush1.bf16.msra.mxu0 %v2832
        %3015 = vmatprep.subr.bf16.mxu0 %v2835
        %3016 = vmatpush1.bf16.msra.mxu0 %v2834
        %3017 = vmatprep.subr.bf16.mxu0 %v2837
        %3018 = vmatpush1.bf16.msra.mxu0 %v2836
        %3019 = vmatprep.subr.bf16.mxu0 %v2839
        %3020 = vmatpush1.bf16.msra.mxu0 %v2838
        %3021 = vmatprep.subr.bf16.mxu0 %v2841
        %3022 = vmatpush1.bf16.msra.mxu0 %v2840
        %3023 = vmatprep.subr.bf16.mxu0 %v2843
        %3024 = vmatpush1.bf16.msra.mxu0 %v2842
        %3025 = vmatprep.subr.bf16.mxu0 %v2845
        %3026 = vmatpush1.bf16.msra.mxu0 %v2844
        %3027 = vmatprep.subr.bf16.mxu0 %v2847
        %3028 = vmatpush1.bf16.msra.mxu0 %v2846
        %3029 = vmatprep.subr.bf16.mxu0 %v2849
        %3030 = vmatpush1.bf16.msra.mxu0 %v2848
        %3031 = vmatprep.subr.bf16.mxu0 %v2851
        %3032 = vmatpush1.bf16.msra.mxu0 %v2850
        %3033 = vmatprep.mubr.bf16.mxu0 %v2934
        %3034 = vmatmul.mubr.bf16.gmra.mrb[0].mxu0 %v2932
        %v3035 = vpop.f32.mrb[0].mxu0
        %v3036 = vadd.f32 %v2995, %v3035
        %v3037 = vpop.f32.mrb[0].mxu0
        %v3038 = vadd.f32 %v2997, %v3037
        %v3039 = vpop.f32.mrb[0].mxu0
        %v3040 = vpop.f32.mrb[0].mxu0
        %3041 = vdwg.mxu0
        %3042 = vmatprep.subr.bf16.mxu0 %v2853
        %3043 = vmatpush1.bf16.msra.mxu0 %v2852
        %3044 = vmatprep.subr.bf16.mxu0 %v2855
        %3045 = vmatpush1.bf16.msra.mxu0 %v2854
        %3046 = vmatprep.subr.bf16.mxu0 %v2857
        %3047 = vmatpush1.bf16.msra.mxu0 %v2856
        %3048 = vmatprep.subr.bf16.mxu0 %v2859
        %3049 = vmatpush1.bf16.msra.mxu0 %v2858
        %3050 = vmatprep.subr.bf16.mxu0 %v2861
        %3051 = vmatpush1.bf16.msra.mxu0 %v2860
        %3052 = vmatprep.subr.bf16.mxu0 %v2863
        %3053 = vmatpush1.bf16.msra.mxu0 %v2862
        %3054 = vmatprep.subr.bf16.mxu0 %v2865
        %3055 = vmatpush1.bf16.msra.mxu0 %v2864
        %3056 = vmatprep.subr.bf16.mxu0 %v2867
        %3057 = vmatpush1.bf16.msra.mxu0 %v2866
        %3058 = vmatprep.subr.bf16.mxu0 %v2869
        %3059 = vmatpush1.bf16.msra.mxu0 %v2868
        %3060 = vmatprep.subr.bf16.mxu0 %v2871
        %3061 = vmatpush1.bf16.msra.mxu0 %v2870
        %3062 = vmatprep.subr.bf16.mxu0 %v2873
        %3063 = vmatpush1.bf16.msra.mxu0 %v2872
        %3064 = vmatprep.subr.bf16.mxu0 %v2875
        %3065 = vmatpush1.bf16.msra.mxu0 %v2874
        %3066 = vmatprep.subr.bf16.mxu0 %v2877
        %3067 = vmatpush1.bf16.msra.mxu0 %v2876
        %3068 = vmatprep.subr.bf16.mxu0 %v2879
        %3069 = vmatpush1.bf16.msra.mxu0 %v2878
        %3070 = vmatprep.subr.bf16.mxu0 %v2881
        %3071 = vmatpush1.bf16.msra.mxu0 %v2880
        %3072 = vmatprep.subr.bf16.mxu0 %v2883
        %3073 = vmatpush1.bf16.msra.mxu0 %v2882
        %3074 = vmatprep.mubr.bf16.mxu0 %v2950
        %3075 = vmatmul.mubr.bf16.gmra.mrb[0].mxu0 %v2942
        %v3076 = vpop.f32.mrb[0].mxu0
        %v3077 = vadd.f32 %v3036, %v3076
        %v3078 = vpop.f32.mrb[0].mxu0
        %v3079 = vadd.f32 %v3038, %v3078
        %v3080 = vpop.f32.mrb[0].mxu0
        %v3081 = vpop.f32.mrb[0].mxu0
        %3082 = vdwg.mxu0
        %3083 = vmatprep.subr.bf16.mxu0 %v2885
        %3084 = vmatpush1.bf16.msra.mxu0 %v2884
        %3085 = vmatprep.subr.bf16.mxu0 %v2887
        %3086 = vmatpush1.bf16.msra.mxu0 %v2886
        %3087 = vmatprep.subr.bf16.mxu0 %v2889
        %3088 = vmatpush1.bf16.msra.mxu0 %v2888
        %3089 = vmatprep.subr.bf16.mxu0 %v2891
        %3090 = vmatpush1.bf16.msra.mxu0 %v2890
        %3091 = vmatprep.subr.bf16.mxu0 %v2893
        %3092 = vmatpush1.bf16.msra.mxu0 %v2892
        %3093 = vmatprep.subr.bf16.mxu0 %v2895
        %3094 = vmatpush1.bf16.msra.mxu0 %v2894
        %3095 = vmatprep.subr.bf16.mxu0 %v2897
        %3096 = vmatpush1.bf16.msra.mxu0 %v2896
        %3097 = vmatprep.subr.bf16.mxu0 %v2899
        %3098 = vmatpush1.bf16.msra.mxu0 %v2898
        %3099 = vmatprep.subr.bf16.mxu0 %v2901
        %3100 = vmatpush1.bf16.msra.mxu0 %v2900
        %3101 = vmatprep.subr.bf16.mxu0 %v2903
        %3102 = vmatpush1.bf16.msra.mxu0 %v2902
        %3103 = vmatprep.subr.bf16.mxu0 %v2905
        %3104 = vmatpush1.bf16.msra.mxu0 %v2904
        %3105 = vmatprep.subr.bf16.mxu0 %v2907
        %3106 = vmatpush1.bf16.msra.mxu0 %v2906
        %3107 = vmatprep.subr.bf16.mxu0 %v2909
        %3108 = vmatpush1.bf16.msra.mxu0 %v2908
        %3109 = vmatprep.subr.bf16.mxu0 %v2911
        %3110 = vmatpush1.bf16.msra.mxu0 %v2910
        %3111 = vmatprep.subr.bf16.mxu0 %v2913
        %3112 = vmatpush1.bf16.msra.mxu0 %v2912
        %3113 = vmatprep.subr.bf16.mxu0 %v2915
        %3114 = vmatpush1.bf16.msra.mxu0 %v2914
        %3115 = vmatprep.mubr.bf16.mxu0 %v2951
        %3116 = vmatmul.mubr.bf16.gmra.mrb[0].mxu0 %v2949
        %v3117 = vpop.f32.mrb[0].mxu0
        %v3118 = vadd.f32 %v3077, %v3117
        %v3119 = vpop.f32.mrb[0].mxu0
        %v3120 = vadd.f32 %v3079, %v3119
        %v3121 = vpop.f32.mrb[0].mxu0
        %v3122 = vpop.f32.mrb[0].mxu0
        %3123 = vdwg.mxu0
        %v3124 = vadd.f32 %v2720, %v3118
        %v3125 = vadd.f32 %v2721, %v3120
        %v3126 = vld [vmem:[%s294 + $0x70] sm:$0xff]
        %v3127 = vld [vmem:[%s294 + $0x78] sm:$0xff]
        %v3128 = vld [vmem:[%s251 + $0xe00] sm:$0xff]
        %v3129 = vld [vmem:[%s251 + $0xe08] sm:$0xff]
        %v3130 = vld [vmem:[%s251 + $0xe10] sm:$0xff]
        %v3131 = vld [vmem:[%s251 + $0xe18] sm:$0xff]
        %v3132 = vld [vmem:[%s251 + $0xe20] sm:$0xff]
        %v3133 = vld [vmem:[%s251 + $0xe28] sm:$0xff]
        %v3134 = vld [vmem:[%s251 + $0xe30] sm:$0xff]
        %v3135 = vld [vmem:[%s251 + $0xe38] sm:$0xff]
        %v3136 = vld [vmem:[%s251 + $0xe40] sm:$0xff]
        %v3137 = vld [vmem:[%s251 + $0xe48] sm:$0xff]
        %v3138 = vld [vmem:[%s251 + $0xe50] sm:$0xff]
        %v3139 = vld [vmem:[%s251 + $0xe58] sm:$0xff]
        %v3140 = vld [vmem:[%s251 + $0xe60] sm:$0xff]
        %v3141 = vld [vmem:[%s251 + $0xe68] sm:$0xff]
        %v3142 = vld [vmem:[%s251 + $0xe70] sm:$0xff]
        %v3143 = vld [vmem:[%s251 + $0xe78] sm:$0xff]
        %v3144 = vld [vmem:[%s251 + $0xe80] sm:$0xff]
        %v3145 = vld [vmem:[%s251 + $0xe88] sm:$0xff]
        %v3146 = vld [vmem:[%s251 + $0xe90] sm:$0xff]
        %v3147 = vld [vmem:[%s251 + $0xe98] sm:$0xff]
        %v3148 = vld [vmem:[%s251 + $0xea0] sm:$0xff]
        %v3149 = vld [vmem:[%s251 + $0xea8] sm:$0xff]
        %v3150 = vld [vmem:[%s251 + $0xeb0] sm:$0xff]
        %v3151 = vld [vmem:[%s251 + $0xeb8] sm:$0xff]
        %v3152 = vld [vmem:[%s251 + $0xec0] sm:$0xff]
        %v3153 = vld [vmem:[%s251 + $0xec8] sm:$0xff]
        %v3154 = vld [vmem:[%s251 + $0xed0] sm:$0xff]
        %v3155 = vld [vmem:[%s251 + $0xed8] sm:$0xff]
        %v3156 = vld [vmem:[%s251 + $0xee0] sm:$0xff]
        %v3157 = vld [vmem:[%s251 + $0xee8] sm:$0xff]
        %v3158 = vld [vmem:[%s251 + $0xef0] sm:$0xff]
        %v3159 = vld [vmem:[%s251 + $0xef8] sm:$0xff]
        %v3160 = vld [vmem:[%s251 + $0xf00] sm:$0xff]
        %v3161 = vld [vmem:[%s251 + $0xf08] sm:$0xff]
        %v3162 = vld [vmem:[%s251 + $0xf10] sm:$0xff]
        %v3163 = vld [vmem:[%s251 + $0xf18] sm:$0xff]
        %v3164 = vld [vmem:[%s251 + $0xf20] sm:$0xff]
        %v3165 = vld [vmem:[%s251 + $0xf28] sm:$0xff]
        %v3166 = vld [vmem:[%s251 + $0xf30] sm:$0xff]
        %v3167 = vld [vmem:[%s251 + $0xf38] sm:$0xff]
        %v3168 = vld [vmem:[%s251 + $0xf40] sm:$0xff]
        %v3169 = vld [vmem:[%s251 + $0xf48] sm:$0xff]
        %v3170 = vld [vmem:[%s251 + $0xf50] sm:$0xff]
        %v3171 = vld [vmem:[%s251 + $0xf58] sm:$0xff]
        %v3172 = vld [vmem:[%s251 + $0xf60] sm:$0xff]
        %v3173 = vld [vmem:[%s251 + $0xf68] sm:$0xff]
        %v3174 = vld [vmem:[%s251 + $0xf70] sm:$0xff]
        %v3175 = vld [vmem:[%s251 + $0xf78] sm:$0xff]
        %v3176 = vld [vmem:[%s251 + $0xf80] sm:$0xff]
        %v3177 = vld [vmem:[%s251 + $0xf88] sm:$0xff]
        %v3178 = vld [vmem:[%s251 + $0xf90] sm:$0xff]
        %v3179 = vld [vmem:[%s251 + $0xf98] sm:$0xff]
        %v3180 = vld [vmem:[%s251 + $0xfa0] sm:$0xff]
        %v3181 = vld [vmem:[%s251 + $0xfa8] sm:$0xff]
        %v3182 = vld [vmem:[%s251 + $0xfb0] sm:$0xff]
        %v3183 = vld [vmem:[%s251 + $0xfb8] sm:$0xff]
        %v3184 = vld [vmem:[%s251 + $0xfc0] sm:$0xff]
        %v3185 = vld [vmem:[%s251 + $0xfc8] sm:$0xff]
        %v3186 = vld [vmem:[%s251 + $0xfd0] sm:$0xff]
        %v3187 = vld [vmem:[%s251 + $0xfd8] sm:$0xff]
        %v3188 = vld [vmem:[%s251 + $0xfe0] sm:$0xff]
        %v3189 = vld [vmem:[%s251 + $0xfe8] sm:$0xff]
        %v3190 = vld [vmem:[%s251 + $0xff0] sm:$0xff]
        %v3191 = vld [vmem:[%s251 + $0xff8] sm:$0xff]
        %v3192 = vunpack.c.l.s8.bf16 %v3128
        %v3193 = vunpack.c.l.s8.bf16 %v3129
        %v3194 = vunpack.c.h.s8.bf16 %v3128
        %v3195 = vunpack.c.h.s8.bf16 %v3129
        %v3196 = vunpack.c.l.s8.bf16 %v3130
        %v3197 = vunpack.c.l.s8.bf16 %v3131
        %v3198 = vunpack.c.h.s8.bf16 %v3130
        %v3199 = vunpack.c.h.s8.bf16 %v3131
        %v3200 = vunpack.c.l.s8.bf16 %v3132
        %v3201 = vunpack.c.l.s8.bf16 %v3133
        %v3202 = vunpack.c.h.s8.bf16 %v3132
        %v3203 = vunpack.c.h.s8.bf16 %v3133
        %v3204 = vunpack.c.l.s8.bf16 %v3134
        %v3205 = vunpack.c.l.s8.bf16 %v3135
        %v3206 = vunpack.c.h.s8.bf16 %v3134
        %v3207 = vunpack.c.h.s8.bf16 %v3135
        %v3208 = vunpack.c.l.s8.bf16 %v3136
        %v3209 = vunpack.c.l.s8.bf16 %v3137
        %v3210 = vunpack.c.h.s8.bf16 %v3136
        %v3211 = vunpack.c.h.s8.bf16 %v3137
        %v3212 = vunpack.c.l.s8.bf16 %v3138
        %v3213 = vunpack.c.l.s8.bf16 %v3139
        %v3214 = vunpack.c.h.s8.bf16 %v3138
        %v3215 = vunpack.c.h.s8.bf16 %v3139
        %v3216 = vunpack.c.l.s8.bf16 %v3140
        %v3217 = vunpack.c.l.s8.bf16 %v3141
        %v3218 = vunpack.c.h.s8.bf16 %v3140
        %v3219 = vunpack.c.h.s8.bf16 %v3141
        %v3220 = vunpack.c.l.s8.bf16 %v3142
        %v3221 = vunpack.c.l.s8.bf16 %v3143
        %v3222 = vunpack.c.h.s8.bf16 %v3142
        %v3223 = vunpack.c.h.s8.bf16 %v3143
        %v3224 = vunpack.c.l.s8.bf16 %v3144
        %v3225 = vunpack.c.l.s8.bf16 %v3145
        %v3226 = vunpack.c.h.s8.bf16 %v3144
        %v3227 = vunpack.c.h.s8.bf16 %v3145
        %v3228 = vunpack.c.l.s8.bf16 %v3146
        %v3229 = vunpack.c.l.s8.bf16 %v3147
        %v3230 = vunpack.c.h.s8.bf16 %v3146
        %v3231 = vunpack.c.h.s8.bf16 %v3147
        %v3232 = vunpack.c.l.s8.bf16 %v3148
        %v3233 = vunpack.c.l.s8.bf16 %v3149
        %v3234 = vunpack.c.h.s8.bf16 %v3148
        %v3235 = vunpack.c.h.s8.bf16 %v3149
        %v3236 = vunpack.c.l.s8.bf16 %v3150
        %v3237 = vunpack.c.l.s8.bf16 %v3151
        %v3238 = vunpack.c.h.s8.bf16 %v3150
        %v3239 = vunpack.c.h.s8.bf16 %v3151
        %v3240 = vunpack.c.l.s8.bf16 %v3152
        %v3241 = vunpack.c.l.s8.bf16 %v3153
        %v3242 = vunpack.c.h.s8.bf16 %v3152
        %v3243 = vunpack.c.h.s8.bf16 %v3153
        %v3244 = vunpack.c.l.s8.bf16 %v3154
        %v3245 = vunpack.c.l.s8.bf16 %v3155
        %v3246 = vunpack.c.h.s8.bf16 %v3154
        %v3247 = vunpack.c.h.s8.bf16 %v3155
        %v3248 = vunpack.c.l.s8.bf16 %v3156
        %v3249 = vunpack.c.l.s8.bf16 %v3157
        %v3250 = vunpack.c.h.s8.bf16 %v3156
        %v3251 = vunpack.c.h.s8.bf16 %v3157
        %v3252 = vunpack.c.l.s8.bf16 %v3158
        %v3253 = vunpack.c.l.s8.bf16 %v3159
        %v3254 = vunpack.c.h.s8.bf16 %v3158
        %v3255 = vunpack.c.h.s8.bf16 %v3159
        %v3256 = vunpack.c.l.s8.bf16 %v3160
        %v3257 = vunpack.c.l.s8.bf16 %v3161
        %v3258 = vunpack.c.h.s8.bf16 %v3160
        %v3259 = vunpack.c.h.s8.bf16 %v3161
        %v3260 = vunpack.c.l.s8.bf16 %v3162
        %v3261 = vunpack.c.l.s8.bf16 %v3163
        %v3262 = vunpack.c.h.s8.bf16 %v3162
        %v3263 = vunpack.c.h.s8.bf16 %v3163
        %v3264 = vunpack.c.l.s8.bf16 %v3164
        %v3265 = vunpack.c.l.s8.bf16 %v3165
        %v3266 = vunpack.c.h.s8.bf16 %v3164
        %v3267 = vunpack.c.h.s8.bf16 %v3165
        %v3268 = vunpack.c.l.s8.bf16 %v3166
        %v3269 = vunpack.c.l.s8.bf16 %v3167
        %v3270 = vunpack.c.h.s8.bf16 %v3166
        %v3271 = vunpack.c.h.s8.bf16 %v3167
        %v3272 = vunpack.c.l.s8.bf16 %v3168
        %v3273 = vunpack.c.l.s8.bf16 %v3169
        %v3274 = vunpack.c.h.s8.bf16 %v3168
        %v3275 = vunpack.c.h.s8.bf16 %v3169
        %v3276 = vunpack.c.l.s8.bf16 %v3170
        %v3277 = vunpack.c.l.s8.bf16 %v3171
        %v3278 = vunpack.c.h.s8.bf16 %v3170
        %v3279 = vunpack.c.h.s8.bf16 %v3171
        %v3280 = vunpack.c.l.s8.bf16 %v3172
        %v3281 = vunpack.c.l.s8.bf16 %v3173
        %v3282 = vunpack.c.h.s8.bf16 %v3172
        %v3283 = vunpack.c.h.s8.bf16 %v3173
        %v3284 = vunpack.c.l.s8.bf16 %v3174
        %v3285 = vunpack.c.l.s8.bf16 %v3175
        %v3286 = vunpack.c.h.s8.bf16 %v3174
        %v3287 = vunpack.c.h.s8.bf16 %v3175
        %v3288 = vunpack.c.l.s8.bf16 %v3176
        %v3289 = vunpack.c.l.s8.bf16 %v3177
        %v3290 = vunpack.c.h.s8.bf16 %v3176
        %v3291 = vunpack.c.h.s8.bf16 %v3177
        %v3292 = vunpack.c.l.s8.bf16 %v3178
        %v3293 = vunpack.c.l.s8.bf16 %v3179
        %v3294 = vunpack.c.h.s8.bf16 %v3178
        %v3295 = vunpack.c.h.s8.bf16 %v3179
        %v3296 = vunpack.c.l.s8.bf16 %v3180
        %v3297 = vunpack.c.l.s8.bf16 %v3181
        %v3298 = vunpack.c.h.s8.bf16 %v3180
        %v3299 = vunpack.c.h.s8.bf16 %v3181
        %v3300 = vunpack.c.l.s8.bf16 %v3182
        %v3301 = vunpack.c.l.s8.bf16 %v3183
        %v3302 = vunpack.c.h.s8.bf16 %v3182
        %v3303 = vunpack.c.h.s8.bf16 %v3183
        %v3304 = vunpack.c.l.s8.bf16 %v3184
        %v3305 = vunpack.c.l.s8.bf16 %v3185
        %v3306 = vunpack.c.h.s8.bf16 %v3184
        %v3307 = vunpack.c.h.s8.bf16 %v3185
        %v3308 = vunpack.c.l.s8.bf16 %v3186
        %v3309 = vunpack.c.l.s8.bf16 %v3187
        %v3310 = vunpack.c.h.s8.bf16 %v3186
        %v3311 = vunpack.c.h.s8.bf16 %v3187
        %v3312 = vunpack.c.l.s8.bf16 %v3188
        %v3313 = vunpack.c.l.s8.bf16 %v3189
        %v3314 = vunpack.c.h.s8.bf16 %v3188
        %v3315 = vunpack.c.h.s8.bf16 %v3189
        %v3316 = vunpack.c.l.s8.bf16 %v3190
        %v3317 = vunpack.c.l.s8.bf16 %v3191
        %v3318 = vunpack.c.h.s8.bf16 %v3190
        %v3319 = vunpack.c.h.s8.bf16 %v3191
        %v3322 = vcombine.high %v3126, %v3126
        %v3324 = vunpack.c.l.s4 1983009808
        %v3325 = vunpack.c.0.s8 %v3324
        %v3326 = vlaneseq
        %v3327 = vshrl.u32 %v3326, 7
        %v3328 = vsub.s32 %v3325, %v3327
        %v3329 = vrot.slane %v3126, %v3328
        %v3331 = vunpack.c.l.s4 1983009808
        %v3332 = vunpack.c.0.s8 %v3331
        %v3333 = vlaneseq
        %v3334 = vshrl.u32 %v3333, 7
        %v3335 = vsub.s32 %v3332, %v3334
        %v3336 = vrot.slane %v3322, %v3335
        %v3337 = vcombine.high %v3329, %v3329
        %v3338 = vcombine.high %v3336, %v3336
        %v3339 = vcombine.high %v3127, %v3127
        %v3341 = vunpack.c.l.s4 1983009808
        %v3342 = vunpack.c.0.s8 %v3341
        %v3343 = vlaneseq
        %v3344 = vshrl.u32 %v3343, 7
        %v3345 = vsub.s32 %v3342, %v3344
        %v3346 = vrot.slane %v3127, %v3345
        %v3348 = vunpack.c.l.s4 1983009808
        %v3349 = vunpack.c.0.s8 %v3348
        %v3350 = vlaneseq
        %v3351 = vshrl.u32 %v3350, 7
        %v3352 = vsub.s32 %v3349, %v3351
        %v3353 = vrot.slane %v3339, %v3352
        %v3354 = vcombine.high %v3346, %v3346
        %v3355 = vcombine.high %v3353, %v3353
        %3364 = vmatprep.subr.bf16.mxu0 %v3193
        %3365 = vmatpush1.bf16.msra.mxu0 %v3192
        %3366 = vmatprep.subr.bf16.mxu0 %v3195
        %3367 = vmatpush1.bf16.msra.mxu0 %v3194
        %3368 = vmatprep.subr.bf16.mxu0 %v3197
        %3369 = vmatpush1.bf16.msra.mxu0 %v3196
        %3370 = vmatprep.subr.bf16.mxu0 %v3199
        %3371 = vmatpush1.bf16.msra.mxu0 %v3198
        %3372 = vmatprep.subr.bf16.mxu0 %v3201
        %3373 = vmatpush1.bf16.msra.mxu0 %v3200
        %3374 = vmatprep.subr.bf16.mxu0 %v3203
        %3375 = vmatpush1.bf16.msra.mxu0 %v3202
        %3376 = vmatprep.subr.bf16.mxu0 %v3205
        %3377 = vmatpush1.bf16.msra.mxu0 %v3204
        %3378 = vmatprep.subr.bf16.mxu0 %v3207
        %3379 = vmatpush1.bf16.msra.mxu0 %v3206
        %3380 = vmatprep.subr.bf16.mxu0 %v3209
        %3381 = vmatpush1.bf16.msra.mxu0 %v3208
        %3382 = vmatprep.subr.bf16.mxu0 %v3211
        %3383 = vmatpush1.bf16.msra.mxu0 %v3210
        %3384 = vmatprep.subr.bf16.mxu0 %v3213
        %3385 = vmatpush1.bf16.msra.mxu0 %v3212
        %3386 = vmatprep.subr.bf16.mxu0 %v3215
        %3387 = vmatpush1.bf16.msra.mxu0 %v3214
        %3388 = vmatprep.subr.bf16.mxu0 %v3217
        %3389 = vmatpush1.bf16.msra.mxu0 %v3216
        %3390 = vmatprep.subr.bf16.mxu0 %v3219
        %3391 = vmatpush1.bf16.msra.mxu0 %v3218
        %3392 = vmatprep.subr.bf16.mxu0 %v3221
        %3393 = vmatpush1.bf16.msra.mxu0 %v3220
        %3394 = vmatprep.subr.bf16.mxu0 %v3223
        %3395 = vmatpush1.bf16.msra.mxu0 %v3222
        %3396 = vmatprep.mubr.bf16.mxu0 %v3337
        %3397 = vmatmul.mubr.bf16.gmra.mrb[0].mxu0 %v3329
        %v3398 = vpop.f32.mrb[0].mxu0
        %v3399 = vadd.f32 0.0, %v3398
        %v3400 = vpop.f32.mrb[0].mxu0
        %v3401 = vadd.f32 0.0, %v3400
        %v3402 = vpop.f32.mrb[0].mxu0
        %v3403 = vpop.f32.mrb[0].mxu0
        %3404 = vdwg.mxu0
        %3405 = vmatprep.subr.bf16.mxu0 %v3225
        %3406 = vmatpush1.bf16.msra.mxu0 %v3224
        %3407 = vmatprep.subr.bf16.mxu0 %v3227
        %3408 = vmatpush1.bf16.msra.mxu0 %v3226
        %3409 = vmatprep.subr.bf16.mxu0 %v3229
        %3410 = vmatpush1.bf16.msra.mxu0 %v3228
        %3411 = vmatprep.subr.bf16.mxu0 %v3231
        %3412 = vmatpush1.bf16.msra.mxu0 %v3230
        %3413 = vmatprep.subr.bf16.mxu0 %v3233
        %3414 = vmatpush1.bf16.msra.mxu0 %v3232
        %3415 = vmatprep.subr.bf16.mxu0 %v3235
        %3416 = vmatpush1.bf16.msra.mxu0 %v3234
        %3417 = vmatprep.subr.bf16.mxu0 %v3237
        %3418 = vmatpush1.bf16.msra.mxu0 %v3236
        %3419 = vmatprep.subr.bf16.mxu0 %v3239
        %3420 = vmatpush1.bf16.msra.mxu0 %v3238
        %3421 = vmatprep.subr.bf16.mxu0 %v3241
        %3422 = vmatpush1.bf16.msra.mxu0 %v3240
        %3423 = vmatprep.subr.bf16.mxu0 %v3243
        %3424 = vmatpush1.bf16.msra.mxu0 %v3242
        %3425 = vmatprep.subr.bf16.mxu0 %v3245
        %3426 = vmatpush1.bf16.msra.mxu0 %v3244
        %3427 = vmatprep.subr.bf16.mxu0 %v3247
        %3428 = vmatpush1.bf16.msra.mxu0 %v3246
        %3429 = vmatprep.subr.bf16.mxu0 %v3249
        %3430 = vmatpush1.bf16.msra.mxu0 %v3248
        %3431 = vmatprep.subr.bf16.mxu0 %v3251
        %3432 = vmatpush1.bf16.msra.mxu0 %v3250
        %3433 = vmatprep.subr.bf16.mxu0 %v3253
        %3434 = vmatpush1.bf16.msra.mxu0 %v3252
        %3435 = vmatprep.subr.bf16.mxu0 %v3255
        %3436 = vmatpush1.bf16.msra.mxu0 %v3254
        %3437 = vmatprep.mubr.bf16.mxu0 %v3338
        %3438 = vmatmul.mubr.bf16.gmra.mrb[0].mxu0 %v3336
        %v3439 = vpop.f32.mrb[0].mxu0
        %v3440 = vadd.f32 %v3399, %v3439
        %v3441 = vpop.f32.mrb[0].mxu0
        %v3442 = vadd.f32 %v3401, %v3441
        %v3443 = vpop.f32.mrb[0].mxu0
        %v3444 = vpop.f32.mrb[0].mxu0
        %3445 = vdwg.mxu0
        %3446 = vmatprep.subr.bf16.mxu0 %v3257
        %3447 = vmatpush1.bf16.msra.mxu0 %v3256
        %3448 = vmatprep.subr.bf16.mxu0 %v3259
        %3449 = vmatpush1.bf16.msra.mxu0 %v3258
        %3450 = vmatprep.subr.bf16.mxu0 %v3261
        %3451 = vmatpush1.bf16.msra.mxu0 %v3260
        %3452 = vmatprep.subr.bf16.mxu0 %v3263
        %3453 = vmatpush1.bf16.msra.mxu0 %v3262
        %3454 = vmatprep.subr.bf16.mxu0 %v3265
        %3455 = vmatpush1.bf16.msra.mxu0 %v3264
        %3456 = vmatprep.subr.bf16.mxu0 %v3267
        %3457 = vmatpush1.bf16.msra.mxu0 %v3266
        %3458 = vmatprep.subr.bf16.mxu0 %v3269
        %3459 = vmatpush1.bf16.msra.mxu0 %v3268
        %3460 = vmatprep.subr.bf16.mxu0 %v3271
        %3461 = vmatpush1.bf16.msra.mxu0 %v3270
        %3462 = vmatprep.subr.bf16.mxu0 %v3273
        %3463 = vmatpush1.bf16.msra.mxu0 %v3272
        %3464 = vmatprep.subr.bf16.mxu0 %v3275
        %3465 = vmatpush1.bf16.msra.mxu0 %v3274
        %3466 = vmatprep.subr.bf16.mxu0 %v3277
        %3467 = vmatpush1.bf16.msra.mxu0 %v3276
        %3468 = vmatprep.subr.bf16.mxu0 %v3279
        %3469 = vmatpush1.bf16.msra.mxu0 %v3278
        %3470 = vmatprep.subr.bf16.mxu0 %v3281
        %3471 = vmatpush1.bf16.msra.mxu0 %v3280
        %3472 = vmatprep.subr.bf16.mxu0 %v3283
        %3473 = vmatpush1.bf16.msra.mxu0 %v3282
        %3474 = vmatprep.subr.bf16.mxu0 %v3285
        %3475 = vmatpush1.bf16.msra.mxu0 %v3284
        %3476 = vmatprep.subr.bf16.mxu0 %v3287
        %3477 = vmatpush1.bf16.msra.mxu0 %v3286
        %3478 = vmatprep.mubr.bf16.mxu0 %v3354
        %3479 = vmatmul.mubr.bf16.gmra.mrb[0].mxu0 %v3346
        %v3480 = vpop.f32.mrb[0].mxu0
        %v3481 = vadd.f32 %v3440, %v3480
        %v3482 = vpop.f32.mrb[0].mxu0
        %v3483 = vadd.f32 %v3442, %v3482
        %v3484 = vpop.f32.mrb[0].mxu0
        %v3485 = vpop.f32.mrb[0].mxu0
        %3486 = vdwg.mxu0
        %3487 = vmatprep.subr.bf16.mxu0 %v3289
        %3488 = vmatpush1.bf16.msra.mxu0 %v3288
        %3489 = vmatprep.subr.bf16.mxu0 %v3291
        %3490 = vmatpush1.bf16.msra.mxu0 %v3290
        %3491 = vmatprep.subr.bf16.mxu0 %v3293
        %3492 = vmatpush1.bf16.msra.mxu0 %v3292
        %3493 = vmatprep.subr.bf16.mxu0 %v3295
        %3494 = vmatpush1.bf16.msra.mxu0 %v3294
        %3495 = vmatprep.subr.bf16.mxu0 %v3297
        %3496 = vmatpush1.bf16.msra.mxu0 %v3296
        %3497 = vmatprep.subr.bf16.mxu0 %v3299
        %3498 = vmatpush1.bf16.msra.mxu0 %v3298
        %3499 = vmatprep.subr.bf16.mxu0 %v3301
        %3500 = vmatpush1.bf16.msra.mxu0 %v3300
        %3501 = vmatprep.subr.bf16.mxu0 %v3303
        %3502 = vmatpush1.bf16.msra.mxu0 %v3302
        %3503 = vmatprep.subr.bf16.mxu0 %v3305
        %3504 = vmatpush1.bf16.msra.mxu0 %v3304
        %3505 = vmatprep.subr.bf16.mxu0 %v3307
        %3506 = vmatpush1.bf16.msra.mxu0 %v3306
        %3507 = vmatprep.subr.bf16.mxu0 %v3309
        %3508 = vmatpush1.bf16.msra.mxu0 %v3308
        %3509 = vmatprep.subr.bf16.mxu0 %v3311
        %3510 = vmatpush1.bf16.msra.mxu0 %v3310
        %3511 = vmatprep.subr.bf16.mxu0 %v3313
        %3512 = vmatpush1.bf16.msra.mxu0 %v3312
        %3513 = vmatprep.subr.bf16.mxu0 %v3315
        %3514 = vmatpush1.bf16.msra.mxu0 %v3314
        %3515 = vmatprep.subr.bf16.mxu0 %v3317
        %3516 = vmatpush1.bf16.msra.mxu0 %v3316
        %3517 = vmatprep.subr.bf16.mxu0 %v3319
        %3518 = vmatpush1.bf16.msra.mxu0 %v3318
        %3519 = vmatprep.mubr.bf16.mxu0 %v3355
        %3520 = vmatmul.mubr.bf16.gmra.mrb[0].mxu0 %v3353
        %v3521 = vpop.f32.mrb[0].mxu0
        %v3522 = vadd.f32 %v3481, %v3521
        %v3523 = vpop.f32.mrb[0].mxu0
        %v3524 = vadd.f32 %v3483, %v3523
        %v3525 = vpop.f32.mrb[0].mxu0
        %v3526 = vpop.f32.mrb[0].mxu0
        %3527 = vdwg.mxu0
        %v3528 = vadd.f32 %v3124, %v3522
        %v3529 = vadd.f32 %v3125, %v3524
        %v3530 = vld [vmem:[%s294 + $0x80] sm:$0xff]
        %v3531 = vld [vmem:[%s294 + $0x88] sm:$0xff]
        %v3532 = vld [vmem:[%s251 + $0x1000] sm:$0xff]
        %v3533 = vld [vmem:[%s251 + $0x1008] sm:$0xff]
        %v3534 = vld [vmem:[%s251 + $0x1010] sm:$0xff]
        %v3535 = vld [vmem:[%s251 + $0x1018] sm:$0xff]
        %v3536 = vld [vmem:[%s251 + $0x1020] sm:$0xff]
        %v3537 = vld [vmem:[%s251 + $0x1028] sm:$0xff]
        %v3538 = vld [vmem:[%s251 + $0x1030] sm:$0xff]
        %v3539 = vld [vmem:[%s251 + $0x1038] sm:$0xff]
        %v3540 = vld [vmem:[%s251 + $0x1040] sm:$0xff]
        %v3541 = vld [vmem:[%s251 + $0x1048] sm:$0xff]
        %v3542 = vld [vmem:[%s251 + $0x1050] sm:$0xff]
        %v3543 = vld [vmem:[%s251 + $0x1058] sm:$0xff]
        %v3544 = vld [vmem:[%s251 + $0x1060] sm:$0xff]
        %v3545 = vld [vmem:[%s251 + $0x1068] sm:$0xff]
        %v3546 = vld [vmem:[%s251 + $0x1070] sm:$0xff]
        %v3547 = vld [vmem:[%s251 + $0x1078] sm:$0xff]
        %v3548 = vld [vmem:[%s251 + $0x1080] sm:$0xff]
        %v3549 = vld [vmem:[%s251 + $0x1088] sm:$0xff]
        %v3550 = vld [vmem:[%s251 + $0x1090] sm:$0xff]
        %v3551 = vld [vmem:[%s251 + $0x1098] sm:$0xff]
        %v3552 = vld [vmem:[%s251 + $0x10a0] sm:$0xff]
        %v3553 = vld [vmem:[%s251 + $0x10a8] sm:$0xff]
        %v3554 = vld [vmem:[%s251 + $0x10b0] sm:$0xff]
        %v3555 = vld [vmem:[%s251 + $0x10b8] sm:$0xff]
        %v3556 = vld [vmem:[%s251 + $0x10c0] sm:$0xff]
        %v3557 = vld [vmem:[%s251 + $0x10c8] sm:$0xff]
        %v3558 = vld [vmem:[%s251 + $0x10d0] sm:$0xff]
        %v3559 = vld [vmem:[%s251 + $0x10d8] sm:$0xff]
        %v3560 = vld [vmem:[%s251 + $0x10e0] sm:$0xff]
        %v3561 = vld [vmem:[%s251 + $0x10e8] sm:$0xff]
        %v3562 = vld [vmem:[%s251 + $0x10f0] sm:$0xff]
        %v3563 = vld [vmem:[%s251 + $0x10f8] sm:$0xff]
        %v3564 = vld [vmem:[%s251 + $0x1100] sm:$0xff]
        %v3565 = vld [vmem:[%s251 + $0x1108] sm:$0xff]
        %v3566 = vld [vmem:[%s251 + $0x1110] sm:$0xff]
        %v3567 = vld [vmem:[%s251 + $0x1118] sm:$0xff]
        %v3568 = vld [vmem:[%s251 + $0x1120] sm:$0xff]
        %v3569 = vld [vmem:[%s251 + $0x1128] sm:$0xff]
        %v3570 = vld [vmem:[%s251 + $0x1130] sm:$0xff]
        %v3571 = vld [vmem:[%s251 + $0x1138] sm:$0xff]
        %v3572 = vld [vmem:[%s251 + $0x1140] sm:$0xff]
        %v3573 = vld [vmem:[%s251 + $0x1148] sm:$0xff]
        %v3574 = vld [vmem:[%s251 + $0x1150] sm:$0xff]
        %v3575 = vld [vmem:[%s251 + $0x1158] sm:$0xff]
        %v3576 = vld [vmem:[%s251 + $0x1160] sm:$0xff]
        %v3577 = vld [vmem:[%s251 + $0x1168] sm:$0xff]
        %v3578 = vld [vmem:[%s251 + $0x1170] sm:$0xff]
        %v3579 = vld [vmem:[%s251 + $0x1178] sm:$0xff]
        %v3580 = vld [vmem:[%s251 + $0x1180] sm:$0xff]
        %v3581 = vld [vmem:[%s251 + $0x1188] sm:$0xff]
        %v3582 = vld [vmem:[%s251 + $0x1190] sm:$0xff]
        %v3583 = vld [vmem:[%s251 + $0x1198] sm:$0xff]
        %v3584 = vld [vmem:[%s251 + $0x11a0] sm:$0xff]
        %v3585 = vld [vmem:[%s251 + $0x11a8] sm:$0xff]
        %v3586 = vld [vmem:[%s251 + $0x11b0] sm:$0xff]
        %v3587 = vld [vmem:[%s251 + $0x11b8] sm:$0xff]
        %v3588 = vld [vmem:[%s251 + $0x11c0] sm:$0xff]
        %v3589 = vld [vmem:[%s251 + $0x11c8] sm:$0xff]
        %v3590 = vld [vmem:[%s251 + $0x11d0] sm:$0xff]
        %v3591 = vld [vmem:[%s251 + $0x11d8] sm:$0xff]
        %v3592 = vld [vmem:[%s251 + $0x11e0] sm:$0xff]
        %v3593 = vld [vmem:[%s251 + $0x11e8] sm:$0xff]
        %v3594 = vld [vmem:[%s251 + $0x11f0] sm:$0xff]
        %v3595 = vld [vmem:[%s251 + $0x11f8] sm:$0xff]
        %v3596 = vunpack.c.l.s8.bf16 %v3532
        %v3597 = vunpack.c.l.s8.bf16 %v3533
        %v3598 = vunpack.c.h.s8.bf16 %v3532
        %v3599 = vunpack.c.h.s8.bf16 %v3533
        %v3600 = vunpack.c.l.s8.bf16 %v3534
        %v3601 = vunpack.c.l.s8.bf16 %v3535
        %v3602 = vunpack.c.h.s8.bf16 %v3534
        %v3603 = vunpack.c.h.s8.bf16 %v3535
        %v3604 = vunpack.c.l.s8.bf16 %v3536
        %v3605 = vunpack.c.l.s8.bf16 %v3537
        %v3606 = vunpack.c.h.s8.bf16 %v3536
        %v3607 = vunpack.c.h.s8.bf16 %v3537
        %v3608 = vunpack.c.l.s8.bf16 %v3538
        %v3609 = vunpack.c.l.s8.bf16 %v3539
        %v3610 = vunpack.c.h.s8.bf16 %v3538
        %v3611 = vunpack.c.h.s8.bf16 %v3539
        %v3612 = vunpack.c.l.s8.bf16 %v3540
        %v3613 = vunpack.c.l.s8.bf16 %v3541
        %v3614 = vunpack.c.h.s8.bf16 %v3540
        %v3615 = vunpack.c.h.s8.bf16 %v3541
        %v3616 = vunpack.c.l.s8.bf16 %v3542
        %v3617 = vunpack.c.l.s8.bf16 %v3543
        %v3618 = vunpack.c.h.s8.bf16 %v3542
        %v3619 = vunpack.c.h.s8.bf16 %v3543
        %v3620 = vunpack.c.l.s8.bf16 %v3544
        %v3621 = vunpack.c.l.s8.bf16 %v3545
        %v3622 = vunpack.c.h.s8.bf16 %v3544
        %v3623 = vunpack.c.h.s8.bf16 %v3545
        %v3624 = vunpack.c.l.s8.bf16 %v3546
        %v3625 = vunpack.c.l.s8.bf16 %v3547
        %v3626 = vunpack.c.h.s8.bf16 %v3546
        %v3627 = vunpack.c.h.s8.bf16 %v3547
        %v3628 = vunpack.c.l.s8.bf16 %v3548
        %v3629 = vunpack.c.l.s8.bf16 %v3549
        %v3630 = vunpack.c.h.s8.bf16 %v3548
        %v3631 = vunpack.c.h.s8.bf16 %v3549
        %v3632 = vunpack.c.l.s8.bf16 %v3550
        %v3633 = vunpack.c.l.s8.bf16 %v3551
        %v3634 = vunpack.c.h.s8.bf16 %v3550
        %v3635 = vunpack.c.h.s8.bf16 %v3551
        %v3636 = vunpack.c.l.s8.bf16 %v3552
        %v3637 = vunpack.c.l.s8.bf16 %v3553
        %v3638 = vunpack.c.h.s8.bf16 %v3552
        %v3639 = vunpack.c.h.s8.bf16 %v3553
        %v3640 = vunpack.c.l.s8.bf16 %v3554
        %v3641 = vunpack.c.l.s8.bf16 %v3555
        %v3642 = vunpack.c.h.s8.bf16 %v3554
        %v3643 = vunpack.c.h.s8.bf16 %v3555
        %v3644 = vunpack.c.l.s8.bf16 %v3556
        %v3645 = vunpack.c.l.s8.bf16 %v3557
        %v3646 = vunpack.c.h.s8.bf16 %v3556
        %v3647 = vunpack.c.h.s8.bf16 %v3557
        %v3648 = vunpack.c.l.s8.bf16 %v3558
        %v3649 = vunpack.c.l.s8.bf16 %v3559
        %v3650 = vunpack.c.h.s8.bf16 %v3558
        %v3651 = vunpack.c.h.s8.bf16 %v3559
        %v3652 = vunpack.c.l.s8.bf16 %v3560
        %v3653 = vunpack.c.l.s8.bf16 %v3561
        %v3654 = vunpack.c.h.s8.bf16 %v3560
        %v3655 = vunpack.c.h.s8.bf16 %v3561
        %v3656 = vunpack.c.l.s8.bf16 %v3562
        %v3657 = vunpack.c.l.s8.bf16 %v3563
        %v3658 = vunpack.c.h.s8.bf16 %v3562
        %v3659 = vunpack.c.h.s8.bf16 %v3563
        %v3660 = vunpack.c.l.s8.bf16 %v3564
        %v3661 = vunpack.c.l.s8.bf16 %v3565
        %v3662 = vunpack.c.h.s8.bf16 %v3564
        %v3663 = vunpack.c.h.s8.bf16 %v3565
        %v3664 = vunpack.c.l.s8.bf16 %v3566
        %v3665 = vunpack.c.l.s8.bf16 %v3567
        %v3666 = vunpack.c.h.s8.bf16 %v3566
        %v3667 = vunpack.c.h.s8.bf16 %v3567
        %v3668 = vunpack.c.l.s8.bf16 %v3568
        %v3669 = vunpack.c.l.s8.bf16 %v3569
        %v3670 = vunpack.c.h.s8.bf16 %v3568
        %v3671 = vunpack.c.h.s8.bf16 %v3569
        %v3672 = vunpack.c.l.s8.bf16 %v3570
        %v3673 = vunpack.c.l.s8.bf16 %v3571
        %v3674 = vunpack.c.h.s8.bf16 %v3570
        %v3675 = vunpack.c.h.s8.bf16 %v3571
        %v3676 = vunpack.c.l.s8.bf16 %v3572
        %v3677 = vunpack.c.l.s8.bf16 %v3573
        %v3678 = vunpack.c.h.s8.bf16 %v3572
        %v3679 = vunpack.c.h.s8.bf16 %v3573
        %v3680 = vunpack.c.l.s8.bf16 %v3574
        %v3681 = vunpack.c.l.s8.bf16 %v3575
        %v3682 = vunpack.c.h.s8.bf16 %v3574
        %v3683 = vunpack.c.h.s8.bf16 %v3575
        %v3684 = vunpack.c.l.s8.bf16 %v3576
        %v3685 = vunpack.c.l.s8.bf16 %v3577
        %v3686 = vunpack.c.h.s8.bf16 %v3576
        %v3687 = vunpack.c.h.s8.bf16 %v3577
        %v3688 = vunpack.c.l.s8.bf16 %v3578
        %v3689 = vunpack.c.l.s8.bf16 %v3579
        %v3690 = vunpack.c.h.s8.bf16 %v3578
        %v3691 = vunpack.c.h.s8.bf16 %v3579
        %v3692 = vunpack.c.l.s8.bf16 %v3580
        %v3693 = vunpack.c.l.s8.bf16 %v3581
        %v3694 = vunpack.c.h.s8.bf16 %v3580
        %v3695 = vunpack.c.h.s8.bf16 %v3581
        %v3696 = vunpack.c.l.s8.bf16 %v3582
        %v3697 = vunpack.c.l.s8.bf16 %v3583
        %v3698 = vunpack.c.h.s8.bf16 %v3582
        %v3699 = vunpack.c.h.s8.bf16 %v3583
        %v3700 = vunpack.c.l.s8.bf16 %v3584
        %v3701 = vunpack.c.l.s8.bf16 %v3585
        %v3702 = vunpack.c.h.s8.bf16 %v3584
        %v3703 = vunpack.c.h.s8.bf16 %v3585
        %v3704 = vunpack.c.l.s8.bf16 %v3586
        %v3705 = vunpack.c.l.s8.bf16 %v3587
        %v3706 = vunpack.c.h.s8.bf16 %v3586
        %v3707 = vunpack.c.h.s8.bf16 %v3587
        %v3708 = vunpack.c.l.s8.bf16 %v3588
        %v3709 = vunpack.c.l.s8.bf16 %v3589
        %v3710 = vunpack.c.h.s8.bf16 %v3588
        %v3711 = vunpack.c.h.s8.bf16 %v3589
        %v3712 = vunpack.c.l.s8.bf16 %v3590
        %v3713 = vunpack.c.l.s8.bf16 %v3591
        %v3714 = vunpack.c.h.s8.bf16 %v3590
        %v3715 = vunpack.c.h.s8.bf16 %v3591
        %v3716 = vunpack.c.l.s8.bf16 %v3592
        %v3717 = vunpack.c.l.s8.bf16 %v3593
        %v3718 = vunpack.c.h.s8.bf16 %v3592
        %v3719 = vunpack.c.h.s8.bf16 %v3593
        %v3720 = vunpack.c.l.s8.bf16 %v3594
        %v3721 = vunpack.c.l.s8.bf16 %v3595
        %v3722 = vunpack.c.h.s8.bf16 %v3594
        %v3723 = vunpack.c.h.s8.bf16 %v3595
        %v3726 = vcombine.high %v3530, %v3530
        %v3728 = vunpack.c.l.s4 1983009808
        %v3729 = vunpack.c.0.s8 %v3728
        %v3730 = vlaneseq
        %v3731 = vshrl.u32 %v3730, 7
        %v3732 = vsub.s32 %v3729, %v3731
        %v3733 = vrot.slane %v3530, %v3732
        %v3735 = vunpack.c.l.s4 1983009808
        %v3736 = vunpack.c.0.s8 %v3735
        %v3737 = vlaneseq
        %v3738 = vshrl.u32 %v3737, 7
        %v3739 = vsub.s32 %v3736, %v3738
        %v3740 = vrot.slane %v3726, %v3739
        %v3741 = vcombine.high %v3733, %v3733
        %v3742 = vcombine.high %v3740, %v3740
        %v3743 = vcombine.high %v3531, %v3531
        %v3745 = vunpack.c.l.s4 1983009808
        %v3746 = vunpack.c.0.s8 %v3745
        %v3747 = vlaneseq
        %v3748 = vshrl.u32 %v3747, 7
        %v3749 = vsub.s32 %v3746, %v3748
        %v3750 = vrot.slane %v3531, %v3749
        %v3752 = vunpack.c.l.s4 1983009808
        %v3753 = vunpack.c.0.s8 %v3752
        %v3754 = vlaneseq
        %v3755 = vshrl.u32 %v3754, 7
        %v3756 = vsub.s32 %v3753, %v3755
        %v3757 = vrot.slane %v3743, %v3756
        %v3758 = vcombine.high %v3750, %v3750
        %v3759 = vcombine.high %v3757, %v3757
        %3768 = vmatprep.subr.bf16.mxu0 %v3597
        %3769 = vmatpush1.bf16.msra.mxu0 %v3596
        %3770 = vmatprep.subr.bf16.mxu0 %v3599
        %3771 = vmatpush1.bf16.msra.mxu0 %v3598
        %3772 = vmatprep.subr.bf16.mxu0 %v3601
        %3773 = vmatpush1.bf16.msra.mxu0 %v3600
        %3774 = vmatprep.subr.bf16.mxu0 %v3603
        %3775 = vmatpush1.bf16.msra.mxu0 %v3602
        %3776 = vmatprep.subr.bf16.mxu0 %v3605
        %3777 = vmatpush1.bf16.msra.mxu0 %v3604
        %3778 = vmatprep.subr.bf16.mxu0 %v3607
        %3779 = vmatpush1.bf16.msra.mxu0 %v3606
        %3780 = vmatprep.subr.bf16.mxu0 %v3609
        %3781 = vmatpush1.bf16.msra.mxu0 %v3608
        %3782 = vmatprep.subr.bf16.mxu0 %v3611
        %3783 = vmatpush1.bf16.msra.mxu0 %v3610
        %3784 = vmatprep.subr.bf16.mxu0 %v3613
        %3785 = vmatpush1.bf16.msra.mxu0 %v3612
        %3786 = vmatprep.subr.bf16.mxu0 %v3615
        %3787 = vmatpush1.bf16.msra.mxu0 %v3614
        %3788 = vmatprep.subr.bf16.mxu0 %v3617
        %3789 = vmatpush1.bf16.msra.mxu0 %v3616
        %3790 = vmatprep.subr.bf16.mxu0 %v3619
        %3791 = vmatpush1.bf16.msra.mxu0 %v3618
        %3792 = vmatprep.subr.bf16.mxu0 %v3621
        %3793 = vmatpush1.bf16.msra.mxu0 %v3620
        %3794 = vmatprep.subr.bf16.mxu0 %v3623
        %3795 = vmatpush1.bf16.msra.mxu0 %v3622
        %3796 = vmatprep.subr.bf16.mxu0 %v3625
        %3797 = vmatpush1.bf16.msra.mxu0 %v3624
        %3798 = vmatprep.subr.bf16.mxu0 %v3627
        %3799 = vmatpush1.bf16.msra.mxu0 %v3626
        %3800 = vmatprep.mubr.bf16.mxu0 %v3741
        %3801 = vmatmul.mubr.bf16.gmra.mrb[0].mxu0 %v3733
        %v3802 = vpop.f32.mrb[0].mxu0
        %v3803 = vadd.f32 0.0, %v3802
        %v3804 = vpop.f32.mrb[0].mxu0
        %v3805 = vadd.f32 0.0, %v3804
        %v3806 = vpop.f32.mrb[0].mxu0
        %v3807 = vpop.f32.mrb[0].mxu0
        %3808 = vdwg.mxu0
        %3809 = vmatprep.subr.bf16.mxu0 %v3629
        %3810 = vmatpush1.bf16.msra.mxu0 %v3628
        %3811 = vmatprep.subr.bf16.mxu0 %v3631
        %3812 = vmatpush1.bf16.msra.mxu0 %v3630
        %3813 = vmatprep.subr.bf16.mxu0 %v3633
        %3814 = vmatpush1.bf16.msra.mxu0 %v3632
        %3815 = vmatprep.subr.bf16.mxu0 %v3635
        %3816 = vmatpush1.bf16.msra.mxu0 %v3634
        %3817 = vmatprep.subr.bf16.mxu0 %v3637
        %3818 = vmatpush1.bf16.msra.mxu0 %v3636
        %3819 = vmatprep.subr.bf16.mxu0 %v3639
        %3820 = vmatpush1.bf16.msra.mxu0 %v3638
        %3821 = vmatprep.subr.bf16.mxu0 %v3641
        %3822 = vmatpush1.bf16.msra.mxu0 %v3640
        %3823 = vmatprep.subr.bf16.mxu0 %v3643
        %3824 = vmatpush1.bf16.msra.mxu0 %v3642
        %3825 = vmatprep.subr.bf16.mxu0 %v3645
        %3826 = vmatpush1.bf16.msra.mxu0 %v3644
        %3827 = vmatprep.subr.bf16.mxu0 %v3647
        %3828 = vmatpush1.bf16.msra.mxu0 %v3646
        %3829 = vmatprep.subr.bf16.mxu0 %v3649
        %3830 = vmatpush1.bf16.msra.mxu0 %v3648
        %3831 = vmatprep.subr.bf16.mxu0 %v3651
        %3832 = vmatpush1.bf16.msra.mxu0 %v3650
        %3833 = vmatprep.subr.bf16.mxu0 %v3653
        %3834 = vmatpush1.bf16.msra.mxu0 %v3652
        %3835 = vmatprep.subr.bf16.mxu0 %v3655
        %3836 = vmatpush1.bf16.msra.mxu0 %v3654
        %3837 = vmatprep.subr.bf16.mxu0 %v3657
        %3838 = vmatpush1.bf16.msra.mxu0 %v3656
        %3839 = vmatprep.subr.bf16.mxu0 %v3659
        %3840 = vmatpush1.bf16.msra.mxu0 %v3658
        %3841 = vmatprep.mubr.bf16.mxu0 %v3742
        %3842 = vmatmul.mubr.bf16.gmra.mrb[0].mxu0 %v3740
        %v3843 = vpop.f32.mrb[0].mxu0
        %v3844 = vadd.f32 %v3803, %v3843
        %v3845 = vpop.f32.mrb[0].mxu0
        %v3846 = vadd.f32 %v3805, %v3845
        %v3847 = vpop.f32.mrb[0].mxu0
        %v3848 = vpop.f32.mrb[0].mxu0
        %3849 = vdwg.mxu0
        %3850 = vmatprep.subr.bf16.mxu0 %v3661
        %3851 = vmatpush1.bf16.msra.mxu0 %v3660
        %3852 = vmatprep.subr.bf16.mxu0 %v3663
        %3853 = vmatpush1.bf16.msra.mxu0 %v3662
        %3854 = vmatprep.subr.bf16.mxu0 %v3665
        %3855 = vmatpush1.bf16.msra.mxu0 %v3664
        %3856 = vmatprep.subr.bf16.mxu0 %v3667
        %3857 = vmatpush1.bf16.msra.mxu0 %v3666
        %3858 = vmatprep.subr.bf16.mxu0 %v3669
        %3859 = vmatpush1.bf16.msra.mxu0 %v3668
        %3860 = vmatprep.subr.bf16.mxu0 %v3671
        %3861 = vmatpush1.bf16.msra.mxu0 %v3670
        %3862 = vmatprep.subr.bf16.mxu0 %v3673
        %3863 = vmatpush1.bf16.msra.mxu0 %v3672
        %3864 = vmatprep.subr.bf16.mxu0 %v3675
        %3865 = vmatpush1.bf16.msra.mxu0 %v3674
        %3866 = vmatprep.subr.bf16.mxu0 %v3677
        %3867 = vmatpush1.bf16.msra.mxu0 %v3676
        %3868 = vmatprep.subr.bf16.mxu0 %v3679
        %3869 = vmatpush1.bf16.msra.mxu0 %v3678
        %3870 = vmatprep.subr.bf16.mxu0 %v3681
        %3871 = vmatpush1.bf16.msra.mxu0 %v3680
        %3872 = vmatprep.subr.bf16.mxu0 %v3683
        %3873 = vmatpush1.bf16.msra.mxu0 %v3682
        %3874 = vmatprep.subr.bf16.mxu0 %v3685
        %3875 = vmatpush1.bf16.msra.mxu0 %v3684
        %3876 = vmatprep.subr.bf16.mxu0 %v3687
        %3877 = vmatpush1.bf16.msra.mxu0 %v3686
        %3878 = vmatprep.subr.bf16.mxu0 %v3689
        %3879 = vmatpush1.bf16.msra.mxu0 %v3688
        %3880 = vmatprep.subr.bf16.mxu0 %v3691
        %3881 = vmatpush1.bf16.msra.mxu0 %v3690
        %3882 = vmatprep.mubr.bf16.mxu0 %v3758
        %3883 = vmatmul.mubr.bf16.gmra.mrb[0].mxu0 %v3750
        %v3884 = vpop.f32.mrb[0].mxu0
        %v3885 = vadd.f32 %v3844, %v3884
        %v3886 = vpop.f32.mrb[0].mxu0
        %v3887 = vadd.f32 %v3846, %v3886
        %v3888 = vpop.f32.mrb[0].mxu0
        %v3889 = vpop.f32.mrb[0].mxu0
        %3890 = vdwg.mxu0
        %3891 = vmatprep.subr.bf16.mxu0 %v3693
        %3892 = vmatpush1.bf16.msra.mxu0 %v3692
        %3893 = vmatprep.subr.bf16.mxu0 %v3695
        %3894 = vmatpush1.bf16.msra.mxu0 %v3694
        %3895 = vmatprep.subr.bf16.mxu0 %v3697
        %3896 = vmatpush1.bf16.msra.mxu0 %v3696
        %3897 = vmatprep.subr.bf16.mxu0 %v3699
        %3898 = vmatpush1.bf16.msra.mxu0 %v3698
        %3899 = vmatprep.subr.bf16.mxu0 %v3701
        %3900 = vmatpush1.bf16.msra.mxu0 %v3700
        %3901 = vmatprep.subr.bf16.mxu0 %v3703
        %3902 = vmatpush1.bf16.msra.mxu0 %v3702
        %3903 = vmatprep.subr.bf16.mxu0 %v3705
        %3904 = vmatpush1.bf16.msra.mxu0 %v3704
        %3905 = vmatprep.subr.bf16.mxu0 %v3707
        %3906 = vmatpush1.bf16.msra.mxu0 %v3706
        %3907 = vmatprep.subr.bf16.mxu0 %v3709
        %3908 = vmatpush1.bf16.msra.mxu0 %v3708
        %3909 = vmatprep.subr.bf16.mxu0 %v3711
        %3910 = vmatpush1.bf16.msra.mxu0 %v3710
        %3911 = vmatprep.subr.bf16.mxu0 %v3713
        %3912 = vmatpush1.bf16.msra.mxu0 %v3712
        %3913 = vmatprep.subr.bf16.mxu0 %v3715
        %3914 = vmatpush1.bf16.msra.mxu0 %v3714
        %3915 = vmatprep.subr.bf16.mxu0 %v3717
        %3916 = vmatpush1.bf16.msra.mxu0 %v3716
        %3917 = vmatprep.subr.bf16.mxu0 %v3719
        %3918 = vmatpush1.bf16.msra.mxu0 %v3718
        %3919 = vmatprep.subr.bf16.mxu0 %v3721
        %3920 = vmatpush1.bf16.msra.mxu0 %v3720
        %3921 = vmatprep.subr.bf16.mxu0 %v3723
        %3922 = vmatpush1.bf16.msra.mxu0 %v3722
        %3923 = vmatprep.mubr.bf16.mxu0 %v3759
        %3924 = vmatmul.mubr.bf16.gmra.mrb[0].mxu0 %v3757
        %v3925 = vpop.f32.mrb[0].mxu0
        %v3926 = vadd.f32 %v3885, %v3925
        %v3927 = vpop.f32.mrb[0].mxu0
        %v3928 = vadd.f32 %v3887, %v3927
        %v3929 = vpop.f32.mrb[0].mxu0
        %v3930 = vpop.f32.mrb[0].mxu0
        %3931 = vdwg.mxu0
        %v3932 = vadd.f32 %v3528, %v3926
        %v3933 = vadd.f32 %v3529, %v3928
        %v3934 = vld [vmem:[%s294 + $0x90] sm:$0xff]
        %v3935 = vld [vmem:[%s294 + $0x98] sm:$0xff]
        %v3936 = vld [vmem:[%s251 + $0x1200] sm:$0xff]
        %v3937 = vld [vmem:[%s251 + $0x1208] sm:$0xff]
        %v3938 = vld [vmem:[%s251 + $0x1210] sm:$0xff]
        %v3939 = vld [vmem:[%s251 + $0x1218] sm:$0xff]
        %v3940 = vld [vmem:[%s251 + $0x1220] sm:$0xff]
        %v3941 = vld [vmem:[%s251 + $0x1228] sm:$0xff]
        %v3942 = vld [vmem:[%s251 + $0x1230] sm:$0xff]
        %v3943 = vld [vmem:[%s251 + $0x1238] sm:$0xff]
        %v3944 = vld [vmem:[%s251 + $0x1240] sm:$0xff]
        %v3945 = vld [vmem:[%s251 + $0x1248] sm:$0xff]
        %v3946 = vld [vmem:[%s251 + $0x1250] sm:$0xff]
        %v3947 = vld [vmem:[%s251 + $0x1258] sm:$0xff]
        %v3948 = vld [vmem:[%s251 + $0x1260] sm:$0xff]
        %v3949 = vld [vmem:[%s251 + $0x1268] sm:$0xff]
        %v3950 = vld [vmem:[%s251 + $0x1270] sm:$0xff]
        %v3951 = vld [vmem:[%s251 + $0x1278] sm:$0xff]
        %v3952 = vld [vmem:[%s251 + $0x1280] sm:$0xff]
        %v3953 = vld [vmem:[%s251 + $0x1288] sm:$0xff]
        %v3954 = vld [vmem:[%s251 + $0x1290] sm:$0xff]
        %v3955 = vld [vmem:[%s251 + $0x1298] sm:$0xff]
        %v3956 = vld [vmem:[%s251 + $0x12a0] sm:$0xff]
        %v3957 = vld [vmem:[%s251 + $0x12a8] sm:$0xff]
        %v3958 = vld [vmem:[%s251 + $0x12b0] sm:$0xff]
        %v3959 = vld [vmem:[%s251 + $0x12b8] sm:$0xff]
        %v3960 = vld [vmem:[%s251 + $0x12c0] sm:$0xff]
        %v3961 = vld [vmem:[%s251 + $0x12c8] sm:$0xff]
        %v3962 = vld [vmem:[%s251 + $0x12d0] sm:$0xff]
        %v3963 = vld [vmem:[%s251 + $0x12d8] sm:$0xff]
        %v3964 = vld [vmem:[%s251 + $0x12e0] sm:$0xff]
        %v3965 = vld [vmem:[%s251 + $0x12e8] sm:$0xff]
        %v3966 = vld [vmem:[%s251 + $0x12f0] sm:$0xff]
        %v3967 = vld [vmem:[%s251 + $0x12f8] sm:$0xff]
        %v3968 = vld [vmem:[%s251 + $0x1300] sm:$0xff]
        %v3969 = vld [vmem:[%s251 + $0x1308] sm:$0xff]
        %v3970 = vld [vmem:[%s251 + $0x1310] sm:$0xff]
        %v3971 = vld [vmem:[%s251 + $0x1318] sm:$0xff]
        %v3972 = vld [vmem:[%s251 + $0x1320] sm:$0xff]
        %v3973 = vld [vmem:[%s251 + $0x1328] sm:$0xff]
        %v3974 = vld [vmem:[%s251 + $0x1330] sm:$0xff]
        %v3975 = vld [vmem:[%s251 + $0x1338] sm:$0xff]
        %v3976 = vld [vmem:[%s251 + $0x1340] sm:$0xff]
        %v3977 = vld [vmem:[%s251 + $0x1348] sm:$0xff]
        %v3978 = vld [vmem:[%s251 + $0x1350] sm:$0xff]
        %v3979 = vld [vmem:[%s251 + $0x1358] sm:$0xff]
        %v3980 = vld [vmem:[%s251 + $0x1360] sm:$0xff]
        %v3981 = vld [vmem:[%s251 + $0x1368] sm:$0xff]
        %v3982 = vld [vmem:[%s251 + $0x1370] sm:$0xff]
        %v3983 = vld [vmem:[%s251 + $0x1378] sm:$0xff]
        %v3984 = vld [vmem:[%s251 + $0x1380] sm:$0xff]
        %v3985 = vld [vmem:[%s251 + $0x1388] sm:$0xff]
        %v3986 = vld [vmem:[%s251 + $0x1390] sm:$0xff]
        %v3987 = vld [vmem:[%s251 + $0x1398] sm:$0xff]
        %v3988 = vld [vmem:[%s251 + $0x13a0] sm:$0xff]
        %v3989 = vld [vmem:[%s251 + $0x13a8] sm:$0xff]
        %v3990 = vld [vmem:[%s251 + $0x13b0] sm:$0xff]
        %v3991 = vld [vmem:[%s251 + $0x13b8] sm:$0xff]
        %v3992 = vld [vmem:[%s251 + $0x13c0] sm:$0xff]
        %v3993 = vld [vmem:[%s251 + $0x13c8] sm:$0xff]
        %v3994 = vld [vmem:[%s251 + $0x13d0] sm:$0xff]
        %v3995 = vld [vmem:[%s251 + $0x13d8] sm:$0xff]
        %v3996 = vld [vmem:[%s251 + $0x13e0] sm:$0xff]
        %v3997 = vld [vmem:[%s251 + $0x13e8] sm:$0xff]
        %v3998 = vld [vmem:[%s251 + $0x13f0] sm:$0xff]
        %v3999 = vld [vmem:[%s251 + $0x13f8] sm:$0xff]
        %v4000 = vunpack.c.l.s8.bf16 %v3936
        %v4001 = vunpack.c.l.s8.bf16 %v3937
        %v4002 = vunpack.c.h.s8.bf16 %v3936
        %v4003 = vunpack.c.h.s8.bf16 %v3937
        %v4004 = vunpack.c.l.s8.bf16 %v3938
        %v4005 = vunpack.c.l.s8.bf16 %v3939
        %v4006 = vunpack.c.h.s8.bf16 %v3938
        %v4007 = vunpack.c.h.s8.bf16 %v3939
        %v4008 = vunpack.c.l.s8.bf16 %v3940
        %v4009 = vunpack.c.l.s8.bf16 %v3941
        %v4010 = vunpack.c.h.s8.bf16 %v3940
        %v4011 = vunpack.c.h.s8.bf16 %v3941
        %v4012 = vunpack.c.l.s8.bf16 %v3942
        %v4013 = vunpack.c.l.s8.bf16 %v3943
        %v4014 = vunpack.c.h.s8.bf16 %v3942
        %v4015 = vunpack.c.h.s8.bf16 %v3943
        %v4016 = vunpack.c.l.s8.bf16 %v3944
        %v4017 = vunpack.c.l.s8.bf16 %v3945
        %v4018 = vunpack.c.h.s8.bf16 %v3944
        %v4019 = vunpack.c.h.s8.bf16 %v3945
        %v4020 = vunpack.c.l.s8.bf16 %v3946
        %v4021 = vunpack.c.l.s8.bf16 %v3947
        %v4022 = vunpack.c.h.s8.bf16 %v3946
        %v4023 = vunpack.c.h.s8.bf16 %v3947
        %v4024 = vunpack.c.l.s8.bf16 %v3948
        %v4025 = vunpack.c.l.s8.bf16 %v3949
        %v4026 = vunpack.c.h.s8.bf16 %v3948
        %v4027 = vunpack.c.h.s8.bf16 %v3949
        %v4028 = vunpack.c.l.s8.bf16 %v3950
        %v4029 = vunpack.c.l.s8.bf16 %v3951
        %v4030 = vunpack.c.h.s8.bf16 %v3950
        %v4031 = vunpack.c.h.s8.bf16 %v3951
        %v4032 = vunpack.c.l.s8.bf16 %v3952
        %v4033 = vunpack.c.l.s8.bf16 %v3953
        %v4034 = vunpack.c.h.s8.bf16 %v3952
        %v4035 = vunpack.c.h.s8.bf16 %v3953
        %v4036 = vunpack.c.l.s8.bf16 %v3954
        %v4037 = vunpack.c.l.s8.bf16 %v3955
        %v4038 = vunpack.c.h.s8.bf16 %v3954
        %v4039 = vunpack.c.h.s8.bf16 %v3955
        %v4040 = vunpack.c.l.s8.bf16 %v3956
        %v4041 = vunpack.c.l.s8.bf16 %v3957
        %v4042 = vunpack.c.h.s8.bf16 %v3956
        %v4043 = vunpack.c.h.s8.bf16 %v3957
        %v4044 = vunpack.c.l.s8.bf16 %v3958
        %v4045 = vunpack.c.l.s8.bf16 %v3959
        %v4046 = vunpack.c.h.s8.bf16 %v3958
        %v4047 = vunpack.c.h.s8.bf16 %v3959
        %v4048 = vunpack.c.l.s8.bf16 %v3960
        %v4049 = vunpack.c.l.s8.bf16 %v3961
        %v4050 = vunpack.c.h.s8.bf16 %v3960
        %v4051 = vunpack.c.h.s8.bf16 %v3961
        %v4052 = vunpack.c.l.s8.bf16 %v3962
        %v4053 = vunpack.c.l.s8.bf16 %v3963
        %v4054 = vunpack.c.h.s8.bf16 %v3962
        %v4055 = vunpack.c.h.s8.bf16 %v3963
        %v4056 = vunpack.c.l.s8.bf16 %v3964
        %v4057 = vunpack.c.l.s8.bf16 %v3965
        %v4058 = vunpack.c.h.s8.bf16 %v3964
        %v4059 = vunpack.c.h.s8.bf16 %v3965
        %v4060 = vunpack.c.l.s8.bf16 %v3966
        %v4061 = vunpack.c.l.s8.bf16 %v3967
        %v4062 = vunpack.c.h.s8.bf16 %v3966
        %v4063 = vunpack.c.h.s8.bf16 %v3967
        %v4064 = vunpack.c.l.s8.bf16 %v3968
        %v4065 = vunpack.c.l.s8.bf16 %v3969
        %v4066 = vunpack.c.h.s8.bf16 %v3968
        %v4067 = vunpack.c.h.s8.bf16 %v3969
        %v4068 = vunpack.c.l.s8.bf16 %v3970
        %v4069 = vunpack.c.l.s8.bf16 %v3971
        %v4070 = vunpack.c.h.s8.bf16 %v3970
        %v4071 = vunpack.c.h.s8.bf16 %v3971
        %v4072 = vunpack.c.l.s8.bf16 %v3972
        %v4073 = vunpack.c.l.s8.bf16 %v3973
        %v4074 = vunpack.c.h.s8.bf16 %v3972
        %v4075 = vunpack.c.h.s8.bf16 %v3973
        %v4076 = vunpack.c.l.s8.bf16 %v3974
        %v4077 = vunpack.c.l.s8.bf16 %v3975
        %v4078 = vunpack.c.h.s8.bf16 %v3974
        %v4079 = vunpack.c.h.s8.bf16 %v3975
        %v4080 = vunpack.c.l.s8.bf16 %v3976
        %v4081 = vunpack.c.l.s8.bf16 %v3977
        %v4082 = vunpack.c.h.s8.bf16 %v3976
        %v4083 = vunpack.c.h.s8.bf16 %v3977
        %v4084 = vunpack.c.l.s8.bf16 %v3978
        %v4085 = vunpack.c.l.s8.bf16 %v3979
        %v4086 = vunpack.c.h.s8.bf16 %v3978
        %v4087 = vunpack.c.h.s8.bf16 %v3979
        %v4088 = vunpack.c.l.s8.bf16 %v3980
        %v4089 = vunpack.c.l.s8.bf16 %v3981
        %v4090 = vunpack.c.h.s8.bf16 %v3980
        %v4091 = vunpack.c.h.s8.bf16 %v3981
        %v4092 = vunpack.c.l.s8.bf16 %v3982
        %v4093 = vunpack.c.l.s8.bf16 %v3983
        %v4094 = vunpack.c.h.s8.bf16 %v3982
        %v4095 = vunpack.c.h.s8.bf16 %v3983
        %v4096 = vunpack.c.l.s8.bf16 %v3984
        %v4097 = vunpack.c.l.s8.bf16 %v3985
        %v4098 = vunpack.c.h.s8.bf16 %v3984
        %v4099 = vunpack.c.h.s8.bf16 %v3985
        %v4100 = vunpack.c.l.s8.bf16 %v3986
        %v4101 = vunpack.c.l.s8.bf16 %v3987
        %v4102 = vunpack.c.h.s8.bf16 %v3986
        %v4103 = vunpack.c.h.s8.bf16 %v3987
        %v4104 = vunpack.c.l.s8.bf16 %v3988
        %v4105 = vunpack.c.l.s8.bf16 %v3989
        %v4106 = vunpack.c.h.s8.bf16 %v3988
        %v4107 = vunpack.c.h.s8.bf16 %v3989
        %v4108 = vunpack.c.l.s8.bf16 %v3990
        %v4109 = vunpack.c.l.s8.bf16 %v3991
        %v4110 = vunpack.c.h.s8.bf16 %v3990
        %v4111 = vunpack.c.h.s8.bf16 %v3991
        %v4112 = vunpack.c.l.s8.bf16 %v3992
        %v4113 = vunpack.c.l.s8.bf16 %v3993
        %v4114 = vunpack.c.h.s8.bf16 %v3992
        %v4115 = vunpack.c.h.s8.bf16 %v3993
        %v4116 = vunpack.c.l.s8.bf16 %v3994
        %v4117 = vunpack.c.l.s8.bf16 %v3995
        %v4118 = vunpack.c.h.s8.bf16 %v3994
        %v4119 = vunpack.c.h.s8.bf16 %v3995
        %v4120 = vunpack.c.l.s8.bf16 %v3996
        %v4121 = vunpack.c.l.s8.bf16 %v3997
        %v4122 = vunpack.c.h.s8.bf16 %v3996
        %v4123 = vunpack.c.h.s8.bf16 %v3997
        %v4124 = vunpack.c.l.s8.bf16 %v3998
        %v4125 = vunpack.c.l.s8.bf16 %v3999
        %v4126 = vunpack.c.h.s8.bf16 %v3998
        %v4127 = vunpack.c.h.s8.bf16 %v3999
        %v4130 = vcombine.high %v3934, %v3934
        %v4132 = vunpack.c.l.s4 1983009808
        %v4133 = vunpack.c.0.s8 %v4132
        %v4134 = vlaneseq
        %v4135 = vshrl.u32 %v4134, 7
        %v4136 = vsub.s32 %v4133, %v4135
        %v4137 = vrot.slane %v3934, %v4136
        %v4139 = vunpack.c.l.s4 1983009808
        %v4140 = vunpack.c.0.s8 %v4139
        %v4141 = vlaneseq
        %v4142 = vshrl.u32 %v4141, 7
        %v4143 = vsub.s32 %v4140, %v4142
        %v4144 = vrot.slane %v4130, %v4143
        %v4145 = vcombine.high %v4137, %v4137
        %v4146 = vcombine.high %v4144, %v4144
        %v4147 = vcombine.high %v3935, %v3935
        %v4149 = vunpack.c.l.s4 1983009808
        %v4150 = vunpack.c.0.s8 %v4149
        %v4151 = vlaneseq
        %v4152 = vshrl.u32 %v4151, 7
        %v4153 = vsub.s32 %v4150, %v4152
        %v4154 = vrot.slane %v3935, %v4153
        %v4156 = vunpack.c.l.s4 1983009808
        %v4157 = vunpack.c.0.s8 %v4156
        %v4158 = vlaneseq
        %v4159 = vshrl.u32 %v4158, 7
        %v4160 = vsub.s32 %v4157, %v4159
        %v4161 = vrot.slane %v4147, %v4160
        %v4162 = vcombine.high %v4154, %v4154
        %v4163 = vcombine.high %v4161, %v4161
        %4172 = vmatprep.subr.bf16.mxu0 %v4001
        %4173 = vmatpush1.bf16.msra.mxu0 %v4000
        %4174 = vmatprep.subr.bf16.mxu0 %v4003
        %4175 = vmatpush1.bf16.msra.mxu0 %v4002
        %4176 = vmatprep.subr.bf16.mxu0 %v4005
        %4177 = vmatpush1.bf16.msra.mxu0 %v4004
        %4178 = vmatprep.subr.bf16.mxu0 %v4007
        %4179 = vmatpush1.bf16.msra.mxu0 %v4006
        %4180 = vmatprep.subr.bf16.mxu0 %v4009
        %4181 = vmatpush1.bf16.msra.mxu0 %v4008
        %4182 = vmatprep.subr.bf16.mxu0 %v4011
        %4183 = vmatpush1.bf16.msra.mxu0 %v4010
        %4184 = vmatprep.subr.bf16.mxu0 %v4013
        %4185 = vmatpush1.bf16.msra.mxu0 %v4012
        %4186 = vmatprep.subr.bf16.mxu0 %v4015
        %4187 = vmatpush1.bf16.msra.mxu0 %v4014
        %4188 = vmatprep.subr.bf16.mxu0 %v4017
        %4189 = vmatpush1.bf16.msra.mxu0 %v4016
        %4190 = vmatprep.subr.bf16.mxu0 %v4019
        %4191 = vmatpush1.bf16.msra.mxu0 %v4018
        %4192 = vmatprep.subr.bf16.mxu0 %v4021
        %4193 = vmatpush1.bf16.msra.mxu0 %v4020
        %4194 = vmatprep.subr.bf16.mxu0 %v4023
        %4195 = vmatpush1.bf16.msra.mxu0 %v4022
        %4196 = vmatprep.subr.bf16.mxu0 %v4025
        %4197 = vmatpush1.bf16.msra.mxu0 %v4024
        %4198 = vmatprep.subr.bf16.mxu0 %v4027
        %4199 = vmatpush1.bf16.msra.mxu0 %v4026
        %4200 = vmatprep.subr.bf16.mxu0 %v4029
        %4201 = vmatpush1.bf16.msra.mxu0 %v4028
        %4202 = vmatprep.subr.bf16.mxu0 %v4031
        %4203 = vmatpush1.bf16.msra.mxu0 %v4030
        %4204 = vmatprep.mubr.bf16.mxu0 %v4145
        %4205 = vmatmul.mubr.bf16.gmra.mrb[0].mxu0 %v4137
        %v4206 = vpop.f32.mrb[0].mxu0
        %v4207 = vadd.f32 0.0, %v4206
        %v4208 = vpop.f32.mrb[0].mxu0
        %v4209 = vadd.f32 0.0, %v4208
        %v4210 = vpop.f32.mrb[0].mxu0
        %v4211 = vpop.f32.mrb[0].mxu0
        %4212 = vdwg.mxu0
        %4213 = vmatprep.subr.bf16.mxu0 %v4033
        %4214 = vmatpush1.bf16.msra.mxu0 %v4032
        %4215 = vmatprep.subr.bf16.mxu0 %v4035
        %4216 = vmatpush1.bf16.msra.mxu0 %v4034
        %4217 = vmatprep.subr.bf16.mxu0 %v4037
        %4218 = vmatpush1.bf16.msra.mxu0 %v4036
        %4219 = vmatprep.subr.bf16.mxu0 %v4039
        %4220 = vmatpush1.bf16.msra.mxu0 %v4038
        %4221 = vmatprep.subr.bf16.mxu0 %v4041
        %4222 = vmatpush1.bf16.msra.mxu0 %v4040
        %4223 = vmatprep.subr.bf16.mxu0 %v4043
        %4224 = vmatpush1.bf16.msra.mxu0 %v4042
        %4225 = vmatprep.subr.bf16.mxu0 %v4045
        %4226 = vmatpush1.bf16.msra.mxu0 %v4044
        %4227 = vmatprep.subr.bf16.mxu0 %v4047
        %4228 = vmatpush1.bf16.msra.mxu0 %v4046
        %4229 = vmatprep.subr.bf16.mxu0 %v4049
        %4230 = vmatpush1.bf16.msra.mxu0 %v4048
        %4231 = vmatprep.subr.bf16.mxu0 %v4051
        %4232 = vmatpush1.bf16.msra.mxu0 %v4050
        %4233 = vmatprep.subr.bf16.mxu0 %v4053
        %4234 = vmatpush1.bf16.msra.mxu0 %v4052
        %4235 = vmatprep.subr.bf16.mxu0 %v4055
        %4236 = vmatpush1.bf16.msra.mxu0 %v4054
        %4237 = vmatprep.subr.bf16.mxu0 %v4057
        %4238 = vmatpush1.bf16.msra.mxu0 %v4056
        %4239 = vmatprep.subr.bf16.mxu0 %v4059
        %4240 = vmatpush1.bf16.msra.mxu0 %v4058
        %4241 = vmatprep.subr.bf16.mxu0 %v4061
        %4242 = vmatpush1.bf16.msra.mxu0 %v4060
        %4243 = vmatprep.subr.bf16.mxu0 %v4063
        %4244 = vmatpush1.bf16.msra.mxu0 %v4062
        %4245 = vmatprep.mubr.bf16.mxu0 %v4146
        %4246 = vmatmul.mubr.bf16.gmra.mrb[0].mxu0 %v4144
        %v4247 = vpop.f32.mrb[0].mxu0
        %v4248 = vadd.f32 %v4207, %v4247
        %v4249 = vpop.f32.mrb[0].mxu0
        %v4250 = vadd.f32 %v4209, %v4249
        %v4251 = vpop.f32.mrb[0].mxu0
        %v4252 = vpop.f32.mrb[0].mxu0
        %4253 = vdwg.mxu0
        %4254 = vmatprep.subr.bf16.mxu0 %v4065
        %4255 = vmatpush1.bf16.msra.mxu0 %v4064
        %4256 = vmatprep.subr.bf16.mxu0 %v4067
        %4257 = vmatpush1.bf16.msra.mxu0 %v4066
        %4258 = vmatprep.subr.bf16.mxu0 %v4069
        %4259 = vmatpush1.bf16.msra.mxu0 %v4068
        %4260 = vmatprep.subr.bf16.mxu0 %v4071
        %4261 = vmatpush1.bf16.msra.mxu0 %v4070
        %4262 = vmatprep.subr.bf16.mxu0 %v4073
        %4263 = vmatpush1.bf16.msra.mxu0 %v4072
        %4264 = vmatprep.subr.bf16.mxu0 %v4075
        %4265 = vmatpush1.bf16.msra.mxu0 %v4074
        %4266 = vmatprep.subr.bf16.mxu0 %v4077
        %4267 = vmatpush1.bf16.msra.mxu0 %v4076
        %4268 = vmatprep.subr.bf16.mxu0 %v4079
        %4269 = vmatpush1.bf16.msra.mxu0 %v4078
        %4270 = vmatprep.subr.bf16.mxu0 %v4081
        %4271 = vmatpush1.bf16.msra.mxu0 %v4080
        %4272 = vmatprep.subr.bf16.mxu0 %v4083
        %4273 = vmatpush1.bf16.msra.mxu0 %v4082
        %4274 = vmatprep.subr.bf16.mxu0 %v4085
        %4275 = vmatpush1.bf16.msra.mxu0 %v4084
        %4276 = vmatprep.subr.bf16.mxu0 %v4087
        %4277 = vmatpush1.bf16.msra.mxu0 %v4086
        %4278 = vmatprep.subr.bf16.mxu0 %v4089
        %4279 = vmatpush1.bf16.msra.mxu0 %v4088
        %4280 = vmatprep.subr.bf16.mxu0 %v4091
        %4281 = vmatpush1.bf16.msra.mxu0 %v4090
        %4282 = vmatprep.subr.bf16.mxu0 %v4093
        %4283 = vmatpush1.bf16.msra.mxu0 %v4092
        %4284 = vmatprep.subr.bf16.mxu0 %v4095
        %4285 = vmatpush1.bf16.msra.mxu0 %v4094
        %4286 = vmatprep.mubr.bf16.mxu0 %v4162
        %4287 = vmatmul.mubr.bf16.gmra.mrb[0].mxu0 %v4154
        %v4288 = vpop.f32.mrb[0].mxu0
        %v4289 = vadd.f32 %v4248, %v4288
        %v4290 = vpop.f32.mrb[0].mxu0
        %v4291 = vadd.f32 %v4250, %v4290
        %v4292 = vpop.f32.mrb[0].mxu0
        %v4293 = vpop.f32.mrb[0].mxu0
        %4294 = vdwg.mxu0
        %4295 = vmatprep.subr.bf16.mxu0 %v4097
        %4296 = vmatpush1.bf16.msra.mxu0 %v4096
        %4297 = vmatprep.subr.bf16.mxu0 %v4099
        %4298 = vmatpush1.bf16.msra.mxu0 %v4098
        %4299 = vmatprep.subr.bf16.mxu0 %v4101
        %4300 = vmatpush1.bf16.msra.mxu0 %v4100
        %4301 = vmatprep.subr.bf16.mxu0 %v4103
        %4302 = vmatpush1.bf16.msra.mxu0 %v4102
        %4303 = vmatprep.subr.bf16.mxu0 %v4105
        %4304 = vmatpush1.bf16.msra.mxu0 %v4104
        %4305 = vmatprep.subr.bf16.mxu0 %v4107
        %4306 = vmatpush1.bf16.msra.mxu0 %v4106
        %4307 = vmatprep.subr.bf16.mxu0 %v4109
        %4308 = vmatpush1.bf16.msra.mxu0 %v4108
        %4309 = vmatprep.subr.bf16.mxu0 %v4111
        %4310 = vmatpush1.bf16.msra.mxu0 %v4110
        %4311 = vmatprep.subr.bf16.mxu0 %v4113
        %4312 = vmatpush1.bf16.msra.mxu0 %v4112
        %4313 = vmatprep.subr.bf16.mxu0 %v4115
        %4314 = vmatpush1.bf16.msra.mxu0 %v4114
        %4315 = vmatprep.subr.bf16.mxu0 %v4117
        %4316 = vmatpush1.bf16.msra.mxu0 %v4116
        %4317 = vmatprep.subr.bf16.mxu0 %v4119
        %4318 = vmatpush1.bf16.msra.mxu0 %v4118
        %4319 = vmatprep.subr.bf16.mxu0 %v4121
        %4320 = vmatpush1.bf16.msra.mxu0 %v4120
        %4321 = vmatprep.subr.bf16.mxu0 %v4123
        %4322 = vmatpush1.bf16.msra.mxu0 %v4122
        %4323 = vmatprep.subr.bf16.mxu0 %v4125
        %4324 = vmatpush1.bf16.msra.mxu0 %v4124
        %4325 = vmatprep.subr.bf16.mxu0 %v4127
        %4326 = vmatpush1.bf16.msra.mxu0 %v4126
        %4327 = vmatprep.mubr.bf16.mxu0 %v4163
        %4328 = vmatmul.mubr.bf16.gmra.mrb[0].mxu0 %v4161
        %v4329 = vpop.f32.mrb[0].mxu0
        %v4330 = vadd.f32 %v4289, %v4329
        %v4331 = vpop.f32.mrb[0].mxu0
        %v4332 = vadd.f32 %v4291, %v4331
        %v4333 = vpop.f32.mrb[0].mxu0
        %v4334 = vpop.f32.mrb[0].mxu0
        %4335 = vdwg.mxu0
        %v4336 = vadd.f32 %v3932, %v4330
        %v4337 = vadd.f32 %v3933, %v4332
        %v4338 = vld [vmem:[%s294 + $0xa0] sm:$0xff]
        %v4339 = vld [vmem:[%s294 + $0xa8] sm:$0xff]
        %v4340 = vld [vmem:[%s251 + $0x1400] sm:$0xff]
        %v4341 = vld [vmem:[%s251 + $0x1408] sm:$0xff]
        %v4342 = vld [vmem:[%s251 + $0x1410] sm:$0xff]
        %v4343 = vld [vmem:[%s251 + $0x1418] sm:$0xff]
        %v4344 = vld [vmem:[%s251 + $0x1420] sm:$0xff]
        %v4345 = vld [vmem:[%s251 + $0x1428] sm:$0xff]
        %v4346 = vld [vmem:[%s251 + $0x1430] sm:$0xff]
        %v4347 = vld [vmem:[%s251 + $0x1438] sm:$0xff]
        %v4348 = vld [vmem:[%s251 + $0x1440] sm:$0xff]
        %v4349 = vld [vmem:[%s251 + $0x1448] sm:$0xff]
        %v4350 = vld [vmem:[%s251 + $0x1450] sm:$0xff]
        %v4351 = vld [vmem:[%s251 + $0x1458] sm:$0xff]
        %v4352 = vld [vmem:[%s251 + $0x1460] sm:$0xff]
        %v4353 = vld [vmem:[%s251 + $0x1468] sm:$0xff]
        %v4354 = vld [vmem:[%s251 + $0x1470] sm:$0xff]
        %v4355 = vld [vmem:[%s251 + $0x1478] sm:$0xff]
        %v4356 = vld [vmem:[%s251 + $0x1480] sm:$0xff]
        %v4357 = vld [vmem:[%s251 + $0x1488] sm:$0xff]
        %v4358 = vld [vmem:[%s251 + $0x1490] sm:$0xff]
        %v4359 = vld [vmem:[%s251 + $0x1498] sm:$0xff]
        %v4360 = vld [vmem:[%s251 + $0x14a0] sm:$0xff]
        %v4361 = vld [vmem:[%s251 + $0x14a8] sm:$0xff]
        %v4362 = vld [vmem:[%s251 + $0x14b0] sm:$0xff]
        %v4363 = vld [vmem:[%s251 + $0x14b8] sm:$0xff]
        %v4364 = vld [vmem:[%s251 + $0x14c0] sm:$0xff]
        %v4365 = vld [vmem:[%s251 + $0x14c8] sm:$0xff]
        %v4366 = vld [vmem:[%s251 + $0x14d0] sm:$0xff]
        %v4367 = vld [vmem:[%s251 + $0x14d8] sm:$0xff]
        %v4368 = vld [vmem:[%s251 + $0x14e0] sm:$0xff]
        %v4369 = vld [vmem:[%s251 + $0x14e8] sm:$0xff]
        %v4370 = vld [vmem:[%s251 + $0x14f0] sm:$0xff]
        %v4371 = vld [vmem:[%s251 + $0x14f8] sm:$0xff]
        %v4372 = vld [vmem:[%s251 + $0x1500] sm:$0xff]
        %v4373 = vld [vmem:[%s251 + $0x1508] sm:$0xff]
        %v4374 = vld [vmem:[%s251 + $0x1510] sm:$0xff]
        %v4375 = vld [vmem:[%s251 + $0x1518] sm:$0xff]
        %v4376 = vld [vmem:[%s251 + $0x1520] sm:$0xff]
        %v4377 = vld [vmem:[%s251 + $0x1528] sm:$0xff]
        %v4378 = vld [vmem:[%s251 + $0x1530] sm:$0xff]
        %v4379 = vld [vmem:[%s251 + $0x1538] sm:$0xff]
        %v4380 = vld [vmem:[%s251 + $0x1540] sm:$0xff]
        %v4381 = vld [vmem:[%s251 + $0x1548] sm:$0xff]
        %v4382 = vld [vmem:[%s251 + $0x1550] sm:$0xff]
        %v4383 = vld [vmem:[%s251 + $0x1558] sm:$0xff]
        %v4384 = vld [vmem:[%s251 + $0x1560] sm:$0xff]
        %v4385 = vld [vmem:[%s251 + $0x1568] sm:$0xff]
        %v4386 = vld [vmem:[%s251 + $0x1570] sm:$0xff]
        %v4387 = vld [vmem:[%s251 + $0x1578] sm:$0xff]
        %v4388 = vld [vmem:[%s251 + $0x1580] sm:$0xff]
        %v4389 = vld [vmem:[%s251 + $0x1588] sm:$0xff]
        %v4390 = vld [vmem:[%s251 + $0x1590] sm:$0xff]
        %v4391 = vld [vmem:[%s251 + $0x1598] sm:$0xff]
        %v4392 = vld [vmem:[%s251 + $0x15a0] sm:$0xff]
        %v4393 = vld [vmem:[%s251 + $0x15a8] sm:$0xff]
        %v4394 = vld [vmem:[%s251 + $0x15b0] sm:$0xff]
        %v4395 = vld [vmem:[%s251 + $0x15b8] sm:$0xff]
        %v4396 = vld [vmem:[%s251 + $0x15c0] sm:$0xff]
        %v4397 = vld [vmem:[%s251 + $0x15c8] sm:$0xff]
        %v4398 = vld [vmem:[%s251 + $0x15d0] sm:$0xff]
        %v4399 = vld [vmem:[%s251 + $0x15d8] sm:$0xff]
        %v4400 = vld [vmem:[%s251 + $0x15e0] sm:$0xff]
        %v4401 = vld [vmem:[%s251 + $0x15e8] sm:$0xff]
        %v4402 = vld [vmem:[%s251 + $0x15f0] sm:$0xff]
        %v4403 = vld [vmem:[%s251 + $0x15f8] sm:$0xff]
        %v4404 = vunpack.c.l.s8.bf16 %v4340
        %v4405 = vunpack.c.l.s8.bf16 %v4341
        %v4406 = vunpack.c.h.s8.bf16 %v4340
        %v4407 = vunpack.c.h.s8.bf16 %v4341
        %v4408 = vunpack.c.l.s8.bf16 %v4342
        %v4409 = vunpack.c.l.s8.bf16 %v4343
        %v4410 = vunpack.c.h.s8.bf16 %v4342
        %v4411 = vunpack.c.h.s8.bf16 %v4343
        %v4412 = vunpack.c.l.s8.bf16 %v4344
        %v4413 = vunpack.c.l.s8.bf16 %v4345
        %v4414 = vunpack.c.h.s8.bf16 %v4344
        %v4415 = vunpack.c.h.s8.bf16 %v4345
        %v4416 = vunpack.c.l.s8.bf16 %v4346
        %v4417 = vunpack.c.l.s8.bf16 %v4347
        %v4418 = vunpack.c.h.s8.bf16 %v4346
        %v4419 = vunpack.c.h.s8.bf16 %v4347
        %v4420 = vunpack.c.l.s8.bf16 %v4348
        %v4421 = vunpack.c.l.s8.bf16 %v4349
        %v4422 = vunpack.c.h.s8.bf16 %v4348
        %v4423 = vunpack.c.h.s8.bf16 %v4349
        %v4424 = vunpack.c.l.s8.bf16 %v4350
        %v4425 = vunpack.c.l.s8.bf16 %v4351
        %v4426 = vunpack.c.h.s8.bf16 %v4350
        %v4427 = vunpack.c.h.s8.bf16 %v4351
        %v4428 = vunpack.c.l.s8.bf16 %v4352
        %v4429 = vunpack.c.l.s8.bf16 %v4353
        %v4430 = vunpack.c.h.s8.bf16 %v4352
        %v4431 = vunpack.c.h.s8.bf16 %v4353
        %v4432 = vunpack.c.l.s8.bf16 %v4354
        %v4433 = vunpack.c.l.s8.bf16 %v4355
        %v4434 = vunpack.c.h.s8.bf16 %v4354
        %v4435 = vunpack.c.h.s8.bf16 %v4355
        %v4436 = vunpack.c.l.s8.bf16 %v4356
        %v4437 = vunpack.c.l.s8.bf16 %v4357
        %v4438 = vunpack.c.h.s8.bf16 %v4356
        %v4439 = vunpack.c.h.s8.bf16 %v4357
        %v4440 = vunpack.c.l.s8.bf16 %v4358
        %v4441 = vunpack.c.l.s8.bf16 %v4359
        %v4442 = vunpack.c.h.s8.bf16 %v4358
        %v4443 = vunpack.c.h.s8.bf16 %v4359
        %v4444 = vunpack.c.l.s8.bf16 %v4360
        %v4445 = vunpack.c.l.s8.bf16 %v4361
        %v4446 = vunpack.c.h.s8.bf16 %v4360
        %v4447 = vunpack.c.h.s8.bf16 %v4361
        %v4448 = vunpack.c.l.s8.bf16 %v4362
        %v4449 = vunpack.c.l.s8.bf16 %v4363
        %v4450 = vunpack.c.h.s8.bf16 %v4362
        %v4451 = vunpack.c.h.s8.bf16 %v4363
        %v4452 = vunpack.c.l.s8.bf16 %v4364
        %v4453 = vunpack.c.l.s8.bf16 %v4365
        %v4454 = vunpack.c.h.s8.bf16 %v4364
        %v4455 = vunpack.c.h.s8.bf16 %v4365
        %v4456 = vunpack.c.l.s8.bf16 %v4366
        %v4457 = vunpack.c.l.s8.bf16 %v4367
        %v4458 = vunpack.c.h.s8.bf16 %v4366
        %v4459 = vunpack.c.h.s8.bf16 %v4367
        %v4460 = vunpack.c.l.s8.bf16 %v4368
        %v4461 = vunpack.c.l.s8.bf16 %v4369
        %v4462 = vunpack.c.h.s8.bf16 %v4368
        %v4463 = vunpack.c.h.s8.bf16 %v4369
        %v4464 = vunpack.c.l.s8.bf16 %v4370
        %v4465 = vunpack.c.l.s8.bf16 %v4371
        %v4466 = vunpack.c.h.s8.bf16 %v4370
        %v4467 = vunpack.c.h.s8.bf16 %v4371
        %v4468 = vunpack.c.l.s8.bf16 %v4372
        %v4469 = vunpack.c.l.s8.bf16 %v4373
        %v4470 = vunpack.c.h.s8.bf16 %v4372
        %v4471 = vunpack.c.h.s8.bf16 %v4373
        %v4472 = vunpack.c.l.s8.bf16 %v4374
        %v4473 = vunpack.c.l.s8.bf16 %v4375
        %v4474 = vunpack.c.h.s8.bf16 %v4374
        %v4475 = vunpack.c.h.s8.bf16 %v4375
        %v4476 = vunpack.c.l.s8.bf16 %v4376
        %v4477 = vunpack.c.l.s8.bf16 %v4377
        %v4478 = vunpack.c.h.s8.bf16 %v4376
        %v4479 = vunpack.c.h.s8.bf16 %v4377
        %v4480 = vunpack.c.l.s8.bf16 %v4378
        %v4481 = vunpack.c.l.s8.bf16 %v4379
        %v4482 = vunpack.c.h.s8.bf16 %v4378
        %v4483 = vunpack.c.h.s8.bf16 %v4379
        %v4484 = vunpack.c.l.s8.bf16 %v4380
        %v4485 = vunpack.c.l.s8.bf16 %v4381
        %v4486 = vunpack.c.h.s8.bf16 %v4380
        %v4487 = vunpack.c.h.s8.bf16 %v4381
        %v4488 = vunpack.c.l.s8.bf16 %v4382
        %v4489 = vunpack.c.l.s8.bf16 %v4383
        %v4490 = vunpack.c.h.s8.bf16 %v4382
        %v4491 = vunpack.c.h.s8.bf16 %v4383
        %v4492 = vunpack.c.l.s8.bf16 %v4384
        %v4493 = vunpack.c.l.s8.bf16 %v4385
        %v4494 = vunpack.c.h.s8.bf16 %v4384
        %v4495 = vunpack.c.h.s8.bf16 %v4385
        %v4496 = vunpack.c.l.s8.bf16 %v4386
        %v4497 = vunpack.c.l.s8.bf16 %v4387
        %v4498 = vunpack.c.h.s8.bf16 %v4386
        %v4499 = vunpack.c.h.s8.bf16 %v4387
        %v4500 = vunpack.c.l.s8.bf16 %v4388
        %v4501 = vunpack.c.l.s8.bf16 %v4389
        %v4502 = vunpack.c.h.s8.bf16 %v4388
        %v4503 = vunpack.c.h.s8.bf16 %v4389
        %v4504 = vunpack.c.l.s8.bf16 %v4390
        %v4505 = vunpack.c.l.s8.bf16 %v4391
        %v4506 = vunpack.c.h.s8.bf16 %v4390
        %v4507 = vunpack.c.h.s8.bf16 %v4391
        %v4508 = vunpack.c.l.s8.bf16 %v4392
        %v4509 = vunpack.c.l.s8.bf16 %v4393
        %v4510 = vunpack.c.h.s8.bf16 %v4392
        %v4511 = vunpack.c.h.s8.bf16 %v4393
        %v4512 = vunpack.c.l.s8.bf16 %v4394
        %v4513 = vunpack.c.l.s8.bf16 %v4395
        %v4514 = vunpack.c.h.s8.bf16 %v4394
        %v4515 = vunpack.c.h.s8.bf16 %v4395
        %v4516 = vunpack.c.l.s8.bf16 %v4396
        %v4517 = vunpack.c.l.s8.bf16 %v4397
        %v4518 = vunpack.c.h.s8.bf16 %v4396
        %v4519 = vunpack.c.h.s8.bf16 %v4397
        %v4520 = vunpack.c.l.s8.bf16 %v4398
        %v4521 = vunpack.c.l.s8.bf16 %v4399
        %v4522 = vunpack.c.h.s8.bf16 %v4398
        %v4523 = vunpack.c.h.s8.bf16 %v4399
        %v4524 = vunpack.c.l.s8.bf16 %v4400
        %v4525 = vunpack.c.l.s8.bf16 %v4401
        %v4526 = vunpack.c.h.s8.bf16 %v4400
        %v4527 = vunpack.c.h.s8.bf16 %v4401
        %v4528 = vunpack.c.l.s8.bf16 %v4402
        %v4529 = vunpack.c.l.s8.bf16 %v4403
        %v4530 = vunpack.c.h.s8.bf16 %v4402
        %v4531 = vunpack.c.h.s8.bf16 %v4403
        %v4534 = vcombine.high %v4338, %v4338
        %v4536 = vunpack.c.l.s4 1983009808
        %v4537 = vunpack.c.0.s8 %v4536
        %v4538 = vlaneseq
        %v4539 = vshrl.u32 %v4538, 7
        %v4540 = vsub.s32 %v4537, %v4539
        %v4541 = vrot.slane %v4338, %v4540
        %v4543 = vunpack.c.l.s4 1983009808
        %v4544 = vunpack.c.0.s8 %v4543
        %v4545 = vlaneseq
        %v4546 = vshrl.u32 %v4545, 7
        %v4547 = vsub.s32 %v4544, %v4546
        %v4548 = vrot.slane %v4534, %v4547
        %v4549 = vcombine.high %v4541, %v4541
        %v4550 = vcombine.high %v4548, %v4548
        %v4551 = vcombine.high %v4339, %v4339
        %v4553 = vunpack.c.l.s4 1983009808
        %v4554 = vunpack.c.0.s8 %v4553
        %v4555 = vlaneseq
        %v4556 = vshrl.u32 %v4555, 7
        %v4557 = vsub.s32 %v4554, %v4556
        %v4558 = vrot.slane %v4339, %v4557
        %v4560 = vunpack.c.l.s4 1983009808
        %v4561 = vunpack.c.0.s8 %v4560
        %v4562 = vlaneseq
        %v4563 = vshrl.u32 %v4562, 7
        %v4564 = vsub.s32 %v4561, %v4563
        %v4565 = vrot.slane %v4551, %v4564
        %v4566 = vcombine.high %v4558, %v4558
        %v4567 = vcombine.high %v4565, %v4565
        %4576 = vmatprep.subr.bf16.mxu0 %v4405
        %4577 = vmatpush1.bf16.msra.mxu0 %v4404
        %4578 = vmatprep.subr.bf16.mxu0 %v4407
        %4579 = vmatpush1.bf16.msra.mxu0 %v4406
        %4580 = vmatprep.subr.bf16.mxu0 %v4409
        %4581 = vmatpush1.bf16.msra.mxu0 %v4408
        %4582 = vmatprep.subr.bf16.mxu0 %v4411
        %4583 = vmatpush1.bf16.msra.mxu0 %v4410
        %4584 = vmatprep.subr.bf16.mxu0 %v4413
        %4585 = vmatpush1.bf16.msra.mxu0 %v4412
        %4586 = vmatprep.subr.bf16.mxu0 %v4415
        %4587 = vmatpush1.bf16.msra.mxu0 %v4414
        %4588 = vmatprep.subr.bf16.mxu0 %v4417
        %4589 = vmatpush1.bf16.msra.mxu0 %v4416
        %4590 = vmatprep.subr.bf16.mxu0 %v4419
        %4591 = vmatpush1.bf16.msra.mxu0 %v4418
        %4592 = vmatprep.subr.bf16.mxu0 %v4421
        %4593 = vmatpush1.bf16.msra.mxu0 %v4420
        %4594 = vmatprep.subr.bf16.mxu0 %v4423
        %4595 = vmatpush1.bf16.msra.mxu0 %v4422
        %4596 = vmatprep.subr.bf16.mxu0 %v4425
        %4597 = vmatpush1.bf16.msra.mxu0 %v4424
        %4598 = vmatprep.subr.bf16.mxu0 %v4427
        %4599 = vmatpush1.bf16.msra.mxu0 %v4426
        %4600 = vmatprep.subr.bf16.mxu0 %v4429
        %4601 = vmatpush1.bf16.msra.mxu0 %v4428
        %4602 = vmatprep.subr.bf16.mxu0 %v4431
        %4603 = vmatpush1.bf16.msra.mxu0 %v4430
        %4604 = vmatprep.subr.bf16.mxu0 %v4433
        %4605 = vmatpush1.bf16.msra.mxu0 %v4432
        %4606 = vmatprep.subr.bf16.mxu0 %v4435
        %4607 = vmatpush1.bf16.msra.mxu0 %v4434
        %4608 = vmatprep.mubr.bf16.mxu0 %v4549
        %4609 = vmatmul.mubr.bf16.gmra.mrb[0].mxu0 %v4541
        %v4610 = vpop.f32.mrb[0].mxu0
        %v4611 = vadd.f32 0.0, %v4610
        %v4612 = vpop.f32.mrb[0].mxu0
        %v4613 = vadd.f32 0.0, %v4612
        %v4614 = vpop.f32.mrb[0].mxu0
        %v4615 = vpop.f32.mrb[0].mxu0
        %4616 = vdwg.mxu0
        %4617 = vmatprep.subr.bf16.mxu0 %v4437
        %4618 = vmatpush1.bf16.msra.mxu0 %v4436
        %4619 = vmatprep.subr.bf16.mxu0 %v4439
        %4620 = vmatpush1.bf16.msra.mxu0 %v4438
        %4621 = vmatprep.subr.bf16.mxu0 %v4441
        %4622 = vmatpush1.bf16.msra.mxu0 %v4440
        %4623 = vmatprep.subr.bf16.mxu0 %v4443
        %4624 = vmatpush1.bf16.msra.mxu0 %v4442
        %4625 = vmatprep.subr.bf16.mxu0 %v4445
        %4626 = vmatpush1.bf16.msra.mxu0 %v4444
        %4627 = vmatprep.subr.bf16.mxu0 %v4447
        %4628 = vmatpush1.bf16.msra.mxu0 %v4446
        %4629 = vmatprep.subr.bf16.mxu0 %v4449
        %4630 = vmatpush1.bf16.msra.mxu0 %v4448
        %4631 = vmatprep.subr.bf16.mxu0 %v4451
        %4632 = vmatpush1.bf16.msra.mxu0 %v4450
        %4633 = vmatprep.subr.bf16.mxu0 %v4453
        %4634 = vmatpush1.bf16.msra.mxu0 %v4452
        %4635 = vmatprep.subr.bf16.mxu0 %v4455
        %4636 = vmatpush1.bf16.msra.mxu0 %v4454
        %4637 = vmatprep.subr.bf16.mxu0 %v4457
        %4638 = vmatpush1.bf16.msra.mxu0 %v4456
        %4639 = vmatprep.subr.bf16.mxu0 %v4459
        %4640 = vmatpush1.bf16.msra.mxu0 %v4458
        %4641 = vmatprep.subr.bf16.mxu0 %v4461
        %4642 = vmatpush1.bf16.msra.mxu0 %v4460
        %4643 = vmatprep.subr.bf16.mxu0 %v4463
        %4644 = vmatpush1.bf16.msra.mxu0 %v4462
        %4645 = vmatprep.subr.bf16.mxu0 %v4465
        %4646 = vmatpush1.bf16.msra.mxu0 %v4464
        %4647 = vmatprep.subr.bf16.mxu0 %v4467
        %4648 = vmatpush1.bf16.msra.mxu0 %v4466
        %4649 = vmatprep.mubr.bf16.mxu0 %v4550
        %4650 = vmatmul.mubr.bf16.gmra.mrb[0].mxu0 %v4548
        %v4651 = vpop.f32.mrb[0].mxu0
        %v4652 = vadd.f32 %v4611, %v4651
        %v4653 = vpop.f32.mrb[0].mxu0
        %v4654 = vadd.f32 %v4613, %v4653
        %v4655 = vpop.f32.mrb[0].mxu0
        %v4656 = vpop.f32.mrb[0].mxu0
        %4657 = vdwg.mxu0
        %4658 = vmatprep.subr.bf16.mxu0 %v4469
        %4659 = vmatpush1.bf16.msra.mxu0 %v4468
        %4660 = vmatprep.subr.bf16.mxu0 %v4471
        %4661 = vmatpush1.bf16.msra.mxu0 %v4470
        %4662 = vmatprep.subr.bf16.mxu0 %v4473
        %4663 = vmatpush1.bf16.msra.mxu0 %v4472
        %4664 = vmatprep.subr.bf16.mxu0 %v4475
        %4665 = vmatpush1.bf16.msra.mxu0 %v4474
        %4666 = vmatprep.subr.bf16.mxu0 %v4477
        %4667 = vmatpush1.bf16.msra.mxu0 %v4476
        %4668 = vmatprep.subr.bf16.mxu0 %v4479
        %4669 = vmatpush1.bf16.msra.mxu0 %v4478
        %4670 = vmatprep.subr.bf16.mxu0 %v4481
        %4671 = vmatpush1.bf16.msra.mxu0 %v4480
        %4672 = vmatprep.subr.bf16.mxu0 %v4483
        %4673 = vmatpush1.bf16.msra.mxu0 %v4482
        %4674 = vmatprep.subr.bf16.mxu0 %v4485
        %4675 = vmatpush1.bf16.msra.mxu0 %v4484
        %4676 = vmatprep.subr.bf16.mxu0 %v4487
        %4677 = vmatpush1.bf16.msra.mxu0 %v4486
        %4678 = vmatprep.subr.bf16.mxu0 %v4489
        %4679 = vmatpush1.bf16.msra.mxu0 %v4488
        %4680 = vmatprep.subr.bf16.mxu0 %v4491
        %4681 = vmatpush1.bf16.msra.mxu0 %v4490
        %4682 = vmatprep.subr.bf16.mxu0 %v4493
        %4683 = vmatpush1.bf16.msra.mxu0 %v4492
        %4684 = vmatprep.subr.bf16.mxu0 %v4495
        %4685 = vmatpush1.bf16.msra.mxu0 %v4494
        %4686 = vmatprep.subr.bf16.mxu0 %v4497
        %4687 = vmatpush1.bf16.msra.mxu0 %v4496
        %4688 = vmatprep.subr.bf16.mxu0 %v4499
        %4689 = vmatpush1.bf16.msra.mxu0 %v4498
        %4690 = vmatprep.mubr.bf16.mxu0 %v4566
        %4691 = vmatmul.mubr.bf16.gmra.mrb[0].mxu0 %v4558
        %v4692 = vpop.f32.mrb[0].mxu0
        %v4693 = vadd.f32 %v4652, %v4692
        %v4694 = vpop.f32.mrb[0].mxu0
        %v4695 = vadd.f32 %v4654, %v4694
        %v4696 = vpop.f32.mrb[0].mxu0
        %v4697 = vpop.f32.mrb[0].mxu0
        %4698 = vdwg.mxu0
        %4699 = vmatprep.subr.bf16.mxu0 %v4501
        %4700 = vmatpush1.bf16.msra.mxu0 %v4500
        %4701 = vmatprep.subr.bf16.mxu0 %v4503
        %4702 = vmatpush1.bf16.msra.mxu0 %v4502
        %4703 = vmatprep.subr.bf16.mxu0 %v4505
        %4704 = vmatpush1.bf16.msra.mxu0 %v4504
        %4705 = vmatprep.subr.bf16.mxu0 %v4507
        %4706 = vmatpush1.bf16.msra.mxu0 %v4506
        %4707 = vmatprep.subr.bf16.mxu0 %v4509
        %4708 = vmatpush1.bf16.msra.mxu0 %v4508
        %4709 = vmatprep.subr.bf16.mxu0 %v4511
        %4710 = vmatpush1.bf16.msra.mxu0 %v4510
        %4711 = vmatprep.subr.bf16.mxu0 %v4513
        %4712 = vmatpush1.bf16.msra.mxu0 %v4512
        %4713 = vmatprep.subr.bf16.mxu0 %v4515
        %4714 = vmatpush1.bf16.msra.mxu0 %v4514
        %4715 = vmatprep.subr.bf16.mxu0 %v4517
        %4716 = vmatpush1.bf16.msra.mxu0 %v4516
        %4717 = vmatprep.subr.bf16.mxu0 %v4519
        %4718 = vmatpush1.bf16.msra.mxu0 %v4518
        %4719 = vmatprep.subr.bf16.mxu0 %v4521
        %4720 = vmatpush1.bf16.msra.mxu0 %v4520
        %4721 = vmatprep.subr.bf16.mxu0 %v4523
        %4722 = vmatpush1.bf16.msra.mxu0 %v4522
        %4723 = vmatprep.subr.bf16.mxu0 %v4525
        %4724 = vmatpush1.bf16.msra.mxu0 %v4524
        %4725 = vmatprep.subr.bf16.mxu0 %v4527
        %4726 = vmatpush1.bf16.msra.mxu0 %v4526
        %4727 = vmatprep.subr.bf16.mxu0 %v4529
        %4728 = vmatpush1.bf16.msra.mxu0 %v4528
        %4729 = vmatprep.subr.bf16.mxu0 %v4531
        %4730 = vmatpush1.bf16.msra.mxu0 %v4530
        %4731 = vmatprep.mubr.bf16.mxu0 %v4567
        %4732 = vmatmul.mubr.bf16.gmra.mrb[0].mxu0 %v4565
        %v4733 = vpop.f32.mrb[0].mxu0
        %v4734 = vadd.f32 %v4693, %v4733
        %v4735 = vpop.f32.mrb[0].mxu0
        %v4736 = vadd.f32 %v4695, %v4735
        %v4737 = vpop.f32.mrb[0].mxu0
        %v4738 = vpop.f32.mrb[0].mxu0
        %4739 = vdwg.mxu0
        %v4740 = vadd.f32 %v4336, %v4734
        %v4741 = vadd.f32 %v4337, %v4736
        %v4742 = vld [vmem:[%s294 + $0xb0] sm:$0xff]
        %v4743 = vld [vmem:[%s294 + $0xb8] sm:$0xff]
        %v4744 = vld [vmem:[%s251 + $0x1600] sm:$0xff]
        %v4745 = vld [vmem:[%s251 + $0x1608] sm:$0xff]
        %v4746 = vld [vmem:[%s251 + $0x1610] sm:$0xff]
        %v4747 = vld [vmem:[%s251 + $0x1618] sm:$0xff]
        %v4748 = vld [vmem:[%s251 + $0x1620] sm:$0xff]
        %v4749 = vld [vmem:[%s251 + $0x1628] sm:$0xff]
        %v4750 = vld [vmem:[%s251 + $0x1630] sm:$0xff]
        %v4751 = vld [vmem:[%s251 + $0x1638] sm:$0xff]
        %v4752 = vld [vmem:[%s251 + $0x1640] sm:$0xff]
        %v4753 = vld [vmem:[%s251 + $0x1648] sm:$0xff]
        %v4754 = vld [vmem:[%s251 + $0x1650] sm:$0xff]
        %v4755 = vld [vmem:[%s251 + $0x1658] sm:$0xff]
        %v4756 = vld [vmem:[%s251 + $0x1660] sm:$0xff]
        %v4757 = vld [vmem:[%s251 + $0x1668] sm:$0xff]
        %v4758 = vld [vmem:[%s251 + $0x1670] sm:$0xff]
        %v4759 = vld [vmem:[%s251 + $0x1678] sm:$0xff]
        %v4760 = vld [vmem:[%s251 + $0x1680] sm:$0xff]
        %v4761 = vld [vmem:[%s251 + $0x1688] sm:$0xff]
        %v4762 = vld [vmem:[%s251 + $0x1690] sm:$0xff]
        %v4763 = vld [vmem:[%s251 + $0x1698] sm:$0xff]
        %v4764 = vld [vmem:[%s251 + $0x16a0] sm:$0xff]
        %v4765 = vld [vmem:[%s251 + $0x16a8] sm:$0xff]
        %v4766 = vld [vmem:[%s251 + $0x16b0] sm:$0xff]
        %v4767 = vld [vmem:[%s251 + $0x16b8] sm:$0xff]
        %v4768 = vld [vmem:[%s251 + $0x16c0] sm:$0xff]
        %v4769 = vld [vmem:[%s251 + $0x16c8] sm:$0xff]
        %v4770 = vld [vmem:[%s251 + $0x16d0] sm:$0xff]
        %v4771 = vld [vmem:[%s251 + $0x16d8] sm:$0xff]
        %v4772 = vld [vmem:[%s251 + $0x16e0] sm:$0xff]
        %v4773 = vld [vmem:[%s251 + $0x16e8] sm:$0xff]
        %v4774 = vld [vmem:[%s251 + $0x16f0] sm:$0xff]
        %v4775 = vld [vmem:[%s251 + $0x16f8] sm:$0xff]
        %v4776 = vld [vmem:[%s251 + $0x1700] sm:$0xff]
        %v4777 = vld [vmem:[%s251 + $0x1708] sm:$0xff]
        %v4778 = vld [vmem:[%s251 + $0x1710] sm:$0xff]
        %v4779 = vld [vmem:[%s251 + $0x1718] sm:$0xff]
        %v4780 = vld [vmem:[%s251 + $0x1720] sm:$0xff]
        %v4781 = vld [vmem:[%s251 + $0x1728] sm:$0xff]
        %v4782 = vld [vmem:[%s251 + $0x1730] sm:$0xff]
        %v4783 = vld [vmem:[%s251 + $0x1738] sm:$0xff]
        %v4784 = vld [vmem:[%s251 + $0x1740] sm:$0xff]
        %v4785 = vld [vmem:[%s251 + $0x1748] sm:$0xff]
        %v4786 = vld [vmem:[%s251 + $0x1750] sm:$0xff]
        %v4787 = vld [vmem:[%s251 + $0x1758] sm:$0xff]
        %v4788 = vld [vmem:[%s251 + $0x1760] sm:$0xff]
        %v4789 = vld [vmem:[%s251 + $0x1768] sm:$0xff]
        %v4790 = vld [vmem:[%s251 + $0x1770] sm:$0xff]
        %v4791 = vld [vmem:[%s251 + $0x1778] sm:$0xff]
        %v4792 = vld [vmem:[%s251 + $0x1780] sm:$0xff]
        %v4793 = vld [vmem:[%s251 + $0x1788] sm:$0xff]
        %v4794 = vld [vmem:[%s251 + $0x1790] sm:$0xff]
        %v4795 = vld [vmem:[%s251 + $0x1798] sm:$0xff]
        %v4796 = vld [vmem:[%s251 + $0x17a0] sm:$0xff]
        %v4797 = vld [vmem:[%s251 + $0x17a8] sm:$0xff]
        %v4798 = vld [vmem:[%s251 + $0x17b0] sm:$0xff]
        %v4799 = vld [vmem:[%s251 + $0x17b8] sm:$0xff]
        %v4800 = vld [vmem:[%s251 + $0x17c0] sm:$0xff]
        %v4801 = vld [vmem:[%s251 + $0x17c8] sm:$0xff]
        %v4802 = vld [vmem:[%s251 + $0x17d0] sm:$0xff]
        %v4803 = vld [vmem:[%s251 + $0x17d8] sm:$0xff]
        %v4804 = vld [vmem:[%s251 + $0x17e0] sm:$0xff]
        %v4805 = vld [vmem:[%s251 + $0x17e8] sm:$0xff]
        %v4806 = vld [vmem:[%s251 + $0x17f0] sm:$0xff]
        %v4807 = vld [vmem:[%s251 + $0x17f8] sm:$0xff]
        %v4808 = vunpack.c.l.s8.bf16 %v4744
        %v4809 = vunpack.c.l.s8.bf16 %v4745
        %v4810 = vunpack.c.h.s8.bf16 %v4744
        %v4811 = vunpack.c.h.s8.bf16 %v4745
        %v4812 = vunpack.c.l.s8.bf16 %v4746
        %v4813 = vunpack.c.l.s8.bf16 %v4747
        %v4814 = vunpack.c.h.s8.bf16 %v4746
        %v4815 = vunpack.c.h.s8.bf16 %v4747
        %v4816 = vunpack.c.l.s8.bf16 %v4748
        %v4817 = vunpack.c.l.s8.bf16 %v4749
        %v4818 = vunpack.c.h.s8.bf16 %v4748
        %v4819 = vunpack.c.h.s8.bf16 %v4749
        %v4820 = vunpack.c.l.s8.bf16 %v4750
        %v4821 = vunpack.c.l.s8.bf16 %v4751
        %v4822 = vunpack.c.h.s8.bf16 %v4750
        %v4823 = vunpack.c.h.s8.bf16 %v4751
        %v4824 = vunpack.c.l.s8.bf16 %v4752
        %v4825 = vunpack.c.l.s8.bf16 %v4753
        %v4826 = vunpack.c.h.s8.bf16 %v4752
        %v4827 = vunpack.c.h.s8.bf16 %v4753
        %v4828 = vunpack.c.l.s8.bf16 %v4754
        %v4829 = vunpack.c.l.s8.bf16 %v4755
        %v4830 = vunpack.c.h.s8.bf16 %v4754
        %v4831 = vunpack.c.h.s8.bf16 %v4755
        %v4832 = vunpack.c.l.s8.bf16 %v4756
        %v4833 = vunpack.c.l.s8.bf16 %v4757
        %v4834 = vunpack.c.h.s8.bf16 %v4756
        %v4835 = vunpack.c.h.s8.bf16 %v4757
        %v4836 = vunpack.c.l.s8.bf16 %v4758
        %v4837 = vunpack.c.l.s8.bf16 %v4759
        %v4838 = vunpack.c.h.s8.bf16 %v4758
        %v4839 = vunpack.c.h.s8.bf16 %v4759
        %v4840 = vunpack.c.l.s8.bf16 %v4760
        %v4841 = vunpack.c.l.s8.bf16 %v4761
        %v4842 = vunpack.c.h.s8.bf16 %v4760
        %v4843 = vunpack.c.h.s8.bf16 %v4761
        %v4844 = vunpack.c.l.s8.bf16 %v4762
        %v4845 = vunpack.c.l.s8.bf16 %v4763
        %v4846 = vunpack.c.h.s8.bf16 %v4762
        %v4847 = vunpack.c.h.s8.bf16 %v4763
        %v4848 = vunpack.c.l.s8.bf16 %v4764
        %v4849 = vunpack.c.l.s8.bf16 %v4765
        %v4850 = vunpack.c.h.s8.bf16 %v4764
        %v4851 = vunpack.c.h.s8.bf16 %v4765
        %v4852 = vunpack.c.l.s8.bf16 %v4766
        %v4853 = vunpack.c.l.s8.bf16 %v4767
        %v4854 = vunpack.c.h.s8.bf16 %v4766
        %v4855 = vunpack.c.h.s8.bf16 %v4767
        %v4856 = vunpack.c.l.s8.bf16 %v4768
        %v4857 = vunpack.c.l.s8.bf16 %v4769
        %v4858 = vunpack.c.h.s8.bf16 %v4768
        %v4859 = vunpack.c.h.s8.bf16 %v4769
        %v4860 = vunpack.c.l.s8.bf16 %v4770
        %v4861 = vunpack.c.l.s8.bf16 %v4771
        %v4862 = vunpack.c.h.s8.bf16 %v4770
        %v4863 = vunpack.c.h.s8.bf16 %v4771
        %v4864 = vunpack.c.l.s8.bf16 %v4772
        %v4865 = vunpack.c.l.s8.bf16 %v4773
        %v4866 = vunpack.c.h.s8.bf16 %v4772
        %v4867 = vunpack.c.h.s8.bf16 %v4773
        %v4868 = vunpack.c.l.s8.bf16 %v4774
        %v4869 = vunpack.c.l.s8.bf16 %v4775
        %v4870 = vunpack.c.h.s8.bf16 %v4774
        %v4871 = vunpack.c.h.s8.bf16 %v4775
        %v4872 = vunpack.c.l.s8.bf16 %v4776
        %v4873 = vunpack.c.l.s8.bf16 %v4777
        %v4874 = vunpack.c.h.s8.bf16 %v4776
        %v4875 = vunpack.c.h.s8.bf16 %v4777
        %v4876 = vunpack.c.l.s8.bf16 %v4778
        %v4877 = vunpack.c.l.s8.bf16 %v4779
        %v4878 = vunpack.c.h.s8.bf16 %v4778
        %v4879 = vunpack.c.h.s8.bf16 %v4779
        %v4880 = vunpack.c.l.s8.bf16 %v4780
        %v4881 = vunpack.c.l.s8.bf16 %v4781
        %v4882 = vunpack.c.h.s8.bf16 %v4780
        %v4883 = vunpack.c.h.s8.bf16 %v4781
        %v4884 = vunpack.c.l.s8.bf16 %v4782
        %v4885 = vunpack.c.l.s8.bf16 %v4783
        %v4886 = vunpack.c.h.s8.bf16 %v4782
        %v4887 = vunpack.c.h.s8.bf16 %v4783
        %v4888 = vunpack.c.l.s8.bf16 %v4784
        %v4889 = vunpack.c.l.s8.bf16 %v4785
        %v4890 = vunpack.c.h.s8.bf16 %v4784
        %v4891 = vunpack.c.h.s8.bf16 %v4785
        %v4892 = vunpack.c.l.s8.bf16 %v4786
        %v4893 = vunpack.c.l.s8.bf16 %v4787
        %v4894 = vunpack.c.h.s8.bf16 %v4786
        %v4895 = vunpack.c.h.s8.bf16 %v4787
        %v4896 = vunpack.c.l.s8.bf16 %v4788
        %v4897 = vunpack.c.l.s8.bf16 %v4789
        %v4898 = vunpack.c.h.s8.bf16 %v4788
        %v4899 = vunpack.c.h.s8.bf16 %v4789
        %v4900 = vunpack.c.l.s8.bf16 %v4790
        %v4901 = vunpack.c.l.s8.bf16 %v4791
        %v4902 = vunpack.c.h.s8.bf16 %v4790
        %v4903 = vunpack.c.h.s8.bf16 %v4791
        %v4904 = vunpack.c.l.s8.bf16 %v4792
        %v4905 = vunpack.c.l.s8.bf16 %v4793
        %v4906 = vunpack.c.h.s8.bf16 %v4792
        %v4907 = vunpack.c.h.s8.bf16 %v4793
        %v4908 = vunpack.c.l.s8.bf16 %v4794
        %v4909 = vunpack.c.l.s8.bf16 %v4795
        %v4910 = vunpack.c.h.s8.bf16 %v4794
        %v4911 = vunpack.c.h.s8.bf16 %v4795
        %v4912 = vunpack.c.l.s8.bf16 %v4796
        %v4913 = vunpack.c.l.s8.bf16 %v4797
        %v4914 = vunpack.c.h.s8.bf16 %v4796
        %v4915 = vunpack.c.h.s8.bf16 %v4797
        %v4916 = vunpack.c.l.s8.bf16 %v4798
        %v4917 = vunpack.c.l.s8.bf16 %v4799
        %v4918 = vunpack.c.h.s8.bf16 %v4798
        %v4919 = vunpack.c.h.s8.bf16 %v4799
        %v4920 = vunpack.c.l.s8.bf16 %v4800
        %v4921 = vunpack.c.l.s8.bf16 %v4801
        %v4922 = vunpack.c.h.s8.bf16 %v4800
        %v4923 = vunpack.c.h.s8.bf16 %v4801
        %v4924 = vunpack.c.l.s8.bf16 %v4802
        %v4925 = vunpack.c.l.s8.bf16 %v4803
        %v4926 = vunpack.c.h.s8.bf16 %v4802
        %v4927 = vunpack.c.h.s8.bf16 %v4803
        %v4928 = vunpack.c.l.s8.bf16 %v4804
        %v4929 = vunpack.c.l.s8.bf16 %v4805
        %v4930 = vunpack.c.h.s8.bf16 %v4804
        %v4931 = vunpack.c.h.s8.bf16 %v4805
        %v4932 = vunpack.c.l.s8.bf16 %v4806
        %v4933 = vunpack.c.l.s8.bf16 %v4807
        %v4934 = vunpack.c.h.s8.bf16 %v4806
        %v4935 = vunpack.c.h.s8.bf16 %v4807
        %v4938 = vcombine.high %v4742, %v4742
        %v4940 = vunpack.c.l.s4 1983009808
        %v4941 = vunpack.c.0.s8 %v4940
        %v4942 = vlaneseq
        %v4943 = vshrl.u32 %v4942, 7
        %v4944 = vsub.s32 %v4941, %v4943
        %v4945 = vrot.slane %v4742, %v4944
        %v4947 = vunpack.c.l.s4 1983009808
        %v4948 = vunpack.c.0.s8 %v4947
        %v4949 = vlaneseq
        %v4950 = vshrl.u32 %v4949, 7
        %v4951 = vsub.s32 %v4948, %v4950
        %v4952 = vrot.slane %v4938, %v4951
        %v4953 = vcombine.high %v4945, %v4945
        %v4954 = vcombine.high %v4952, %v4952
        %v4955 = vcombine.high %v4743, %v4743
        %v4957 = vunpack.c.l.s4 1983009808
        %v4958 = vunpack.c.0.s8 %v4957
        %v4959 = vlaneseq
        %v4960 = vshrl.u32 %v4959, 7
        %v4961 = vsub.s32 %v4958, %v4960
        %v4962 = vrot.slane %v4743, %v4961
        %v4964 = vunpack.c.l.s4 1983009808
        %v4965 = vunpack.c.0.s8 %v4964
        %v4966 = vlaneseq
        %v4967 = vshrl.u32 %v4966, 7
        %v4968 = vsub.s32 %v4965, %v4967
        %v4969 = vrot.slane %v4955, %v4968
        %v4970 = vcombine.high %v4962, %v4962
        %v4971 = vcombine.high %v4969, %v4969
        %4980 = vmatprep.subr.bf16.mxu0 %v4809
        %4981 = vmatpush1.bf16.msra.mxu0 %v4808
        %4982 = vmatprep.subr.bf16.mxu0 %v4811
        %4983 = vmatpush1.bf16.msra.mxu0 %v4810
        %4984 = vmatprep.subr.bf16.mxu0 %v4813
        %4985 = vmatpush1.bf16.msra.mxu0 %v4812
        %4986 = vmatprep.subr.bf16.mxu0 %v4815
        %4987 = vmatpush1.bf16.msra.mxu0 %v4814
        %4988 = vmatprep.subr.bf16.mxu0 %v4817
        %4989 = vmatpush1.bf16.msra.mxu0 %v4816
        %4990 = vmatprep.subr.bf16.mxu0 %v4819
        %4991 = vmatpush1.bf16.msra.mxu0 %v4818
        %4992 = vmatprep.subr.bf16.mxu0 %v4821
        %4993 = vmatpush1.bf16.msra.mxu0 %v4820
        %4994 = vmatprep.subr.bf16.mxu0 %v4823
        %4995 = vmatpush1.bf16.msra.mxu0 %v4822
        %4996 = vmatprep.subr.bf16.mxu0 %v4825
        %4997 = vmatpush1.bf16.msra.mxu0 %v4824
        %4998 = vmatprep.subr.bf16.mxu0 %v4827
        %4999 = vmatpush1.bf16.msra.mxu0 %v4826
        %5000 = vmatprep.subr.bf16.mxu0 %v4829
        %5001 = vmatpush1.bf16.msra.mxu0 %v4828
        %5002 = vmatprep.subr.bf16.mxu0 %v4831
        %5003 = vmatpush1.bf16.msra.mxu0 %v4830
        %5004 = vmatprep.subr.bf16.mxu0 %v4833
        %5005 = vmatpush1.bf16.msra.mxu0 %v4832
        %5006 = vmatprep.subr.bf16.mxu0 %v4835
        %5007 = vmatpush1.bf16.msra.mxu0 %v4834
        %5008 = vmatprep.subr.bf16.mxu0 %v4837
        %5009 = vmatpush1.bf16.msra.mxu0 %v4836
        %5010 = vmatprep.subr.bf16.mxu0 %v4839
        %5011 = vmatpush1.bf16.msra.mxu0 %v4838
        %5012 = vmatprep.mubr.bf16.mxu0 %v4953
        %5013 = vmatmul.mubr.bf16.gmra.mrb[0].mxu0 %v4945
        %v5014 = vpop.f32.mrb[0].mxu0
        %v5015 = vadd.f32 0.0, %v5014
        %v5016 = vpop.f32.mrb[0].mxu0
        %v5017 = vadd.f32 0.0, %v5016
        %v5018 = vpop.f32.mrb[0].mxu0
        %v5019 = vpop.f32.mrb[0].mxu0
        %5020 = vdwg.mxu0
        %5021 = vmatprep.subr.bf16.mxu0 %v4841
        %5022 = vmatpush1.bf16.msra.mxu0 %v4840
        %5023 = vmatprep.subr.bf16.mxu0 %v4843
        %5024 = vmatpush1.bf16.msra.mxu0 %v4842
        %5025 = vmatprep.subr.bf16.mxu0 %v4845
        %5026 = vmatpush1.bf16.msra.mxu0 %v4844
        %5027 = vmatprep.subr.bf16.mxu0 %v4847
        %5028 = vmatpush1.bf16.msra.mxu0 %v4846
        %5029 = vmatprep.subr.bf16.mxu0 %v4849
        %5030 = vmatpush1.bf16.msra.mxu0 %v4848
        %5031 = vmatprep.subr.bf16.mxu0 %v4851
        %5032 = vmatpush1.bf16.msra.mxu0 %v4850
        %5033 = vmatprep.subr.bf16.mxu0 %v4853
        %5034 = vmatpush1.bf16.msra.mxu0 %v4852
        %5035 = vmatprep.subr.bf16.mxu0 %v4855
        %5036 = vmatpush1.bf16.msra.mxu0 %v4854
        %5037 = vmatprep.subr.bf16.mxu0 %v4857
        %5038 = vmatpush1.bf16.msra.mxu0 %v4856
        %5039 = vmatprep.subr.bf16.mxu0 %v4859
        %5040 = vmatpush1.bf16.msra.mxu0 %v4858
        %5041 = vmatprep.subr.bf16.mxu0 %v4861
        %5042 = vmatpush1.bf16.msra.mxu0 %v4860
        %5043 = vmatprep.subr.bf16.mxu0 %v4863
        %5044 = vmatpush1.bf16.msra.mxu0 %v4862
        %5045 = vmatprep.subr.bf16.mxu0 %v4865
        %5046 = vmatpush1.bf16.msra.mxu0 %v4864
        %5047 = vmatprep.subr.bf16.mxu0 %v4867
        %5048 = vmatpush1.bf16.msra.mxu0 %v4866
        %5049 = vmatprep.subr.bf16.mxu0 %v4869
        %5050 = vmatpush1.bf16.msra.mxu0 %v4868
        %5051 = vmatprep.subr.bf16.mxu0 %v4871
        %5052 = vmatpush1.bf16.msra.mxu0 %v4870
        %5053 = vmatprep.mubr.bf16.mxu0 %v4954
        %5054 = vmatmul.mubr.bf16.gmra.mrb[0].mxu0 %v4952
        %v5055 = vpop.f32.mrb[0].mxu0
        %v5056 = vadd.f32 %v5015, %v5055
        %v5057 = vpop.f32.mrb[0].mxu0
        %v5058 = vadd.f32 %v5017, %v5057
        %v5059 = vpop.f32.mrb[0].mxu0
        %v5060 = vpop.f32.mrb[0].mxu0
        %5061 = vdwg.mxu0
        %5062 = vmatprep.subr.bf16.mxu0 %v4873
        %5063 = vmatpush1.bf16.msra.mxu0 %v4872
        %5064 = vmatprep.subr.bf16.mxu0 %v4875
        %5065 = vmatpush1.bf16.msra.mxu0 %v4874
        %5066 = vmatprep.subr.bf16.mxu0 %v4877
        %5067 = vmatpush1.bf16.msra.mxu0 %v4876
        %5068 = vmatprep.subr.bf16.mxu0 %v4879
        %5069 = vmatpush1.bf16.msra.mxu0 %v4878
        %5070 = vmatprep.subr.bf16.mxu0 %v4881
        %5071 = vmatpush1.bf16.msra.mxu0 %v4880
        %5072 = vmatprep.subr.bf16.mxu0 %v4883
        %5073 = vmatpush1.bf16.msra.mxu0 %v4882
        %5074 = vmatprep.subr.bf16.mxu0 %v4885
        %5075 = vmatpush1.bf16.msra.mxu0 %v4884
        %5076 = vmatprep.subr.bf16.mxu0 %v4887
        %5077 = vmatpush1.bf16.msra.mxu0 %v4886
        %5078 = vmatprep.subr.bf16.mxu0 %v4889
        %5079 = vmatpush1.bf16.msra.mxu0 %v4888
        %5080 = vmatprep.subr.bf16.mxu0 %v4891
        %5081 = vmatpush1.bf16.msra.mxu0 %v4890
        %5082 = vmatprep.subr.bf16.mxu0 %v4893
        %5083 = vmatpush1.bf16.msra.mxu0 %v4892
        %5084 = vmatprep.subr.bf16.mxu0 %v4895
        %5085 = vmatpush1.bf16.msra.mxu0 %v4894
        %5086 = vmatprep.subr.bf16.mxu0 %v4897
        %5087 = vmatpush1.bf16.msra.mxu0 %v4896
        %5088 = vmatprep.subr.bf16.mxu0 %v4899
        %5089 = vmatpush1.bf16.msra.mxu0 %v4898
        %5090 = vmatprep.subr.bf16.mxu0 %v4901
        %5091 = vmatpush1.bf16.msra.mxu0 %v4900
        %5092 = vmatprep.subr.bf16.mxu0 %v4903
        %5093 = vmatpush1.bf16.msra.mxu0 %v4902
        %5094 = vmatprep.mubr.bf16.mxu0 %v4970
        %5095 = vmatmul.mubr.bf16.gmra.mrb[0].mxu0 %v4962
        %v5096 = vpop.f32.mrb[0].mxu0
        %v5097 = vadd.f32 %v5056, %v5096
        %v5098 = vpop.f32.mrb[0].mxu0
        %v5099 = vadd.f32 %v5058, %v5098
        %v5100 = vpop.f32.mrb[0].mxu0
        %v5101 = vpop.f32.mrb[0].mxu0
        %5102 = vdwg.mxu0
        %5103 = vmatprep.subr.bf16.mxu0 %v4905
        %5104 = vmatpush1.bf16.msra.mxu0 %v4904
        %5105 = vmatprep.subr.bf16.mxu0 %v4907
        %5106 = vmatpush1.bf16.msra.mxu0 %v4906
        %5107 = vmatprep.subr.bf16.mxu0 %v4909
        %5108 = vmatpush1.bf16.msra.mxu0 %v4908
        %5109 = vmatprep.subr.bf16.mxu0 %v4911
        %5110 = vmatpush1.bf16.msra.mxu0 %v4910
        %5111 = vmatprep.subr.bf16.mxu0 %v4913
        %5112 = vmatpush1.bf16.msra.mxu0 %v4912
        %5113 = vmatprep.subr.bf16.mxu0 %v4915
        %5114 = vmatpush1.bf16.msra.mxu0 %v4914
        %5115 = vmatprep.subr.bf16.mxu0 %v4917
        %5116 = vmatpush1.bf16.msra.mxu0 %v4916
        %5117 = vmatprep.subr.bf16.mxu0 %v4919
        %5118 = vmatpush1.bf16.msra.mxu0 %v4918
        %5119 = vmatprep.subr.bf16.mxu0 %v4921
        %5120 = vmatpush1.bf16.msra.mxu0 %v4920
        %5121 = vmatprep.subr.bf16.mxu0 %v4923
        %5122 = vmatpush1.bf16.msra.mxu0 %v4922
        %5123 = vmatprep.subr.bf16.mxu0 %v4925
        %5124 = vmatpush1.bf16.msra.mxu0 %v4924
        %5125 = vmatprep.subr.bf16.mxu0 %v4927
        %5126 = vmatpush1.bf16.msra.mxu0 %v4926
        %5127 = vmatprep.subr.bf16.mxu0 %v4929
        %5128 = vmatpush1.bf16.msra.mxu0 %v4928
        %5129 = vmatprep.subr.bf16.mxu0 %v4931
        %5130 = vmatpush1.bf16.msra.mxu0 %v4930
        %5131 = vmatprep.subr.bf16.mxu0 %v4933
        %5132 = vmatpush1.bf16.msra.mxu0 %v4932
        %5133 = vmatprep.subr.bf16.mxu0 %v4935
        %5134 = vmatpush1.bf16.msra.mxu0 %v4934
        %5135 = vmatprep.mubr.bf16.mxu0 %v4971
        %5136 = vmatmul.mubr.bf16.gmra.mrb[0].mxu0 %v4969
        %v5137 = vpop.f32.mrb[0].mxu0
        %v5138 = vadd.f32 %v5097, %v5137
        %v5139 = vpop.f32.mrb[0].mxu0
        %v5140 = vadd.f32 %v5099, %v5139
        %v5141 = vpop.f32.mrb[0].mxu0
        %v5142 = vpop.f32.mrb[0].mxu0
        %5143 = vdwg.mxu0
        %v5144 = vadd.f32 %v4740, %v5138
        %v5145 = vadd.f32 %v4741, %v5140
        %v5146 = vld [vmem:[%s294 + $0xc0] sm:$0xff]
        %v5147 = vld [vmem:[%s294 + $0xc8] sm:$0xff]
        %v5148 = vld [vmem:[%s251 + $0x1800] sm:$0xff]
        %v5149 = vld [vmem:[%s251 + $0x1808] sm:$0xff]
        %v5150 = vld [vmem:[%s251 + $0x1810] sm:$0xff]
        %v5151 = vld [vmem:[%s251 + $0x1818] sm:$0xff]
        %v5152 = vld [vmem:[%s251 + $0x1820] sm:$0xff]
        %v5153 = vld [vmem:[%s251 + $0x1828] sm:$0xff]
        %v5154 = vld [vmem:[%s251 + $0x1830] sm:$0xff]
        %v5155 = vld [vmem:[%s251 + $0x1838] sm:$0xff]
        %v5156 = vld [vmem:[%s251 + $0x1840] sm:$0xff]
        %v5157 = vld [vmem:[%s251 + $0x1848] sm:$0xff]
        %v5158 = vld [vmem:[%s251 + $0x1850] sm:$0xff]
        %v5159 = vld [vmem:[%s251 + $0x1858] sm:$0xff]
        %v5160 = vld [vmem:[%s251 + $0x1860] sm:$0xff]
        %v5161 = vld [vmem:[%s251 + $0x1868] sm:$0xff]
        %v5162 = vld [vmem:[%s251 + $0x1870] sm:$0xff]
        %v5163 = vld [vmem:[%s251 + $0x1878] sm:$0xff]
        %v5164 = vld [vmem:[%s251 + $0x1880] sm:$0xff]
        %v5165 = vld [vmem:[%s251 + $0x1888] sm:$0xff]
        %v5166 = vld [vmem:[%s251 + $0x1890] sm:$0xff]
        %v5167 = vld [vmem:[%s251 + $0x1898] sm:$0xff]
        %v5168 = vld [vmem:[%s251 + $0x18a0] sm:$0xff]
        %v5169 = vld [vmem:[%s251 + $0x18a8] sm:$0xff]
        %v5170 = vld [vmem:[%s251 + $0x18b0] sm:$0xff]
        %v5171 = vld [vmem:[%s251 + $0x18b8] sm:$0xff]
        %v5172 = vld [vmem:[%s251 + $0x18c0] sm:$0xff]
        %v5173 = vld [vmem:[%s251 + $0x18c8] sm:$0xff]
        %v5174 = vld [vmem:[%s251 + $0x18d0] sm:$0xff]
        %v5175 = vld [vmem:[%s251 + $0x18d8] sm:$0xff]
        %v5176 = vld [vmem:[%s251 + $0x18e0] sm:$0xff]
        %v5177 = vld [vmem:[%s251 + $0x18e8] sm:$0xff]
        %v5178 = vld [vmem:[%s251 + $0x18f0] sm:$0xff]
        %v5179 = vld [vmem:[%s251 + $0x18f8] sm:$0xff]
        %v5180 = vld [vmem:[%s251 + $0x1900] sm:$0xff]
        %v5181 = vld [vmem:[%s251 + $0x1908] sm:$0xff]
        %v5182 = vld [vmem:[%s251 + $0x1910] sm:$0xff]
        %v5183 = vld [vmem:[%s251 + $0x1918] sm:$0xff]
        %v5184 = vld [vmem:[%s251 + $0x1920] sm:$0xff]
        %v5185 = vld [vmem:[%s251 + $0x1928] sm:$0xff]
        %v5186 = vld [vmem:[%s251 + $0x1930] sm:$0xff]
        %v5187 = vld [vmem:[%s251 + $0x1938] sm:$0xff]
        %v5188 = vld [vmem:[%s251 + $0x1940] sm:$0xff]
        %v5189 = vld [vmem:[%s251 + $0x1948] sm:$0xff]
        %v5190 = vld [vmem:[%s251 + $0x1950] sm:$0xff]
        %v5191 = vld [vmem:[%s251 + $0x1958] sm:$0xff]
        %v5192 = vld [vmem:[%s251 + $0x1960] sm:$0xff]
        %v5193 = vld [vmem:[%s251 + $0x1968] sm:$0xff]
        %v5194 = vld [vmem:[%s251 + $0x1970] sm:$0xff]
        %v5195 = vld [vmem:[%s251 + $0x1978] sm:$0xff]
        %v5196 = vld [vmem:[%s251 + $0x1980] sm:$0xff]
        %v5197 = vld [vmem:[%s251 + $0x1988] sm:$0xff]
        %v5198 = vld [vmem:[%s251 + $0x1990] sm:$0xff]
        %v5199 = vld [vmem:[%s251 + $0x1998] sm:$0xff]
        %v5200 = vld [vmem:[%s251 + $0x19a0] sm:$0xff]
        %v5201 = vld [vmem:[%s251 + $0x19a8] sm:$0xff]
        %v5202 = vld [vmem:[%s251 + $0x19b0] sm:$0xff]
        %v5203 = vld [vmem:[%s251 + $0x19b8] sm:$0xff]
        %v5204 = vld [vmem:[%s251 + $0x19c0] sm:$0xff]
        %v5205 = vld [vmem:[%s251 + $0x19c8] sm:$0xff]
        %v5206 = vld [vmem:[%s251 + $0x19d0] sm:$0xff]
        %v5207 = vld [vmem:[%s251 + $0x19d8] sm:$0xff]
        %v5208 = vld [vmem:[%s251 + $0x19e0] sm:$0xff]
        %v5209 = vld [vmem:[%s251 + $0x19e8] sm:$0xff]
        %v5210 = vld [vmem:[%s251 + $0x19f0] sm:$0xff]
        %v5211 = vld [vmem:[%s251 + $0x19f8] sm:$0xff]
        %v5212 = vunpack.c.l.s8.bf16 %v5148
        %v5213 = vunpack.c.l.s8.bf16 %v5149
        %v5214 = vunpack.c.h.s8.bf16 %v5148
        %v5215 = vunpack.c.h.s8.bf16 %v5149
        %v5216 = vunpack.c.l.s8.bf16 %v5150
        %v5217 = vunpack.c.l.s8.bf16 %v5151
        %v5218 = vunpack.c.h.s8.bf16 %v5150
        %v5219 = vunpack.c.h.s8.bf16 %v5151
        %v5220 = vunpack.c.l.s8.bf16 %v5152
        %v5221 = vunpack.c.l.s8.bf16 %v5153
        %v5222 = vunpack.c.h.s8.bf16 %v5152
        %v5223 = vunpack.c.h.s8.bf16 %v5153
        %v5224 = vunpack.c.l.s8.bf16 %v5154
        %v5225 = vunpack.c.l.s8.bf16 %v5155
        %v5226 = vunpack.c.h.s8.bf16 %v5154
        %v5227 = vunpack.c.h.s8.bf16 %v5155
        %v5228 = vunpack.c.l.s8.bf16 %v5156
        %v5229 = vunpack.c.l.s8.bf16 %v5157
        %v5230 = vunpack.c.h.s8.bf16 %v5156
        %v5231 = vunpack.c.h.s8.bf16 %v5157
        %v5232 = vunpack.c.l.s8.bf16 %v5158
        %v5233 = vunpack.c.l.s8.bf16 %v5159
        %v5234 = vunpack.c.h.s8.bf16 %v5158
        %v5235 = vunpack.c.h.s8.bf16 %v5159
        %v5236 = vunpack.c.l.s8.bf16 %v5160
        %v5237 = vunpack.c.l.s8.bf16 %v5161
        %v5238 = vunpack.c.h.s8.bf16 %v5160
        %v5239 = vunpack.c.h.s8.bf16 %v5161
        %v5240 = vunpack.c.l.s8.bf16 %v5162
        %v5241 = vunpack.c.l.s8.bf16 %v5163
        %v5242 = vunpack.c.h.s8.bf16 %v5162
        %v5243 = vunpack.c.h.s8.bf16 %v5163
        %v5244 = vunpack.c.l.s8.bf16 %v5164
        %v5245 = vunpack.c.l.s8.bf16 %v5165
        %v5246 = vunpack.c.h.s8.bf16 %v5164
        %v5247 = vunpack.c.h.s8.bf16 %v5165
        %v5248 = vunpack.c.l.s8.bf16 %v5166
        %v5249 = vunpack.c.l.s8.bf16 %v5167
        %v5250 = vunpack.c.h.s8.bf16 %v5166
        %v5251 = vunpack.c.h.s8.bf16 %v5167
        %v5252 = vunpack.c.l.s8.bf16 %v5168
        %v5253 = vunpack.c.l.s8.bf16 %v5169
        %v5254 = vunpack.c.h.s8.bf16 %v5168
        %v5255 = vunpack.c.h.s8.bf16 %v5169
        %v5256 = vunpack.c.l.s8.bf16 %v5170
        %v5257 = vunpack.c.l.s8.bf16 %v5171
        %v5258 = vunpack.c.h.s8.bf16 %v5170
        %v5259 = vunpack.c.h.s8.bf16 %v5171
        %v5260 = vunpack.c.l.s8.bf16 %v5172
        %v5261 = vunpack.c.l.s8.bf16 %v5173
        %v5262 = vunpack.c.h.s8.bf16 %v5172
        %v5263 = vunpack.c.h.s8.bf16 %v5173
        %v5264 = vunpack.c.l.s8.bf16 %v5174
        %v5265 = vunpack.c.l.s8.bf16 %v5175
        %v5266 = vunpack.c.h.s8.bf16 %v5174
        %v5267 = vunpack.c.h.s8.bf16 %v5175
        %v5268 = vunpack.c.l.s8.bf16 %v5176
        %v5269 = vunpack.c.l.s8.bf16 %v5177
        %v5270 = vunpack.c.h.s8.bf16 %v5176
        %v5271 = vunpack.c.h.s8.bf16 %v5177
        %v5272 = vunpack.c.l.s8.bf16 %v5178
        %v5273 = vunpack.c.l.s8.bf16 %v5179
        %v5274 = vunpack.c.h.s8.bf16 %v5178
        %v5275 = vunpack.c.h.s8.bf16 %v5179
        %v5276 = vunpack.c.l.s8.bf16 %v5180
        %v5277 = vunpack.c.l.s8.bf16 %v5181
        %v5278 = vunpack.c.h.s8.bf16 %v5180
        %v5279 = vunpack.c.h.s8.bf16 %v5181
        %v5280 = vunpack.c.l.s8.bf16 %v5182
        %v5281 = vunpack.c.l.s8.bf16 %v5183
        %v5282 = vunpack.c.h.s8.bf16 %v5182
        %v5283 = vunpack.c.h.s8.bf16 %v5183
        %v5284 = vunpack.c.l.s8.bf16 %v5184
        %v5285 = vunpack.c.l.s8.bf16 %v5185
        %v5286 = vunpack.c.h.s8.bf16 %v5184
        %v5287 = vunpack.c.h.s8.bf16 %v5185
        %v5288 = vunpack.c.l.s8.bf16 %v5186
        %v5289 = vunpack.c.l.s8.bf16 %v5187
        %v5290 = vunpack.c.h.s8.bf16 %v5186
        %v5291 = vunpack.c.h.s8.bf16 %v5187
        %v5292 = vunpack.c.l.s8.bf16 %v5188
        %v5293 = vunpack.c.l.s8.bf16 %v5189
        %v5294 = vunpack.c.h.s8.bf16 %v5188
        %v5295 = vunpack.c.h.s8.bf16 %v5189
        %v5296 = vunpack.c.l.s8.bf16 %v5190
        %v5297 = vunpack.c.l.s8.bf16 %v5191
        %v5298 = vunpack.c.h.s8.bf16 %v5190
        %v5299 = vunpack.c.h.s8.bf16 %v5191
        %v5300 = vunpack.c.l.s8.bf16 %v5192
        %v5301 = vunpack.c.l.s8.bf16 %v5193
        %v5302 = vunpack.c.h.s8.bf16 %v5192
        %v5303 = vunpack.c.h.s8.bf16 %v5193
        %v5304 = vunpack.c.l.s8.bf16 %v5194
        %v5305 = vunpack.c.l.s8.bf16 %v5195
        %v5306 = vunpack.c.h.s8.bf16 %v5194
        %v5307 = vunpack.c.h.s8.bf16 %v5195
        %v5308 = vunpack.c.l.s8.bf16 %v5196
        %v5309 = vunpack.c.l.s8.bf16 %v5197
        %v5310 = vunpack.c.h.s8.bf16 %v5196
        %v5311 = vunpack.c.h.s8.bf16 %v5197
        %v5312 = vunpack.c.l.s8.bf16 %v5198
        %v5313 = vunpack.c.l.s8.bf16 %v5199
        %v5314 = vunpack.c.h.s8.bf16 %v5198
        %v5315 = vunpack.c.h.s8.bf16 %v5199
        %v5316 = vunpack.c.l.s8.bf16 %v5200
        %v5317 = vunpack.c.l.s8.bf16 %v5201
        %v5318 = vunpack.c.h.s8.bf16 %v5200
        %v5319 = vunpack.c.h.s8.bf16 %v5201
        %v5320 = vunpack.c.l.s8.bf16 %v5202
        %v5321 = vunpack.c.l.s8.bf16 %v5203
        %v5322 = vunpack.c.h.s8.bf16 %v5202
        %v5323 = vunpack.c.h.s8.bf16 %v5203
        %v5324 = vunpack.c.l.s8.bf16 %v5204
        %v5325 = vunpack.c.l.s8.bf16 %v5205
        %v5326 = vunpack.c.h.s8.bf16 %v5204
        %v5327 = vunpack.c.h.s8.bf16 %v5205
        %v5328 = vunpack.c.l.s8.bf16 %v5206
        %v5329 = vunpack.c.l.s8.bf16 %v5207
        %v5330 = vunpack.c.h.s8.bf16 %v5206
        %v5331 = vunpack.c.h.s8.bf16 %v5207
        %v5332 = vunpack.c.l.s8.bf16 %v5208
        %v5333 = vunpack.c.l.s8.bf16 %v5209
        %v5334 = vunpack.c.h.s8.bf16 %v5208
        %v5335 = vunpack.c.h.s8.bf16 %v5209
        %v5336 = vunpack.c.l.s8.bf16 %v5210
        %v5337 = vunpack.c.l.s8.bf16 %v5211
        %v5338 = vunpack.c.h.s8.bf16 %v5210
        %v5339 = vunpack.c.h.s8.bf16 %v5211
        %v5342 = vcombine.high %v5146, %v5146
        %v5344 = vunpack.c.l.s4 1983009808
        %v5345 = vunpack.c.0.s8 %v5344
        %v5346 = vlaneseq
        %v5347 = vshrl.u32 %v5346, 7
        %v5348 = vsub.s32 %v5345, %v5347
        %v5349 = vrot.slane %v5146, %v5348
        %v5351 = vunpack.c.l.s4 1983009808
        %v5352 = vunpack.c.0.s8 %v5351
        %v5353 = vlaneseq
        %v5354 = vshrl.u32 %v5353, 7
        %v5355 = vsub.s32 %v5352, %v5354
        %v5356 = vrot.slane %v5342, %v5355
        %v5357 = vcombine.high %v5349, %v5349
        %v5358 = vcombine.high %v5356, %v5356
        %v5359 = vcombine.high %v5147, %v5147
        %v5361 = vunpack.c.l.s4 1983009808
        %v5362 = vunpack.c.0.s8 %v5361
        %v5363 = vlaneseq
        %v5364 = vshrl.u32 %v5363, 7
        %v5365 = vsub.s32 %v5362, %v5364
        %v5366 = vrot.slane %v5147, %v5365
        %v5368 = vunpack.c.l.s4 1983009808
        %v5369 = vunpack.c.0.s8 %v5368
        %v5370 = vlaneseq
        %v5371 = vshrl.u32 %v5370, 7
        %v5372 = vsub.s32 %v5369, %v5371
        %v5373 = vrot.slane %v5359, %v5372
        %v5374 = vcombine.high %v5366, %v5366
        %v5375 = vcombine.high %v5373, %v5373
        %5384 = vmatprep.subr.bf16.mxu0 %v5213
        %5385 = vmatpush1.bf16.msra.mxu0 %v5212
        %5386 = vmatprep.subr.bf16.mxu0 %v5215
        %5387 = vmatpush1.bf16.msra.mxu0 %v5214
        %5388 = vmatprep.subr.bf16.mxu0 %v5217
        %5389 = vmatpush1.bf16.msra.mxu0 %v5216
        %5390 = vmatprep.subr.bf16.mxu0 %v5219
        %5391 = vmatpush1.bf16.msra.mxu0 %v5218
        %5392 = vmatprep.subr.bf16.mxu0 %v5221
        %5393 = vmatpush1.bf16.msra.mxu0 %v5220
        %5394 = vmatprep.subr.bf16.mxu0 %v5223
        %5395 = vmatpush1.bf16.msra.mxu0 %v5222
        %5396 = vmatprep.subr.bf16.mxu0 %v5225
        %5397 = vmatpush1.bf16.msra.mxu0 %v5224
        %5398 = vmatprep.subr.bf16.mxu0 %v5227
        %5399 = vmatpush1.bf16.msra.mxu0 %v5226
        %5400 = vmatprep.subr.bf16.mxu0 %v5229
        %5401 = vmatpush1.bf16.msra.mxu0 %v5228
        %5402 = vmatprep.subr.bf16.mxu0 %v5231
        %5403 = vmatpush1.bf16.msra.mxu0 %v5230
        %5404 = vmatprep.subr.bf16.mxu0 %v5233
        %5405 = vmatpush1.bf16.msra.mxu0 %v5232
        %5406 = vmatprep.subr.bf16.mxu0 %v5235
        %5407 = vmatpush1.bf16.msra.mxu0 %v5234
        %5408 = vmatprep.subr.bf16.mxu0 %v5237
        %5409 = vmatpush1.bf16.msra.mxu0 %v5236
        %5410 = vmatprep.subr.bf16.mxu0 %v5239
        %5411 = vmatpush1.bf16.msra.mxu0 %v5238
        %5412 = vmatprep.subr.bf16.mxu0 %v5241
        %5413 = vmatpush1.bf16.msra.mxu0 %v5240
        %5414 = vmatprep.subr.bf16.mxu0 %v5243
        %5415 = vmatpush1.bf16.msra.mxu0 %v5242
        %5416 = vmatprep.mubr.bf16.mxu0 %v5357
        %5417 = vmatmul.mubr.bf16.gmra.mrb[0].mxu0 %v5349
        %v5418 = vpop.f32.mrb[0].mxu0
        %v5419 = vadd.f32 0.0, %v5418
        %v5420 = vpop.f32.mrb[0].mxu0
        %v5421 = vadd.f32 0.0, %v5420
        %v5422 = vpop.f32.mrb[0].mxu0
        %v5423 = vpop.f32.mrb[0].mxu0
        %5424 = vdwg.mxu0
        %5425 = vmatprep.subr.bf16.mxu0 %v5245
        %5426 = vmatpush1.bf16.msra.mxu0 %v5244
        %5427 = vmatprep.subr.bf16.mxu0 %v5247
        %5428 = vmatpush1.bf16.msra.mxu0 %v5246
        %5429 = vmatprep.subr.bf16.mxu0 %v5249
        %5430 = vmatpush1.bf16.msra.mxu0 %v5248
        %5431 = vmatprep.subr.bf16.mxu0 %v5251
        %5432 = vmatpush1.bf16.msra.mxu0 %v5250
        %5433 = vmatprep.subr.bf16.mxu0 %v5253
        %5434 = vmatpush1.bf16.msra.mxu0 %v5252
        %5435 = vmatprep.subr.bf16.mxu0 %v5255
        %5436 = vmatpush1.bf16.msra.mxu0 %v5254
        %5437 = vmatprep.subr.bf16.mxu0 %v5257
        %5438 = vmatpush1.bf16.msra.mxu0 %v5256
        %5439 = vmatprep.subr.bf16.mxu0 %v5259
        %5440 = vmatpush1.bf16.msra.mxu0 %v5258
        %5441 = vmatprep.subr.bf16.mxu0 %v5261
        %5442 = vmatpush1.bf16.msra.mxu0 %v5260
        %5443 = vmatprep.subr.bf16.mxu0 %v5263
        %5444 = vmatpush1.bf16.msra.mxu0 %v5262
        %5445 = vmatprep.subr.bf16.mxu0 %v5265
        %5446 = vmatpush1.bf16.msra.mxu0 %v5264
        %5447 = vmatprep.subr.bf16.mxu0 %v5267
        %5448 = vmatpush1.bf16.msra.mxu0 %v5266
        %5449 = vmatprep.subr.bf16.mxu0 %v5269
        %5450 = vmatpush1.bf16.msra.mxu0 %v5268
        %5451 = vmatprep.subr.bf16.mxu0 %v5271
        %5452 = vmatpush1.bf16.msra.mxu0 %v5270
        %5453 = vmatprep.subr.bf16.mxu0 %v5273
        %5454 = vmatpush1.bf16.msra.mxu0 %v5272
        %5455 = vmatprep.subr.bf16.mxu0 %v5275
        %5456 = vmatpush1.bf16.msra.mxu0 %v5274
        %5457 = vmatprep.mubr.bf16.mxu0 %v5358
        %5458 = vmatmul.mubr.bf16.gmra.mrb[0].mxu0 %v5356
        %v5459 = vpop.f32.mrb[0].mxu0
        %v5460 = vadd.f32 %v5419, %v5459
        %v5461 = vpop.f32.mrb[0].mxu0
        %v5462 = vadd.f32 %v5421, %v5461
        %v5463 = vpop.f32.mrb[0].mxu0
        %v5464 = vpop.f32.mrb[0].mxu0
        %5465 = vdwg.mxu0
        %5466 = vmatprep.subr.bf16.mxu0 %v5277
        %5467 = vmatpush1.bf16.msra.mxu0 %v5276
        %5468 = vmatprep.subr.bf16.mxu0 %v5279
        %5469 = vmatpush1.bf16.msra.mxu0 %v5278
        %5470 = vmatprep.subr.bf16.mxu0 %v5281
        %5471 = vmatpush1.bf16.msra.mxu0 %v5280
        %5472 = vmatprep.subr.bf16.mxu0 %v5283
        %5473 = vmatpush1.bf16.msra.mxu0 %v5282
        %5474 = vmatprep.subr.bf16.mxu0 %v5285
        %5475 = vmatpush1.bf16.msra.mxu0 %v5284
        %5476 = vmatprep.subr.bf16.mxu0 %v5287
        %5477 = vmatpush1.bf16.msra.mxu0 %v5286
        %5478 = vmatprep.subr.bf16.mxu0 %v5289
        %5479 = vmatpush1.bf16.msra.mxu0 %v5288
        %5480 = vmatprep.subr.bf16.mxu0 %v5291
        %5481 = vmatpush1.bf16.msra.mxu0 %v5290
        %5482 = vmatprep.subr.bf16.mxu0 %v5293
        %5483 = vmatpush1.bf16.msra.mxu0 %v5292
        %5484 = vmatprep.subr.bf16.mxu0 %v5295
        %5485 = vmatpush1.bf16.msra.mxu0 %v5294
        %5486 = vmatprep.subr.bf16.mxu0 %v5297
        %5487 = vmatpush1.bf16.msra.mxu0 %v5296
        %5488 = vmatprep.subr.bf16.mxu0 %v5299
        %5489 = vmatpush1.bf16.msra.mxu0 %v5298
        %5490 = vmatprep.subr.bf16.mxu0 %v5301
        %5491 = vmatpush1.bf16.msra.mxu0 %v5300
        %5492 = vmatprep.subr.bf16.mxu0 %v5303
        %5493 = vmatpush1.bf16.msra.mxu0 %v5302
        %5494 = vmatprep.subr.bf16.mxu0 %v5305
        %5495 = vmatpush1.bf16.msra.mxu0 %v5304
        %5496 = vmatprep.subr.bf16.mxu0 %v5307
        %5497 = vmatpush1.bf16.msra.mxu0 %v5306
        %5498 = vmatprep.mubr.bf16.mxu0 %v5374
        %5499 = vmatmul.mubr.bf16.gmra.mrb[0].mxu0 %v5366
        %v5500 = vpop.f32.mrb[0].mxu0
        %v5501 = vadd.f32 %v5460, %v5500
        %v5502 = vpop.f32.mrb[0].mxu0
        %v5503 = vadd.f32 %v5462, %v5502
        %v5504 = vpop.f32.mrb[0].mxu0
        %v5505 = vpop.f32.mrb[0].mxu0
        %5506 = vdwg.mxu0
        %5507 = vmatprep.subr.bf16.mxu0 %v5309
        %5508 = vmatpush1.bf16.msra.mxu0 %v5308
        %5509 = vmatprep.subr.bf16.mxu0 %v5311
        %5510 = vmatpush1.bf16.msra.mxu0 %v5310
        %5511 = vmatprep.subr.bf16.mxu0 %v5313
        %5512 = vmatpush1.bf16.msra.mxu0 %v5312
        %5513 = vmatprep.subr.bf16.mxu0 %v5315
        %5514 = vmatpush1.bf16.msra.mxu0 %v5314
        %5515 = vmatprep.subr.bf16.mxu0 %v5317
        %5516 = vmatpush1.bf16.msra.mxu0 %v5316
        %5517 = vmatprep.subr.bf16.mxu0 %v5319
        %5518 = vmatpush1.bf16.msra.mxu0 %v5318
        %5519 = vmatprep.subr.bf16.mxu0 %v5321
        %5520 = vmatpush1.bf16.msra.mxu0 %v5320
        %5521 = vmatprep.subr.bf16.mxu0 %v5323
        %5522 = vmatpush1.bf16.msra.mxu0 %v5322
        %5523 = vmatprep.subr.bf16.mxu0 %v5325
        %5524 = vmatpush1.bf16.msra.mxu0 %v5324
        %5525 = vmatprep.subr.bf16.mxu0 %v5327
        %5526 = vmatpush1.bf16.msra.mxu0 %v5326
        %5527 = vmatprep.subr.bf16.mxu0 %v5329
        %5528 = vmatpush1.bf16.msra.mxu0 %v5328
        %5529 = vmatprep.subr.bf16.mxu0 %v5331
        %5530 = vmatpush1.bf16.msra.mxu0 %v5330
        %5531 = vmatprep.subr.bf16.mxu0 %v5333
        %5532 = vmatpush1.bf16.msra.mxu0 %v5332
        %5533 = vmatprep.subr.bf16.mxu0 %v5335
        %5534 = vmatpush1.bf16.msra.mxu0 %v5334
        %5535 = vmatprep.subr.bf16.mxu0 %v5337
        %5536 = vmatpush1.bf16.msra.mxu0 %v5336
        %5537 = vmatprep.subr.bf16.mxu0 %v5339
        %5538 = vmatpush1.bf16.msra.mxu0 %v5338
        %5539 = vmatprep.mubr.bf16.mxu0 %v5375
        %5540 = vmatmul.mubr.bf16.gmra.mrb[0].mxu0 %v5373
        %v5541 = vpop.f32.mrb[0].mxu0
        %v5542 = vadd.f32 %v5501, %v5541
        %v5543 = vpop.f32.mrb[0].mxu0
        %v5544 = vadd.f32 %v5503, %v5543
        %v5545 = vpop.f32.mrb[0].mxu0
        %v5546 = vpop.f32.mrb[0].mxu0
        %5547 = vdwg.mxu0
        %v5548 = vadd.f32 %v5144, %v5542
        %v5549 = vadd.f32 %v5145, %v5544
        %v5550 = vld [vmem:[%s294 + $0xd0] sm:$0xff]
        %v5551 = vld [vmem:[%s294 + $0xd8] sm:$0xff]
        %v5552 = vld [vmem:[%s251 + $0x1a00] sm:$0xff]
        %v5553 = vld [vmem:[%s251 + $0x1a08] sm:$0xff]
        %v5554 = vld [vmem:[%s251 + $0x1a10] sm:$0xff]
        %v5555 = vld [vmem:[%s251 + $0x1a18] sm:$0xff]
        %v5556 = vld [vmem:[%s251 + $0x1a20] sm:$0xff]
        %v5557 = vld [vmem:[%s251 + $0x1a28] sm:$0xff]
        %v5558 = vld [vmem:[%s251 + $0x1a30] sm:$0xff]
        %v5559 = vld [vmem:[%s251 + $0x1a38] sm:$0xff]
        %v5560 = vld [vmem:[%s251 + $0x1a40] sm:$0xff]
        %v5561 = vld [vmem:[%s251 + $0x1a48] sm:$0xff]
        %v5562 = vld [vmem:[%s251 + $0x1a50] sm:$0xff]
        %v5563 = vld [vmem:[%s251 + $0x1a58] sm:$0xff]
        %v5564 = vld [vmem:[%s251 + $0x1a60] sm:$0xff]
        %v5565 = vld [vmem:[%s251 + $0x1a68] sm:$0xff]
        %v5566 = vld [vmem:[%s251 + $0x1a70] sm:$0xff]
        %v5567 = vld [vmem:[%s251 + $0x1a78] sm:$0xff]
        %v5568 = vld [vmem:[%s251 + $0x1a80] sm:$0xff]
        %v5569 = vld [vmem:[%s251 + $0x1a88] sm:$0xff]
        %v5570 = vld [vmem:[%s251 + $0x1a90] sm:$0xff]
        %v5571 = vld [vmem:[%s251 + $0x1a98] sm:$0xff]
        %v5572 = vld [vmem:[%s251 + $0x1aa0] sm:$0xff]
        %v5573 = vld [vmem:[%s251 + $0x1aa8] sm:$0xff]
        %v5574 = vld [vmem:[%s251 + $0x1ab0] sm:$0xff]
        %v5575 = vld [vmem:[%s251 + $0x1ab8] sm:$0xff]
        %v5576 = vld [vmem:[%s251 + $0x1ac0] sm:$0xff]
        %v5577 = vld [vmem:[%s251 + $0x1ac8] sm:$0xff]
        %v5578 = vld [vmem:[%s251 + $0x1ad0] sm:$0xff]
        %v5579 = vld [vmem:[%s251 + $0x1ad8] sm:$0xff]
        %v5580 = vld [vmem:[%s251 + $0x1ae0] sm:$0xff]
        %v5581 = vld [vmem:[%s251 + $0x1ae8] sm:$0xff]
        %v5582 = vld [vmem:[%s251 + $0x1af0] sm:$0xff]
        %v5583 = vld [vmem:[%s251 + $0x1af8] sm:$0xff]
        %v5584 = vld [vmem:[%s251 + $0x1b00] sm:$0xff]
        %v5585 = vld [vmem:[%s251 + $0x1b08] sm:$0xff]
        %v5586 = vld [vmem:[%s251 + $0x1b10] sm:$0xff]
        %v5587 = vld [vmem:[%s251 + $0x1b18] sm:$0xff]
        %v5588 = vld [vmem:[%s251 + $0x1b20] sm:$0xff]
        %v5589 = vld [vmem:[%s251 + $0x1b28] sm:$0xff]
        %v5590 = vld [vmem:[%s251 + $0x1b30] sm:$0xff]
        %v5591 = vld [vmem:[%s251 + $0x1b38] sm:$0xff]
        %v5592 = vld [vmem:[%s251 + $0x1b40] sm:$0xff]
        %v5593 = vld [vmem:[%s251 + $0x1b48] sm:$0xff]
        %v5594 = vld [vmem:[%s251 + $0x1b50] sm:$0xff]
        %v5595 = vld [vmem:[%s251 + $0x1b58] sm:$0xff]
        %v5596 = vld [vmem:[%s251 + $0x1b60] sm:$0xff]
        %v5597 = vld [vmem:[%s251 + $0x1b68] sm:$0xff]
        %v5598 = vld [vmem:[%s251 + $0x1b70] sm:$0xff]
        %v5599 = vld [vmem:[%s251 + $0x1b78] sm:$0xff]
        %v5600 = vld [vmem:[%s251 + $0x1b80] sm:$0xff]
        %v5601 = vld [vmem:[%s251 + $0x1b88] sm:$0xff]
        %v5602 = vld [vmem:[%s251 + $0x1b90] sm:$0xff]
        %v5603 = vld [vmem:[%s251 + $0x1b98] sm:$0xff]
        %v5604 = vld [vmem:[%s251 + $0x1ba0] sm:$0xff]
        %v5605 = vld [vmem:[%s251 + $0x1ba8] sm:$0xff]
        %v5606 = vld [vmem:[%s251 + $0x1bb0] sm:$0xff]
        %v5607 = vld [vmem:[%s251 + $0x1bb8] sm:$0xff]
        %v5608 = vld [vmem:[%s251 + $0x1bc0] sm:$0xff]
        %v5609 = vld [vmem:[%s251 + $0x1bc8] sm:$0xff]
        %v5610 = vld [vmem:[%s251 + $0x1bd0] sm:$0xff]
        %v5611 = vld [vmem:[%s251 + $0x1bd8] sm:$0xff]
        %v5612 = vld [vmem:[%s251 + $0x1be0] sm:$0xff]
        %v5613 = vld [vmem:[%s251 + $0x1be8] sm:$0xff]
        %v5614 = vld [vmem:[%s251 + $0x1bf0] sm:$0xff]
        %v5615 = vld [vmem:[%s251 + $0x1bf8] sm:$0xff]
        %v5616 = vunpack.c.l.s8.bf16 %v5552
        %v5617 = vunpack.c.l.s8.bf16 %v5553
        %v5618 = vunpack.c.h.s8.bf16 %v5552
        %v5619 = vunpack.c.h.s8.bf16 %v5553
        %v5620 = vunpack.c.l.s8.bf16 %v5554
        %v5621 = vunpack.c.l.s8.bf16 %v5555
        %v5622 = vunpack.c.h.s8.bf16 %v5554
        %v5623 = vunpack.c.h.s8.bf16 %v5555
        %v5624 = vunpack.c.l.s8.bf16 %v5556
        %v5625 = vunpack.c.l.s8.bf16 %v5557
        %v5626 = vunpack.c.h.s8.bf16 %v5556
        %v5627 = vunpack.c.h.s8.bf16 %v5557
        %v5628 = vunpack.c.l.s8.bf16 %v5558
        %v5629 = vunpack.c.l.s8.bf16 %v5559
        %v5630 = vunpack.c.h.s8.bf16 %v5558
        %v5631 = vunpack.c.h.s8.bf16 %v5559
        %v5632 = vunpack.c.l.s8.bf16 %v5560
        %v5633 = vunpack.c.l.s8.bf16 %v5561
        %v5634 = vunpack.c.h.s8.bf16 %v5560
        %v5635 = vunpack.c.h.s8.bf16 %v5561
        %v5636 = vunpack.c.l.s8.bf16 %v5562
        %v5637 = vunpack.c.l.s8.bf16 %v5563
        %v5638 = vunpack.c.h.s8.bf16 %v5562
        %v5639 = vunpack.c.h.s8.bf16 %v5563
        %v5640 = vunpack.c.l.s8.bf16 %v5564
        %v5641 = vunpack.c.l.s8.bf16 %v5565
        %v5642 = vunpack.c.h.s8.bf16 %v5564
        %v5643 = vunpack.c.h.s8.bf16 %v5565
        %v5644 = vunpack.c.l.s8.bf16 %v5566
        %v5645 = vunpack.c.l.s8.bf16 %v5567
        %v5646 = vunpack.c.h.s8.bf16 %v5566
        %v5647 = vunpack.c.h.s8.bf16 %v5567
        %v5648 = vunpack.c.l.s8.bf16 %v5568
        %v5649 = vunpack.c.l.s8.bf16 %v5569
        %v5650 = vunpack.c.h.s8.bf16 %v5568
        %v5651 = vunpack.c.h.s8.bf16 %v5569
        %v5652 = vunpack.c.l.s8.bf16 %v5570
        %v5653 = vunpack.c.l.s8.bf16 %v5571
        %v5654 = vunpack.c.h.s8.bf16 %v5570
        %v5655 = vunpack.c.h.s8.bf16 %v5571
        %v5656 = vunpack.c.l.s8.bf16 %v5572
        %v5657 = vunpack.c.l.s8.bf16 %v5573
        %v5658 = vunpack.c.h.s8.bf16 %v5572
        %v5659 = vunpack.c.h.s8.bf16 %v5573
        %v5660 = vunpack.c.l.s8.bf16 %v5574
        %v5661 = vunpack.c.l.s8.bf16 %v5575
        %v5662 = vunpack.c.h.s8.bf16 %v5574
        %v5663 = vunpack.c.h.s8.bf16 %v5575
        %v5664 = vunpack.c.l.s8.bf16 %v5576
        %v5665 = vunpack.c.l.s8.bf16 %v5577
        %v5666 = vunpack.c.h.s8.bf16 %v5576
        %v5667 = vunpack.c.h.s8.bf16 %v5577
        %v5668 = vunpack.c.l.s8.bf16 %v5578
        %v5669 = vunpack.c.l.s8.bf16 %v5579
        %v5670 = vunpack.c.h.s8.bf16 %v5578
        %v5671 = vunpack.c.h.s8.bf16 %v5579
        %v5672 = vunpack.c.l.s8.bf16 %v5580
        %v5673 = vunpack.c.l.s8.bf16 %v5581
        %v5674 = vunpack.c.h.s8.bf16 %v5580
        %v5675 = vunpack.c.h.s8.bf16 %v5581
        %v5676 = vunpack.c.l.s8.bf16 %v5582
        %v5677 = vunpack.c.l.s8.bf16 %v5583
        %v5678 = vunpack.c.h.s8.bf16 %v5582
        %v5679 = vunpack.c.h.s8.bf16 %v5583
        %v5680 = vunpack.c.l.s8.bf16 %v5584
        %v5681 = vunpack.c.l.s8.bf16 %v5585
        %v5682 = vunpack.c.h.s8.bf16 %v5584
        %v5683 = vunpack.c.h.s8.bf16 %v5585
        %v5684 = vunpack.c.l.s8.bf16 %v5586
        %v5685 = vunpack.c.l.s8.bf16 %v5587
        %v5686 = vunpack.c.h.s8.bf16 %v5586
        %v5687 = vunpack.c.h.s8.bf16 %v5587
        %v5688 = vunpack.c.l.s8.bf16 %v5588
        %v5689 = vunpack.c.l.s8.bf16 %v5589
        %v5690 = vunpack.c.h.s8.bf16 %v5588
        %v5691 = vunpack.c.h.s8.bf16 %v5589
        %v5692 = vunpack.c.l.s8.bf16 %v5590
        %v5693 = vunpack.c.l.s8.bf16 %v5591
        %v5694 = vunpack.c.h.s8.bf16 %v5590
        %v5695 = vunpack.c.h.s8.bf16 %v5591
        %v5696 = vunpack.c.l.s8.bf16 %v5592
        %v5697 = vunpack.c.l.s8.bf16 %v5593
        %v5698 = vunpack.c.h.s8.bf16 %v5592
        %v5699 = vunpack.c.h.s8.bf16 %v5593
        %v5700 = vunpack.c.l.s8.bf16 %v5594
        %v5701 = vunpack.c.l.s8.bf16 %v5595
        %v5702 = vunpack.c.h.s8.bf16 %v5594
        %v5703 = vunpack.c.h.s8.bf16 %v5595
        %v5704 = vunpack.c.l.s8.bf16 %v5596
        %v5705 = vunpack.c.l.s8.bf16 %v5597
        %v5706 = vunpack.c.h.s8.bf16 %v5596
        %v5707 = vunpack.c.h.s8.bf16 %v5597
        %v5708 = vunpack.c.l.s8.bf16 %v5598
        %v5709 = vunpack.c.l.s8.bf16 %v5599
        %v5710 = vunpack.c.h.s8.bf16 %v5598
        %v5711 = vunpack.c.h.s8.bf16 %v5599
        %v5712 = vunpack.c.l.s8.bf16 %v5600
        %v5713 = vunpack.c.l.s8.bf16 %v5601
        %v5714 = vunpack.c.h.s8.bf16 %v5600
        %v5715 = vunpack.c.h.s8.bf16 %v5601
        %v5716 = vunpack.c.l.s8.bf16 %v5602
        %v5717 = vunpack.c.l.s8.bf16 %v5603
        %v5718 = vunpack.c.h.s8.bf16 %v5602
        %v5719 = vunpack.c.h.s8.bf16 %v5603
        %v5720 = vunpack.c.l.s8.bf16 %v5604
        %v5721 = vunpack.c.l.s8.bf16 %v5605
        %v5722 = vunpack.c.h.s8.bf16 %v5604
        %v5723 = vunpack.c.h.s8.bf16 %v5605
        %v5724 = vunpack.c.l.s8.bf16 %v5606
        %v5725 = vunpack.c.l.s8.bf16 %v5607
        %v5726 = vunpack.c.h.s8.bf16 %v5606
        %v5727 = vunpack.c.h.s8.bf16 %v5607
        %v5728 = vunpack.c.l.s8.bf16 %v5608
        %v5729 = vunpack.c.l.s8.bf16 %v5609
        %v5730 = vunpack.c.h.s8.bf16 %v5608
        %v5731 = vunpack.c.h.s8.bf16 %v5609
        %v5732 = vunpack.c.l.s8.bf16 %v5610
        %v5733 = vunpack.c.l.s8.bf16 %v5611
        %v5734 = vunpack.c.h.s8.bf16 %v5610
        %v5735 = vunpack.c.h.s8.bf16 %v5611
        %v5736 = vunpack.c.l.s8.bf16 %v5612
        %v5737 = vunpack.c.l.s8.bf16 %v5613
        %v5738 = vunpack.c.h.s8.bf16 %v5612
        %v5739 = vunpack.c.h.s8.bf16 %v5613
        %v5740 = vunpack.c.l.s8.bf16 %v5614
        %v5741 = vunpack.c.l.s8.bf16 %v5615
        %v5742 = vunpack.c.h.s8.bf16 %v5614
        %v5743 = vunpack.c.h.s8.bf16 %v5615
        %v5746 = vcombine.high %v5550, %v5550
        %v5748 = vunpack.c.l.s4 1983009808
        %v5749 = vunpack.c.0.s8 %v5748
        %v5750 = vlaneseq
        %v5751 = vshrl.u32 %v5750, 7
        %v5752 = vsub.s32 %v5749, %v5751
        %v5753 = vrot.slane %v5550, %v5752
        %v5755 = vunpack.c.l.s4 1983009808
        %v5756 = vunpack.c.0.s8 %v5755
        %v5757 = vlaneseq
        %v5758 = vshrl.u32 %v5757, 7
        %v5759 = vsub.s32 %v5756, %v5758
        %v5760 = vrot.slane %v5746, %v5759
        %v5761 = vcombine.high %v5753, %v5753
        %v5762 = vcombine.high %v5760, %v5760
        %v5763 = vcombine.high %v5551, %v5551
        %v5765 = vunpack.c.l.s4 1983009808
        %v5766 = vunpack.c.0.s8 %v5765
        %v5767 = vlaneseq
        %v5768 = vshrl.u32 %v5767, 7
        %v5769 = vsub.s32 %v5766, %v5768
        %v5770 = vrot.slane %v5551, %v5769
        %v5772 = vunpack.c.l.s4 1983009808
        %v5773 = vunpack.c.0.s8 %v5772
        %v5774 = vlaneseq
        %v5775 = vshrl.u32 %v5774, 7
        %v5776 = vsub.s32 %v5773, %v5775
        %v5777 = vrot.slane %v5763, %v5776
        %v5778 = vcombine.high %v5770, %v5770
        %v5779 = vcombine.high %v5777, %v5777
        %5788 = vmatprep.subr.bf16.mxu0 %v5617
        %5789 = vmatpush1.bf16.msra.mxu0 %v5616
        %5790 = vmatprep.subr.bf16.mxu0 %v5619
        %5791 = vmatpush1.bf16.msra.mxu0 %v5618
        %5792 = vmatprep.subr.bf16.mxu0 %v5621
        %5793 = vmatpush1.bf16.msra.mxu0 %v5620
        %5794 = vmatprep.subr.bf16.mxu0 %v5623
        %5795 = vmatpush1.bf16.msra.mxu0 %v5622
        %5796 = vmatprep.subr.bf16.mxu0 %v5625
        %5797 = vmatpush1.bf16.msra.mxu0 %v5624
        %5798 = vmatprep.subr.bf16.mxu0 %v5627
        %5799 = vmatpush1.bf16.msra.mxu0 %v5626
        %5800 = vmatprep.subr.bf16.mxu0 %v5629
        %5801 = vmatpush1.bf16.msra.mxu0 %v5628
        %5802 = vmatprep.subr.bf16.mxu0 %v5631
        %5803 = vmatpush1.bf16.msra.mxu0 %v5630
        %5804 = vmatprep.subr.bf16.mxu0 %v5633
        %5805 = vmatpush1.bf16.msra.mxu0 %v5632
        %5806 = vmatprep.subr.bf16.mxu0 %v5635
        %5807 = vmatpush1.bf16.msra.mxu0 %v5634
        %5808 = vmatprep.subr.bf16.mxu0 %v5637
        %5809 = vmatpush1.bf16.msra.mxu0 %v5636
        %5810 = vmatprep.subr.bf16.mxu0 %v5639
        %5811 = vmatpush1.bf16.msra.mxu0 %v5638
        %5812 = vmatprep.subr.bf16.mxu0 %v5641
        %5813 = vmatpush1.bf16.msra.mxu0 %v5640
        %5814 = vmatprep.subr.bf16.mxu0 %v5643
        %5815 = vmatpush1.bf16.msra.mxu0 %v5642
        %5816 = vmatprep.subr.bf16.mxu0 %v5645
        %5817 = vmatpush1.bf16.msra.mxu0 %v5644
        %5818 = vmatprep.subr.bf16.mxu0 %v5647
        %5819 = vmatpush1.bf16.msra.mxu0 %v5646
        %5820 = vmatprep.mubr.bf16.mxu0 %v5761
        %5821 = vmatmul.mubr.bf16.gmra.mrb[0].mxu0 %v5753
        %v5822 = vpop.f32.mrb[0].mxu0
        %v5823 = vadd.f32 0.0, %v5822
        %v5824 = vpop.f32.mrb[0].mxu0
        %v5825 = vadd.f32 0.0, %v5824
        %v5826 = vpop.f32.mrb[0].mxu0
        %v5827 = vpop.f32.mrb[0].mxu0
        %5828 = vdwg.mxu0
        %5829 = vmatprep.subr.bf16.mxu0 %v5649
        %5830 = vmatpush1.bf16.msra.mxu0 %v5648
        %5831 = vmatprep.subr.bf16.mxu0 %v5651
        %5832 = vmatpush1.bf16.msra.mxu0 %v5650
        %5833 = vmatprep.subr.bf16.mxu0 %v5653
        %5834 = vmatpush1.bf16.msra.mxu0 %v5652
        %5835 = vmatprep.subr.bf16.mxu0 %v5655
        %5836 = vmatpush1.bf16.msra.mxu0 %v5654
        %5837 = vmatprep.subr.bf16.mxu0 %v5657
        %5838 = vmatpush1.bf16.msra.mxu0 %v5656
        %5839 = vmatprep.subr.bf16.mxu0 %v5659
        %5840 = vmatpush1.bf16.msra.mxu0 %v5658
        %5841 = vmatprep.subr.bf16.mxu0 %v5661
        %5842 = vmatpush1.bf16.msra.mxu0 %v5660
        %5843 = vmatprep.subr.bf16.mxu0 %v5663
        %5844 = vmatpush1.bf16.msra.mxu0 %v5662
        %5845 = vmatprep.subr.bf16.mxu0 %v5665
        %5846 = vmatpush1.bf16.msra.mxu0 %v5664
        %5847 = vmatprep.subr.bf16.mxu0 %v5667
        %5848 = vmatpush1.bf16.msra.mxu0 %v5666
        %5849 = vmatprep.subr.bf16.mxu0 %v5669
        %5850 = vmatpush1.bf16.msra.mxu0 %v5668
        %5851 = vmatprep.subr.bf16.mxu0 %v5671
        %5852 = vmatpush1.bf16.msra.mxu0 %v5670
        %5853 = vmatprep.subr.bf16.mxu0 %v5673
        %5854 = vmatpush1.bf16.msra.mxu0 %v5672
        %5855 = vmatprep.subr.bf16.mxu0 %v5675
        %5856 = vmatpush1.bf16.msra.mxu0 %v5674
        %5857 = vmatprep.subr.bf16.mxu0 %v5677
        %5858 = vmatpush1.bf16.msra.mxu0 %v5676
        %5859 = vmatprep.subr.bf16.mxu0 %v5679
        %5860 = vmatpush1.bf16.msra.mxu0 %v5678
        %5861 = vmatprep.mubr.bf16.mxu0 %v5762
        %5862 = vmatmul.mubr.bf16.gmra.mrb[0].mxu0 %v5760
        %v5863 = vpop.f32.mrb[0].mxu0
        %v5864 = vadd.f32 %v5823, %v5863
        %v5865 = vpop.f32.mrb[0].mxu0
        %v5866 = vadd.f32 %v5825, %v5865
        %v5867 = vpop.f32.mrb[0].mxu0
        %v5868 = vpop.f32.mrb[0].mxu0
        %5869 = vdwg.mxu0
        %5870 = vmatprep.subr.bf16.mxu0 %v5681
        %5871 = vmatpush1.bf16.msra.mxu0 %v5680
        %5872 = vmatprep.subr.bf16.mxu0 %v5683
        %5873 = vmatpush1.bf16.msra.mxu0 %v5682
        %5874 = vmatprep.subr.bf16.mxu0 %v5685
        %5875 = vmatpush1.bf16.msra.mxu0 %v5684
        %5876 = vmatprep.subr.bf16.mxu0 %v5687
        %5877 = vmatpush1.bf16.msra.mxu0 %v5686
        %5878 = vmatprep.subr.bf16.mxu0 %v5689
        %5879 = vmatpush1.bf16.msra.mxu0 %v5688
        %5880 = vmatprep.subr.bf16.mxu0 %v5691
        %5881 = vmatpush1.bf16.msra.mxu0 %v5690
        %5882 = vmatprep.subr.bf16.mxu0 %v5693
        %5883 = vmatpush1.bf16.msra.mxu0 %v5692
        %5884 = vmatprep.subr.bf16.mxu0 %v5695
        %5885 = vmatpush1.bf16.msra.mxu0 %v5694
        %5886 = vmatprep.subr.bf16.mxu0 %v5697
        %5887 = vmatpush1.bf16.msra.mxu0 %v5696
        %5888 = vmatprep.subr.bf16.mxu0 %v5699
        %5889 = vmatpush1.bf16.msra.mxu0 %v5698
        %5890 = vmatprep.subr.bf16.mxu0 %v5701
        %5891 = vmatpush1.bf16.msra.mxu0 %v5700
        %5892 = vmatprep.subr.bf16.mxu0 %v5703
        %5893 = vmatpush1.bf16.msra.mxu0 %v5702
        %5894 = vmatprep.subr.bf16.mxu0 %v5705
        %5895 = vmatpush1.bf16.msra.mxu0 %v5704
        %5896 = vmatprep.subr.bf16.mxu0 %v5707
        %5897 = vmatpush1.bf16.msra.mxu0 %v5706
        %5898 = vmatprep.subr.bf16.mxu0 %v5709
        %5899 = vmatpush1.bf16.msra.mxu0 %v5708
        %5900 = vmatprep.subr.bf16.mxu0 %v5711
        %5901 = vmatpush1.bf16.msra.mxu0 %v5710
        %5902 = vmatprep.mubr.bf16.mxu0 %v5778
        %5903 = vmatmul.mubr.bf16.gmra.mrb[0].mxu0 %v5770
        %v5904 = vpop.f32.mrb[0].mxu0
        %v5905 = vadd.f32 %v5864, %v5904
        %v5906 = vpop.f32.mrb[0].mxu0
        %v5907 = vadd.f32 %v5866, %v5906
        %v5908 = vpop.f32.mrb[0].mxu0
        %v5909 = vpop.f32.mrb[0].mxu0
        %5910 = vdwg.mxu0
        %5911 = vmatprep.subr.bf16.mxu0 %v5713
        %5912 = vmatpush1.bf16.msra.mxu0 %v5712
        %5913 = vmatprep.subr.bf16.mxu0 %v5715
        %5914 = vmatpush1.bf16.msra.mxu0 %v5714
        %5915 = vmatprep.subr.bf16.mxu0 %v5717
        %5916 = vmatpush1.bf16.msra.mxu0 %v5716
        %5917 = vmatprep.subr.bf16.mxu0 %v5719
        %5918 = vmatpush1.bf16.msra.mxu0 %v5718
        %5919 = vmatprep.subr.bf16.mxu0 %v5721
        %5920 = vmatpush1.bf16.msra.mxu0 %v5720
        %5921 = vmatprep.subr.bf16.mxu0 %v5723
        %5922 = vmatpush1.bf16.msra.mxu0 %v5722
        %5923 = vmatprep.subr.bf16.mxu0 %v5725
        %5924 = vmatpush1.bf16.msra.mxu0 %v5724
        %5925 = vmatprep.subr.bf16.mxu0 %v5727
        %5926 = vmatpush1.bf16.msra.mxu0 %v5726
        %5927 = vmatprep.subr.bf16.mxu0 %v5729
        %5928 = vmatpush1.bf16.msra.mxu0 %v5728
        %5929 = vmatprep.subr.bf16.mxu0 %v5731
        %5930 = vmatpush1.bf16.msra.mxu0 %v5730
        %5931 = vmatprep.subr.bf16.mxu0 %v5733
        %5932 = vmatpush1.bf16.msra.mxu0 %v5732
        %5933 = vmatprep.subr.bf16.mxu0 %v5735
        %5934 = vmatpush1.bf16.msra.mxu0 %v5734
        %5935 = vmatprep.subr.bf16.mxu0 %v5737
        %5936 = vmatpush1.bf16.msra.mxu0 %v5736
        %5937 = vmatprep.subr.bf16.mxu0 %v5739
        %5938 = vmatpush1.bf16.msra.mxu0 %v5738
        %5939 = vmatprep.subr.bf16.mxu0 %v5741
        %5940 = vmatpush1.bf16.msra.mxu0 %v5740
        %5941 = vmatprep.subr.bf16.mxu0 %v5743
        %5942 = vmatpush1.bf16.msra.mxu0 %v5742
        %5943 = vmatprep.mubr.bf16.mxu0 %v5779
        %5944 = vmatmul.mubr.bf16.gmra.mrb[0].mxu0 %v5777
        %v5945 = vpop.f32.mrb[0].mxu0
        %v5946 = vadd.f32 %v5905, %v5945
        %v5947 = vpop.f32.mrb[0].mxu0
        %v5948 = vadd.f32 %v5907, %v5947
        %v5949 = vpop.f32.mrb[0].mxu0
        %v5950 = vpop.f32.mrb[0].mxu0
        %5951 = vdwg.mxu0
        %v5952 = vadd.f32 %v5548, %v5946
        %v5953 = vadd.f32 %v5549, %v5948
        %v5954 = vld [vmem:[%s294 + $0xe0] sm:$0xff]
        %v5955 = vld [vmem:[%s294 + $0xe8] sm:$0xff]
        %v5956 = vld [vmem:[%s251 + $0x1c00] sm:$0xff]
        %v5957 = vld [vmem:[%s251 + $0x1c08] sm:$0xff]
        %v5958 = vld [vmem:[%s251 + $0x1c10] sm:$0xff]
        %v5959 = vld [vmem:[%s251 + $0x1c18] sm:$0xff]
        %v5960 = vld [vmem:[%s251 + $0x1c20] sm:$0xff]
        %v5961 = vld [vmem:[%s251 + $0x1c28] sm:$0xff]
        %v5962 = vld [vmem:[%s251 + $0x1c30] sm:$0xff]
        %v5963 = vld [vmem:[%s251 + $0x1c38] sm:$0xff]
        %v5964 = vld [vmem:[%s251 + $0x1c40] sm:$0xff]
        %v5965 = vld [vmem:[%s251 + $0x1c48] sm:$0xff]
        %v5966 = vld [vmem:[%s251 + $0x1c50] sm:$0xff]
        %v5967 = vld [vmem:[%s251 + $0x1c58] sm:$0xff]
        %v5968 = vld [vmem:[%s251 + $0x1c60] sm:$0xff]
        %v5969 = vld [vmem:[%s251 + $0x1c68] sm:$0xff]
        %v5970 = vld [vmem:[%s251 + $0x1c70] sm:$0xff]
        %v5971 = vld [vmem:[%s251 + $0x1c78] sm:$0xff]
        %v5972 = vld [vmem:[%s251 + $0x1c80] sm:$0xff]
        %v5973 = vld [vmem:[%s251 + $0x1c88] sm:$0xff]
        %v5974 = vld [vmem:[%s251 + $0x1c90] sm:$0xff]
        %v5975 = vld [vmem:[%s251 + $0x1c98] sm:$0xff]
        %v5976 = vld [vmem:[%s251 + $0x1ca0] sm:$0xff]
        %v5977 = vld [vmem:[%s251 + $0x1ca8] sm:$0xff]
        %v5978 = vld [vmem:[%s251 + $0x1cb0] sm:$0xff]
        %v5979 = vld [vmem:[%s251 + $0x1cb8] sm:$0xff]
        %v5980 = vld [vmem:[%s251 + $0x1cc0] sm:$0xff]
        %v5981 = vld [vmem:[%s251 + $0x1cc8] sm:$0xff]
        %v5982 = vld [vmem:[%s251 + $0x1cd0] sm:$0xff]
        %v5983 = vld [vmem:[%s251 + $0x1cd8] sm:$0xff]
        %v5984 = vld [vmem:[%s251 + $0x1ce0] sm:$0xff]
        %v5985 = vld [vmem:[%s251 + $0x1ce8] sm:$0xff]
        %v5986 = vld [vmem:[%s251 + $0x1cf0] sm:$0xff]
        %v5987 = vld [vmem:[%s251 + $0x1cf8] sm:$0xff]
        %v5988 = vld [vmem:[%s251 + $0x1d00] sm:$0xff]
        %v5989 = vld [vmem:[%s251 + $0x1d08] sm:$0xff]
        %v5990 = vld [vmem:[%s251 + $0x1d10] sm:$0xff]
        %v5991 = vld [vmem:[%s251 + $0x1d18] sm:$0xff]
        %v5992 = vld [vmem:[%s251 + $0x1d20] sm:$0xff]
        %v5993 = vld [vmem:[%s251 + $0x1d28] sm:$0xff]
        %v5994 = vld [vmem:[%s251 + $0x1d30] sm:$0xff]
        %v5995 = vld [vmem:[%s251 + $0x1d38] sm:$0xff]
        %v5996 = vld [vmem:[%s251 + $0x1d40] sm:$0xff]
        %v5997 = vld [vmem:[%s251 + $0x1d48] sm:$0xff]
        %v5998 = vld [vmem:[%s251 + $0x1d50] sm:$0xff]
        %v5999 = vld [vmem:[%s251 + $0x1d58] sm:$0xff]
        %v6000 = vld [vmem:[%s251 + $0x1d60] sm:$0xff]
        %v6001 = vld [vmem:[%s251 + $0x1d68] sm:$0xff]
        %v6002 = vld [vmem:[%s251 + $0x1d70] sm:$0xff]
        %v6003 = vld [vmem:[%s251 + $0x1d78] sm:$0xff]
        %v6004 = vld [vmem:[%s251 + $0x1d80] sm:$0xff]
        %v6005 = vld [vmem:[%s251 + $0x1d88] sm:$0xff]
        %v6006 = vld [vmem:[%s251 + $0x1d90] sm:$0xff]
        %v6007 = vld [vmem:[%s251 + $0x1d98] sm:$0xff]
        %v6008 = vld [vmem:[%s251 + $0x1da0] sm:$0xff]
        %v6009 = vld [vmem:[%s251 + $0x1da8] sm:$0xff]
        %v6010 = vld [vmem:[%s251 + $0x1db0] sm:$0xff]
        %v6011 = vld [vmem:[%s251 + $0x1db8] sm:$0xff]
        %v6012 = vld [vmem:[%s251 + $0x1dc0] sm:$0xff]
        %v6013 = vld [vmem:[%s251 + $0x1dc8] sm:$0xff]
        %v6014 = vld [vmem:[%s251 + $0x1dd0] sm:$0xff]
        %v6015 = vld [vmem:[%s251 + $0x1dd8] sm:$0xff]
        %v6016 = vld [vmem:[%s251 + $0x1de0] sm:$0xff]
        %v6017 = vld [vmem:[%s251 + $0x1de8] sm:$0xff]
        %v6018 = vld [vmem:[%s251 + $0x1df0] sm:$0xff]
        %v6019 = vld [vmem:[%s251 + $0x1df8] sm:$0xff]
        %v6020 = vunpack.c.l.s8.bf16 %v5956
        %v6021 = vunpack.c.l.s8.bf16 %v5957
        %v6022 = vunpack.c.h.s8.bf16 %v5956
        %v6023 = vunpack.c.h.s8.bf16 %v5957
        %v6024 = vunpack.c.l.s8.bf16 %v5958
        %v6025 = vunpack.c.l.s8.bf16 %v5959
        %v6026 = vunpack.c.h.s8.bf16 %v5958
        %v6027 = vunpack.c.h.s8.bf16 %v5959
        %v6028 = vunpack.c.l.s8.bf16 %v5960
        %v6029 = vunpack.c.l.s8.bf16 %v5961
        %v6030 = vunpack.c.h.s8.bf16 %v5960
        %v6031 = vunpack.c.h.s8.bf16 %v5961
        %v6032 = vunpack.c.l.s8.bf16 %v5962
        %v6033 = vunpack.c.l.s8.bf16 %v5963
        %v6034 = vunpack.c.h.s8.bf16 %v5962
        %v6035 = vunpack.c.h.s8.bf16 %v5963
        %v6036 = vunpack.c.l.s8.bf16 %v5964
        %v6037 = vunpack.c.l.s8.bf16 %v5965
        %v6038 = vunpack.c.h.s8.bf16 %v5964
        %v6039 = vunpack.c.h.s8.bf16 %v5965
        %v6040 = vunpack.c.l.s8.bf16 %v5966
        %v6041 = vunpack.c.l.s8.bf16 %v5967
        %v6042 = vunpack.c.h.s8.bf16 %v5966
        %v6043 = vunpack.c.h.s8.bf16 %v5967
        %v6044 = vunpack.c.l.s8.bf16 %v5968
        %v6045 = vunpack.c.l.s8.bf16 %v5969
        %v6046 = vunpack.c.h.s8.bf16 %v5968
        %v6047 = vunpack.c.h.s8.bf16 %v5969
        %v6048 = vunpack.c.l.s8.bf16 %v5970
        %v6049 = vunpack.c.l.s8.bf16 %v5971
        %v6050 = vunpack.c.h.s8.bf16 %v5970
        %v6051 = vunpack.c.h.s8.bf16 %v5971
        %v6052 = vunpack.c.l.s8.bf16 %v5972
        %v6053 = vunpack.c.l.s8.bf16 %v5973
        %v6054 = vunpack.c.h.s8.bf16 %v5972
        %v6055 = vunpack.c.h.s8.bf16 %v5973
        %v6056 = vunpack.c.l.s8.bf16 %v5974
        %v6057 = vunpack.c.l.s8.bf16 %v5975
        %v6058 = vunpack.c.h.s8.bf16 %v5974
        %v6059 = vunpack.c.h.s8.bf16 %v5975
        %v6060 = vunpack.c.l.s8.bf16 %v5976
        %v6061 = vunpack.c.l.s8.bf16 %v5977
        %v6062 = vunpack.c.h.s8.bf16 %v5976
        %v6063 = vunpack.c.h.s8.bf16 %v5977
        %v6064 = vunpack.c.l.s8.bf16 %v5978
        %v6065 = vunpack.c.l.s8.bf16 %v5979
        %v6066 = vunpack.c.h.s8.bf16 %v5978
        %v6067 = vunpack.c.h.s8.bf16 %v5979
        %v6068 = vunpack.c.l.s8.bf16 %v5980
        %v6069 = vunpack.c.l.s8.bf16 %v5981
        %v6070 = vunpack.c.h.s8.bf16 %v5980
        %v6071 = vunpack.c.h.s8.bf16 %v5981
        %v6072 = vunpack.c.l.s8.bf16 %v5982
        %v6073 = vunpack.c.l.s8.bf16 %v5983
        %v6074 = vunpack.c.h.s8.bf16 %v5982
        %v6075 = vunpack.c.h.s8.bf16 %v5983
        %v6076 = vunpack.c.l.s8.bf16 %v5984
        %v6077 = vunpack.c.l.s8.bf16 %v5985
        %v6078 = vunpack.c.h.s8.bf16 %v5984
        %v6079 = vunpack.c.h.s8.bf16 %v5985
        %v6080 = vunpack.c.l.s8.bf16 %v5986
        %v6081 = vunpack.c.l.s8.bf16 %v5987
        %v6082 = vunpack.c.h.s8.bf16 %v5986
        %v6083 = vunpack.c.h.s8.bf16 %v5987
        %v6084 = vunpack.c.l.s8.bf16 %v5988
        %v6085 = vunpack.c.l.s8.bf16 %v5989
        %v6086 = vunpack.c.h.s8.bf16 %v5988
        %v6087 = vunpack.c.h.s8.bf16 %v5989
        %v6088 = vunpack.c.l.s8.bf16 %v5990
        %v6089 = vunpack.c.l.s8.bf16 %v5991
        %v6090 = vunpack.c.h.s8.bf16 %v5990
        %v6091 = vunpack.c.h.s8.bf16 %v5991
        %v6092 = vunpack.c.l.s8.bf16 %v5992
        %v6093 = vunpack.c.l.s8.bf16 %v5993
        %v6094 = vunpack.c.h.s8.bf16 %v5992
        %v6095 = vunpack.c.h.s8.bf16 %v5993
        %v6096 = vunpack.c.l.s8.bf16 %v5994
        %v6097 = vunpack.c.l.s8.bf16 %v5995
        %v6098 = vunpack.c.h.s8.bf16 %v5994
        %v6099 = vunpack.c.h.s8.bf16 %v5995
        %v6100 = vunpack.c.l.s8.bf16 %v5996
        %v6101 = vunpack.c.l.s8.bf16 %v5997
        %v6102 = vunpack.c.h.s8.bf16 %v5996
        %v6103 = vunpack.c.h.s8.bf16 %v5997
        %v6104 = vunpack.c.l.s8.bf16 %v5998
        %v6105 = vunpack.c.l.s8.bf16 %v5999
        %v6106 = vunpack.c.h.s8.bf16 %v5998
        %v6107 = vunpack.c.h.s8.bf16 %v5999
        %v6108 = vunpack.c.l.s8.bf16 %v6000
        %v6109 = vunpack.c.l.s8.bf16 %v6001
        %v6110 = vunpack.c.h.s8.bf16 %v6000
        %v6111 = vunpack.c.h.s8.bf16 %v6001
        %v6112 = vunpack.c.l.s8.bf16 %v6002
        %v6113 = vunpack.c.l.s8.bf16 %v6003
        %v6114 = vunpack.c.h.s8.bf16 %v6002
        %v6115 = vunpack.c.h.s8.bf16 %v6003
        %v6116 = vunpack.c.l.s8.bf16 %v6004
        %v6117 = vunpack.c.l.s8.bf16 %v6005
        %v6118 = vunpack.c.h.s8.bf16 %v6004
        %v6119 = vunpack.c.h.s8.bf16 %v6005
        %v6120 = vunpack.c.l.s8.bf16 %v6006
        %v6121 = vunpack.c.l.s8.bf16 %v6007
        %v6122 = vunpack.c.h.s8.bf16 %v6006
        %v6123 = vunpack.c.h.s8.bf16 %v6007
        %v6124 = vunpack.c.l.s8.bf16 %v6008
        %v6125 = vunpack.c.l.s8.bf16 %v6009
        %v6126 = vunpack.c.h.s8.bf16 %v6008
        %v6127 = vunpack.c.h.s8.bf16 %v6009
        %v6128 = vunpack.c.l.s8.bf16 %v6010
        %v6129 = vunpack.c.l.s8.bf16 %v6011
        %v6130 = vunpack.c.h.s8.bf16 %v6010
        %v6131 = vunpack.c.h.s8.bf16 %v6011
        %v6132 = vunpack.c.l.s8.bf16 %v6012
        %v6133 = vunpack.c.l.s8.bf16 %v6013
        %v6134 = vunpack.c.h.s8.bf16 %v6012
        %v6135 = vunpack.c.h.s8.bf16 %v6013
        %v6136 = vunpack.c.l.s8.bf16 %v6014
        %v6137 = vunpack.c.l.s8.bf16 %v6015
        %v6138 = vunpack.c.h.s8.bf16 %v6014
        %v6139 = vunpack.c.h.s8.bf16 %v6015
        %v6140 = vunpack.c.l.s8.bf16 %v6016
        %v6141 = vunpack.c.l.s8.bf16 %v6017
        %v6142 = vunpack.c.h.s8.bf16 %v6016
        %v6143 = vunpack.c.h.s8.bf16 %v6017
        %v6144 = vunpack.c.l.s8.bf16 %v6018
        %v6145 = vunpack.c.l.s8.bf16 %v6019
        %v6146 = vunpack.c.h.s8.bf16 %v6018
        %v6147 = vunpack.c.h.s8.bf16 %v6019
        %v6150 = vcombine.high %v5954, %v5954
        %v6152 = vunpack.c.l.s4 1983009808
        %v6153 = vunpack.c.0.s8 %v6152
        %v6154 = vlaneseq
        %v6155 = vshrl.u32 %v6154, 7
        %v6156 = vsub.s32 %v6153, %v6155
        %v6157 = vrot.slane %v5954, %v6156
        %v6159 = vunpack.c.l.s4 1983009808
        %v6160 = vunpack.c.0.s8 %v6159
        %v6161 = vlaneseq
        %v6162 = vshrl.u32 %v6161, 7
        %v6163 = vsub.s32 %v6160, %v6162
        %v6164 = vrot.slane %v6150, %v6163
        %v6165 = vcombine.high %v6157, %v6157
        %v6166 = vcombine.high %v6164, %v6164
        %v6167 = vcombine.high %v5955, %v5955
        %v6169 = vunpack.c.l.s4 1983009808
        %v6170 = vunpack.c.0.s8 %v6169
        %v6171 = vlaneseq
        %v6172 = vshrl.u32 %v6171, 7
        %v6173 = vsub.s32 %v6170, %v6172
        %v6174 = vrot.slane %v5955, %v6173
        %v6176 = vunpack.c.l.s4 1983009808
        %v6177 = vunpack.c.0.s8 %v6176
        %v6178 = vlaneseq
        %v6179 = vshrl.u32 %v6178, 7
        %v6180 = vsub.s32 %v6177, %v6179
        %v6181 = vrot.slane %v6167, %v6180
        %v6182 = vcombine.high %v6174, %v6174
        %v6183 = vcombine.high %v6181, %v6181
        %6192 = vmatprep.subr.bf16.mxu0 %v6021
        %6193 = vmatpush1.bf16.msra.mxu0 %v6020
        %6194 = vmatprep.subr.bf16.mxu0 %v6023
        %6195 = vmatpush1.bf16.msra.mxu0 %v6022
        %6196 = vmatprep.subr.bf16.mxu0 %v6025
        %6197 = vmatpush1.bf16.msra.mxu0 %v6024
        %6198 = vmatprep.subr.bf16.mxu0 %v6027
        %6199 = vmatpush1.bf16.msra.mxu0 %v6026
        %6200 = vmatprep.subr.bf16.mxu0 %v6029
        %6201 = vmatpush1.bf16.msra.mxu0 %v6028
        %6202 = vmatprep.subr.bf16.mxu0 %v6031
        %6203 = vmatpush1.bf16.msra.mxu0 %v6030
        %6204 = vmatprep.subr.bf16.mxu0 %v6033
        %6205 = vmatpush1.bf16.msra.mxu0 %v6032
        %6206 = vmatprep.subr.bf16.mxu0 %v6035
        %6207 = vmatpush1.bf16.msra.mxu0 %v6034
        %6208 = vmatprep.subr.bf16.mxu0 %v6037
        %6209 = vmatpush1.bf16.msra.mxu0 %v6036
        %6210 = vmatprep.subr.bf16.mxu0 %v6039
        %6211 = vmatpush1.bf16.msra.mxu0 %v6038
        %6212 = vmatprep.subr.bf16.mxu0 %v6041
        %6213 = vmatpush1.bf16.msra.mxu0 %v6040
        %6214 = vmatprep.subr.bf16.mxu0 %v6043
        %6215 = vmatpush1.bf16.msra.mxu0 %v6042
        %6216 = vmatprep.subr.bf16.mxu0 %v6045
        %6217 = vmatpush1.bf16.msra.mxu0 %v6044
        %6218 = vmatprep.subr.bf16.mxu0 %v6047
        %6219 = vmatpush1.bf16.msra.mxu0 %v6046
        %6220 = vmatprep.subr.bf16.mxu0 %v6049
        %6221 = vmatpush1.bf16.msra.mxu0 %v6048
        %6222 = vmatprep.subr.bf16.mxu0 %v6051
        %6223 = vmatpush1.bf16.msra.mxu0 %v6050
        %6224 = vmatprep.mubr.bf16.mxu0 %v6165
        %6225 = vmatmul.mubr.bf16.gmra.mrb[0].mxu0 %v6157
        %v6226 = vpop.f32.mrb[0].mxu0
        %v6227 = vadd.f32 0.0, %v6226
        %v6228 = vpop.f32.mrb[0].mxu0
        %v6229 = vadd.f32 0.0, %v6228
        %v6230 = vpop.f32.mrb[0].mxu0
        %v6231 = vpop.f32.mrb[0].mxu0
        %6232 = vdwg.mxu0
        %6233 = vmatprep.subr.bf16.mxu0 %v6053
        %6234 = vmatpush1.bf16.msra.mxu0 %v6052
        %6235 = vmatprep.subr.bf16.mxu0 %v6055
        %6236 = vmatpush1.bf16.msra.mxu0 %v6054
        %6237 = vmatprep.subr.bf16.mxu0 %v6057
        %6238 = vmatpush1.bf16.msra.mxu0 %v6056
        %6239 = vmatprep.subr.bf16.mxu0 %v6059
        %6240 = vmatpush1.bf16.msra.mxu0 %v6058
        %6241 = vmatprep.subr.bf16.mxu0 %v6061
        %6242 = vmatpush1.bf16.msra.mxu0 %v6060
        %6243 = vmatprep.subr.bf16.mxu0 %v6063
        %6244 = vmatpush1.bf16.msra.mxu0 %v6062
        %6245 = vmatprep.subr.bf16.mxu0 %v6065
        %6246 = vmatpush1.bf16.msra.mxu0 %v6064
        %6247 = vmatprep.subr.bf16.mxu0 %v6067
        %6248 = vmatpush1.bf16.msra.mxu0 %v6066
        %6249 = vmatprep.subr.bf16.mxu0 %v6069
        %6250 = vmatpush1.bf16.msra.mxu0 %v6068
        %6251 = vmatprep.subr.bf16.mxu0 %v6071
        %6252 = vmatpush1.bf16.msra.mxu0 %v6070
        %6253 = vmatprep.subr.bf16.mxu0 %v6073
        %6254 = vmatpush1.bf16.msra.mxu0 %v6072
        %6255 = vmatprep.subr.bf16.mxu0 %v6075
        %6256 = vmatpush1.bf16.msra.mxu0 %v6074
        %6257 = vmatprep.subr.bf16.mxu0 %v6077
        %6258 = vmatpush1.bf16.msra.mxu0 %v6076
        %6259 = vmatprep.subr.bf16.mxu0 %v6079
        %6260 = vmatpush1.bf16.msra.mxu0 %v6078
        %6261 = vmatprep.subr.bf16.mxu0 %v6081
        %6262 = vmatpush1.bf16.msra.mxu0 %v6080
        %6263 = vmatprep.subr.bf16.mxu0 %v6083
        %6264 = vmatpush1.bf16.msra.mxu0 %v6082
        %6265 = vmatprep.mubr.bf16.mxu0 %v6166
        %6266 = vmatmul.mubr.bf16.gmra.mrb[0].mxu0 %v6164
        %v6267 = vpop.f32.mrb[0].mxu0
        %v6268 = vadd.f32 %v6227, %v6267
        %v6269 = vpop.f32.mrb[0].mxu0
        %v6270 = vadd.f32 %v6229, %v6269
        %v6271 = vpop.f32.mrb[0].mxu0
        %v6272 = vpop.f32.mrb[0].mxu0
        %6273 = vdwg.mxu0
        %6274 = vmatprep.subr.bf16.mxu0 %v6085
        %6275 = vmatpush1.bf16.msra.mxu0 %v6084
        %6276 = vmatprep.subr.bf16.mxu0 %v6087
        %6277 = vmatpush1.bf16.msra.mxu0 %v6086
        %6278 = vmatprep.subr.bf16.mxu0 %v6089
        %6279 = vmatpush1.bf16.msra.mxu0 %v6088
        %6280 = vmatprep.subr.bf16.mxu0 %v6091
        %6281 = vmatpush1.bf16.msra.mxu0 %v6090
        %6282 = vmatprep.subr.bf16.mxu0 %v6093
        %6283 = vmatpush1.bf16.msra.mxu0 %v6092
        %6284 = vmatprep.subr.bf16.mxu0 %v6095
        %6285 = vmatpush1.bf16.msra.mxu0 %v6094
        %6286 = vmatprep.subr.bf16.mxu0 %v6097
        %6287 = vmatpush1.bf16.msra.mxu0 %v6096
        %6288 = vmatprep.subr.bf16.mxu0 %v6099
        %6289 = vmatpush1.bf16.msra.mxu0 %v6098
        %6290 = vmatprep.subr.bf16.mxu0 %v6101
        %6291 = vmatpush1.bf16.msra.mxu0 %v6100
        %6292 = vmatprep.subr.bf16.mxu0 %v6103
        %6293 = vmatpush1.bf16.msra.mxu0 %v6102
        %6294 = vmatprep.subr.bf16.mxu0 %v6105
        %6295 = vmatpush1.bf16.msra.mxu0 %v6104
        %6296 = vmatprep.subr.bf16.mxu0 %v6107
        %6297 = vmatpush1.bf16.msra.mxu0 %v6106
        %6298 = vmatprep.subr.bf16.mxu0 %v6109
        %6299 = vmatpush1.bf16.msra.mxu0 %v6108
        %6300 = vmatprep.subr.bf16.mxu0 %v6111
        %6301 = vmatpush1.bf16.msra.mxu0 %v6110
        %6302 = vmatprep.subr.bf16.mxu0 %v6113
        %6303 = vmatpush1.bf16.msra.mxu0 %v6112
        %6304 = vmatprep.subr.bf16.mxu0 %v6115
        %6305 = vmatpush1.bf16.msra.mxu0 %v6114
        %6306 = vmatprep.mubr.bf16.mxu0 %v6182
        %6307 = vmatmul.mubr.bf16.gmra.mrb[0].mxu0 %v6174
        %v6308 = vpop.f32.mrb[0].mxu0
        %v6309 = vadd.f32 %v6268, %v6308
        %v6310 = vpop.f32.mrb[0].mxu0
        %v6311 = vadd.f32 %v6270, %v6310
        %v6312 = vpop.f32.mrb[0].mxu0
        %v6313 = vpop.f32.mrb[0].mxu0
        %6314 = vdwg.mxu0
        %6315 = vmatprep.subr.bf16.mxu0 %v6117
        %6316 = vmatpush1.bf16.msra.mxu0 %v6116
        %6317 = vmatprep.subr.bf16.mxu0 %v6119
        %6318 = vmatpush1.bf16.msra.mxu0 %v6118
        %6319 = vmatprep.subr.bf16.mxu0 %v6121
        %6320 = vmatpush1.bf16.msra.mxu0 %v6120
        %6321 = vmatprep.subr.bf16.mxu0 %v6123
        %6322 = vmatpush1.bf16.msra.mxu0 %v6122
        %6323 = vmatprep.subr.bf16.mxu0 %v6125
        %6324 = vmatpush1.bf16.msra.mxu0 %v6124
        %6325 = vmatprep.subr.bf16.mxu0 %v6127
        %6326 = vmatpush1.bf16.msra.mxu0 %v6126
        %6327 = vmatprep.subr.bf16.mxu0 %v6129
        %6328 = vmatpush1.bf16.msra.mxu0 %v6128
        %6329 = vmatprep.subr.bf16.mxu0 %v6131
        %6330 = vmatpush1.bf16.msra.mxu0 %v6130
        %6331 = vmatprep.subr.bf16.mxu0 %v6133
        %6332 = vmatpush1.bf16.msra.mxu0 %v6132
        %6333 = vmatprep.subr.bf16.mxu0 %v6135
        %6334 = vmatpush1.bf16.msra.mxu0 %v6134
        %6335 = vmatprep.subr.bf16.mxu0 %v6137
        %6336 = vmatpush1.bf16.msra.mxu0 %v6136
        %6337 = vmatprep.subr.bf16.mxu0 %v6139
        %6338 = vmatpush1.bf16.msra.mxu0 %v6138
        %6339 = vmatprep.subr.bf16.mxu0 %v6141
        %6340 = vmatpush1.bf16.msra.mxu0 %v6140
        %6341 = vmatprep.subr.bf16.mxu0 %v6143
        %6342 = vmatpush1.bf16.msra.mxu0 %v6142
        %6343 = vmatprep.subr.bf16.mxu0 %v6145
        %6344 = vmatpush1.bf16.msra.mxu0 %v6144
        %6345 = vmatprep.subr.bf16.mxu0 %v6147
        %6346 = vmatpush1.bf16.msra.mxu0 %v6146
        %6347 = vmatprep.mubr.bf16.mxu0 %v6183
        %6348 = vmatmul.mubr.bf16.gmra.mrb[0].mxu0 %v6181
        %v6349 = vpop.f32.mrb[0].mxu0
        %v6350 = vadd.f32 %v6309, %v6349
        %v6351 = vpop.f32.mrb[0].mxu0
        %v6352 = vadd.f32 %v6311, %v6351
        %v6353 = vpop.f32.mrb[0].mxu0
        %v6354 = vpop.f32.mrb[0].mxu0
        %6355 = vdwg.mxu0
        %v6356 = vadd.f32 %v5952, %v6350
        %v6357 = vadd.f32 %v5953, %v6352
        %v6358 = vld [vmem:[%s294 + $0xf0] sm:$0xff]
        %v6359 = vld [vmem:[%s294 + $0xf8] sm:$0xff]
        %v6360 = vld [vmem:[%s251 + $0x1e00] sm:$0xff]
        %v6361 = vld [vmem:[%s251 + $0x1e08] sm:$0xff]
        %v6362 = vld [vmem:[%s251 + $0x1e10] sm:$0xff]
        %v6363 = vld [vmem:[%s251 + $0x1e18] sm:$0xff]
        %v6364 = vld [vmem:[%s251 + $0x1e20] sm:$0xff]
        %v6365 = vld [vmem:[%s251 + $0x1e28] sm:$0xff]
        %v6366 = vld [vmem:[%s251 + $0x1e30] sm:$0xff]
        %v6367 = vld [vmem:[%s251 + $0x1e38] sm:$0xff]
        %v6368 = vld [vmem:[%s251 + $0x1e40] sm:$0xff]
        %v6369 = vld [vmem:[%s251 + $0x1e48] sm:$0xff]
        %v6370 = vld [vmem:[%s251 + $0x1e50] sm:$0xff]
        %v6371 = vld [vmem:[%s251 + $0x1e58] sm:$0xff]
        %v6372 = vld [vmem:[%s251 + $0x1e60] sm:$0xff]
        %v6373 = vld [vmem:[%s251 + $0x1e68] sm:$0xff]
        %v6374 = vld [vmem:[%s251 + $0x1e70] sm:$0xff]
        %v6375 = vld [vmem:[%s251 + $0x1e78] sm:$0xff]
        %v6376 = vld [vmem:[%s251 + $0x1e80] sm:$0xff]
        %v6377 = vld [vmem:[%s251 + $0x1e88] sm:$0xff]
        %v6378 = vld [vmem:[%s251 + $0x1e90] sm:$0xff]
        %v6379 = vld [vmem:[%s251 + $0x1e98] sm:$0xff]
        %v6380 = vld [vmem:[%s251 + $0x1ea0] sm:$0xff]
        %v6381 = vld [vmem:[%s251 + $0x1ea8] sm:$0xff]
        %v6382 = vld [vmem:[%s251 + $0x1eb0] sm:$0xff]
        %v6383 = vld [vmem:[%s251 + $0x1eb8] sm:$0xff]
        %v6384 = vld [vmem:[%s251 + $0x1ec0] sm:$0xff]
        %v6385 = vld [vmem:[%s251 + $0x1ec8] sm:$0xff]
        %v6386 = vld [vmem:[%s251 + $0x1ed0] sm:$0xff]
        %v6387 = vld [vmem:[%s251 + $0x1ed8] sm:$0xff]
        %v6388 = vld [vmem:[%s251 + $0x1ee0] sm:$0xff]
        %v6389 = vld [vmem:[%s251 + $0x1ee8] sm:$0xff]
        %v6390 = vld [vmem:[%s251 + $0x1ef0] sm:$0xff]
        %v6391 = vld [vmem:[%s251 + $0x1ef8] sm:$0xff]
        %v6392 = vld [vmem:[%s251 + $0x1f00] sm:$0xff]
        %v6393 = vld [vmem:[%s251 + $0x1f08] sm:$0xff]
        %v6394 = vld [vmem:[%s251 + $0x1f10] sm:$0xff]
        %v6395 = vld [vmem:[%s251 + $0x1f18] sm:$0xff]
        %v6396 = vld [vmem:[%s251 + $0x1f20] sm:$0xff]
        %v6397 = vld [vmem:[%s251 + $0x1f28] sm:$0xff]
        %v6398 = vld [vmem:[%s251 + $0x1f30] sm:$0xff]
        %v6399 = vld [vmem:[%s251 + $0x1f38] sm:$0xff]
        %v6400 = vld [vmem:[%s251 + $0x1f40] sm:$0xff]
        %v6401 = vld [vmem:[%s251 + $0x1f48] sm:$0xff]
        %v6402 = vld [vmem:[%s251 + $0x1f50] sm:$0xff]
        %v6403 = vld [vmem:[%s251 + $0x1f58] sm:$0xff]
        %v6404 = vld [vmem:[%s251 + $0x1f60] sm:$0xff]
        %v6405 = vld [vmem:[%s251 + $0x1f68] sm:$0xff]
        %v6406 = vld [vmem:[%s251 + $0x1f70] sm:$0xff]
        %v6407 = vld [vmem:[%s251 + $0x1f78] sm:$0xff]
        %v6408 = vld [vmem:[%s251 + $0x1f80] sm:$0xff]
        %v6409 = vld [vmem:[%s251 + $0x1f88] sm:$0xff]
        %v6410 = vld [vmem:[%s251 + $0x1f90] sm:$0xff]
        %v6411 = vld [vmem:[%s251 + $0x1f98] sm:$0xff]
        %v6412 = vld [vmem:[%s251 + $0x1fa0] sm:$0xff]
        %v6413 = vld [vmem:[%s251 + $0x1fa8] sm:$0xff]
        %v6414 = vld [vmem:[%s251 + $0x1fb0] sm:$0xff]
        %v6415 = vld [vmem:[%s251 + $0x1fb8] sm:$0xff]
        %v6416 = vld [vmem:[%s251 + $0x1fc0] sm:$0xff]
        %v6417 = vld [vmem:[%s251 + $0x1fc8] sm:$0xff]
        %v6418 = vld [vmem:[%s251 + $0x1fd0] sm:$0xff]
        %v6419 = vld [vmem:[%s251 + $0x1fd8] sm:$0xff]
        %v6420 = vld [vmem:[%s251 + $0x1fe0] sm:$0xff]
        %v6421 = vld [vmem:[%s251 + $0x1fe8] sm:$0xff]
        %v6422 = vld [vmem:[%s251 + $0x1ff0] sm:$0xff]
        %v6423 = vld [vmem:[%s251 + $0x1ff8] sm:$0xff]
        %v6424 = vunpack.c.l.s8.bf16 %v6360
        %v6425 = vunpack.c.l.s8.bf16 %v6361
        %v6426 = vunpack.c.h.s8.bf16 %v6360
        %v6427 = vunpack.c.h.s8.bf16 %v6361
        %v6428 = vunpack.c.l.s8.bf16 %v6362
        %v6429 = vunpack.c.l.s8.bf16 %v6363
        %v6430 = vunpack.c.h.s8.bf16 %v6362
        %v6431 = vunpack.c.h.s8.bf16 %v6363
        %v6432 = vunpack.c.l.s8.bf16 %v6364
        %v6433 = vunpack.c.l.s8.bf16 %v6365
        %v6434 = vunpack.c.h.s8.bf16 %v6364
        %v6435 = vunpack.c.h.s8.bf16 %v6365
        %v6436 = vunpack.c.l.s8.bf16 %v6366
        %v6437 = vunpack.c.l.s8.bf16 %v6367
        %v6438 = vunpack.c.h.s8.bf16 %v6366
        %v6439 = vunpack.c.h.s8.bf16 %v6367
        %v6440 = vunpack.c.l.s8.bf16 %v6368
        %v6441 = vunpack.c.l.s8.bf16 %v6369
        %v6442 = vunpack.c.h.s8.bf16 %v6368
        %v6443 = vunpack.c.h.s8.bf16 %v6369
        %v6444 = vunpack.c.l.s8.bf16 %v6370
        %v6445 = vunpack.c.l.s8.bf16 %v6371
        %v6446 = vunpack.c.h.s8.bf16 %v6370
        %v6447 = vunpack.c.h.s8.bf16 %v6371
        %v6448 = vunpack.c.l.s8.bf16 %v6372
        %v6449 = vunpack.c.l.s8.bf16 %v6373
        %v6450 = vunpack.c.h.s8.bf16 %v6372
        %v6451 = vunpack.c.h.s8.bf16 %v6373
        %v6452 = vunpack.c.l.s8.bf16 %v6374
        %v6453 = vunpack.c.l.s8.bf16 %v6375
        %v6454 = vunpack.c.h.s8.bf16 %v6374
        %v6455 = vunpack.c.h.s8.bf16 %v6375
        %v6456 = vunpack.c.l.s8.bf16 %v6376
        %v6457 = vunpack.c.l.s8.bf16 %v6377
        %v6458 = vunpack.c.h.s8.bf16 %v6376
        %v6459 = vunpack.c.h.s8.bf16 %v6377
        %v6460 = vunpack.c.l.s8.bf16 %v6378
        %v6461 = vunpack.c.l.s8.bf16 %v6379
        %v6462 = vunpack.c.h.s8.bf16 %v6378
        %v6463 = vunpack.c.h.s8.bf16 %v6379
        %v6464 = vunpack.c.l.s8.bf16 %v6380
        %v6465 = vunpack.c.l.s8.bf16 %v6381
        %v6466 = vunpack.c.h.s8.bf16 %v6380
        %v6467 = vunpack.c.h.s8.bf16 %v6381
        %v6468 = vunpack.c.l.s8.bf16 %v6382
        %v6469 = vunpack.c.l.s8.bf16 %v6383
        %v6470 = vunpack.c.h.s8.bf16 %v6382
        %v6471 = vunpack.c.h.s8.bf16 %v6383
        %v6472 = vunpack.c.l.s8.bf16 %v6384
        %v6473 = vunpack.c.l.s8.bf16 %v6385
        %v6474 = vunpack.c.h.s8.bf16 %v6384
        %v6475 = vunpack.c.h.s8.bf16 %v6385
        %v6476 = vunpack.c.l.s8.bf16 %v6386
        %v6477 = vunpack.c.l.s8.bf16 %v6387
        %v6478 = vunpack.c.h.s8.bf16 %v6386
        %v6479 = vunpack.c.h.s8.bf16 %v6387
        %v6480 = vunpack.c.l.s8.bf16 %v6388
        %v6481 = vunpack.c.l.s8.bf16 %v6389
        %v6482 = vunpack.c.h.s8.bf16 %v6388
        %v6483 = vunpack.c.h.s8.bf16 %v6389
        %v6484 = vunpack.c.l.s8.bf16 %v6390
        %v6485 = vunpack.c.l.s8.bf16 %v6391
        %v6486 = vunpack.c.h.s8.bf16 %v6390
        %v6487 = vunpack.c.h.s8.bf16 %v6391
        %v6488 = vunpack.c.l.s8.bf16 %v6392
        %v6489 = vunpack.c.l.s8.bf16 %v6393
        %v6490 = vunpack.c.h.s8.bf16 %v6392
        %v6491 = vunpack.c.h.s8.bf16 %v6393
        %v6492 = vunpack.c.l.s8.bf16 %v6394
        %v6493 = vunpack.c.l.s8.bf16 %v6395
        %v6494 = vunpack.c.h.s8.bf16 %v6394
        %v6495 = vunpack.c.h.s8.bf16 %v6395
        %v6496 = vunpack.c.l.s8.bf16 %v6396
        %v6497 = vunpack.c.l.s8.bf16 %v6397
        %v6498 = vunpack.c.h.s8.bf16 %v6396
        %v6499 = vunpack.c.h.s8.bf16 %v6397
        %v6500 = vunpack.c.l.s8.bf16 %v6398
        %v6501 = vunpack.c.l.s8.bf16 %v6399
        %v6502 = vunpack.c.h.s8.bf16 %v6398
        %v6503 = vunpack.c.h.s8.bf16 %v6399
        %v6504 = vunpack.c.l.s8.bf16 %v6400
        %v6505 = vunpack.c.l.s8.bf16 %v6401
        %v6506 = vunpack.c.h.s8.bf16 %v6400
        %v6507 = vunpack.c.h.s8.bf16 %v6401
        %v6508 = vunpack.c.l.s8.bf16 %v6402
        %v6509 = vunpack.c.l.s8.bf16 %v6403
        %v6510 = vunpack.c.h.s8.bf16 %v6402
        %v6511 = vunpack.c.h.s8.bf16 %v6403
        %v6512 = vunpack.c.l.s8.bf16 %v6404
        %v6513 = vunpack.c.l.s8.bf16 %v6405
        %v6514 = vunpack.c.h.s8.bf16 %v6404
        %v6515 = vunpack.c.h.s8.bf16 %v6405
        %v6516 = vunpack.c.l.s8.bf16 %v6406
        %v6517 = vunpack.c.l.s8.bf16 %v6407
        %v6518 = vunpack.c.h.s8.bf16 %v6406
        %v6519 = vunpack.c.h.s8.bf16 %v6407
        %v6520 = vunpack.c.l.s8.bf16 %v6408
        %v6521 = vunpack.c.l.s8.bf16 %v6409
        %v6522 = vunpack.c.h.s8.bf16 %v6408
        %v6523 = vunpack.c.h.s8.bf16 %v6409
        %v6524 = vunpack.c.l.s8.bf16 %v6410
        %v6525 = vunpack.c.l.s8.bf16 %v6411
        %v6526 = vunpack.c.h.s8.bf16 %v6410
        %v6527 = vunpack.c.h.s8.bf16 %v6411
        %v6528 = vunpack.c.l.s8.bf16 %v6412
        %v6529 = vunpack.c.l.s8.bf16 %v6413
        %v6530 = vunpack.c.h.s8.bf16 %v6412
        %v6531 = vunpack.c.h.s8.bf16 %v6413
        %v6532 = vunpack.c.l.s8.bf16 %v6414
        %v6533 = vunpack.c.l.s8.bf16 %v6415
        %v6534 = vunpack.c.h.s8.bf16 %v6414
        %v6535 = vunpack.c.h.s8.bf16 %v6415
        %v6536 = vunpack.c.l.s8.bf16 %v6416
        %v6537 = vunpack.c.l.s8.bf16 %v6417
        %v6538 = vunpack.c.h.s8.bf16 %v6416
        %v6539 = vunpack.c.h.s8.bf16 %v6417
        %v6540 = vunpack.c.l.s8.bf16 %v6418
        %v6541 = vunpack.c.l.s8.bf16 %v6419
        %v6542 = vunpack.c.h.s8.bf16 %v6418
        %v6543 = vunpack.c.h.s8.bf16 %v6419
        %v6544 = vunpack.c.l.s8.bf16 %v6420
        %v6545 = vunpack.c.l.s8.bf16 %v6421
        %v6546 = vunpack.c.h.s8.bf16 %v6420
        %v6547 = vunpack.c.h.s8.bf16 %v6421
        %v6548 = vunpack.c.l.s8.bf16 %v6422
        %v6549 = vunpack.c.l.s8.bf16 %v6423
        %v6550 = vunpack.c.h.s8.bf16 %v6422
        %v6551 = vunpack.c.h.s8.bf16 %v6423
        %v6554 = vcombine.high %v6358, %v6358
        %v6556 = vunpack.c.l.s4 1983009808
        %v6557 = vunpack.c.0.s8 %v6556
        %v6558 = vlaneseq
        %v6559 = vshrl.u32 %v6558, 7
        %v6560 = vsub.s32 %v6557, %v6559
        %v6561 = vrot.slane %v6358, %v6560
        %v6563 = vunpack.c.l.s4 1983009808
        %v6564 = vunpack.c.0.s8 %v6563
        %v6565 = vlaneseq
        %v6566 = vshrl.u32 %v6565, 7
        %v6567 = vsub.s32 %v6564, %v6566
        %v6568 = vrot.slane %v6554, %v6567
        %v6569 = vcombine.high %v6561, %v6561
        %v6570 = vcombine.high %v6568, %v6568
        %v6571 = vcombine.high %v6359, %v6359
        %v6573 = vunpack.c.l.s4 1983009808
        %v6574 = vunpack.c.0.s8 %v6573
        %v6575 = vlaneseq
        %v6576 = vshrl.u32 %v6575, 7
        %v6577 = vsub.s32 %v6574, %v6576
        %v6578 = vrot.slane %v6359, %v6577
        %v6580 = vunpack.c.l.s4 1983009808
        %v6581 = vunpack.c.0.s8 %v6580
        %v6582 = vlaneseq
        %v6583 = vshrl.u32 %v6582, 7
        %v6584 = vsub.s32 %v6581, %v6583
        %v6585 = vrot.slane %v6571, %v6584
        %v6586 = vcombine.high %v6578, %v6578
        %v6587 = vcombine.high %v6585, %v6585
        %6596 = vmatprep.subr.bf16.mxu0 %v6425
        %6597 = vmatpush1.bf16.msra.mxu0 %v6424
        %6598 = vmatprep.subr.bf16.mxu0 %v6427
        %6599 = vmatpush1.bf16.msra.mxu0 %v6426
        %6600 = vmatprep.subr.bf16.mxu0 %v6429
        %6601 = vmatpush1.bf16.msra.mxu0 %v6428
        %6602 = vmatprep.subr.bf16.mxu0 %v6431
        %6603 = vmatpush1.bf16.msra.mxu0 %v6430
        %6604 = vmatprep.subr.bf16.mxu0 %v6433
        %6605 = vmatpush1.bf16.msra.mxu0 %v6432
        %6606 = vmatprep.subr.bf16.mxu0 %v6435
        %6607 = vmatpush1.bf16.msra.mxu0 %v6434
        %6608 = vmatprep.subr.bf16.mxu0 %v6437
        %6609 = vmatpush1.bf16.msra.mxu0 %v6436
        %6610 = vmatprep.subr.bf16.mxu0 %v6439
        %6611 = vmatpush1.bf16.msra.mxu0 %v6438
        %6612 = vmatprep.subr.bf16.mxu0 %v6441
        %6613 = vmatpush1.bf16.msra.mxu0 %v6440
        %6614 = vmatprep.subr.bf16.mxu0 %v6443
        %6615 = vmatpush1.bf16.msra.mxu0 %v6442
        %6616 = vmatprep.subr.bf16.mxu0 %v6445
        %6617 = vmatpush1.bf16.msra.mxu0 %v6444
        %6618 = vmatprep.subr.bf16.mxu0 %v6447
        %6619 = vmatpush1.bf16.msra.mxu0 %v6446
        %6620 = vmatprep.subr.bf16.mxu0 %v6449
        %6621 = vmatpush1.bf16.msra.mxu0 %v6448
        %6622 = vmatprep.subr.bf16.mxu0 %v6451
        %6623 = vmatpush1.bf16.msra.mxu0 %v6450
        %6624 = vmatprep.subr.bf16.mxu0 %v6453
        %6625 = vmatpush1.bf16.msra.mxu0 %v6452
        %6626 = vmatprep.subr.bf16.mxu0 %v6455
        %6627 = vmatpush1.bf16.msra.mxu0 %v6454
        %6628 = vmatprep.mubr.bf16.mxu0 %v6569
        %6629 = vmatmul.mubr.bf16.gmra.mrb[0].mxu0 %v6561
        %v6630 = vpop.f32.mrb[0].mxu0
        %v6631 = vadd.f32 0.0, %v6630
        %v6632 = vpop.f32.mrb[0].mxu0
        %v6633 = vadd.f32 0.0, %v6632
        %v6634 = vpop.f32.mrb[0].mxu0
        %v6635 = vpop.f32.mrb[0].mxu0
        %6636 = vdwg.mxu0
        %6637 = vmatprep.subr.bf16.mxu0 %v6457
        %6638 = vmatpush1.bf16.msra.mxu0 %v6456
        %6639 = vmatprep.subr.bf16.mxu0 %v6459
        %6640 = vmatpush1.bf16.msra.mxu0 %v6458
        %6641 = vmatprep.subr.bf16.mxu0 %v6461
        %6642 = vmatpush1.bf16.msra.mxu0 %v6460
        %6643 = vmatprep.subr.bf16.mxu0 %v6463
        %6644 = vmatpush1.bf16.msra.mxu0 %v6462
        %6645 = vmatprep.subr.bf16.mxu0 %v6465
        %6646 = vmatpush1.bf16.msra.mxu0 %v6464
        %6647 = vmatprep.subr.bf16.mxu0 %v6467
        %6648 = vmatpush1.bf16.msra.mxu0 %v6466
        %6649 = vmatprep.subr.bf16.mxu0 %v6469
        %6650 = vmatpush1.bf16.msra.mxu0 %v6468
        %6651 = vmatprep.subr.bf16.mxu0 %v6471
        %6652 = vmatpush1.bf16.msra.mxu0 %v6470
        %6653 = vmatprep.subr.bf16.mxu0 %v6473
        %6654 = vmatpush1.bf16.msra.mxu0 %v6472
        %6655 = vmatprep.subr.bf16.mxu0 %v6475
        %6656 = vmatpush1.bf16.msra.mxu0 %v6474
        %6657 = vmatprep.subr.bf16.mxu0 %v6477
        %6658 = vmatpush1.bf16.msra.mxu0 %v6476
        %6659 = vmatprep.subr.bf16.mxu0 %v6479
        %6660 = vmatpush1.bf16.msra.mxu0 %v6478
        %6661 = vmatprep.subr.bf16.mxu0 %v6481
        %6662 = vmatpush1.bf16.msra.mxu0 %v6480
        %6663 = vmatprep.subr.bf16.mxu0 %v6483
        %6664 = vmatpush1.bf16.msra.mxu0 %v6482
        %6665 = vmatprep.subr.bf16.mxu0 %v6485
        %6666 = vmatpush1.bf16.msra.mxu0 %v6484
        %6667 = vmatprep.subr.bf16.mxu0 %v6487
        %6668 = vmatpush1.bf16.msra.mxu0 %v6486
        %6669 = vmatprep.mubr.bf16.mxu0 %v6570
        %6670 = vmatmul.mubr.bf16.gmra.mrb[0].mxu0 %v6568
        %v6671 = vpop.f32.mrb[0].mxu0
        %v6672 = vadd.f32 %v6631, %v6671
        %v6673 = vpop.f32.mrb[0].mxu0
        %v6674 = vadd.f32 %v6633, %v6673
        %v6675 = vpop.f32.mrb[0].mxu0
        %v6676 = vpop.f32.mrb[0].mxu0
        %6677 = vdwg.mxu0
        %6678 = vmatprep.subr.bf16.mxu0 %v6489
        %6679 = vmatpush1.bf16.msra.mxu0 %v6488
        %6680 = vmatprep.subr.bf16.mxu0 %v6491
        %6681 = vmatpush1.bf16.msra.mxu0 %v6490
        %6682 = vmatprep.subr.bf16.mxu0 %v6493
        %6683 = vmatpush1.bf16.msra.mxu0 %v6492
        %6684 = vmatprep.subr.bf16.mxu0 %v6495
        %6685 = vmatpush1.bf16.msra.mxu0 %v6494
        %6686 = vmatprep.subr.bf16.mxu0 %v6497
        %6687 = vmatpush1.bf16.msra.mxu0 %v6496
        %6688 = vmatprep.subr.bf16.mxu0 %v6499
        %6689 = vmatpush1.bf16.msra.mxu0 %v6498
        %6690 = vmatprep.subr.bf16.mxu0 %v6501
        %6691 = vmatpush1.bf16.msra.mxu0 %v6500
        %6692 = vmatprep.subr.bf16.mxu0 %v6503
        %6693 = vmatpush1.bf16.msra.mxu0 %v6502
        %6694 = vmatprep.subr.bf16.mxu0 %v6505
        %6695 = vmatpush1.bf16.msra.mxu0 %v6504
        %6696 = vmatprep.subr.bf16.mxu0 %v6507
        %6697 = vmatpush1.bf16.msra.mxu0 %v6506
        %6698 = vmatprep.subr.bf16.mxu0 %v6509
        %6699 = vmatpush1.bf16.msra.mxu0 %v6508
        %6700 = vmatprep.subr.bf16.mxu0 %v6511
        %6701 = vmatpush1.bf16.msra.mxu0 %v6510
        %6702 = vmatprep.subr.bf16.mxu0 %v6513
        %6703 = vmatpush1.bf16.msra.mxu0 %v6512
        %6704 = vmatprep.subr.bf16.mxu0 %v6515
        %6705 = vmatpush1.bf16.msra.mxu0 %v6514
        %6706 = vmatprep.subr.bf16.mxu0 %v6517
        %6707 = vmatpush1.bf16.msra.mxu0 %v6516
        %6708 = vmatprep.subr.bf16.mxu0 %v6519
        %6709 = vmatpush1.bf16.msra.mxu0 %v6518
        %6710 = vmatprep.mubr.bf16.mxu0 %v6586
        %6711 = vmatmul.mubr.bf16.gmra.mrb[0].mxu0 %v6578
        %v6712 = vpop.f32.mrb[0].mxu0
        %v6713 = vadd.f32 %v6672, %v6712
        %v6714 = vpop.f32.mrb[0].mxu0
        %v6715 = vadd.f32 %v6674, %v6714
        %v6716 = vpop.f32.mrb[0].mxu0
        %v6717 = vpop.f32.mrb[0].mxu0
        %6718 = vdwg.mxu0
        %6719 = vmatprep.subr.bf16.mxu0 %v6521
        %6720 = vmatpush1.bf16.msra.mxu0 %v6520
        %6721 = vmatprep.subr.bf16.mxu0 %v6523
        %6722 = vmatpush1.bf16.msra.mxu0 %v6522
        %6723 = vmatprep.subr.bf16.mxu0 %v6525
        %6724 = vmatpush1.bf16.msra.mxu0 %v6524
        %6725 = vmatprep.subr.bf16.mxu0 %v6527
        %6726 = vmatpush1.bf16.msra.mxu0 %v6526
        %6727 = vmatprep.subr.bf16.mxu0 %v6529
        %6728 = vmatpush1.bf16.msra.mxu0 %v6528
        %6729 = vmatprep.subr.bf16.mxu0 %v6531
        %6730 = vmatpush1.bf16.msra.mxu0 %v6530
        %6731 = vmatprep.subr.bf16.mxu0 %v6533
        %6732 = vmatpush1.bf16.msra.mxu0 %v6532
        %6733 = vmatprep.subr.bf16.mxu0 %v6535
        %6734 = vmatpush1.bf16.msra.mxu0 %v6534
        %6735 = vmatprep.subr.bf16.mxu0 %v6537
        %6736 = vmatpush1.bf16.msra.mxu0 %v6536
        %6737 = vmatprep.subr.bf16.mxu0 %v6539
        %6738 = vmatpush1.bf16.msra.mxu0 %v6538
        %6739 = vmatprep.subr.bf16.mxu0 %v6541
        %6740 = vmatpush1.bf16.msra.mxu0 %v6540
        %6741 = vmatprep.subr.bf16.mxu0 %v6543
        %6742 = vmatpush1.bf16.msra.mxu0 %v6542
        %6743 = vmatprep.subr.bf16.mxu0 %v6545
        %6744 = vmatpush1.bf16.msra.mxu0 %v6544
        %6745 = vmatprep.subr.bf16.mxu0 %v6547
        %6746 = vmatpush1.bf16.msra.mxu0 %v6546
        %6747 = vmatprep.subr.bf16.mxu0 %v6549
        %6748 = vmatpush1.bf16.msra.mxu0 %v6548
        %6749 = vmatprep.subr.bf16.mxu0 %v6551
        %6750 = vmatpush1.bf16.msra.mxu0 %v6550
        %6751 = vmatprep.mubr.bf16.mxu0 %v6587
        %6752 = vmatmul.mubr.bf16.gmra.mrb[0].mxu0 %v6585
        %v6753 = vpop.f32.mrb[0].mxu0
        %v6754 = vadd.f32 %v6713, %v6753
        %v6755 = vpop.f32.mrb[0].mxu0
        %v6756 = vadd.f32 %v6715, %v6755
        %v6757 = vpop.f32.mrb[0].mxu0
        %v6758 = vpop.f32.mrb[0].mxu0
        %6759 = vdwg.mxu0
        %v6760 = vadd.f32 %v6356, %v6754
        %v6761 = vadd.f32 %v6357, %v6756
        %v6762 = vld [vmem:[#allocation2] sm:$0xff]
        %v6765 = vcombine.low %v6760, %v6761
        %v6767 = vadd.f32 %v6762, %v6765
        %6768 = vst [vmem:[#allocation2] sm:$0xff] %v6767
        %p6769 = scmp.eq.s32.totalorder %s22, 3
        // Predicated region
        $region61: #{discriminator_forward.1} parent=39 // pred_check
          %p6770 = pneg %p6769
        $region62: #{discriminator_forward.1} parent=39 // pred_check_branch
          %6772 = sbr.rel (%p6770) target = $region64
        $region63: #{discriminator_forward.1} parent=39 // pred_region
          %v6773 = vld [vmem:[#allocation2] sm:$0xff]
          %v6774 = vld [vmem:[#allocation6] ss:$8 sm:$0x3]
          %v6776 = vlaneseq
          %v6777 = vshrl.u32 %v6776, 7
          %v6778 = vsub.s32 0, %v6777
          %v6779 = vrot.slane %v6774, %v6778
          %v6780 = vlaneseq
          %v6781 = vshrl.u32 %v6780, 7
          %v6782 = vsub.s32 1, %v6781
          %v6783 = vrot.slane %v6774, %v6782
          %v6784 = vcombine.low %v6779, %v6783
          %v6786 = vmul.f32 %v6773, %v6784
          %s6787 = scalar_lea.vmem [#allocation6], 16
          %v6788 = vld [vmem:[%s6787] ss:$8 sm:$0x3]
          %v6790 = vlaneseq
          %v6791 = vshrl.u32 %v6790, 7
          %v6792 = vsub.s32 0, %v6791
          %v6793 = vrot.slane %v6788, %v6792
          %v6794 = vlaneseq
          %v6795 = vshrl.u32 %v6794, 7
          %v6796 = vsub.s32 1, %v6795
          %v6797 = vrot.slane %v6788, %v6796
          %v6798 = vcombine.low %v6793, %v6797
          %v6800 = vadd.f32 %v6786, %v6798
          %s6801 = scalar_lea.vmem [#allocation6], 32
          %v6802 = vld [vmem:[%s6801] ss:$8 sm:$0x3]
          %s6803 = scalar_lea.vmem [#allocation6], 48
          %v6804 = vld [vmem:[%s6803] ss:$8 sm:$0x3]
          %v6806 = vcombine.high %v6800, %v6800
          %vm6808 = vcmask 1043456
          %v6809 = vsel %vm6808, %v6800, 0.0
          %v6810 = vrot.slane %v6809, 4
          %v6811 = vadd.f32 %v6809, %v6810
          %v6812 = vrot.slane %v6811, 2
          %v6813 = vadd.f32 %v6811, %v6812
          %v6814 = vrot.slane %v6813, 1
          %v6815 = vadd.f32 %v6813, %v6814
          %v6816 = vsel %vm6808, %v6806, 0.0
          %v6817 = vrot.slane %v6816, 4
          %v6818 = vadd.f32 %v6816, %v6817
          %v6819 = vrot.slane %v6818, 2
          %v6820 = vadd.f32 %v6818, %v6819
          %v6821 = vrot.slane %v6820, 1
          %v6822 = vadd.f32 %v6820, %v6821
          %v6823 = vrcp.pop 4.0
          %v6824 = vmul.f32 %v6815, %v6823
          %v6825 = vmul.f32 %v6822, %v6823
          %v6828 = vcombine.low %v6824, %v6825
          %v6830 = vsub.f32 %v6800, %v6828
          %v6831 = vmul.f32 %v6830, %v6830
          %v6833 = vcombine.high %v6831, %v6831
          %v6835 = vsel %vm6808, %v6831, 0.0
          %v6836 = vrot.slane %v6835, 4
          %v6837 = vadd.f32 %v6835, %v6836
          %v6838 = vrot.slane %v6837, 2
          %v6839 = vadd.f32 %v6837, %v6838
          %v6840 = vrot.slane %v6839, 1
          %v6841 = vadd.f32 %v6839, %v6840
          %v6842 = vsel %vm6808, %v6833, 0.0
          %v6843 = vrot.slane %v6842, 4
          %v6844 = vadd.f32 %v6842, %v6843
          %v6845 = vrot.slane %v6844, 2
          %v6846 = vadd.f32 %v6844, %v6845
          %v6847 = vrot.slane %v6846, 1
          %v6848 = vadd.f32 %v6846, %v6847
          %v6849 = vmul.f32 %v6841, %v6823
          %v6850 = vmul.f32 %v6848, %v6823
          %v6851 = vadd.f32 %v6849, 1e-05
          %v6852 = vadd.f32 %v6850, 1e-05
          %v6853 = vrsqrt.pop %v6851
          %v6854 = vrsqrt.pop %v6852
          %v6857 = vcombine.low %v6853, %v6854
          %v6859 = vmul.f32 %v6830, %v6857
          %v6861 = vlaneseq
          %v6862 = vshrl.u32 %v6861, 7
          %v6863 = vsub.s32 0, %v6862
          %v6864 = vrot.slane %v6802, %v6863
          %v6865 = vlaneseq
          %v6866 = vshrl.u32 %v6865, 7
          %v6867 = vsub.s32 1, %v6866
          %v6868 = vrot.slane %v6802, %v6867
          %v6869 = vcombine.low %v6864, %v6868
          %v6871 = vmul.f32 %v6859, %v6869
          %v6873 = vlaneseq
          %v6874 = vshrl.u32 %v6873, 7
          %v6875 = vsub.s32 0, %v6874
          %v6876 = vrot.slane %v6804, %v6875
          %v6877 = vlaneseq
          %v6878 = vshrl.u32 %v6877, 7
          %v6879 = vsub.s32 1, %v6878
          %v6880 = vrot.slane %v6804, %v6879
          %v6881 = vcombine.low %v6876, %v6880
          %v6883 = vadd.f32 %v6871, %v6881
          %vm6884 = vcmp.gt.f32.partialorder %v6883, 0.0
          %v6885 = vmul.f32 %v6883, 0.1
          %v6886 = vsel %vm6884, %v6883, %v6885
          %v6887 = vld [vmem:[#allocation6 + $0x40] sm:$0xff]
          %v6888 = vld [vmem:[#allocation6 + $0x50] sm:$0xff]
          %v6889 = vld [vmem:[#allocation6 + $0x60] sm:$0xff]
          %v6890 = vld [vmem:[#allocation6 + $0x70] sm:$0xff]
          %v6891 = vld [vmem:[#allocation6 + $0x80] sm:$0xff]
          %v6892 = vld [vmem:[#allocation6 + $0x90] sm:$0xff]
          %v6893 = vld [vmem:[#allocation6 + $0xa0] sm:$0xff]
          %v6894 = vld [vmem:[#allocation6 + $0xb0] sm:$0xff]
          %v6895 = vld [vmem:[#allocation6 + $0xc0] sm:$0xff]
          %v6896 = vld [vmem:[#allocation6 + $0xd0] sm:$0xff]
          %v6897 = vld [vmem:[#allocation6 + $0xe0] sm:$0xff]
          %v6898 = vld [vmem:[#allocation6 + $0xf0] sm:$0xff]
          %v6899 = vld [vmem:[#allocation6 + $0x100] sm:$0xff]
          %v6900 = vld [vmem:[#allocation6 + $0x110] sm:$0xff]
          %v6901 = vld [vmem:[#allocation6 + $0x120] sm:$0xff]
          %v6902 = vld [vmem:[#allocation6 + $0x130] sm:$0xff]
          %v6903 = vld [vmem:[#allocation6 + $0x140] sm:$0xff]
          %v6904 = vld [vmem:[#allocation6 + $0x150] sm:$0xff]
          %v6905 = vld [vmem:[#allocation6 + $0x160] sm:$0xff]
          %v6906 = vld [vmem:[#allocation6 + $0x170] sm:$0xff]
          %v6907 = vld [vmem:[#allocation6 + $0x180] sm:$0xff]
          %v6908 = vld [vmem:[#allocation6 + $0x190] sm:$0xff]
          %v6909 = vld [vmem:[#allocation6 + $0x1a0] sm:$0xff]
          %v6910 = vld [vmem:[#allocation6 + $0x1b0] sm:$0xff]
          %v6911 = vld [vmem:[#allocation6 + $0x1c0] sm:$0xff]
          %v6912 = vld [vmem:[#allocation6 + $0x1d0] sm:$0xff]
          %v6913 = vld [vmem:[#allocation6 + $0x1e0] sm:$0xff]
          %v6914 = vld [vmem:[#allocation6 + $0x1f0] sm:$0xff]
          %v6915 = vld [vmem:[#allocation6 + $0x200] sm:$0xff]
          %v6916 = vld [vmem:[#allocation6 + $0x210] sm:$0xff]
          %v6917 = vld [vmem:[#allocation6 + $0x220] sm:$0xff]
          %v6918 = vld [vmem:[#allocation6 + $0x230] sm:$0xff]
          %v6919 = vld [vmem:[#allocation6 + $0x240] ss:$0 sm:$0xff]
          %v6921 = vcombine.high %v6886, %v6886
          %6923 = vmatprep.subr.mxu0 0.0
          %6924 = vmatpush1.msra.mxu0 %v6887
          %6925 = vmatprep.subr.mxu0 0.0
          %6926 = vmatpush1.msra.mxu0 %v6888
          %6927 = vmatprep.subr.mxu0 0.0
          %6928 = vmatpush1.msra.mxu0 %v6889
          %6929 = vmatprep.subr.mxu0 0.0
          %6930 = vmatpush1.msra.mxu0 %v6890
          %6931 = vmatprep.subr.mxu0 0.0
          %6932 = vmatpush1.msra.mxu0 %v6891
          %6933 = vmatprep.subr.mxu0 0.0
          %6934 = vmatpush1.msra.mxu0 %v6892
          %6935 = vmatprep.subr.mxu0 0.0
          %6936 = vmatpush1.msra.mxu0 %v6893
          %6937 = vmatprep.subr.mxu0 0.0
          %6938 = vmatpush1.msra.mxu0 %v6894
          %6939 = vmatprep.subr.mxu0 0.0
          %6940 = vmatpush1.msra.mxu0 %v6895
          %6941 = vmatprep.subr.mxu0 0.0
          %6942 = vmatpush1.msra.mxu0 %v6896
          %6943 = vmatprep.subr.mxu0 0.0
          %6944 = vmatpush1.msra.mxu0 %v6897
          %6945 = vmatprep.subr.mxu0 0.0
          %6946 = vmatpush1.msra.mxu0 %v6898
          %6947 = vmatprep.subr.mxu0 0.0
          %6948 = vmatpush1.msra.mxu0 %v6899
          %6949 = vmatprep.subr.mxu0 0.0
          %6950 = vmatpush1.msra.mxu0 %v6900
          %6951 = vmatprep.subr.mxu0 0.0
          %6952 = vmatpush1.msra.mxu0 %v6901
          %6953 = vmatprep.subr.mxu0 0.0
          %6954 = vmatpush1.msra.mxu0 %v6902
          %6955 = vmatprep.subr.mxu0 0.0
          %6956 = vmatpush1.msra.mxu0 %v6903
          %6957 = vmatprep.subr.mxu0 0.0
          %6958 = vmatpush1.msra.mxu0 %v6904
          %6959 = vmatprep.subr.mxu0 0.0
          %6960 = vmatpush1.msra.mxu0 %v6905
          %6961 = vmatprep.subr.mxu0 0.0
          %6962 = vmatpush1.msra.mxu0 %v6906
          %6963 = vmatprep.subr.mxu0 0.0
          %6964 = vmatpush1.msra.mxu0 %v6907
          %6965 = vmatprep.subr.mxu0 0.0
          %6966 = vmatpush1.msra.mxu0 %v6908
          %6967 = vmatprep.subr.mxu0 0.0
          %6968 = vmatpush1.msra.mxu0 %v6909
          %6969 = vmatprep.subr.mxu0 0.0
          %6970 = vmatpush1.msra.mxu0 %v6910
          %6971 = vmatprep.subr.mxu0 0.0
          %6972 = vmatpush1.msra.mxu0 %v6911
          %6973 = vmatprep.subr.mxu0 0.0
          %6974 = vmatpush1.msra.mxu0 %v6912
          %6975 = vmatprep.subr.mxu0 0.0
          %6976 = vmatpush1.msra.mxu0 %v6913
          %6977 = vmatprep.subr.mxu0 0.0
          %6978 = vmatpush1.msra.mxu0 %v6914
          %6979 = vmatprep.subr.mxu0 0.0
          %6980 = vmatpush1.msra.mxu0 %v6915
          %6981 = vmatprep.subr.mxu0 0.0
          %6982 = vmatpush1.msra.mxu0 %v6916
          %6983 = vmatprep.subr.mxu0 0.0
          %6984 = vmatpush1.msra.mxu0 %v6917
          %6985 = vmatprep.subr.mxu0 0.0
          %6986 = vmatpush1.msra.mxu0 %v6918
          %6987 = vmatprep.mubr.f32.mxu0 %v6921
          %6988 = vmatmul.mubr.f32.gmra.mrb[0].mxu0 %v6886
          %v6989 = vpop.f32.mrb[0].mxu0
          %v6990 = vadd.f32 %v6919, %v6989
          %v6991 = vpop.f32.mrb[0].mxu0
          %6992 = vdwg.mxu0
          %v6993 = vld [vmem:[#allocation6 + $0x250] ss:$0 sm:$0xff]
          %v6994 = vld [vmem:[#allocation6 + $0x260] ss:$0 sm:$0xff]
          %vm6995 = vcmask 248832
          %v6996 = vsel %vm6995, %v6990, 0.0
          %v6997 = vrot.slane %v6996, 4
          %v6998 = vadd.f32 %v6996, %v6997
          %v6999 = vrot.slane %v6998, 2
          %v7000 = vadd.f32 %v6998, %v6999
          %v7001 = vrot.slane %v7000, 1
          %v7002 = vadd.f32 %v7000, %v7001
          %v7003 = vmul.f32 %v7002, %v6823
          %v7004 = vsub.f32 %v6990, %v7003
          %v7005 = vmul.f32 %v7004, %v7004
          %v7006 = vsel %vm6995, %v7005, 0.0
          %v7007 = vrot.slane %v7006, 4
          %v7008 = vadd.f32 %v7006, %v7007
          %v7009 = vrot.slane %v7008, 2
          %v7010 = vadd.f32 %v7008, %v7009
          %v7011 = vrot.slane %v7010, 1
          %v7012 = vadd.f32 %v7010, %v7011
          %v7013 = vmul.f32 %v7012, %v6823
          %v7014 = vadd.f32 %v7013, 1e-05
          %v7015 = vrsqrt.pop %v7014
          %v7016 = vmul.f32 %v7004, %v7015
          %v7017 = vmul.f32 %v7016, %v6993
          %v7018 = vadd.f32 %v7017, %v6994
          %vm7019 = vcmp.gt.f32.partialorder %v7018, 0.0
          %v7020 = vmul.f32 %v7018, 0.1
          %v7021 = vsel %vm7019, %v7018, %v7020
          %v7022 = vld [vmem:[#allocation8] sm:$0xff]
          %v7023 = vld [vmem:[#allocation8 + $0x8] sm:$0xff]
          %v7024 = vld [vmem:[#allocation8 + $0x10] sm:$0xff]
          %v7025 = vld [vmem:[#allocation8 + $0x18] sm:$0xff]
          %v7026 = vld [vmem:[#allocation8 + $0x20] sm:$0xff]
          %v7027 = vld [vmem:[#allocation8 + $0x28] sm:$0xff]
          %v7028 = vld [vmem:[#allocation8 + $0x30] sm:$0xff]
          %v7029 = vld [vmem:[#allocation8 + $0x38] sm:$0xff]
          %v7030 = vld [vmem:[#allocation8 + $0x40] sm:$0xff]
          %v7031 = vld [vmem:[#allocation8 + $0x48] sm:$0xff]
          %v7032 = vld [vmem:[#allocation8 + $0x50] sm:$0xff]
          %v7033 = vld [vmem:[#allocation8 + $0x58] sm:$0xff]
          %v7034 = vld [vmem:[#allocation8 + $0x60] sm:$0x7f]
          %v7035 = vld [vmem:[#allocation8 + $0x68] sm:$0x7f]
          %v7036 = vld [vmem:[#allocation8 + $0x70] sm:$0x7f]
          %v7037 = vld [vmem:[#allocation8 + $0x78] sm:$0x7f]
          %v7038 = vld [vmem:[#allocation9] sm:$0xf]
          %v7040 = vlaneseq
          %v7041 = vshrl.u32 %v7040, 7
          %v7042 = vsub.s32 0, %v7041
          %v7043 = vrot.slane %v7038, %v7042
          %v7044 = vlaneseq
          %v7045 = vshrl.u32 %v7044, 7
          %v7046 = vsub.s32 1, %v7045
          %v7047 = vrot.slane %v7038, %v7046
          %v7048 = vlaneseq
          %v7049 = vshrl.u32 %v7048, 7
          %v7050 = vsub.s32 2, %v7049
          %v7051 = vrot.slane %v7038, %v7050
          %v7052 = vlaneseq
          %v7053 = vshrl.u32 %v7052, 7
          %v7054 = vsub.s32 3, %v7053
          %v7055 = vrot.slane %v7038, %v7054
          %vm7060 = vcmask 252928
          %v7062 = vsel %vm7060, %v7021, 0
          %vm7064 = vcmask 1046528
          %v7066 = vsel %vm7064, %v7034, 0
          %v7069 = vsel %vm7064, %v7035, 0
          %v7072 = vsel %vm7064, %v7036, 0
          %v7075 = vsel %vm7064, %v7037, 0
          %7077 = vmatprep.subr.mxu0 %v7023
          %7078 = vmatpush1.msra.mxu0 %v7022
          %7079 = vmatprep.subr.mxu0 %v7027
          %7080 = vmatpush1.msra.mxu0 %v7026
          %7081 = vmatprep.subr.mxu0 %v7031
          %7082 = vmatpush1.msra.mxu0 %v7030
          %7083 = vmatprep.subr.mxu0 %v7069
          %7084 = vmatpush1.msra.mxu0 %v7066
          %7085 = vmatprep.subr.mxu0 0.0
          %7086 = vmatpush1.msra.mxu0 0.0
          %7087 = vmatprep.subr.mxu0 0.0
          %7088 = vmatpush1.msra.mxu0 0.0
          %7089 = vmatprep.subr.mxu0 0.0
          %7090 = vmatpush1.msra.mxu0 0.0
          %7091 = vmatprep.subr.mxu0 0.0
          %7092 = vmatpush1.msra.mxu0 0.0
          %7093 = vmatprep.subr.mxu0 0.0
          %7094 = vmatpush1.msra.mxu0 0.0
          %7095 = vmatprep.subr.mxu0 0.0
          %7096 = vmatpush1.msra.mxu0 0.0
          %7097 = vmatprep.subr.mxu0 0.0
          %7098 = vmatpush1.msra.mxu0 0.0
          %7099 = vmatprep.subr.mxu0 0.0
          %7100 = vmatpush1.msra.mxu0 0.0
          %7101 = vmatprep.subr.mxu0 0.0
          %7102 = vmatpush1.msra.mxu0 0.0
          %7103 = vmatprep.subr.mxu0 0.0
          %7104 = vmatpush1.msra.mxu0 0.0
          %7105 = vmatprep.subr.mxu0 0.0
          %7106 = vmatpush1.msra.mxu0 0.0
          %7107 = vmatprep.subr.mxu0 0.0
          %7108 = vmatpush1.msra.mxu0 0.0
          %7109 = vmatprep.subr.mxu0 0.0
          %7110 = vmatpush1.msra.mxu0 0.0
          %7111 = vmatprep.subr.mxu0 0.0
          %7112 = vmatpush1.msra.mxu0 0.0
          %7113 = vmatprep.subr.mxu0 0.0
          %7114 = vmatpush1.msra.mxu0 0.0
          %7115 = vmatprep.subr.mxu0 0.0
          %7116 = vmatpush1.msra.mxu0 0.0
          %7117 = vmatprep.subr.mxu0 0.0
          %7118 = vmatpush1.msra.mxu0 0.0
          %7119 = vmatprep.subr.mxu0 0.0
          %7120 = vmatpush1.msra.mxu0 0.0
          %7121 = vmatprep.subr.mxu0 0.0
          %7122 = vmatpush1.msra.mxu0 0.0
          %7123 = vmatprep.subr.mxu0 0.0
          %7124 = vmatpush1.msra.mxu0 0.0
          %7125 = vmatprep.subr.mxu0 0.0
          %7126 = vmatpush1.msra.mxu0 0.0
          %7127 = vmatprep.subr.mxu0 0.0
          %7128 = vmatpush1.msra.mxu0 0.0
          %7129 = vmatprep.subr.mxu0 0.0
          %7130 = vmatpush1.msra.mxu0 0.0
          %7131 = vmatprep.subr.mxu0 0.0
          %7132 = vmatpush1.msra.mxu0 0.0
          %7133 = vmatprep.subr.mxu0 0.0
          %7134 = vmatpush1.msra.mxu0 0.0
          %7135 = vmatprep.subr.mxu0 0.0
          %7136 = vmatpush1.msra.mxu0 0.0
          %7137 = vmatprep.subr.mxu0 0.0
          %7138 = vmatpush1.msra.mxu0 0.0
          %7139 = vmatprep.subr.mxu0 0.0
          %7140 = vmatpush1.msra.mxu0 0.0
          %7141 = vmatprep.mubr.f32.mxu0 0.0
          %7142 = vmatmul.mubr.f32.gmra.mrb[0].mxu0 %v7062
          %v7143 = vpop.f32.mrb[0].mxu0
          %v7144 = vadd.f32 %v7043, %v7143
          %v7145 = vpop.f32.mrb[0].mxu0
          %v7146 = vadd.f32 %v7047, %v7145
          %7147 = vdwg.mxu0
          %7148 = vmatprep.subr.mxu0 %v7025
          %7149 = vmatpush1.msra.mxu0 %v7024
          %7150 = vmatprep.subr.mxu0 %v7029
          %7151 = vmatpush1.msra.mxu0 %v7028
          %7152 = vmatprep.subr.mxu0 %v7033
          %7153 = vmatpush1.msra.mxu0 %v7032
          %7154 = vmatprep.subr.mxu0 %v7075
          %7155 = vmatpush1.msra.mxu0 %v7072
          %7156 = vmatprep.subr.mxu0 0.0
          %7157 = vmatpush1.msra.mxu0 0.0
          %7158 = vmatprep.subr.mxu0 0.0
          %7159 = vmatpush1.msra.mxu0 0.0
          %7160 = vmatprep.subr.mxu0 0.0
          %7161 = vmatpush1.msra.mxu0 0.0
          %7162 = vmatprep.subr.mxu0 0.0
          %7163 = vmatpush1.msra.mxu0 0.0
          %7164 = vmatprep.subr.mxu0 0.0
          %7165 = vmatpush1.msra.mxu0 0.0
          %7166 = vmatprep.subr.mxu0 0.0
          %7167 = vmatpush1.msra.mxu0 0.0
          %7168 = vmatprep.subr.mxu0 0.0
          %7169 = vmatpush1.msra.mxu0 0.0
          %7170 = vmatprep.subr.mxu0 0.0
          %7171 = vmatpush1.msra.mxu0 0.0
          %7172 = vmatprep.subr.mxu0 0.0
          %7173 = vmatpush1.msra.mxu0 0.0
          %7174 = vmatprep.subr.mxu0 0.0
          %7175 = vmatpush1.msra.mxu0 0.0
          %7176 = vmatprep.subr.mxu0 0.0
          %7177 = vmatpush1.msra.mxu0 0.0
          %7178 = vmatprep.subr.mxu0 0.0
          %7179 = vmatpush1.msra.mxu0 0.0
          %7180 = vmatprep.subr.mxu0 0.0
          %7181 = vmatpush1.msra.mxu0 0.0
          %7182 = vmatprep.subr.mxu0 0.0
          %7183 = vmatpush1.msra.mxu0 0.0
          %7184 = vmatprep.subr.mxu0 0.0
          %7185 = vmatpush1.msra.mxu0 0.0
          %7186 = vmatprep.subr.mxu0 0.0
          %7187 = vmatpush1.msra.mxu0 0.0
          %7188 = vmatprep.subr.mxu0 0.0
          %7189 = vmatpush1.msra.mxu0 0.0
          %7190 = vmatprep.subr.mxu0 0.0
          %7191 = vmatpush1.msra.mxu0 0.0
          %7192 = vmatprep.subr.mxu0 0.0
          %7193 = vmatpush1.msra.mxu0 0.0
          %7194 = vmatprep.subr.mxu0 0.0
          %7195 = vmatpush1.msra.mxu0 0.0
          %7196 = vmatprep.subr.mxu0 0.0
          %7197 = vmatpush1.msra.mxu0 0.0
          %7198 = vmatprep.subr.mxu0 0.0
          %7199 = vmatpush1.msra.mxu0 0.0
          %7200 = vmatprep.subr.mxu0 0.0
          %7201 = vmatpush1.msra.mxu0 0.0
          %7202 = vmatprep.subr.mxu0 0.0
          %7203 = vmatpush1.msra.mxu0 0.0
          %7204 = vmatprep.subr.mxu0 0.0
          %7205 = vmatpush1.msra.mxu0 0.0
          %7206 = vmatprep.subr.mxu0 0.0
          %7207 = vmatpush1.msra.mxu0 0.0
          %7208 = vmatprep.subr.mxu0 0.0
          %7209 = vmatpush1.msra.mxu0 0.0
          %7210 = vmatprep.subr.mxu0 0.0
          %7211 = vmatpush1.msra.mxu0 0.0
          %7212 = vmatprep.mubr.f32.mxu0 0.0
          %7213 = vmatmul.mubr.f32.gmra.mrb[0].mxu0 %v7062
          %v7214 = vpop.f32.mrb[0].mxu0
          %v7215 = vadd.f32 %v7051, %v7214
          %v7216 = vpop.f32.mrb[0].mxu0
          %v7217 = vadd.f32 %v7055, %v7216
          %7218 = vdwg.mxu0
          %v7219 = vmax.f32 %v7144, 0.0
          %v7220 = vmax.f32 %v7146, 0.0
          %v7221 = vmax.f32 %v7215, 0.0
          %v7222 = vmax.f32 %v7217, 0.0
          %v7223 = vld [vmem:[#allocation6 + $0x270] sm:$0xff]
          %v7224 = vld [vmem:[#allocation6 + $0x278] sm:$0xff]
          %v7225 = vld [vmem:[#allocation6 + $0x280] sm:$0xff]
          %v7226 = vld [vmem:[#allocation6 + $0x288] sm:$0xff]
          %v7227 = vld [vmem:[#allocation6 + $0x290] sm:$0xff]
          %v7228 = vld [vmem:[#allocation6 + $0x298] sm:$0xff]
          %v7229 = vld [vmem:[#allocation6 + $0x2a0] sm:$0xff]
          %v7230 = vld [vmem:[#allocation6 + $0x2a8] sm:$0xff]
          %v7231 = vld [vmem:[#allocation6 + $0x2b0] sm:$0xff]
          %v7232 = vld [vmem:[#allocation6 + $0x2b8] sm:$0xff]
          %v7233 = vld [vmem:[#allocation6 + $0x2c0] sm:$0xff]
          %v7234 = vld [vmem:[#allocation6 + $0x2c8] sm:$0xff]
          %v7235 = vld [vmem:[#allocation6 + $0x2d0] sm:$0xff]
          %v7236 = vld [vmem:[#allocation6 + $0x2d8] sm:$0xff]
          %v7237 = vld [vmem:[#allocation6 + $0x2e0] sm:$0xff]
          %v7238 = vld [vmem:[#allocation6 + $0x2e8] sm:$0xff]
          %v7239 = vld [vmem:[#allocation6 + $0x2f0] sm:$0xff]
          %v7240 = vld [vmem:[#allocation6 + $0x2f8] sm:$0xff]
          %v7241 = vld [vmem:[#allocation6 + $0x300] sm:$0xff]
          %v7242 = vld [vmem:[#allocation6 + $0x308] sm:$0xff]
          %v7243 = vld [vmem:[#allocation6 + $0x310] sm:$0xff]
          %v7244 = vld [vmem:[#allocation6 + $0x318] sm:$0xff]
          %v7245 = vld [vmem:[#allocation6 + $0x320] sm:$0xff]
          %v7246 = vld [vmem:[#allocation6 + $0x328] sm:$0xff]
          %v7247 = vld [vmem:[#allocation6 + $0x330] sm:$0xff]
          %v7248 = vld [vmem:[#allocation6 + $0x338] sm:$0xff]
          %v7249 = vld [vmem:[#allocation6 + $0x340] sm:$0xff]
          %v7250 = vld [vmem:[#allocation6 + $0x348] sm:$0xff]
          %v7251 = vld [vmem:[#allocation6 + $0x350] sm:$0xff]
          %v7252 = vld [vmem:[#allocation6 + $0x358] sm:$0xff]
          %v7253 = vld [vmem:[#allocation6 + $0x360] sm:$0xff]
          %v7254 = vld [vmem:[#allocation6 + $0x368] sm:$0xff]
          %v7255 = vld [vmem:[#allocation6 + $0x370] sm:$0xff]
          %v7256 = vld [vmem:[#allocation6 + $0x378] sm:$0xff]
          %v7257 = vld [vmem:[#allocation6 + $0x380] sm:$0xff]
          %v7258 = vld [vmem:[#allocation6 + $0x388] sm:$0xff]
          %v7259 = vld [vmem:[#allocation6 + $0x390] sm:$0xff]
          %v7260 = vld [vmem:[#allocation6 + $0x398] sm:$0xff]
          %v7261 = vld [vmem:[#allocation6 + $0x3a0] sm:$0xff]
          %v7262 = vld [vmem:[#allocation6 + $0x3a8] sm:$0xff]
          %v7263 = vld [vmem:[#allocation6 + $0x3b0] sm:$0xff]
          %v7264 = vld [vmem:[#allocation6 + $0x3b8] sm:$0xff]
          %v7265 = vld [vmem:[#allocation6 + $0x3c0] sm:$0xff]
          %v7266 = vld [vmem:[#allocation6 + $0x3c8] sm:$0xff]
          %v7267 = vld [vmem:[#allocation6 + $0x3d0] sm:$0xff]
          %v7268 = vld [vmem:[#allocation6 + $0x3d8] sm:$0xff]
          %v7269 = vld [vmem:[#allocation6 + $0x3e0] sm:$0xff]
          %v7270 = vld [vmem:[#allocation6 + $0x3e8] sm:$0xff]
          %v7271 = vld [vmem:[#allocation6 + $0x3f0] sm:$0xff]
          %v7272 = vld [vmem:[#allocation6 + $0x3f8] sm:$0xff]
          %v7273 = vld [vmem:[#allocation6 + $0x400] sm:$0xff]
          %v7274 = vld [vmem:[#allocation6 + $0x408] sm:$0xff]
          %v7275 = vld [vmem:[#allocation6 + $0x410] sm:$0xff]
          %v7276 = vld [vmem:[#allocation6 + $0x418] sm:$0xff]
          %v7277 = vld [vmem:[#allocation6 + $0x420] sm:$0xff]
          %v7278 = vld [vmem:[#allocation6 + $0x428] sm:$0xff]
          %v7279 = vld [vmem:[#allocation6 + $0x430] sm:$0xff]
          %v7280 = vld [vmem:[#allocation6 + $0x438] sm:$0xff]
          %v7281 = vld [vmem:[#allocation6 + $0x440] sm:$0xff]
          %v7282 = vld [vmem:[#allocation6 + $0x448] sm:$0xff]
          %v7283 = vld [vmem:[#allocation6 + $0x450] sm:$0xff]
          %v7284 = vld [vmem:[#allocation6 + $0x458] sm:$0xff]
          %v7285 = vld [vmem:[#allocation6 + $0x460] sm:$0xff]
          %v7286 = vld [vmem:[#allocation6 + $0x468] sm:$0xff]
          %v7287 = vld [vmem:[#allocation6 + $0x470] sm:$0xff]
          %v7288 = vld [vmem:[#allocation6 + $0x478] sm:$0xff]
          %v7289 = vld [vmem:[#allocation6 + $0x480] sm:$0xff]
          %v7290 = vld [vmem:[#allocation6 + $0x488] sm:$0xff]
          %v7291 = vld [vmem:[#allocation6 + $0x490] sm:$0xff]
          %v7292 = vld [vmem:[#allocation6 + $0x498] sm:$0xff]
          %v7293 = vld [vmem:[#allocation6 + $0x4a0] sm:$0xff]
          %v7294 = vld [vmem:[#allocation6 + $0x4a8] sm:$0xff]
          %v7295 = vld [vmem:[#allocation6 + $0x4b0] sm:$0xff]
          %v7296 = vld [vmem:[#allocation6 + $0x4b8] sm:$0xff]
          %v7297 = vld [vmem:[#allocation6 + $0x4c0] sm:$0xff]
          %v7298 = vld [vmem:[#allocation6 + $0x4c8] sm:$0xff]
          %v7299 = vld [vmem:[#allocation6 + $0x4d0] sm:$0xff]
          %v7300 = vld [vmem:[#allocation6 + $0x4d8] sm:$0xff]
          %v7301 = vld [vmem:[#allocation6 + $0x4e0] sm:$0xff]
          %v7302 = vld [vmem:[#allocation6 + $0x4e8] sm:$0xff]
          %v7303 = vld [vmem:[#allocation6 + $0x4f0] sm:$0xff]
          %v7304 = vld [vmem:[#allocation6 + $0x4f8] sm:$0xff]
          %v7305 = vld [vmem:[#allocation6 + $0x500] sm:$0xff]
          %v7306 = vld [vmem:[#allocation6 + $0x508] sm:$0xff]
          %v7307 = vld [vmem:[#allocation6 + $0x510] sm:$0xff]
          %v7308 = vld [vmem:[#allocation6 + $0x518] sm:$0xff]
          %v7309 = vld [vmem:[#allocation6 + $0x520] sm:$0xff]
          %v7310 = vld [vmem:[#allocation6 + $0x528] sm:$0xff]
          %v7311 = vld [vmem:[#allocation6 + $0x530] sm:$0xff]
          %v7312 = vld [vmem:[#allocation6 + $0x538] sm:$0xff]
          %v7313 = vld [vmem:[#allocation6 + $0x540] sm:$0xff]
          %v7314 = vld [vmem:[#allocation6 + $0x548] sm:$0xff]
          %v7315 = vld [vmem:[#allocation6 + $0x550] sm:$0xff]
          %v7316 = vld [vmem:[#allocation6 + $0x558] sm:$0xff]
          %v7317 = vld [vmem:[#allocation6 + $0x560] sm:$0xff]
          %v7318 = vld [vmem:[#allocation6 + $0x568] sm:$0xff]
          %v7319 = vld [vmem:[#allocation6 + $0x570] sm:$0xff]
          %v7320 = vld [vmem:[#allocation6 + $0x578] sm:$0xff]
          %v7321 = vld [vmem:[#allocation6 + $0x580] sm:$0xff]
          %v7322 = vld [vmem:[#allocation6 + $0x588] sm:$0xff]
          %v7323 = vld [vmem:[#allocation6 + $0x590] sm:$0xff]
          %v7324 = vld [vmem:[#allocation6 + $0x598] sm:$0xff]
          %v7325 = vld [vmem:[#allocation6 + $0x5a0] sm:$0xff]
          %v7326 = vld [vmem:[#allocation6 + $0x5a8] sm:$0xff]
          %v7327 = vld [vmem:[#allocation6 + $0x5b0] sm:$0xff]
          %v7328 = vld [vmem:[#allocation6 + $0x5b8] sm:$0xff]
          %v7329 = vld [vmem:[#allocation6 + $0x5c0] sm:$0xff]
          %v7330 = vld [vmem:[#allocation6 + $0x5c8] sm:$0xff]
          %v7331 = vld [vmem:[#allocation6 + $0x5d0] sm:$0xff]
          %v7332 = vld [vmem:[#allocation6 + $0x5d8] sm:$0xff]
          %v7333 = vld [vmem:[#allocation6 + $0x5e0] sm:$0xff]
          %v7334 = vld [vmem:[#allocation6 + $0x5e8] sm:$0xff]
          %v7335 = vld [vmem:[#allocation6 + $0x5f0] sm:$0xff]
          %v7336 = vld [vmem:[#allocation6 + $0x5f8] sm:$0xff]
          %v7337 = vld [vmem:[#allocation6 + $0x600] sm:$0xff]
          %v7338 = vld [vmem:[#allocation6 + $0x608] sm:$0xff]
          %v7339 = vld [vmem:[#allocation6 + $0x610] sm:$0xff]
          %v7340 = vld [vmem:[#allocation6 + $0x618] sm:$0xff]
          %v7341 = vld [vmem:[#allocation6 + $0x620] sm:$0xff]
          %v7342 = vld [vmem:[#allocation6 + $0x628] sm:$0xff]
          %v7343 = vld [vmem:[#allocation6 + $0x630] sm:$0xff]
          %v7344 = vld [vmem:[#allocation6 + $0x638] sm:$0xff]
          %v7345 = vld [vmem:[#allocation6 + $0x640] sm:$0xff]
          %v7346 = vld [vmem:[#allocation6 + $0x648] sm:$0xff]
          %v7347 = vld [vmem:[#allocation6 + $0x650] sm:$0xff]
          %v7348 = vld [vmem:[#allocation6 + $0x658] sm:$0xff]
          %v7349 = vld [vmem:[#allocation6 + $0x660] sm:$0xff]
          %v7350 = vld [vmem:[#allocation6 + $0x668] sm:$0xff]
          %s7351 = scalar_lea.vmem [#allocation6], 1648
          %v7352 = vld [vmem:[%s7351] ss:$8 sm:$0x3]
          %v7354 = vlaneseq
          %v7355 = vshrl.u32 %v7354, 7
          %v7356 = vsub.s32 0, %v7355
          %v7357 = vrot.slane %v7352, %v7356
          %v7358 = vlaneseq
          %v7359 = vshrl.u32 %v7358, 7
          %v7360 = vsub.s32 1, %v7359
          %v7361 = vrot.slane %v7352, %v7360
          %7364 = vmatprep.subr.mxu0 %v7224
          %7365 = vmatpush1.msra.mxu0 %v7223
          %7366 = vmatprep.subr.mxu0 %v7226
          %7367 = vmatpush1.msra.mxu0 %v7225
          %7368 = vmatprep.subr.mxu0 %v7228
          %7369 = vmatpush1.msra.mxu0 %v7227
          %7370 = vmatprep.subr.mxu0 %v7230
          %7371 = vmatpush1.msra.mxu0 %v7229
          %7372 = vmatprep.subr.mxu0 %v7232
          %7373 = vmatpush1.msra.mxu0 %v7231
          %7374 = vmatprep.subr.mxu0 %v7234
          %7375 = vmatpush1.msra.mxu0 %v7233
          %7376 = vmatprep.subr.mxu0 %v7236
          %7377 = vmatpush1.msra.mxu0 %v7235
          %7378 = vmatprep.subr.mxu0 %v7238
          %7379 = vmatpush1.msra.mxu0 %v7237
          %7380 = vmatprep.subr.mxu0 %v7240
          %7381 = vmatpush1.msra.mxu0 %v7239
          %7382 = vmatprep.subr.mxu0 %v7242
          %7383 = vmatpush1.msra.mxu0 %v7241
          %7384 = vmatprep.subr.mxu0 %v7244
          %7385 = vmatpush1.msra.mxu0 %v7243
          %7386 = vmatprep.subr.mxu0 %v7246
          %7387 = vmatpush1.msra.mxu0 %v7245
          %7388 = vmatprep.subr.mxu0 %v7248
          %7389 = vmatpush1.msra.mxu0 %v7247
          %7390 = vmatprep.subr.mxu0 %v7250
          %7391 = vmatpush1.msra.mxu0 %v7249
          %7392 = vmatprep.subr.mxu0 %v7252
          %7393 = vmatpush1.msra.mxu0 %v7251
          %7394 = vmatprep.subr.mxu0 %v7254
          %7395 = vmatpush1.msra.mxu0 %v7253
          %7396 = vmatprep.subr.mxu0 %v7256
          %7397 = vmatpush1.msra.mxu0 %v7255
          %7398 = vmatprep.subr.mxu0 %v7258
          %7399 = vmatpush1.msra.mxu0 %v7257
          %7400 = vmatprep.subr.mxu0 %v7260
          %7401 = vmatpush1.msra.mxu0 %v7259
          %7402 = vmatprep.subr.mxu0 %v7262
          %7403 = vmatpush1.msra.mxu0 %v7261
          %7404 = vmatprep.subr.mxu0 %v7264
          %7405 = vmatpush1.msra.mxu0 %v7263
          %7406 = vmatprep.subr.mxu0 %v7266
          %7407 = vmatpush1.msra.mxu0 %v7265
          %7408 = vmatprep.subr.mxu0 %v7268
          %7409 = vmatpush1.msra.mxu0 %v7267
          %7410 = vmatprep.subr.mxu0 %v7270
          %7411 = vmatpush1.msra.mxu0 %v7269
          %7412 = vmatprep.subr.mxu0 %v7272
          %7413 = vmatpush1.msra.mxu0 %v7271
          %7414 = vmatprep.subr.mxu0 %v7274
          %7415 = vmatpush1.msra.mxu0 %v7273
          %7416 = vmatprep.subr.mxu0 %v7276
          %7417 = vmatpush1.msra.mxu0 %v7275
          %7418 = vmatprep.subr.mxu0 %v7278
          %7419 = vmatpush1.msra.mxu0 %v7277
          %7420 = vmatprep.subr.mxu0 %v7280
          %7421 = vmatpush1.msra.mxu0 %v7279
          %7422 = vmatprep.subr.mxu0 %v7282
          %7423 = vmatpush1.msra.mxu0 %v7281
          %7424 = vmatprep.subr.mxu0 %v7284
          %7425 = vmatpush1.msra.mxu0 %v7283
          %7426 = vmatprep.subr.mxu0 %v7286
          %7427 = vmatpush1.msra.mxu0 %v7285
          %7428 = vmatprep.mubr.f32.mxu0 %v7220
          %7429 = vmatmul.mubr.f32.gmra.mrb[0].mxu0 %v7219
          %v7430 = vpop.f32.mrb[0].mxu0
          %v7431 = vadd.f32 %v7357, %v7430
          %v7432 = vpop.f32.mrb[0].mxu0
          %v7433 = vadd.f32 %v7361, %v7432
          %7434 = vdwg.mxu0
          %7435 = vmatprep.subr.mxu0 %v7288
          %7436 = vmatpush1.msra.mxu0 %v7287
          %7437 = vmatprep.subr.mxu0 %v7290
          %7438 = vmatpush1.msra.mxu0 %v7289
          %7439 = vmatprep.subr.mxu0 %v7292
          %7440 = vmatpush1.msra.mxu0 %v7291
          %7441 = vmatprep.subr.mxu0 %v7294
          %7442 = vmatpush1.msra.mxu0 %v7293
          %7443 = vmatprep.subr.mxu0 %v7296
          %7444 = vmatpush1.msra.mxu0 %v7295
          %7445 = vmatprep.subr.mxu0 %v7298
          %7446 = vmatpush1.msra.mxu0 %v7297
          %7447 = vmatprep.subr.mxu0 %v7300
          %7448 = vmatpush1.msra.mxu0 %v7299
          %7449 = vmatprep.subr.mxu0 %v7302
          %7450 = vmatpush1.msra.mxu0 %v7301
          %7451 = vmatprep.subr.mxu0 %v7304
          %7452 = vmatpush1.msra.mxu0 %v7303
          %7453 = vmatprep.subr.mxu0 %v7306
          %7454 = vmatpush1.msra.mxu0 %v7305
          %7455 = vmatprep.subr.mxu0 %v7308
          %7456 = vmatpush1.msra.mxu0 %v7307
          %7457 = vmatprep.subr.mxu0 %v7310
          %7458 = vmatpush1.msra.mxu0 %v7309
          %7459 = vmatprep.subr.mxu0 %v7312
          %7460 = vmatpush1.msra.mxu0 %v7311
          %7461 = vmatprep.subr.mxu0 %v7314
          %7462 = vmatpush1.msra.mxu0 %v7313
          %7463 = vmatprep.subr.mxu0 %v7316
          %7464 = vmatpush1.msra.mxu0 %v7315
          %7465 = vmatprep.subr.mxu0 %v7318
          %7466 = vmatpush1.msra.mxu0 %v7317
          %7467 = vmatprep.subr.mxu0 %v7320
          %7468 = vmatpush1.msra.mxu0 %v7319
          %7469 = vmatprep.subr.mxu0 %v7322
          %7470 = vmatpush1.msra.mxu0 %v7321
          %7471 = vmatprep.subr.mxu0 %v7324
          %7472 = vmatpush1.msra.mxu0 %v7323
          %7473 = vmatprep.subr.mxu0 %v7326
          %7474 = vmatpush1.msra.mxu0 %v7325
          %7475 = vmatprep.subr.mxu0 %v7328
          %7476 = vmatpush1.msra.mxu0 %v7327
          %7477 = vmatprep.subr.mxu0 %v7330
          %7478 = vmatpush1.msra.mxu0 %v7329
          %7479 = vmatprep.subr.mxu0 %v7332
          %7480 = vmatpush1.msra.mxu0 %v7331
          %7481 = vmatprep.subr.mxu0 %v7334
          %7482 = vmatpush1.msra.mxu0 %v7333
          %7483 = vmatprep.subr.mxu0 %v7336
          %7484 = vmatpush1.msra.mxu0 %v7335
          %7485 = vmatprep.subr.mxu0 %v7338
          %7486 = vmatpush1.msra.mxu0 %v7337
          %7487 = vmatprep.subr.mxu0 %v7340
          %7488 = vmatpush1.msra.mxu0 %v7339
          %7489 = vmatprep.subr.mxu0 %v7342
          %7490 = vmatpush1.msra.mxu0 %v7341
          %7491 = vmatprep.subr.mxu0 %v7344
          %7492 = vmatpush1.msra.mxu0 %v7343
          %7493 = vmatprep.subr.mxu0 %v7346
          %7494 = vmatpush1.msra.mxu0 %v7345
          %7495 = vmatprep.subr.mxu0 %v7348
          %7496 = vmatpush1.msra.mxu0 %v7347
          %7497 = vmatprep.subr.mxu0 %v7350
          %7498 = vmatpush1.msra.mxu0 %v7349
          %7499 = vmatprep.mubr.f32.mxu0 %v7222
          %7500 = vmatmul.mubr.f32.gmra.mrb[0].mxu0 %v7221
          %v7501 = vpop.f32.mrb[0].mxu0
          %v7502 = vadd.f32 %v7431, %v7501
          %v7503 = vpop.f32.mrb[0].mxu0
          %v7504 = vadd.f32 %v7433, %v7503
          %7505 = vdwg.mxu0
          %v7506 = vmax.f32 %v7502, 0.0
          %v7507 = vmax.f32 %v7504, 0.0
          %v7508 = vld [vmem:[#allocation6 + $0x680] sm:$0xff]
          %v7509 = vld [vmem:[#allocation6 + $0x690] sm:$0xff]
          %v7510 = vld [vmem:[#allocation6 + $0x6a0] sm:$0xff]
          %v7511 = vld [vmem:[#allocation6 + $0x6b0] sm:$0xff]
          %v7512 = vld [vmem:[#allocation6 + $0x6c0] sm:$0xff]
          %v7513 = vld [vmem:[#allocation6 + $0x6d0] sm:$0xff]
          %v7514 = vld [vmem:[#allocation6 + $0x6e0] sm:$0xff]
          %v7515 = vld [vmem:[#allocation6 + $0x6f0] sm:$0xff]
          %v7516 = vld [vmem:[#allocation6 + $0x700] sm:$0xff]
          %v7517 = vld [vmem:[#allocation6 + $0x710] sm:$0xff]
          %v7518 = vld [vmem:[#allocation6 + $0x720] sm:$0xff]
          %v7519 = vld [vmem:[#allocation6 + $0x730] sm:$0xff]
          %v7520 = vld [vmem:[#allocation6 + $0x740] sm:$0xff]
          %v7521 = vld [vmem:[#allocation6 + $0x750] sm:$0xff]
          %v7522 = vld [vmem:[#allocation6 + $0x760] sm:$0xff]
          %v7523 = vld [vmem:[#allocation6 + $0x770] sm:$0xff]
          %v7524 = vld [vmem:[#allocation6 + $0x780] sm:$0xff]
          %v7525 = vld [vmem:[#allocation6 + $0x790] sm:$0xff]
          %v7526 = vld [vmem:[#allocation6 + $0x7a0] sm:$0xff]
          %v7527 = vld [vmem:[#allocation6 + $0x7b0] sm:$0xff]
          %v7528 = vld [vmem:[#allocation6 + $0x7c0] sm:$0xff]
          %v7529 = vld [vmem:[#allocation6 + $0x7d0] sm:$0xff]
          %v7530 = vld [vmem:[#allocation6 + $0x7e0] sm:$0xff]
          %v7531 = vld [vmem:[#allocation6 + $0x7f0] sm:$0xff]
          %v7532 = vld [vmem:[#allocation6 + $0x800] sm:$0xff]
          %v7533 = vld [vmem:[#allocation6 + $0x810] sm:$0xff]
          %v7534 = vld [vmem:[#allocation6 + $0x820] sm:$0xff]
          %v7535 = vld [vmem:[#allocation6 + $0x830] sm:$0xff]
          %v7536 = vld [vmem:[#allocation6 + $0x840] sm:$0xff]
          %v7537 = vld [vmem:[#allocation6 + $0x850] sm:$0xff]
          %v7538 = vld [vmem:[#allocation6 + $0x860] sm:$0xff]
          %v7539 = vld [vmem:[#allocation6 + $0x870] sm:$0xff]
          %v7540 = vld [vmem:[#allocation6 + $0x880] ss:$0 sm:$0xff]
          %7541 = vmatprep.subr.mxu0 0.0
          %7542 = vmatpush1.msra.mxu0 %v7508
          %7543 = vmatprep.subr.mxu0 0.0
          %7544 = vmatpush1.msra.mxu0 %v7509
          %7545 = vmatprep.subr.mxu0 0.0
          %7546 = vmatpush1.msra.mxu0 %v7510
          %7547 = vmatprep.subr.mxu0 0.0
          %7548 = vmatpush1.msra.mxu0 %v7511
          %7549 = vmatprep.subr.mxu0 0.0
          %7550 = vmatpush1.msra.mxu0 %v7512
          %7551 = vmatprep.subr.mxu0 0.0
          %7552 = vmatpush1.msra.mxu0 %v7513
          %7553 = vmatprep.subr.mxu0 0.0
          %7554 = vmatpush1.msra.mxu0 %v7514
          %7555 = vmatprep.subr.mxu0 0.0
          %7556 = vmatpush1.msra.mxu0 %v7515
          %7557 = vmatprep.subr.mxu0 0.0
          %7558 = vmatpush1.msra.mxu0 %v7516
          %7559 = vmatprep.subr.mxu0 0.0
          %7560 = vmatpush1.msra.mxu0 %v7517
          %7561 = vmatprep.subr.mxu0 0.0
          %7562 = vmatpush1.msra.mxu0 %v7518
          %7563 = vmatprep.subr.mxu0 0.0
          %7564 = vmatpush1.msra.mxu0 %v7519
          %7565 = vmatprep.subr.mxu0 0.0
          %7566 = vmatpush1.msra.mxu0 %v7520
          %7567 = vmatprep.subr.mxu0 0.0
          %7568 = vmatpush1.msra.mxu0 %v7521
          %7569 = vmatprep.subr.mxu0 0.0
          %7570 = vmatpush1.msra.mxu0 %v7522
          %7571 = vmatprep.subr.mxu0 0.0
          %7572 = vmatpush1.msra.mxu0 %v7523
          %7573 = vmatprep.subr.mxu0 0.0
          %7574 = vmatpush1.msra.mxu0 %v7524
          %7575 = vmatprep.subr.mxu0 0.0
          %7576 = vmatpush1.msra.mxu0 %v7525
          %7577 = vmatprep.subr.mxu0 0.0
          %7578 = vmatpush1.msra.mxu0 %v7526
          %7579 = vmatprep.subr.mxu0 0.0
          %7580 = vmatpush1.msra.mxu0 %v7527
          %7581 = vmatprep.subr.mxu0 0.0
          %7582 = vmatpush1.msra.mxu0 %v7528
          %7583 = vmatprep.subr.mxu0 0.0
          %7584 = vmatpush1.msra.mxu0 %v7529
          %7585 = vmatprep.subr.mxu0 0.0
          %7586 = vmatpush1.msra.mxu0 %v7530
          %7587 = vmatprep.subr.mxu0 0.0
          %7588 = vmatpush1.msra.mxu0 %v7531
          %7589 = vmatprep.subr.mxu0 0.0
          %7590 = vmatpush1.msra.mxu0 %v7532
          %7591 = vmatprep.subr.mxu0 0.0
          %7592 = vmatpush1.msra.mxu0 %v7533
          %7593 = vmatprep.subr.mxu0 0.0
          %7594 = vmatpush1.msra.mxu0 %v7534
          %7595 = vmatprep.subr.mxu0 0.0
          %7596 = vmatpush1.msra.mxu0 %v7535
          %7597 = vmatprep.subr.mxu0 0.0
          %7598 = vmatpush1.msra.mxu0 %v7536
          %7599 = vmatprep.subr.mxu0 0.0
          %7600 = vmatpush1.msra.mxu0 %v7537
          %7601 = vmatprep.subr.mxu0 0.0
          %7602 = vmatpush1.msra.mxu0 %v7538
          %7603 = vmatprep.subr.mxu0 0.0
          %7604 = vmatpush1.msra.mxu0 %v7539
          %7605 = vmatprep.mubr.f32.mxu0 %v7507
          %7606 = vmatmul.mubr.f32.gmra.mrb[0].mxu0 %v7506
          %v7607 = vpop.f32.mrb[0].mxu0
          %v7608 = vadd.f32 %v7540, %v7607
          %v7609 = vpop.f32.mrb[0].mxu0
          %7610 = vdwg.mxu0
          %v7611 = vmax.f32 %v7608, 0.0
          %v7612 = vld [vmem:[#allocation6 + $0x890] sm:$0xff]
          %v7613 = vld [vmem:[#allocation6 + $0x8a0] sm:$0xff]
          %v7614 = vld [vmem:[#allocation6 + $0x8b0] sm:$0xff]
          %v7615 = vld [vmem:[#allocation6 + $0x8c0] sm:$0xff]
          %v7616 = vld [vmem:[#allocation6 + $0x8d0] sm:$0xff]
          %v7617 = vld [vmem:[#allocation6 + $0x8e0] sm:$0xff]
          %v7618 = vld [vmem:[#allocation6 + $0x8f0] sm:$0xff]
          %v7619 = vld [vmem:[#allocation6 + $0x900] sm:$0xff]
          %v7620 = vld [vmem:[#allocation6 + $0x910] sm:$0xff]
          %v7621 = vld [vmem:[#allocation6 + $0x920] sm:$0xff]
          %v7622 = vld [vmem:[#allocation6 + $0x930] sm:$0xff]
          %v7623 = vld [vmem:[#allocation6 + $0x940] sm:$0xff]
          %v7624 = vld [vmem:[#allocation6 + $0x950] sm:$0xff]
          %v7625 = vld [vmem:[#allocation6 + $0x960] sm:$0xff]
          %v7626 = vld [vmem:[#allocation6 + $0x970] sm:$0xff]
          %v7627 = vld [vmem:[#allocation6 + $0x980] sm:$0xff]
          %v7628 = vld [vmem:[#allocation6 + $0x990] ss:$0 sm:$0xff]
          %7629 = vmatprep.subr.mxu0 0.0
          %7630 = vmatpush1.msra.mxu0 %v7612
          %7631 = vmatprep.subr.mxu0 0.0
          %7632 = vmatpush1.msra.mxu0 %v7613
          %7633 = vmatprep.subr.mxu0 0.0
          %7634 = vmatpush1.msra.mxu0 %v7614
          %7635 = vmatprep.subr.mxu0 0.0
          %7636 = vmatpush1.msra.mxu0 %v7615
          %7637 = vmatprep.subr.mxu0 0.0
          %7638 = vmatpush1.msra.mxu0 %v7616
          %7639 = vmatprep.subr.mxu0 0.0
          %7640 = vmatpush1.msra.mxu0 %v7617
          %7641 = vmatprep.subr.mxu0 0.0
          %7642 = vmatpush1.msra.mxu0 %v7618
          %7643 = vmatprep.subr.mxu0 0.0
          %7644 = vmatpush1.msra.mxu0 %v7619
          %7645 = vmatprep.subr.mxu0 0.0
          %7646 = vmatpush1.msra.mxu0 %v7620
          %7647 = vmatprep.subr.mxu0 0.0
          %7648 = vmatpush1.msra.mxu0 %v7621
          %7649 = vmatprep.subr.mxu0 0.0
          %7650 = vmatpush1.msra.mxu0 %v7622
          %7651 = vmatprep.subr.mxu0 0.0
          %7652 = vmatpush1.msra.mxu0 %v7623
          %7653 = vmatprep.subr.mxu0 0.0
          %7654 = vmatpush1.msra.mxu0 %v7624
          %7655 = vmatprep.subr.mxu0 0.0
          %7656 = vmatpush1.msra.mxu0 %v7625
          %7657 = vmatprep.subr.mxu0 0.0
          %7658 = vmatpush1.msra.mxu0 %v7626
          %7659 = vmatprep.subr.mxu0 0.0
          %7660 = vmatpush1.msra.mxu0 %v7627
          %7661 = vmatprep.subr.mxu0 0.0
          %7662 = vmatpush1.msra.mxu0 0.0
          %7663 = vmatprep.subr.mxu0 0.0
          %7664 = vmatpush1.msra.mxu0 0.0
          %7665 = vmatprep.subr.mxu0 0.0
          %7666 = vmatpush1.msra.mxu0 0.0
          %7667 = vmatprep.subr.mxu0 0.0
          %7668 = vmatpush1.msra.mxu0 0.0
          %7669 = vmatprep.subr.mxu0 0.0
          %7670 = vmatpush1.msra.mxu0 0.0
          %7671 = vmatprep.subr.mxu0 0.0
          %7672 = vmatpush1.msra.mxu0 0.0
          %7673 = vmatprep.subr.mxu0 0.0
          %7674 = vmatpush1.msra.mxu0 0.0
          %7675 = vmatprep.subr.mxu0 0.0
          %7676 = vmatpush1.msra.mxu0 0.0
          %7677 = vmatprep.subr.mxu0 0.0
          %7678 = vmatpush1.msra.mxu0 0.0
          %7679 = vmatprep.subr.mxu0 0.0
          %7680 = vmatpush1.msra.mxu0 0.0
          %7681 = vmatprep.subr.mxu0 0.0
          %7682 = vmatpush1.msra.mxu0 0.0
          %7683 = vmatprep.subr.mxu0 0.0
          %7684 = vmatpush1.msra.mxu0 0.0
          %7685 = vmatprep.subr.mxu0 0.0
          %7686 = vmatpush1.msra.mxu0 0.0
          %7687 = vmatprep.subr.mxu0 0.0
          %7688 = vmatpush1.msra.mxu0 0.0
          %7689 = vmatprep.subr.mxu0 0.0
          %7690 = vmatpush1.msra.mxu0 0.0
          %7691 = vmatprep.subr.mxu0 0.0
          %7692 = vmatpush1.msra.mxu0 0.0
          %7693 = vmatprep.mubr.f32.mxu0 0.0
          %7694 = vmatmul.mubr.f32.gmra.mrb[0].mxu0 %v7611
          %v7695 = vpop.f32.mrb[0].mxu0
          %v7696 = vadd.f32 %v7628, %v7695
          %v7697 = vpop.f32.mrb[0].mxu0
          %7698 = vdwg.mxu0
          %v7699 = vmax.f32 %v7696, 0.0
          %v7700 = vld [vmem:[#allocation6 + $0x9a0] sm:$0xff]
          %v7701 = vld [vmem:[#allocation6 + $0x9b0] sm:$0xff]
          %v7702 = vld [vmem:[#allocation6 + $0x9c0] sm:$0xff]
          %v7703 = vld [vmem:[#allocation6 + $0x9d0] sm:$0xff]
          %v7704 = vld [vmem:[#allocation6 + $0x9e0] sm:$0xff]
          %v7705 = vld [vmem:[#allocation6 + $0x9f0] sm:$0xff]
          %v7706 = vld [vmem:[#allocation6 + $0xa00] sm:$0xff]
          %v7707 = vld [vmem:[#allocation6 + $0xa10] sm:$0xff]
          %v7708 = vld [vmem:[#allocation6 + $0xa20] ss:$0 sm:$0xff]
          %vm7709 = vcmask 523264
          %v7711 = vsel %vm7709, %v7699, 0
          %7713 = vmatprep.subr.mxu0 0.0
          %7714 = vmatpush1.msra.mxu0 %v7700
          %7715 = vmatprep.subr.mxu0 0.0
          %7716 = vmatpush1.msra.mxu0 %v7701
          %7717 = vmatprep.subr.mxu0 0.0
          %7718 = vmatpush1.msra.mxu0 %v7702
          %7719 = vmatprep.subr.mxu0 0.0
          %7720 = vmatpush1.msra.mxu0 %v7703
          %7721 = vmatprep.subr.mxu0 0.0
          %7722 = vmatpush1.msra.mxu0 %v7704
          %7723 = vmatprep.subr.mxu0 0.0
          %7724 = vmatpush1.msra.mxu0 %v7705
          %7725 = vmatprep.subr.mxu0 0.0
          %7726 = vmatpush1.msra.mxu0 %v7706
          %7727 = vmatprep.subr.mxu0 0.0
          %7728 = vmatpush1.msra.mxu0 %v7707
          %7729 = vmatprep.subr.mxu0 0.0
          %7730 = vmatpush1.msra.mxu0 0.0
          %7731 = vmatprep.subr.mxu0 0.0
          %7732 = vmatpush1.msra.mxu0 0.0
          %7733 = vmatprep.subr.mxu0 0.0
          %7734 = vmatpush1.msra.mxu0 0.0
          %7735 = vmatprep.subr.mxu0 0.0
          %7736 = vmatpush1.msra.mxu0 0.0
          %7737 = vmatprep.subr.mxu0 0.0
          %7738 = vmatpush1.msra.mxu0 0.0
          %7739 = vmatprep.subr.mxu0 0.0
          %7740 = vmatpush1.msra.mxu0 0.0
          %7741 = vmatprep.subr.mxu0 0.0
          %7742 = vmatpush1.msra.mxu0 0.0
          %7743 = vmatprep.subr.mxu0 0.0
          %7744 = vmatpush1.msra.mxu0 0.0
          %7745 = vmatprep.subr.mxu0 0.0
          %7746 = vmatpush1.msra.mxu0 0.0
          %7747 = vmatprep.subr.mxu0 0.0
          %7748 = vmatpush1.msra.mxu0 0.0
          %7749 = vmatprep.subr.mxu0 0.0
          %7750 = vmatpush1.msra.mxu0 0.0
          %7751 = vmatprep.subr.mxu0 0.0
          %7752 = vmatpush1.msra.mxu0 0.0
          %7753 = vmatprep.subr.mxu0 0.0
          %7754 = vmatpush1.msra.mxu0 0.0
          %7755 = vmatprep.subr.mxu0 0.0
          %7756 = vmatpush1.msra.mxu0 0.0
          %7757 = vmatprep.subr.mxu0 0.0
          %7758 = vmatpush1.msra.mxu0 0.0
          %7759 = vmatprep.subr.mxu0 0.0
          %7760 = vmatpush1.msra.mxu0 0.0
          %7761 = vmatprep.subr.mxu0 0.0
          %7762 = vmatpush1.msra.mxu0 0.0
          %7763 = vmatprep.subr.mxu0 0.0
          %7764 = vmatpush1.msra.mxu0 0.0
          %7765 = vmatprep.subr.mxu0 0.0
          %7766 = vmatpush1.msra.mxu0 0.0
          %7767 = vmatprep.subr.mxu0 0.0
          %7768 = vmatpush1.msra.mxu0 0.0
          %7769 = vmatprep.subr.mxu0 0.0
          %7770 = vmatpush1.msra.mxu0 0.0
          %7771 = vmatprep.subr.mxu0 0.0
          %7772 = vmatpush1.msra.mxu0 0.0
          %7773 = vmatprep.subr.mxu0 0.0
          %7774 = vmatpush1.msra.mxu0 0.0
          %7775 = vmatprep.subr.mxu0 0.0
          %7776 = vmatpush1.msra.mxu0 0.0
          %7777 = vmatprep.mubr.f32.mxu0 0.0
          %7778 = vmatmul.mubr.f32.gmra.mrb[0].mxu0 %v7711
          %v7779 = vpop.f32.mrb[0].mxu0
          %v7780 = vadd.f32 %v7708, %v7779
          %v7781 = vpop.f32.mrb[0].mxu0
          %7782 = vdwg.mxu0
          %v7783 = vld [vmem:[#allocation6 + $0xa30] sm:$0xff]
          %v7784 = vld [vmem:[#allocation6 + $0xa40] sm:$0xff]
          %v7785 = vld [vmem:[#allocation6 + $0xa50] sm:$0xff]
          %v7786 = vld [vmem:[#allocation6 + $0xa60] sm:$0x7f]
          %v7787 = vld [vmem:[#allocation6 + $0xa70] ss:$0 sm:$0xff]
          %v7789 = vsel %vm7060, %v7780, 0
          %v7792 = vsel %vm7064, %v7786, 0
          %7794 = vmatprep.subr.mxu0 0.0
          %7795 = vmatpush1.msra.mxu0 %v7783
          %7796 = vmatprep.subr.mxu0 0.0
          %7797 = vmatpush1.msra.mxu0 %v7784
          %7798 = vmatprep.subr.mxu0 0.0
          %7799 = vmatpush1.msra.mxu0 %v7785
          %7800 = vmatprep.subr.mxu0 0.0
          %7801 = vmatpush1.msra.mxu0 %v7792
          %7802 = vmatprep.subr.mxu0 0.0
          %7803 = vmatpush1.msra.mxu0 0.0
          %7804 = vmatprep.subr.mxu0 0.0
          %7805 = vmatpush1.msra.mxu0 0.0
          %7806 = vmatprep.subr.mxu0 0.0
          %7807 = vmatpush1.msra.mxu0 0.0
          %7808 = vmatprep.subr.mxu0 0.0
          %7809 = vmatpush1.msra.mxu0 0.0
          %7810 = vmatprep.subr.mxu0 0.0
          %7811 = vmatpush1.msra.mxu0 0.0
          %7812 = vmatprep.subr.mxu0 0.0
          %7813 = vmatpush1.msra.mxu0 0.0
          %7814 = vmatprep.subr.mxu0 0.0
          %7815 = vmatpush1.msra.mxu0 0.0
          %7816 = vmatprep.subr.mxu0 0.0
          %7817 = vmatpush1.msra.mxu0 0.0
          %7818 = vmatprep.subr.mxu0 0.0
          %7819 = vmatpush1.msra.mxu0 0.0
          %7820 = vmatprep.subr.mxu0 0.0
          %7821 = vmatpush1.msra.mxu0 0.0
          %7822 = vmatprep.subr.mxu0 0.0
          %7823 = vmatpush1.msra.mxu0 0.0
          %7824 = vmatprep.subr.mxu0 0.0
          %7825 = vmatpush1.msra.mxu0 0.0
          %7826 = vmatprep.subr.mxu0 0.0
          %7827 = vmatpush1.msra.mxu0 0.0
          %7828 = vmatprep.subr.mxu0 0.0
          %7829 = vmatpush1.msra.mxu0 0.0
          %7830 = vmatprep.subr.mxu0 0.0
          %7831 = vmatpush1.msra.mxu0 0.0
          %7832 = vmatprep.subr.mxu0 0.0
          %7833 = vmatpush1.msra.mxu0 0.0
          %7834 = vmatprep.subr.mxu0 0.0
          %7835 = vmatpush1.msra.mxu0 0.0
          %7836 = vmatprep.subr.mxu0 0.0
          %7837 = vmatpush1.msra.mxu0 0.0
          %7838 = vmatprep.subr.mxu0 0.0
          %7839 = vmatpush1.msra.mxu0 0.0
          %7840 = vmatprep.subr.mxu0 0.0
          %7841 = vmatpush1.msra.mxu0 0.0
          %7842 = vmatprep.subr.mxu0 0.0
          %7843 = vmatpush1.msra.mxu0 0.0
          %7844 = vmatprep.subr.mxu0 0.0
          %7845 = vmatpush1.msra.mxu0 0.0
          %7846 = vmatprep.subr.mxu0 0.0
          %7847 = vmatpush1.msra.mxu0 0.0
          %7848 = vmatprep.subr.mxu0 0.0
          %7849 = vmatpush1.msra.mxu0 0.0
          %7850 = vmatprep.subr.mxu0 0.0
          %7851 = vmatpush1.msra.mxu0 0.0
          %7852 = vmatprep.subr.mxu0 0.0
          %7853 = vmatpush1.msra.mxu0 0.0
          %7854 = vmatprep.subr.mxu0 0.0
          %7855 = vmatpush1.msra.mxu0 0.0
          %7856 = vmatprep.subr.mxu0 0.0
          %7857 = vmatpush1.msra.mxu0 0.0
          %7858 = vmatprep.mubr.f32.mxu0 0.0
          %7859 = vmatmul.mubr.f32.gmra.mrb[0].mxu0 %v7789
          %v7860 = vpop.f32.mrb[0].mxu0
          %v7861 = vadd.f32 %v7787, %v7860
          %v7862 = vpop.f32.mrb[0].mxu0
          %7863 = vdwg.mxu0
          %v7864 = vmax.f32 %v7861, 0.0
          %v7865 = vld [vmem:[#allocation6 + $0xa80] sm:$0xff]
          %v7866 = vld [vmem:[#allocation6 + $0xa90] sm:$0xff]
          %v7867 = vld [vmem:[#allocation6 + $0xaa0] sm:$0xff]
          %v7868 = vld [vmem:[#allocation6 + $0xab0] sm:$0x7f]
          %v7869 = vld [vmem:[#allocation6 + $0xac0] ss:$0 sm:$0xff]
          %v7871 = vsel %vm7064, %v7868, 0
          %7873 = vmatprep.subr.mxu0 0.0
          %7874 = vmatpush1.msra.mxu0 %v7865
          %7875 = vmatprep.subr.mxu0 0.0
          %7876 = vmatpush1.msra.mxu0 %v7866
          %7877 = vmatprep.subr.mxu0 0.0
          %7878 = vmatpush1.msra.mxu0 %v7867
          %7879 = vmatprep.subr.mxu0 0.0
          %7880 = vmatpush1.msra.mxu0 %v7871
          %7881 = vmatprep.subr.mxu0 0.0
          %7882 = vmatpush1.msra.mxu0 0.0
          %7883 = vmatprep.subr.mxu0 0.0
          %7884 = vmatpush1.msra.mxu0 0.0
          %7885 = vmatprep.subr.mxu0 0.0
          %7886 = vmatpush1.msra.mxu0 0.0
          %7887 = vmatprep.subr.mxu0 0.0
          %7888 = vmatpush1.msra.mxu0 0.0
          %7889 = vmatprep.subr.mxu0 0.0
          %7890 = vmatpush1.msra.mxu0 0.0
          %7891 = vmatprep.subr.mxu0 0.0
          %7892 = vmatpush1.msra.mxu0 0.0
          %7893 = vmatprep.subr.mxu0 0.0
          %7894 = vmatpush1.msra.mxu0 0.0
          %7895 = vmatprep.subr.mxu0 0.0
          %7896 = vmatpush1.msra.mxu0 0.0
          %7897 = vmatprep.subr.mxu0 0.0
          %7898 = vmatpush1.msra.mxu0 0.0
          %7899 = vmatprep.subr.mxu0 0.0
          %7900 = vmatpush1.msra.mxu0 0.0
          %7901 = vmatprep.subr.mxu0 0.0
          %7902 = vmatpush1.msra.mxu0 0.0
          %7903 = vmatprep.subr.mxu0 0.0
          %7904 = vmatpush1.msra.mxu0 0.0
          %7905 = vmatprep.subr.mxu0 0.0
          %7906 = vmatpush1.msra.mxu0 0.0
          %7907 = vmatprep.subr.mxu0 0.0
          %7908 = vmatpush1.msra.mxu0 0.0
          %7909 = vmatprep.subr.mxu0 0.0
          %7910 = vmatpush1.msra.mxu0 0.0
          %7911 = vmatprep.subr.mxu0 0.0
          %7912 = vmatpush1.msra.mxu0 0.0
          %7913 = vmatprep.subr.mxu0 0.0
          %7914 = vmatpush1.msra.mxu0 0.0
          %7915 = vmatprep.subr.mxu0 0.0
          %7916 = vmatpush1.msra.mxu0 0.0
          %7917 = vmatprep.subr.mxu0 0.0
          %7918 = vmatpush1.msra.mxu0 0.0
          %7919 = vmatprep.subr.mxu0 0.0
          %7920 = vmatpush1.msra.mxu0 0.0
          %7921 = vmatprep.subr.mxu0 0.0
          %7922 = vmatpush1.msra.mxu0 0.0
          %7923 = vmatprep.subr.mxu0 0.0
          %7924 = vmatpush1.msra.mxu0 0.0
          %7925 = vmatprep.subr.mxu0 0.0
          %7926 = vmatpush1.msra.mxu0 0.0
          %7927 = vmatprep.subr.mxu0 0.0
          %7928 = vmatpush1.msra.mxu0 0.0
          %7929 = vmatprep.subr.mxu0 0.0
          %7930 = vmatpush1.msra.mxu0 0.0
          %7931 = vmatprep.subr.mxu0 0.0
          %7932 = vmatpush1.msra.mxu0 0.0
          %7933 = vmatprep.subr.mxu0 0.0
          %7934 = vmatpush1.msra.mxu0 0.0
          %7935 = vmatprep.subr.mxu0 0.0
          %7936 = vmatpush1.msra.mxu0 0.0
          %7937 = vmatprep.mubr.f32.mxu0 0.0
          %7938 = vmatmul.mubr.f32.gmra.mrb[0].mxu0 %v7789
          %v7939 = vpop.f32.mrb[0].mxu0
          %v7940 = vadd.f32 %v7869, %v7939
          %v7941 = vpop.f32.mrb[0].mxu0
          %7942 = vdwg.mxu0
          %v7943 = vmax.f32 %v7940, 0.0
          %v7944 = vld [vmem:[#allocation6 + $0xad0] sm:$0xff]
          %v7945 = vld [vmem:[#allocation6 + $0xae0] sm:$0xff]
          %v7946 = vld [vmem:[#allocation6 + $0xaf0] sm:$0xff]
          %v7947 = vld [vmem:[#allocation6 + $0xb00] sm:$0x7f]
          %v7948 = vld [vmem:[#allocation6 + $0xb10] ss:$0 sm:$0xff]
          %v7950 = vsel %vm7064, %v7947, 0
          %7952 = vmatprep.subr.mxu0 0.0
          %7953 = vmatpush1.msra.mxu0 %v7944
          %7954 = vmatprep.subr.mxu0 0.0
          %7955 = vmatpush1.msra.mxu0 %v7945
          %7956 = vmatprep.subr.mxu0 0.0
          %7957 = vmatpush1.msra.mxu0 %v7946
          %7958 = vmatprep.subr.mxu0 0.0
          %7959 = vmatpush1.msra.mxu0 %v7950
          %7960 = vmatprep.subr.mxu0 0.0
          %7961 = vmatpush1.msra.mxu0 0.0
          %7962 = vmatprep.subr.mxu0 0.0
          %7963 = vmatpush1.msra.mxu0 0.0
          %7964 = vmatprep.subr.mxu0 0.0
          %7965 = vmatpush1.msra.mxu0 0.0
          %7966 = vmatprep.subr.mxu0 0.0
          %7967 = vmatpush1.msra.mxu0 0.0
          %7968 = vmatprep.subr.mxu0 0.0
          %7969 = vmatpush1.msra.mxu0 0.0
          %7970 = vmatprep.subr.mxu0 0.0
          %7971 = vmatpush1.msra.mxu0 0.0
          %7972 = vmatprep.subr.mxu0 0.0
          %7973 = vmatpush1.msra.mxu0 0.0
          %7974 = vmatprep.subr.mxu0 0.0
          %7975 = vmatpush1.msra.mxu0 0.0
          %7976 = vmatprep.subr.mxu0 0.0
          %7977 = vmatpush1.msra.mxu0 0.0
          %7978 = vmatprep.subr.mxu0 0.0
          %7979 = vmatpush1.msra.mxu0 0.0
          %7980 = vmatprep.subr.mxu0 0.0
          %7981 = vmatpush1.msra.mxu0 0.0
          %7982 = vmatprep.subr.mxu0 0.0
          %7983 = vmatpush1.msra.mxu0 0.0
          %7984 = vmatprep.subr.mxu0 0.0
          %7985 = vmatpush1.msra.mxu0 0.0
          %7986 = vmatprep.subr.mxu0 0.0
          %7987 = vmatpush1.msra.mxu0 0.0
          %7988 = vmatprep.subr.mxu0 0.0
          %7989 = vmatpush1.msra.mxu0 0.0
          %7990 = vmatprep.subr.mxu0 0.0
          %7991 = vmatpush1.msra.mxu0 0.0
          %7992 = vmatprep.subr.mxu0 0.0
          %7993 = vmatpush1.msra.mxu0 0.0
          %7994 = vmatprep.subr.mxu0 0.0
          %7995 = vmatpush1.msra.mxu0 0.0
          %7996 = vmatprep.subr.mxu0 0.0
          %7997 = vmatpush1.msra.mxu0 0.0
          %7998 = vmatprep.subr.mxu0 0.0
          %7999 = vmatpush1.msra.mxu0 0.0
          %8000 = vmatprep.subr.mxu0 0.0
          %8001 = vmatpush1.msra.mxu0 0.0
          %8002 = vmatprep.subr.mxu0 0.0
          %8003 = vmatpush1.msra.mxu0 0.0
          %8004 = vmatprep.subr.mxu0 0.0
          %8005 = vmatpush1.msra.mxu0 0.0
          %8006 = vmatprep.subr.mxu0 0.0
          %8007 = vmatpush1.msra.mxu0 0.0
          %8008 = vmatprep.subr.mxu0 0.0
          %8009 = vmatpush1.msra.mxu0 0.0
          %8010 = vmatprep.subr.mxu0 0.0
          %8011 = vmatpush1.msra.mxu0 0.0
          %8012 = vmatprep.subr.mxu0 0.0
          %8013 = vmatpush1.msra.mxu0 0.0
          %8014 = vmatprep.subr.mxu0 0.0
          %8015 = vmatpush1.msra.mxu0 0.0
          %8016 = vmatprep.mubr.f32.mxu0 0.0
          %8017 = vmatmul.mubr.f32.gmra.mrb[0].mxu0 %v7789
          %v8018 = vpop.f32.mrb[0].mxu0
          %v8019 = vadd.f32 %v7948, %v8018
          %v8020 = vpop.f32.mrb[0].mxu0
          %8021 = vdwg.mxu0
          %v8022 = vmax.f32 %v8019, 0.0
          %v8023 = vlaneseq
          %v8024 = vshrl.u32 %v8023, 7
          %v8025 = vmul.u32 %v8024, 4
          %v8026 = vlaneseq
          %v8027 = vand.u32 %v8026, 127
          %v8028 = vadd.s32 %v8025, %v8027
          %vm8029 = vcmp.eq.s32.totalorder %v8028, 0
          %s8031 = vtos %v7943
          %v8032 = vstv %s8031
          %v8034 = vsel %vm8029, %v8032, 0.0
          %v8035 = vadd.f32 %v8034, 0.0
          %vm8036 = vcmp.eq.s32.totalorder %v8028, 1
          %8037 = vrot.lane.b32.xlu0 %v7943, 127
          %v8038 = vpop.permute.xlu0 %8037
          %s8039 = vtos %v8038
          %v8040 = vstv %s8039
          %v8042 = vsel %vm8036, %v8040, 0.0
          %v8043 = vadd.f32 %v8035, %v8042
          %vm8044 = vcmp.eq.s32.totalorder %v8028, 2
          %8045 = vrot.lane.b32.xlu0 %v7943, 126
          %v8046 = vpop.permute.xlu0 %8045
          %s8047 = vtos %v8046
          %v8048 = vstv %s8047
          %v8050 = vsel %vm8044, %v8048, 0.0
          %v8051 = vadd.f32 %v8043, %v8050
          %vm8052 = vcmp.eq.s32.totalorder %v8028, 3
          %v8053 = vrot.slane %v7943, 1
          %s8054 = vtos %v8053
          %v8055 = vstv %s8054
          %v8057 = vsel %vm8052, %v8055, 0.0
          %v8058 = vadd.f32 %v8051, %v8057
          %vm8059 = vcmp.eq.s32.totalorder %v8028, 4
          %8060 = vrot.lane.b32.xlu0 %v8053, 127
          %v8061 = vpop.permute.xlu0 %8060
          %s8062 = vtos %v8061
          %v8063 = vstv %s8062
          %v8065 = vsel %vm8059, %v8063, 0.0
          %v8066 = vadd.f32 %v8058, %v8065
          %vm8067 = vcmp.eq.s32.totalorder %v8028, 5
          %8068 = vrot.lane.b32.xlu0 %v8053, 126
          %v8069 = vpop.permute.xlu0 %8068
          %s8070 = vtos %v8069
          %v8071 = vstv %s8070
          %v8073 = vsel %vm8067, %v8071, 0.0
          %v8074 = vadd.f32 %v8066, %v8073
          %vm8075 = vcmp.eq.s32.totalorder %v8028, 6
          %v8076 = vrot.slane %v7943, 2
          %s8077 = vtos %v8076
          %v8078 = vstv %s8077
          %v8080 = vsel %vm8075, %v8078, 0.0
          %v8081 = vadd.f32 %v8074, %v8080
          %vm8082 = vcmp.eq.s32.totalorder %v8028, 7
          %8083 = vrot.lane.b32.xlu0 %v8076, 127
          %v8084 = vpop.permute.xlu0 %8083
          %s8085 = vtos %v8084
          %v8086 = vstv %s8085
          %v8088 = vsel %vm8082, %v8086, 0.0
          %v8089 = vadd.f32 %v8081, %v8088
          %vm8090 = vcmp.eq.s32.totalorder %v8028, 8
          %8091 = vrot.lane.b32.xlu0 %v8076, 126
          %v8092 = vpop.permute.xlu0 %8091
          %s8093 = vtos %v8092
          %v8094 = vstv %s8093
          %v8096 = vsel %vm8090, %v8094, 0.0
          %v8097 = vadd.f32 %v8089, %v8096
          %vm8098 = vcmp.eq.s32.totalorder %v8028, 9
          %v8099 = vrot.slane %v7943, 3
          %s8100 = vtos %v8099
          %v8101 = vstv %s8100
          %v8103 = vsel %vm8098, %v8101, 0.0
          %v8104 = vadd.f32 %v8097, %v8103
          %vm8105 = vcmp.eq.s32.totalorder %v8028, 10
          %8106 = vrot.lane.b32.xlu0 %v8099, 127
          %v8107 = vpop.permute.xlu0 %8106
          %s8108 = vtos %v8107
          %v8109 = vstv %s8108
          %v8111 = vsel %vm8105, %v8109, 0.0
          %v8112 = vadd.f32 %v8104, %v8111
          %vm8113 = vcmp.eq.s32.totalorder %v8028, 11
          %8114 = vrot.lane.b32.xlu0 %v8099, 126
          %v8115 = vpop.permute.xlu0 %8114
          %s8116 = vtos %v8115
          %v8117 = vstv %s8116
          %v8119 = vsel %vm8113, %v8117, 0.0
          %v8120 = vadd.f32 %v8112, %v8119
          %vm8121 = vcmask 23552
          %v8123 = vsel %vm8121, %v7864, 0
          %vm8125 = vcmask 1042432
          %v8127 = vsel %vm8125, %v8120, 0
          %8129 = vmatprep.subr.mxu0 0.0
          %8130 = vmatpush1.msra.mxu0 %v8127
          %8131 = vmatprep.subr.mxu0 0.0
          %8132 = vmatpush1.msra.mxu0 0.0
          %8133 = vmatprep.subr.mxu0 0.0
          %8134 = vmatpush1.msra.mxu0 0.0
          %8135 = vmatprep.subr.mxu0 0.0
          %8136 = vmatpush1.msra.mxu0 0.0
          %8137 = vmatprep.subr.mxu0 0.0
          %8138 = vmatpush1.msra.mxu0 0.0
          %8139 = vmatprep.subr.mxu0 0.0
          %8140 = vmatpush1.msra.mxu0 0.0
          %8141 = vmatprep.subr.mxu0 0.0
          %8142 = vmatpush1.msra.mxu0 0.0
          %8143 = vmatprep.subr.mxu0 0.0
          %8144 = vmatpush1.msra.mxu0 0.0
          %8145 = vmatprep.subr.mxu0 0.0
          %8146 = vmatpush1.msra.mxu0 0.0
          %8147 = vmatprep.subr.mxu0 0.0
          %8148 = vmatpush1.msra.mxu0 0.0
          %8149 = vmatprep.subr.mxu0 0.0
          %8150 = vmatpush1.msra.mxu0 0.0
          %8151 = vmatprep.subr.mxu0 0.0
          %8152 = vmatpush1.msra.mxu0 0.0
          %8153 = vmatprep.subr.mxu0 0.0
          %8154 = vmatpush1.msra.mxu0 0.0
          %8155 = vmatprep.subr.mxu0 0.0
          %8156 = vmatpush1.msra.mxu0 0.0
          %8157 = vmatprep.subr.mxu0 0.0
          %8158 = vmatpush1.msra.mxu0 0.0
          %8159 = vmatprep.subr.mxu0 0.0
          %8160 = vmatpush1.msra.mxu0 0.0
          %8161 = vmatprep.subr.mxu0 0.0
          %8162 = vmatpush1.msra.mxu0 0.0
          %8163 = vmatprep.subr.mxu0 0.0
          %8164 = vmatpush1.msra.mxu0 0.0
          %8165 = vmatprep.subr.mxu0 0.0
          %8166 = vmatpush1.msra.mxu0 0.0
          %8167 = vmatprep.subr.mxu0 0.0
          %8168 = vmatpush1.msra.mxu0 0.0
          %8169 = vmatprep.subr.mxu0 0.0
          %8170 = vmatpush1.msra.mxu0 0.0
          %8171 = vmatprep.subr.mxu0 0.0
          %8172 = vmatpush1.msra.mxu0 0.0
          %8173 = vmatprep.subr.mxu0 0.0
          %8174 = vmatpush1.msra.mxu0 0.0
          %8175 = vmatprep.subr.mxu0 0.0
          %8176 = vmatpush1.msra.mxu0 0.0
          %8177 = vmatprep.subr.mxu0 0.0
          %8178 = vmatpush1.msra.mxu0 0.0
          %8179 = vmatprep.subr.mxu0 0.0
          %8180 = vmatpush1.msra.mxu0 0.0
          %8181 = vmatprep.subr.mxu0 0.0
          %8182 = vmatpush1.msra.mxu0 0.0
          %8183 = vmatprep.subr.mxu0 0.0
          %8184 = vmatpush1.msra.mxu0 0.0
          %8185 = vmatprep.subr.mxu0 0.0
          %8186 = vmatpush1.msra.mxu0 0.0
          %8187 = vmatprep.subr.mxu0 0.0
          %8188 = vmatpush1.msra.mxu0 0.0
          %8189 = vmatprep.subr.mxu0 0.0
          %8190 = vmatpush1.msra.mxu0 0.0
          %8191 = vmatprep.subr.mxu0 0.0
          %8192 = vmatpush1.msra.mxu0 0.0
          %8193 = vmatprep.mubr.f32.mxu0 0.0
          %8194 = vmatmul.mubr.f32.gmra.mrb[0].mxu0 %v8123
          %v8195 = vpop.f32.mrb[0].mxu0
          %v8196 = vadd.f32 0.0, %v8195
          %v8197 = vpop.f32.mrb[0].mxu0
          %8198 = vdwg.mxu0
          %vm8199 = vcmask 27648
          %v8200 = vsel %vm8199, %v8196, -inf
          %8201 = vmax.xlane.f32.xlu0 %v8200
          %v8202 = vpop.xlane.xlu0 %8201
          %v8203 = vsub.f32 %v8196, %v8202
          %v8204 = vmul.f32 %v8203, 1.442695
          %v8205 = vpow.pop %v8204
          %v8206 = vsel %vm8199, %v8205, 0.0
          %8207 = vadd.xlane.f32.xlu0 %v8206
          %v8208 = vpop.xlane.xlu0 %8207
          %v8209 = vrcp.pop %v8208
          %v8210 = vmul.f32 %v8205, %v8209
          %v8211 = vld [vmem:[#allocation6 + $0x1090] sm:$0xff]
          %v8212 = vld [vmem:[#allocation6 + $0x10a0] sm:$0xff]
          %v8213 = vld [vmem:[#allocation6 + $0x10b0] sm:$0xff]
          %v8214 = vld [vmem:[#allocation6 + $0x10c0] sm:$0xff]
          %v8215 = vld [vmem:[#allocation6 + $0x10d0] sm:$0xff]
          %v8216 = vld [vmem:[#allocation6 + $0x10e0] sm:$0xff]
          %v8217 = vld [vmem:[#allocation6 + $0x10f0] sm:$0xff]
          %v8218 = vld [vmem:[#allocation6 + $0x1100] sm:$0xff]
          %v8219 = vld [vmem:[#allocation6 + $0x1110] sm:$0xff]
          %v8220 = vld [vmem:[#allocation6 + $0x1120] sm:$0xff]
          %v8221 = vld [vmem:[#allocation6 + $0x1130] sm:$0xff]
          %v8222 = vld [vmem:[#allocation6 + $0x1140] sm:$0xff]
          %v8223 = vld [vmem:[#allocation6 + $0x1150] sm:$0xf]
          %vm8224 = vcmask 31744
          %v8226 = vsel %vm8224, %v8211, 0
          %v8229 = vsel %vm8224, %v8212, 0
          %v8232 = vsel %vm8224, %v8213, 0
          %v8235 = vsel %vm8224, %v8214, 0
          %v8238 = vsel %vm8224, %v8215, 0
          %v8241 = vsel %vm8224, %v8216, 0
          %v8244 = vsel %vm8224, %v8217, 0
          %v8247 = vsel %vm8224, %v8218, 0
          %v8250 = vsel %vm8224, %v8219, 0
          %v8253 = vsel %vm8224, %v8220, 0
          %v8256 = vsel %vm8224, %v8221, 0
          %v8259 = vsel %vm8224, %v8222, 0
          %v8262 = vsel %vm8224, %v8223, 0
          %v8265 = vsel %vm6808, %v8210, 0
          %8267 = vmatprep.subr.mxu0 0.0
          %8268 = vmatpush1.msra.mxu0 %v8265
          %8269 = vmatprep.subr.mxu0 0.0
          %8270 = vmatpush1.msra.mxu0 0.0
          %8271 = vmatprep.subr.mxu0 0.0
          %8272 = vmatpush1.msra.mxu0 0.0
          %8273 = vmatprep.subr.mxu0 0.0
          %8274 = vmatpush1.msra.mxu0 0.0
          %8275 = vmatprep.subr.mxu0 0.0
          %8276 = vmatpush1.msra.mxu0 0.0
          %8277 = vmatprep.subr.mxu0 0.0
          %8278 = vmatpush1.msra.mxu0 0.0
          %8279 = vmatprep.subr.mxu0 0.0
          %8280 = vmatpush1.msra.mxu0 0.0
          %8281 = vmatprep.subr.mxu0 0.0
          %8282 = vmatpush1.msra.mxu0 0.0
          %8283 = vmatprep.subr.mxu0 0.0
          %8284 = vmatpush1.msra.mxu0 0.0
          %8285 = vmatprep.subr.mxu0 0.0
          %8286 = vmatpush1.msra.mxu0 0.0
          %8287 = vmatprep.subr.mxu0 0.0
          %8288 = vmatpush1.msra.mxu0 0.0
          %8289 = vmatprep.subr.mxu0 0.0
          %8290 = vmatpush1.msra.mxu0 0.0
          %8291 = vmatprep.subr.mxu0 0.0
          %8292 = vmatpush1.msra.mxu0 0.0
          %8293 = vmatprep.subr.mxu0 0.0
          %8294 = vmatpush1.msra.mxu0 0.0
          %8295 = vmatprep.subr.mxu0 0.0
          %8296 = vmatpush1.msra.mxu0 0.0
          %8297 = vmatprep.subr.mxu0 0.0
          %8298 = vmatpush1.msra.mxu0 0.0
          %8299 = vmatprep.subr.mxu0 0.0
          %8300 = vmatpush1.msra.mxu0 0.0
          %8301 = vmatprep.subr.mxu0 0.0
          %8302 = vmatpush1.msra.mxu0 0.0
          %8303 = vmatprep.subr.mxu0 0.0
          %8304 = vmatpush1.msra.mxu0 0.0
          %8305 = vmatprep.subr.mxu0 0.0
          %8306 = vmatpush1.msra.mxu0 0.0
          %8307 = vmatprep.subr.mxu0 0.0
          %8308 = vmatpush1.msra.mxu0 0.0
          %8309 = vmatprep.subr.mxu0 0.0
          %8310 = vmatpush1.msra.mxu0 0.0
          %8311 = vmatprep.subr.mxu0 0.0
          %8312 = vmatpush1.msra.mxu0 0.0
          %8313 = vmatprep.subr.mxu0 0.0
          %8314 = vmatpush1.msra.mxu0 0.0
          %8315 = vmatprep.subr.mxu0 0.0
          %8316 = vmatpush1.msra.mxu0 0.0
          %8317 = vmatprep.subr.mxu0 0.0
          %8318 = vmatpush1.msra.mxu0 0.0
          %8319 = vmatprep.subr.mxu0 0.0
          %8320 = vmatpush1.msra.mxu0 0.0
          %8321 = vmatprep.subr.mxu0 0.0
          %8322 = vmatpush1.msra.mxu0 0.0
          %8323 = vmatprep.subr.mxu0 0.0
          %8324 = vmatpush1.msra.mxu0 0.0
          %8325 = vmatprep.subr.mxu0 0.0
          %8326 = vmatpush1.msra.mxu0 0.0
          %8327 = vmatprep.subr.mxu0 0.0
          %8328 = vmatpush1.msra.mxu0 0.0
          %8329 = vmatprep.subr.mxu0 0.0
          %8330 = vmatpush1.msra.mxu0 0.0
          %8331 = vmatprep.mubr.f32.mxu0 0.0
          %8332 = vmatmul.mubr.f32.gmra.mrb[0].mxu0 %v8226
          %v8333 = vpop.f32.mrb[0].mxu0
          %v8334 = vadd.f32 0.0, %v8333
          %v8335 = vpop.f32.mrb[0].mxu0
          %8336 = vmatprep.mubr.f32.mxu0 0.0
          %8337 = vmatmul.mubr.f32.gmra.mrb[0].mxu0 %v8229
          %v8338 = vpop.f32.mrb[0].mxu0
          %v8339 = vadd.f32 0.0, %v8338
          %v8340 = vpop.f32.mrb[0].mxu0
          %8341 = vmatprep.mubr.f32.mxu0 0.0
          %8342 = vmatmul.mubr.f32.gmra.mrb[0].mxu0 %v8232
          %v8343 = vpop.f32.mrb[0].mxu0
          %v8344 = vadd.f32 0.0, %v8343
          %v8345 = vpop.f32.mrb[0].mxu0
          %8346 = vmatprep.mubr.f32.mxu0 0.0
          %8347 = vmatmul.mubr.f32.gmra.mrb[0].mxu0 %v8235
          %v8348 = vpop.f32.mrb[0].mxu0
          %v8349 = vadd.f32 0.0, %v8348
          %v8350 = vpop.f32.mrb[0].mxu0
          %8351 = vmatprep.mubr.f32.mxu0 0.0
          %8352 = vmatmul.mubr.f32.gmra.mrb[0].mxu0 %v8238
          %v8353 = vpop.f32.mrb[0].mxu0
          %v8354 = vadd.f32 0.0, %v8353
          %v8355 = vpop.f32.mrb[0].mxu0
          %8356 = vmatprep.mubr.f32.mxu0 0.0
          %8357 = vmatmul.mubr.f32.gmra.mrb[0].mxu0 %v8241
          %v8358 = vpop.f32.mrb[0].mxu0
          %v8359 = vadd.f32 0.0, %v8358
          %v8360 = vpop.f32.mrb[0].mxu0
          %8361 = vmatprep.mubr.f32.mxu0 0.0
          %8362 = vmatmul.mubr.f32.gmra.mrb[0].mxu0 %v8244
          %v8363 = vpop.f32.mrb[0].mxu0
          %v8364 = vadd.f32 0.0, %v8363
          %v8365 = vpop.f32.mrb[0].mxu0
          %8366 = vmatprep.mubr.f32.mxu0 0.0
          %8367 = vmatmul.mubr.f32.gmra.mrb[0].mxu0 %v8247
          %v8368 = vpop.f32.mrb[0].mxu0
          %v8369 = vadd.f32 0.0, %v8368
          %v8370 = vpop.f32.mrb[0].mxu0
          %8371 = vmatprep.mubr.f32.mxu0 0.0
          %8372 = vmatmul.mubr.f32.gmra.mrb[0].mxu0 %v8250
          %v8373 = vpop.f32.mrb[0].mxu0
          %v8374 = vadd.f32 0.0, %v8373
          %v8375 = vpop.f32.mrb[0].mxu0
          %8376 = vmatprep.mubr.f32.mxu0 0.0
          %8377 = vmatmul.mubr.f32.gmra.mrb[0].mxu0 %v8253
          %v8378 = vpop.f32.mrb[0].mxu0
          %v8379 = vadd.f32 0.0, %v8378
          %v8380 = vpop.f32.mrb[0].mxu0
          %8381 = vmatprep.mubr.f32.mxu0 0.0
          %8382 = vmatmul.mubr.f32.gmra.mrb[0].mxu0 %v8256
          %v8383 = vpop.f32.mrb[0].mxu0
          %v8384 = vadd.f32 0.0, %v8383
          %v8385 = vpop.f32.mrb[0].mxu0
          %8386 = vmatprep.mubr.f32.mxu0 0.0
          %8387 = vmatmul.mubr.f32.gmra.mrb[0].mxu0 %v8259
          %v8388 = vpop.f32.mrb[0].mxu0
          %v8389 = vadd.f32 0.0, %v8388
          %v8390 = vpop.f32.mrb[0].mxu0
          %8391 = vmatprep.mubr.f32.mxu0 0.0
          %8392 = vmatmul.mubr.f32.gmra.mrb[0].mxu0 %v8262
          %v8393 = vpop.f32.mrb[0].mxu0
          %v8394 = vadd.f32 0.0, %v8393
          %v8395 = vpop.f32.mrb[0].mxu0
          %8396 = vdwg.mxu0
          %v8397 = vld [vmem:[#allocation6 + $0x1160] sm:$0xf]
          %v8399 = vsel %vm8224, %v8334, 0
          %v8402 = vsel %vm8224, %v8339, 0
          %v8405 = vsel %vm8224, %v8344, 0
          %v8408 = vsel %vm8224, %v8349, 0
          %v8411 = vsel %vm8224, %v8354, 0
          %v8414 = vsel %vm8224, %v8359, 0
          %v8417 = vsel %vm8224, %v8364, 0
          %v8420 = vsel %vm8224, %v8369, 0
          %v8423 = vsel %vm8224, %v8374, 0
          %v8426 = vsel %vm8224, %v8379, 0
          %v8429 = vsel %vm8224, %v8384, 0
          %v8432 = vsel %vm8224, %v8389, 0
          %v8435 = vsel %vm8224, %v8394, 0
          %v8438 = vsel %vm6808, %v8397, 0
          %8440 = vmatprep.subr.mxu0 0.0
          %8441 = vmatpush1.msra.mxu0 %v8438
          %8442 = vmatprep.subr.mxu0 0.0
          %8443 = vmatpush1.msra.mxu0 0.0
          %8444 = vmatprep.subr.mxu0 0.0
          %8445 = vmatpush1.msra.mxu0 0.0
          %8446 = vmatprep.subr.mxu0 0.0
          %8447 = vmatpush1.msra.mxu0 0.0
          %8448 = vmatprep.subr.mxu0 0.0
          %8449 = vmatpush1.msra.mxu0 0.0
          %8450 = vmatprep.subr.mxu0 0.0
          %8451 = vmatpush1.msra.mxu0 0.0
          %8452 = vmatprep.subr.mxu0 0.0
          %8453 = vmatpush1.msra.mxu0 0.0
          %8454 = vmatprep.subr.mxu0 0.0
          %8455 = vmatpush1.msra.mxu0 0.0
          %8456 = vmatprep.subr.mxu0 0.0
          %8457 = vmatpush1.msra.mxu0 0.0
          %8458 = vmatprep.subr.mxu0 0.0
          %8459 = vmatpush1.msra.mxu0 0.0
          %8460 = vmatprep.subr.mxu0 0.0
          %8461 = vmatpush1.msra.mxu0 0.0
          %8462 = vmatprep.subr.mxu0 0.0
          %8463 = vmatpush1.msra.mxu0 0.0
          %8464 = vmatprep.subr.mxu0 0.0
          %8465 = vmatpush1.msra.mxu0 0.0
          %8466 = vmatprep.subr.mxu0 0.0
          %8467 = vmatpush1.msra.mxu0 0.0
          %8468 = vmatprep.subr.mxu0 0.0
          %8469 = vmatpush1.msra.mxu0 0.0
          %8470 = vmatprep.subr.mxu0 0.0
          %8471 = vmatpush1.msra.mxu0 0.0
          %8472 = vmatprep.subr.mxu0 0.0
          %8473 = vmatpush1.msra.mxu0 0.0
          %8474 = vmatprep.subr.mxu0 0.0
          %8475 = vmatpush1.msra.mxu0 0.0
          %8476 = vmatprep.subr.mxu0 0.0
          %8477 = vmatpush1.msra.mxu0 0.0
          %8478 = vmatprep.subr.mxu0 0.0
          %8479 = vmatpush1.msra.mxu0 0.0
          %8480 = vmatprep.subr.mxu0 0.0
          %8481 = vmatpush1.msra.mxu0 0.0
          %8482 = vmatprep.subr.mxu0 0.0
          %8483 = vmatpush1.msra.mxu0 0.0
          %8484 = vmatprep.subr.mxu0 0.0
          %8485 = vmatpush1.msra.mxu0 0.0
          %8486 = vmatprep.subr.mxu0 0.0
          %8487 = vmatpush1.msra.mxu0 0.0
          %8488 = vmatprep.subr.mxu0 0.0
          %8489 = vmatpush1.msra.mxu0 0.0
          %8490 = vmatprep.subr.mxu0 0.0
          %8491 = vmatpush1.msra.mxu0 0.0
          %8492 = vmatprep.subr.mxu0 0.0
          %8493 = vmatpush1.msra.mxu0 0.0
          %8494 = vmatprep.subr.mxu0 0.0
          %8495 = vmatpush1.msra.mxu0 0.0
          %8496 = vmatprep.subr.mxu0 0.0
          %8497 = vmatpush1.msra.mxu0 0.0
          %8498 = vmatprep.subr.mxu0 0.0
          %8499 = vmatpush1.msra.mxu0 0.0
          %8500 = vmatprep.subr.mxu0 0.0
          %8501 = vmatpush1.msra.mxu0 0.0
          %8502 = vmatprep.subr.mxu0 0.0
          %8503 = vmatpush1.msra.mxu0 0.0
          %8504 = vmatprep.mubr.f32.mxu0 0.0
          %8505 = vmatmul.mubr.f32.gmra.mrb[0].mxu0 %v8399
          %v8506 = vpop.f32.mrb[0].mxu0
          %v8507 = vadd.f32 0.0, %v8506
          %v8508 = vpop.f32.mrb[0].mxu0
          %8509 = vmatprep.mubr.f32.mxu0 0.0
          %8510 = vmatmul.mubr.f32.gmra.mrb[0].mxu0 %v8402
          %v8511 = vpop.f32.mrb[0].mxu0
          %v8512 = vadd.f32 0.0, %v8511
          %v8513 = vpop.f32.mrb[0].mxu0
          %8514 = vmatprep.mubr.f32.mxu0 0.0
          %8515 = vmatmul.mubr.f32.gmra.mrb[0].mxu0 %v8405
          %v8516 = vpop.f32.mrb[0].mxu0
          %v8517 = vadd.f32 0.0, %v8516
          %v8518 = vpop.f32.mrb[0].mxu0
          %8519 = vmatprep.mubr.f32.mxu0 0.0
          %8520 = vmatmul.mubr.f32.gmra.mrb[0].mxu0 %v8408
          %v8521 = vpop.f32.mrb[0].mxu0
          %v8522 = vadd.f32 0.0, %v8521
          %v8523 = vpop.f32.mrb[0].mxu0
          %8524 = vmatprep.mubr.f32.mxu0 0.0
          %8525 = vmatmul.mubr.f32.gmra.mrb[0].mxu0 %v8411
          %v8526 = vpop.f32.mrb[0].mxu0
          %v8527 = vadd.f32 0.0, %v8526
          %v8528 = vpop.f32.mrb[0].mxu0
          %8529 = vmatprep.mubr.f32.mxu0 0.0
          %8530 = vmatmul.mubr.f32.gmra.mrb[0].mxu0 %v8414
          %v8531 = vpop.f32.mrb[0].mxu0
          %v8532 = vadd.f32 0.0, %v8531
          %v8533 = vpop.f32.mrb[0].mxu0
          %8534 = vmatprep.mubr.f32.mxu0 0.0
          %8535 = vmatmul.mubr.f32.gmra.mrb[0].mxu0 %v8417
          %v8536 = vpop.f32.mrb[0].mxu0
          %v8537 = vadd.f32 0.0, %v8536
          %v8538 = vpop.f32.mrb[0].mxu0
          %8539 = vmatprep.mubr.f32.mxu0 0.0
          %8540 = vmatmul.mubr.f32.gmra.mrb[0].mxu0 %v8420
          %v8541 = vpop.f32.mrb[0].mxu0
          %v8542 = vadd.f32 0.0, %v8541
          %v8543 = vpop.f32.mrb[0].mxu0
          %8544 = vmatprep.mubr.f32.mxu0 0.0
          %8545 = vmatmul.mubr.f32.gmra.mrb[0].mxu0 %v8423
          %v8546 = vpop.f32.mrb[0].mxu0
          %v8547 = vadd.f32 0.0, %v8546
          %v8548 = vpop.f32.mrb[0].mxu0
          %8549 = vmatprep.mubr.f32.mxu0 0.0
          %8550 = vmatmul.mubr.f32.gmra.mrb[0].mxu0 %v8426
          %v8551 = vpop.f32.mrb[0].mxu0
          %v8552 = vadd.f32 0.0, %v8551
          %v8553 = vpop.f32.mrb[0].mxu0
          %8554 = vmatprep.mubr.f32.mxu0 0.0
          %8555 = vmatmul.mubr.f32.gmra.mrb[0].mxu0 %v8429
          %v8556 = vpop.f32.mrb[0].mxu0
          %v8557 = vadd.f32 0.0, %v8556
          %v8558 = vpop.f32.mrb[0].mxu0
          %8559 = vmatprep.mubr.f32.mxu0 0.0
          %8560 = vmatmul.mubr.f32.gmra.mrb[0].mxu0 %v8432
          %v8561 = vpop.f32.mrb[0].mxu0
          %v8562 = vadd.f32 0.0, %v8561
          %v8563 = vpop.f32.mrb[0].mxu0
          %8564 = vmatprep.mubr.f32.mxu0 0.0
          %8565 = vmatmul.mubr.f32.gmra.mrb[0].mxu0 %v8435
          %v8566 = vpop.f32.mrb[0].mxu0
          %v8567 = vadd.f32 0.0, %v8566
          %v8568 = vpop.f32.mrb[0].mxu0
          %8569 = vdwg.mxu0
          %v8570 = vld [vmem:[#allocation6 + $0x1170] sm:$0xff]
          %v8571 = vld [vmem:[#allocation6 + $0x1180] sm:$0xff]
          %v8572 = vld [vmem:[#allocation6 + $0x1190] sm:$0xff]
          %v8573 = vld [vmem:[#allocation6 + $0x11a0] sm:$0xff]
          %v8574 = vld [vmem:[#allocation6 + $0x11b0] sm:$0xff]
          %v8575 = vld [vmem:[#allocation6 + $0x11c0] sm:$0xff]
          %v8576 = vld [vmem:[#allocation6 + $0x11d0] sm:$0xff]
          %v8577 = vld [vmem:[#allocation6 + $0x11e0] sm:$0xff]
          %v8578 = vld [vmem:[#allocation6 + $0x11f0] sm:$0xff]
          %v8579 = vld [vmem:[#allocation6 + $0x1200] sm:$0xff]
          %v8580 = vld [vmem:[#allocation6 + $0x1210] sm:$0xff]
          %v8581 = vld [vmem:[#allocation6 + $0x1220] sm:$0xff]
          %v8582 = vld [vmem:[#allocation6 + $0x1230] sm:$0xf]
          %v8583 = vmul.f32 %v8507, %v8570
          %v8584 = vmul.f32 %v8512, %v8571
          %v8585 = vmul.f32 %v8517, %v8572
          %v8586 = vmul.f32 %v8522, %v8573
          %v8587 = vmul.f32 %v8527, %v8574
          %v8588 = vmul.f32 %v8532, %v8575
          %v8589 = vmul.f32 %v8537, %v8576
          %v8590 = vmul.f32 %v8542, %v8577
          %v8591 = vmul.f32 %v8547, %v8578
          %v8592 = vmul.f32 %v8552, %v8579
          %v8593 = vmul.f32 %v8557, %v8580
          %v8594 = vmul.f32 %v8562, %v8581
          %v8595 = vmul.f32 %v8567, %v8582
          %vm8596 = vcmask 818176
          %v8598 = vsel %vm8596, %v8022, 0
          %v8601 = vsel %vm6808, %v8595, 0
          %8603 = vmatprep.subr.mxu0 0.0
          %8604 = vmatpush1.msra.mxu0 %v8583
          %8605 = vmatprep.subr.mxu0 0.0
          %8606 = vmatpush1.msra.mxu0 %v8584
          %8607 = vmatprep.subr.mxu0 0.0
          %8608 = vmatpush1.msra.mxu0 %v8585
          %8609 = vmatprep.subr.mxu0 0.0
          %8610 = vmatpush1.msra.mxu0 %v8586
          %8611 = vmatprep.subr.mxu0 0.0
          %8612 = vmatpush1.msra.mxu0 %v8587
          %8613 = vmatprep.subr.mxu0 0.0
          %8614 = vmatpush1.msra.mxu0 %v8588
          %8615 = vmatprep.subr.mxu0 0.0
          %8616 = vmatpush1.msra.mxu0 %v8589
          %8617 = vmatprep.subr.mxu0 0.0
          %8618 = vmatpush1.msra.mxu0 %v8590
          %8619 = vmatprep.subr.mxu0 0.0
          %8620 = vmatpush1.msra.mxu0 %v8591
          %8621 = vmatprep.subr.mxu0 0.0
          %8622 = vmatpush1.msra.mxu0 %v8592
          %8623 = vmatprep.subr.mxu0 0.0
          %8624 = vmatpush1.msra.mxu0 %v8593
          %8625 = vmatprep.subr.mxu0 0.0
          %8626 = vmatpush1.msra.mxu0 %v8594
          %8627 = vmatprep.subr.mxu0 0.0
          %8628 = vmatpush1.msra.mxu0 %v8601
          %8629 = vmatprep.subr.mxu0 0.0
          %8630 = vmatpush1.msra.mxu0 0.0
          %8631 = vmatprep.subr.mxu0 0.0
          %8632 = vmatpush1.msra.mxu0 0.0
          %8633 = vmatprep.subr.mxu0 0.0
          %8634 = vmatpush1.msra.mxu0 0.0
          %8635 = vmatprep.subr.mxu0 0.0
          %8636 = vmatpush1.msra.mxu0 0.0
          %8637 = vmatprep.subr.mxu0 0.0
          %8638 = vmatpush1.msra.mxu0 0.0
          %8639 = vmatprep.subr.mxu0 0.0
          %8640 = vmatpush1.msra.mxu0 0.0
          %8641 = vmatprep.subr.mxu0 0.0
          %8642 = vmatpush1.msra.mxu0 0.0
          %8643 = vmatprep.subr.mxu0 0.0
          %8644 = vmatpush1.msra.mxu0 0.0
          %8645 = vmatprep.subr.mxu0 0.0
          %8646 = vmatpush1.msra.mxu0 0.0
          %8647 = vmatprep.subr.mxu0 0.0
          %8648 = vmatpush1.msra.mxu0 0.0
          %8649 = vmatprep.subr.mxu0 0.0
          %8650 = vmatpush1.msra.mxu0 0.0
          %8651 = vmatprep.subr.mxu0 0.0
          %8652 = vmatpush1.msra.mxu0 0.0
          %8653 = vmatprep.subr.mxu0 0.0
          %8654 = vmatpush1.msra.mxu0 0.0
          %8655 = vmatprep.subr.mxu0 0.0
          %8656 = vmatpush1.msra.mxu0 0.0
          %8657 = vmatprep.subr.mxu0 0.0
          %8658 = vmatpush1.msra.mxu0 0.0
          %8659 = vmatprep.subr.mxu0 0.0
          %8660 = vmatpush1.msra.mxu0 0.0
          %8661 = vmatprep.subr.mxu0 0.0
          %8662 = vmatpush1.msra.mxu0 0.0
          %8663 = vmatprep.subr.mxu0 0.0
          %8664 = vmatpush1.msra.mxu0 0.0
          %8665 = vmatprep.subr.mxu0 0.0
          %8666 = vmatpush1.msra.mxu0 0.0
          %8667 = vmatprep.mubr.f32.mxu0 0.0
          %8668 = vmatmul.mubr.f32.gmra.mrb[0].mxu0 %v8598
          %v8669 = vpop.f32.mrb[0].mxu0
          %v8670 = vadd.f32 0.0, %v8669
          %v8671 = vpop.f32.mrb[0].mxu0
          %8672 = vdwg.mxu0
          %v8673 = vld [vmem:[#allocation6 + $0xb20] sm:$0xff]
          %v8674 = vld [vmem:[#allocation6 + $0xb30] sm:$0xff]
          %v8675 = vld [vmem:[#allocation6 + $0xb40] sm:$0xff]
          %v8676 = vld [vmem:[#allocation6 + $0xb50] sm:$0xff]
          %v8677 = vld [vmem:[#allocation6 + $0xb60] sm:$0xff]
          %v8678 = vld [vmem:[#allocation6 + $0xb70] sm:$0xff]
          %v8679 = vld [vmem:[#allocation6 + $0xb80] sm:$0xff]
          %v8680 = vld [vmem:[#allocation6 + $0xb90] sm:$0xff]
          %v8681 = vld [vmem:[#allocation6 + $0xba0] sm:$0xff]
          %v8682 = vld [vmem:[#allocation6 + $0xbb0] sm:$0xff]
          %v8683 = vld [vmem:[#allocation6 + $0xbc0] sm:$0xff]
          %v8684 = vld [vmem:[#allocation6 + $0xbd0] sm:$0xff]
          %v8685 = vld [vmem:[#allocation6 + $0xbe0] sm:$0xf]
          %v8686 = vld [vmem:[#allocation6 + $0xbf0] ss:$0 sm:$0xff]
          %v8688 = vsel %vm8596, %v8670, 0
          %v8691 = vsel %vm6808, %v8685, 0
          %8693 = vmatprep.subr.mxu0 0.0
          %8694 = vmatpush1.msra.mxu0 %v8673
          %8695 = vmatprep.subr.mxu0 0.0
          %8696 = vmatpush1.msra.mxu0 %v8674
          %8697 = vmatprep.subr.mxu0 0.0
          %8698 = vmatpush1.msra.mxu0 %v8675
          %8699 = vmatprep.subr.mxu0 0.0
          %8700 = vmatpush1.msra.mxu0 %v8676
          %8701 = vmatprep.subr.mxu0 0.0
          %8702 = vmatpush1.msra.mxu0 %v8677
          %8703 = vmatprep.subr.mxu0 0.0
          %8704 = vmatpush1.msra.mxu0 %v8678
          %8705 = vmatprep.subr.mxu0 0.0
          %8706 = vmatpush1.msra.mxu0 %v8679
          %8707 = vmatprep.subr.mxu0 0.0
          %8708 = vmatpush1.msra.mxu0 %v8680
          %8709 = vmatprep.subr.mxu0 0.0
          %8710 = vmatpush1.msra.mxu0 %v8681
          %8711 = vmatprep.subr.mxu0 0.0
          %8712 = vmatpush1.msra.mxu0 %v8682
          %8713 = vmatprep.subr.mxu0 0.0
          %8714 = vmatpush1.msra.mxu0 %v8683
          %8715 = vmatprep.subr.mxu0 0.0
          %8716 = vmatpush1.msra.mxu0 %v8684
          %8717 = vmatprep.subr.mxu0 0.0
          %8718 = vmatpush1.msra.mxu0 %v8691
          %8719 = vmatprep.subr.mxu0 0.0
          %8720 = vmatpush1.msra.mxu0 0.0
          %8721 = vmatprep.subr.mxu0 0.0
          %8722 = vmatpush1.msra.mxu0 0.0
          %8723 = vmatprep.subr.mxu0 0.0
          %8724 = vmatpush1.msra.mxu0 0.0
          %8725 = vmatprep.subr.mxu0 0.0
          %8726 = vmatpush1.msra.mxu0 0.0
          %8727 = vmatprep.subr.mxu0 0.0
          %8728 = vmatpush1.msra.mxu0 0.0
          %8729 = vmatprep.subr.mxu0 0.0
          %8730 = vmatpush1.msra.mxu0 0.0
          %8731 = vmatprep.subr.mxu0 0.0
          %8732 = vmatpush1.msra.mxu0 0.0
          %8733 = vmatprep.subr.mxu0 0.0
          %8734 = vmatpush1.msra.mxu0 0.0
          %8735 = vmatprep.subr.mxu0 0.0
          %8736 = vmatpush1.msra.mxu0 0.0
          %8737 = vmatprep.subr.mxu0 0.0
          %8738 = vmatpush1.msra.mxu0 0.0
          %8739 = vmatprep.subr.mxu0 0.0
          %8740 = vmatpush1.msra.mxu0 0.0
          %8741 = vmatprep.subr.mxu0 0.0
          %8742 = vmatpush1.msra.mxu0 0.0
          %8743 = vmatprep.subr.mxu0 0.0
          %8744 = vmatpush1.msra.mxu0 0.0
          %8745 = vmatprep.subr.mxu0 0.0
          %8746 = vmatpush1.msra.mxu0 0.0
          %8747 = vmatprep.subr.mxu0 0.0
          %8748 = vmatpush1.msra.mxu0 0.0
          %8749 = vmatprep.subr.mxu0 0.0
          %8750 = vmatpush1.msra.mxu0 0.0
          %8751 = vmatprep.subr.mxu0 0.0
          %8752 = vmatpush1.msra.mxu0 0.0
          %8753 = vmatprep.subr.mxu0 0.0
          %8754 = vmatpush1.msra.mxu0 0.0
          %8755 = vmatprep.subr.mxu0 0.0
          %8756 = vmatpush1.msra.mxu0 0.0
          %8757 = vmatprep.mubr.f32.mxu0 0.0
          %8758 = vmatmul.mubr.f32.gmra.mrb[0].mxu0 %v8688
          %v8759 = vpop.f32.mrb[0].mxu0
          %v8760 = vadd.f32 %v8686, %v8759
          %v8761 = vpop.f32.mrb[0].mxu0
          %8762 = vdwg.mxu0
          %v8763 = vmax.f32 %v8760, 0.0
          %v8764 = vld [vmem:[#allocation6 + $0xc00] sm:$0xff]
          %v8765 = vld [vmem:[#allocation6 + $0xc10] sm:$0xff]
          %v8766 = vld [vmem:[#allocation6 + $0xc20] sm:$0xff]
          %v8767 = vld [vmem:[#allocation6 + $0xc30] sm:$0xff]
          %v8768 = vld [vmem:[#allocation6 + $0xc40] sm:$0xff]
          %v8769 = vld [vmem:[#allocation6 + $0xc50] sm:$0xff]
          %v8770 = vld [vmem:[#allocation6 + $0xc60] sm:$0xff]
          %v8771 = vld [vmem:[#allocation6 + $0xc70] sm:$0xff]
          %v8772 = vld [vmem:[#allocation6 + $0xc80] sm:$0xff]
          %v8773 = vld [vmem:[#allocation6 + $0xc90] sm:$0xff]
          %v8774 = vld [vmem:[#allocation6 + $0xca0] sm:$0xff]
          %v8775 = vld [vmem:[#allocation6 + $0xcb0] sm:$0xff]
          %v8776 = vld [vmem:[#allocation6 + $0xcc0] sm:$0xff]
          %v8777 = vld [vmem:[#allocation6 + $0xcd0] sm:$0xff]
          %v8778 = vld [vmem:[#allocation6 + $0xce0] sm:$0xff]
          %v8779 = vld [vmem:[#allocation6 + $0xcf0] sm:$0xff]
          %v8780 = vld [vmem:[#allocation6 + $0xd00] ss:$0 sm:$0xff]
          %8781 = vmatprep.subr.mxu0 0.0
          %8782 = vmatpush1.msra.mxu0 %v8764
          %8783 = vmatprep.subr.mxu0 0.0
          %8784 = vmatpush1.msra.mxu0 %v8765
          %8785 = vmatprep.subr.mxu0 0.0
          %8786 = vmatpush1.msra.mxu0 %v8766
          %8787 = vmatprep.subr.mxu0 0.0
          %8788 = vmatpush1.msra.mxu0 %v8767
          %8789 = vmatprep.subr.mxu0 0.0
          %8790 = vmatpush1.msra.mxu0 %v8768
          %8791 = vmatprep.subr.mxu0 0.0
          %8792 = vmatpush1.msra.mxu0 %v8769
          %8793 = vmatprep.subr.mxu0 0.0
          %8794 = vmatpush1.msra.mxu0 %v8770
          %8795 = vmatprep.subr.mxu0 0.0
          %8796 = vmatpush1.msra.mxu0 %v8771
          %8797 = vmatprep.subr.mxu0 0.0
          %8798 = vmatpush1.msra.mxu0 %v8772
          %8799 = vmatprep.subr.mxu0 0.0
          %8800 = vmatpush1.msra.mxu0 %v8773
          %8801 = vmatprep.subr.mxu0 0.0
          %8802 = vmatpush1.msra.mxu0 %v8774
          %8803 = vmatprep.subr.mxu0 0.0
          %8804 = vmatpush1.msra.mxu0 %v8775
          %8805 = vmatprep.subr.mxu0 0.0
          %8806 = vmatpush1.msra.mxu0 %v8776
          %8807 = vmatprep.subr.mxu0 0.0
          %8808 = vmatpush1.msra.mxu0 %v8777
          %8809 = vmatprep.subr.mxu0 0.0
          %8810 = vmatpush1.msra.mxu0 %v8778
          %8811 = vmatprep.subr.mxu0 0.0
          %8812 = vmatpush1.msra.mxu0 %v8779
          %8813 = vmatprep.subr.mxu0 0.0
          %8814 = vmatpush1.msra.mxu0 0.0
          %8815 = vmatprep.subr.mxu0 0.0
          %8816 = vmatpush1.msra.mxu0 0.0
          %8817 = vmatprep.subr.mxu0 0.0
          %8818 = vmatpush1.msra.mxu0 0.0
          %8819 = vmatprep.subr.mxu0 0.0
          %8820 = vmatpush1.msra.mxu0 0.0
          %8821 = vmatprep.subr.mxu0 0.0
          %8822 = vmatpush1.msra.mxu0 0.0
          %8823 = vmatprep.subr.mxu0 0.0
          %8824 = vmatpush1.msra.mxu0 0.0
          %8825 = vmatprep.subr.mxu0 0.0
          %8826 = vmatpush1.msra.mxu0 0.0
          %8827 = vmatprep.subr.mxu0 0.0
          %8828 = vmatpush1.msra.mxu0 0.0
          %8829 = vmatprep.subr.mxu0 0.0
          %8830 = vmatpush1.msra.mxu0 0.0
          %8831 = vmatprep.subr.mxu0 0.0
          %8832 = vmatpush1.msra.mxu0 0.0
          %8833 = vmatprep.subr.mxu0 0.0
          %8834 = vmatpush1.msra.mxu0 0.0
          %8835 = vmatprep.subr.mxu0 0.0
          %8836 = vmatpush1.msra.mxu0 0.0
          %8837 = vmatprep.subr.mxu0 0.0
          %8838 = vmatpush1.msra.mxu0 0.0
          %8839 = vmatprep.subr.mxu0 0.0
          %8840 = vmatpush1.msra.mxu0 0.0
          %8841 = vmatprep.subr.mxu0 0.0
          %8842 = vmatpush1.msra.mxu0 0.0
          %8843 = vmatprep.subr.mxu0 0.0
          %8844 = vmatpush1.msra.mxu0 0.0
          %8845 = vmatprep.mubr.f32.mxu0 0.0
          %8846 = vmatmul.mubr.f32.gmra.mrb[0].mxu0 %v8763
          %v8847 = vpop.f32.mrb[0].mxu0
          %v8848 = vadd.f32 %v8780, %v8847
          %v8849 = vpop.f32.mrb[0].mxu0
          %8850 = vdwg.mxu0
          %v8851 = vmax.f32 %v8848, 0.0
          %v8852 = vld [vmem:[#allocation6 + $0xd10] sm:$0xff]
          %v8853 = vld [vmem:[#allocation6 + $0xd20] sm:$0xff]
          %v8854 = vld [vmem:[#allocation6 + $0xd30] sm:$0xff]
          %v8855 = vld [vmem:[#allocation6 + $0xd40] sm:$0xff]
          %v8856 = vld [vmem:[#allocation6 + $0xd50] sm:$0xff]
          %v8857 = vld [vmem:[#allocation6 + $0xd60] sm:$0xff]
          %v8858 = vld [vmem:[#allocation6 + $0xd70] sm:$0xff]
          %v8859 = vld [vmem:[#allocation6 + $0xd80] sm:$0xff]
          %v8860 = vld [vmem:[#allocation6 + $0xd90] ss:$0 sm:$0xff]
          %v8862 = vsel %vm7709, %v8851, 0
          %8864 = vmatprep.subr.mxu0 0.0
          %8865 = vmatpush1.msra.mxu0 %v8852
          %8866 = vmatprep.subr.mxu0 0.0
          %8867 = vmatpush1.msra.mxu0 %v8853
          %8868 = vmatprep.subr.mxu0 0.0
          %8869 = vmatpush1.msra.mxu0 %v8854
          %8870 = vmatprep.subr.mxu0 0.0
          %8871 = vmatpush1.msra.mxu0 %v8855
          %8872 = vmatprep.subr.mxu0 0.0
          %8873 = vmatpush1.msra.mxu0 %v8856
          %8874 = vmatprep.subr.mxu0 0.0
          %8875 = vmatpush1.msra.mxu0 %v8857
          %8876 = vmatprep.subr.mxu0 0.0
          %8877 = vmatpush1.msra.mxu0 %v8858
          %8878 = vmatprep.subr.mxu0 0.0
          %8879 = vmatpush1.msra.mxu0 %v8859
          %8880 = vmatprep.subr.mxu0 0.0
          %8881 = vmatpush1.msra.mxu0 0.0
          %8882 = vmatprep.subr.mxu0 0.0
          %8883 = vmatpush1.msra.mxu0 0.0
          %8884 = vmatprep.subr.mxu0 0.0
          %8885 = vmatpush1.msra.mxu0 0.0
          %8886 = vmatprep.subr.mxu0 0.0
          %8887 = vmatpush1.msra.mxu0 0.0
          %8888 = vmatprep.subr.mxu0 0.0
          %8889 = vmatpush1.msra.mxu0 0.0
          %8890 = vmatprep.subr.mxu0 0.0
          %8891 = vmatpush1.msra.mxu0 0.0
          %8892 = vmatprep.subr.mxu0 0.0
          %8893 = vmatpush1.msra.mxu0 0.0
          %8894 = vmatprep.subr.mxu0 0.0
          %8895 = vmatpush1.msra.mxu0 0.0
          %8896 = vmatprep.subr.mxu0 0.0
          %8897 = vmatpush1.msra.mxu0 0.0
          %8898 = vmatprep.subr.mxu0 0.0
          %8899 = vmatpush1.msra.mxu0 0.0
          %8900 = vmatprep.subr.mxu0 0.0
          %8901 = vmatpush1.msra.mxu0 0.0
          %8902 = vmatprep.subr.mxu0 0.0
          %8903 = vmatpush1.msra.mxu0 0.0
          %8904 = vmatprep.subr.mxu0 0.0
          %8905 = vmatpush1.msra.mxu0 0.0
          %8906 = vmatprep.subr.mxu0 0.0
          %8907 = vmatpush1.msra.mxu0 0.0
          %8908 = vmatprep.subr.mxu0 0.0
          %8909 = vmatpush1.msra.mxu0 0.0
          %8910 = vmatprep.subr.mxu0 0.0
          %8911 = vmatpush1.msra.mxu0 0.0
          %8912 = vmatprep.subr.mxu0 0.0
          %8913 = vmatpush1.msra.mxu0 0.0
          %8914 = vmatprep.subr.mxu0 0.0
          %8915 = vmatpush1.msra.mxu0 0.0
          %8916 = vmatprep.subr.mxu0 0.0
          %8917 = vmatpush1.msra.mxu0 0.0
          %8918 = vmatprep.subr.mxu0 0.0
          %8919 = vmatpush1.msra.mxu0 0.0
          %8920 = vmatprep.subr.mxu0 0.0
          %8921 = vmatpush1.msra.mxu0 0.0
          %8922 = vmatprep.subr.mxu0 0.0
          %8923 = vmatpush1.msra.mxu0 0.0
          %8924 = vmatprep.subr.mxu0 0.0
          %8925 = vmatpush1.msra.mxu0 0.0
          %8926 = vmatprep.subr.mxu0 0.0
          %8927 = vmatpush1.msra.mxu0 0.0
          %8928 = vmatprep.mubr.f32.mxu0 0.0
          %8929 = vmatmul.mubr.f32.gmra.mrb[0].mxu0 %v8862
          %v8930 = vpop.f32.mrb[0].mxu0
          %v8931 = vadd.f32 %v8860, %v8930
          %v8932 = vpop.f32.mrb[0].mxu0
          %8933 = vdwg.mxu0
          %v8934 = vmax.f32 %v8931, 0.0
          %v8935 = vld [vmem:[#allocation6 + $0xda0] sm:$0xff]
          %v8936 = vld [vmem:[#allocation6 + $0xdb0] sm:$0xff]
          %v8937 = vld [vmem:[#allocation6 + $0xdc0] sm:$0xff]
          %v8938 = vld [vmem:[#allocation6 + $0xdd0] sm:$0xff]
          %v8939 = vld [vmem:[#allocation6 + $0xde0] ss:$0 sm:$0xff]
          %vm8940 = vcmask 261120
          %v8942 = vsel %vm8940, %v8934, 0
          %8944 = vmatprep.subr.mxu0 0.0
          %8945 = vmatpush1.msra.mxu0 %v8935
          %8946 = vmatprep.subr.mxu0 0.0
          %8947 = vmatpush1.msra.mxu0 %v8936
          %8948 = vmatprep.subr.mxu0 0.0
          %8949 = vmatpush1.msra.mxu0 %v8937
          %8950 = vmatprep.subr.mxu0 0.0
          %8951 = vmatpush1.msra.mxu0 %v8938
          %8952 = vmatprep.subr.mxu0 0.0
          %8953 = vmatpush1.msra.mxu0 0.0
          %8954 = vmatprep.subr.mxu0 0.0
          %8955 = vmatpush1.msra.mxu0 0.0
          %8956 = vmatprep.subr.mxu0 0.0
          %8957 = vmatpush1.msra.mxu0 0.0
          %8958 = vmatprep.subr.mxu0 0.0
          %8959 = vmatpush1.msra.mxu0 0.0
          %8960 = vmatprep.subr.mxu0 0.0
          %8961 = vmatpush1.msra.mxu0 0.0
          %8962 = vmatprep.subr.mxu0 0.0
          %8963 = vmatpush1.msra.mxu0 0.0
          %8964 = vmatprep.subr.mxu0 0.0
          %8965 = vmatpush1.msra.mxu0 0.0
          %8966 = vmatprep.subr.mxu0 0.0
          %8967 = vmatpush1.msra.mxu0 0.0
          %8968 = vmatprep.subr.mxu0 0.0
          %8969 = vmatpush1.msra.mxu0 0.0
          %8970 = vmatprep.subr.mxu0 0.0
          %8971 = vmatpush1.msra.mxu0 0.0
          %8972 = vmatprep.subr.mxu0 0.0
          %8973 = vmatpush1.msra.mxu0 0.0
          %8974 = vmatprep.subr.mxu0 0.0
          %8975 = vmatpush1.msra.mxu0 0.0
          %8976 = vmatprep.subr.mxu0 0.0
          %8977 = vmatpush1.msra.mxu0 0.0
          %8978 = vmatprep.subr.mxu0 0.0
          %8979 = vmatpush1.msra.mxu0 0.0
          %8980 = vmatprep.subr.mxu0 0.0
          %8981 = vmatpush1.msra.mxu0 0.0
          %8982 = vmatprep.subr.mxu0 0.0
          %8983 = vmatpush1.msra.mxu0 0.0
          %8984 = vmatprep.subr.mxu0 0.0
          %8985 = vmatpush1.msra.mxu0 0.0
          %8986 = vmatprep.subr.mxu0 0.0
          %8987 = vmatpush1.msra.mxu0 0.0
          %8988 = vmatprep.subr.mxu0 0.0
          %8989 = vmatpush1.msra.mxu0 0.0
          %8990 = vmatprep.subr.mxu0 0.0
          %8991 = vmatpush1.msra.mxu0 0.0
          %8992 = vmatprep.subr.mxu0 0.0
          %8993 = vmatpush1.msra.mxu0 0.0
          %8994 = vmatprep.subr.mxu0 0.0
          %8995 = vmatpush1.msra.mxu0 0.0
          %8996 = vmatprep.subr.mxu0 0.0
          %8997 = vmatpush1.msra.mxu0 0.0
          %8998 = vmatprep.subr.mxu0 0.0
          %8999 = vmatpush1.msra.mxu0 0.0
          %9000 = vmatprep.subr.mxu0 0.0
          %9001 = vmatpush1.msra.mxu0 0.0
          %9002 = vmatprep.subr.mxu0 0.0
          %9003 = vmatpush1.msra.mxu0 0.0
          %9004 = vmatprep.subr.mxu0 0.0
          %9005 = vmatpush1.msra.mxu0 0.0
          %9006 = vmatprep.subr.mxu0 0.0
          %9007 = vmatpush1.msra.mxu0 0.0
          %9008 = vmatprep.mubr.f32.mxu0 0.0
          %9009 = vmatmul.mubr.f32.gmra.mrb[0].mxu0 %v8942
          %v9010 = vpop.f32.mrb[0].mxu0
          %v9011 = vadd.f32 %v8939, %v9010
          %v9012 = vpop.f32.mrb[0].mxu0
          %9013 = vdwg.mxu0
          %v9014 = vld [vmem:[#allocation6 + $0xdf0] sm:$0xff]
          %v9015 = vld [vmem:[#allocation6 + $0xe00] sm:$0xff]
          %v9016 = vld [vmem:[#allocation6 + $0xe10] sm:$0xff]
          %v9017 = vld [vmem:[#allocation6 + $0xe20] sm:$0x3f]
          %v9018 = vld [vmem:[#allocation6 + $0xe30] ss:$0 sm:$0xff]
          %vm9019 = vcmask 244736
          %v9021 = vsel %vm9019, %v9011, 0
          %vm9023 = vcmask 1045504
          %v9025 = vsel %vm9023, %v9017, 0
          %9027 = vmatprep.subr.mxu0 0.0
          %9028 = vmatpush1.msra.mxu0 %v9014
          %9029 = vmatprep.subr.mxu0 0.0
          %9030 = vmatpush1.msra.mxu0 %v9015
          %9031 = vmatprep.subr.mxu0 0.0
          %9032 = vmatpush1.msra.mxu0 %v9016
          %9033 = vmatprep.subr.mxu0 0.0
          %9034 = vmatpush1.msra.mxu0 %v9025
          %9035 = vmatprep.subr.mxu0 0.0
          %9036 = vmatpush1.msra.mxu0 0.0
          %9037 = vmatprep.subr.mxu0 0.0
          %9038 = vmatpush1.msra.mxu0 0.0
          %9039 = vmatprep.subr.mxu0 0.0
          %9040 = vmatpush1.msra.mxu0 0.0
          %9041 = vmatprep.subr.mxu0 0.0
          %9042 = vmatpush1.msra.mxu0 0.0
          %9043 = vmatprep.subr.mxu0 0.0
          %9044 = vmatpush1.msra.mxu0 0.0
          %9045 = vmatprep.subr.mxu0 0.0
          %9046 = vmatpush1.msra.mxu0 0.0
          %9047 = vmatprep.subr.mxu0 0.0
          %9048 = vmatpush1.msra.mxu0 0.0
          %9049 = vmatprep.subr.mxu0 0.0
          %9050 = vmatpush1.msra.mxu0 0.0
          %9051 = vmatprep.subr.mxu0 0.0
          %9052 = vmatpush1.msra.mxu0 0.0
          %9053 = vmatprep.subr.mxu0 0.0
          %9054 = vmatpush1.msra.mxu0 0.0
          %9055 = vmatprep.subr.mxu0 0.0
          %9056 = vmatpush1.msra.mxu0 0.0
          %9057 = vmatprep.subr.mxu0 0.0
          %9058 = vmatpush1.msra.mxu0 0.0
          %9059 = vmatprep.subr.mxu0 0.0
          %9060 = vmatpush1.msra.mxu0 0.0
          %9061 = vmatprep.subr.mxu0 0.0
          %9062 = vmatpush1.msra.mxu0 0.0
          %9063 = vmatprep.subr.mxu0 0.0
          %9064 = vmatpush1.msra.mxu0 0.0
          %9065 = vmatprep.subr.mxu0 0.0
          %9066 = vmatpush1.msra.mxu0 0.0
          %9067 = vmatprep.subr.mxu0 0.0
          %9068 = vmatpush1.msra.mxu0 0.0
          %9069 = vmatprep.subr.mxu0 0.0
          %9070 = vmatpush1.msra.mxu0 0.0
          %9071 = vmatprep.subr.mxu0 0.0
          %9072 = vmatpush1.msra.mxu0 0.0
          %9073 = vmatprep.subr.mxu0 0.0
          %9074 = vmatpush1.msra.mxu0 0.0
          %9075 = vmatprep.subr.mxu0 0.0
          %9076 = vmatpush1.msra.mxu0 0.0
          %9077 = vmatprep.subr.mxu0 0.0
          %9078 = vmatpush1.msra.mxu0 0.0
          %9079 = vmatprep.subr.mxu0 0.0
          %9080 = vmatpush1.msra.mxu0 0.0
          %9081 = vmatprep.subr.mxu0 0.0
          %9082 = vmatpush1.msra.mxu0 0.0
          %9083 = vmatprep.subr.mxu0 0.0
          %9084 = vmatpush1.msra.mxu0 0.0
          %9085 = vmatprep.subr.mxu0 0.0
          %9086 = vmatpush1.msra.mxu0 0.0
          %9087 = vmatprep.subr.mxu0 0.0
          %9088 = vmatpush1.msra.mxu0 0.0
          %9089 = vmatprep.subr.mxu0 0.0
          %9090 = vmatpush1.msra.mxu0 0.0
          %9091 = vmatprep.mubr.f32.mxu0 0.0
          %9092 = vmatmul.mubr.f32.gmra.mrb[0].mxu0 %v9021
          %v9093 = vpop.f32.mrb[0].mxu0
          %v9094 = vadd.f32 %v9018, %v9093
          %v9095 = vpop.f32.mrb[0].mxu0
          %9096 = vdwg.mxu0
          %v9097 = vld [vmem:[#allocation6 + $0xe40] ss:$0 sm:$0xff]
          %v9098 = vld [vmem:[#allocation6 + $0xe50] ss:$0 sm:$0xff]
          %v9099 = vsel %vm6808, %v9094, 0.0
          %v9100 = vrot.slane %v9099, 4
          %v9101 = vadd.f32 %v9099, %v9100
          %v9102 = vrot.slane %v9101, 2
          %v9103 = vadd.f32 %v9101, %v9102
          %v9104 = vrot.slane %v9103, 1
          %v9105 = vadd.f32 %v9103, %v9104
          %v9106 = vmul.f32 %v9105, %v6823
          %v9107 = vsub.f32 %v9094, %v9106
          %v9108 = vmul.f32 %v9107, %v9107
          %v9109 = vsel %vm6808, %v9108, 0.0
          %v9110 = vrot.slane %v9109, 4
          %v9111 = vadd.f32 %v9109, %v9110
          %v9112 = vrot.slane %v9111, 2
          %v9113 = vadd.f32 %v9111, %v9112
          %v9114 = vrot.slane %v9113, 1
          %v9115 = vadd.f32 %v9113, %v9114
          %v9116 = vmul.f32 %v9115, %v6823
          %v9117 = vadd.f32 %v9116, 1e-05
          %v9118 = vrsqrt.pop %v9117
          %v9119 = vmul.f32 %v9107, %v9118
          %v9120 = vmul.f32 %v9119, %v9097
          %v9121 = vadd.f32 %v9120, %v9098
          %vm9122 = vcmp.gt.f32.partialorder %v9121, 0.0
          %v9123 = vmul.f32 %v9121, 0.1
          %v9124 = vsel %vm9122, %v9121, %v9123
          %v9125 = vld [vmem:[#allocation6 + $0xe60] sm:$0xff]
          %v9126 = vld [vmem:[#allocation6 + $0xe70] sm:$0xff]
          %v9127 = vld [vmem:[#allocation6 + $0xe80] sm:$0xff]
          %v9128 = vld [vmem:[#allocation6 + $0xe90] sm:$0xff]
          %v9129 = vld [vmem:[#allocation6 + $0xea0] sm:$0xff]
          %v9130 = vld [vmem:[#allocation6 + $0xeb0] sm:$0xff]
          %v9131 = vld [vmem:[#allocation6 + $0xec0] sm:$0xff]
          %v9132 = vld [vmem:[#allocation6 + $0xed0] sm:$0xff]
          %v9133 = vld [vmem:[#allocation6 + $0xee0] sm:$0xff]
          %v9134 = vld [vmem:[#allocation6 + $0xef0] sm:$0xff]
          %v9135 = vld [vmem:[#allocation6 + $0xf00] sm:$0xff]
          %v9136 = vld [vmem:[#allocation6 + $0xf10] sm:$0xff]
          %v9137 = vld [vmem:[#allocation6 + $0xf20] sm:$0xff]
          %v9138 = vld [vmem:[#allocation6 + $0xf30] sm:$0xff]
          %v9139 = vld [vmem:[#allocation6 + $0xf40] sm:$0xff]
          %v9140 = vld [vmem:[#allocation6 + $0xf50] sm:$0xff]
          %v9141 = vld [vmem:[#allocation6 + $0xf60] ss:$0 sm:$0xff]
          %9142 = vmatprep.subr.mxu0 0.0
          %9143 = vmatpush1.msra.mxu0 %v9125
          %9144 = vmatprep.subr.mxu0 0.0
          %9145 = vmatpush1.msra.mxu0 %v9126
          %9146 = vmatprep.subr.mxu0 0.0
          %9147 = vmatpush1.msra.mxu0 %v9127
          %9148 = vmatprep.subr.mxu0 0.0
          %9149 = vmatpush1.msra.mxu0 %v9128
          %9150 = vmatprep.subr.mxu0 0.0
          %9151 = vmatpush1.msra.mxu0 %v9129
          %9152 = vmatprep.subr.mxu0 0.0
          %9153 = vmatpush1.msra.mxu0 %v9130
          %9154 = vmatprep.subr.mxu0 0.0
          %9155 = vmatpush1.msra.mxu0 %v9131
          %9156 = vmatprep.subr.mxu0 0.0
          %9157 = vmatpush1.msra.mxu0 %v9132
          %9158 = vmatprep.subr.mxu0 0.0
          %9159 = vmatpush1.msra.mxu0 %v9133
          %9160 = vmatprep.subr.mxu0 0.0
          %9161 = vmatpush1.msra.mxu0 %v9134
          %9162 = vmatprep.subr.mxu0 0.0
          %9163 = vmatpush1.msra.mxu0 %v9135
          %9164 = vmatprep.subr.mxu0 0.0
          %9165 = vmatpush1.msra.mxu0 %v9136
          %9166 = vmatprep.subr.mxu0 0.0
          %9167 = vmatpush1.msra.mxu0 %v9137
          %9168 = vmatprep.subr.mxu0 0.0
          %9169 = vmatpush1.msra.mxu0 %v9138
          %9170 = vmatprep.subr.mxu0 0.0
          %9171 = vmatpush1.msra.mxu0 %v9139
          %9172 = vmatprep.subr.mxu0 0.0
          %9173 = vmatpush1.msra.mxu0 %v9140
          %9174 = vmatprep.subr.mxu0 0.0
          %9175 = vmatpush1.msra.mxu0 0.0
          %9176 = vmatprep.subr.mxu0 0.0
          %9177 = vmatpush1.msra.mxu0 0.0
          %9178 = vmatprep.subr.mxu0 0.0
          %9179 = vmatpush1.msra.mxu0 0.0
          %9180 = vmatprep.subr.mxu0 0.0
          %9181 = vmatpush1.msra.mxu0 0.0
          %9182 = vmatprep.subr.mxu0 0.0
          %9183 = vmatpush1.msra.mxu0 0.0
          %9184 = vmatprep.subr.mxu0 0.0
          %9185 = vmatpush1.msra.mxu0 0.0
          %9186 = vmatprep.subr.mxu0 0.0
          %9187 = vmatpush1.msra.mxu0 0.0
          %9188 = vmatprep.subr.mxu0 0.0
          %9189 = vmatpush1.msra.mxu0 0.0
          %9190 = vmatprep.subr.mxu0 0.0
          %9191 = vmatpush1.msra.mxu0 0.0
          %9192 = vmatprep.subr.mxu0 0.0
          %9193 = vmatpush1.msra.mxu0 0.0
          %9194 = vmatprep.subr.mxu0 0.0
          %9195 = vmatpush1.msra.mxu0 0.0
          %9196 = vmatprep.subr.mxu0 0.0
          %9197 = vmatpush1.msra.mxu0 0.0
          %9198 = vmatprep.subr.mxu0 0.0
          %9199 = vmatpush1.msra.mxu0 0.0
          %9200 = vmatprep.subr.mxu0 0.0
          %9201 = vmatpush1.msra.mxu0 0.0
          %9202 = vmatprep.subr.mxu0 0.0
          %9203 = vmatpush1.msra.mxu0 0.0
          %9204 = vmatprep.subr.mxu0 0.0
          %9205 = vmatpush1.msra.mxu0 0.0
          %9206 = vmatprep.mubr.f32.mxu0 0.0
          %9207 = vmatmul.mubr.f32.gmra.mrb[0].mxu0 %v9124
          %v9208 = vpop.f32.mrb[0].mxu0
          %v9209 = vadd.f32 %v9141, %v9208
          %v9210 = vpop.f32.mrb[0].mxu0
          %9211 = vdwg.mxu0
          %v9212 = vld [vmem:[#allocation6 + $0xf70] ss:$0 sm:$0xff]
          %v9213 = vld [vmem:[#allocation6 + $0xf80] ss:$0 sm:$0xff]
          %vm9214 = vcmask 519168
          %v9215 = vsel %vm9214, %v9209, 0.0
          %v9216 = vrot.slane %v9215, 4
          %v9217 = vadd.f32 %v9215, %v9216
          %v9218 = vrot.slane %v9217, 2
          %v9219 = vadd.f32 %v9217, %v9218
          %v9220 = vrot.slane %v9219, 1
          %v9221 = vadd.f32 %v9219, %v9220
          %v9222 = vmul.f32 %v9221, %v6823
          %v9223 = vsub.f32 %v9209, %v9222
          %v9224 = vmul.f32 %v9223, %v9223
          %v9225 = vsel %vm9214, %v9224, 0.0
          %v9226 = vrot.slane %v9225, 4
          %v9227 = vadd.f32 %v9225, %v9226
          %v9228 = vrot.slane %v9227, 2
          %v9229 = vadd.f32 %v9227, %v9228
          %v9230 = vrot.slane %v9229, 1
          %v9231 = vadd.f32 %v9229, %v9230
          %v9232 = vmul.f32 %v9231, %v6823
          %v9233 = vadd.f32 %v9232, 1e-05
          %v9234 = vrsqrt.pop %v9233
          %v9235 = vmul.f32 %v9223, %v9234
          %v9236 = vmul.f32 %v9235, %v9212
          %v9237 = vadd.f32 %v9236, %v9213
          %vm9238 = vcmp.gt.f32.partialorder %v9237, 0.0
          %v9239 = vmul.f32 %v9237, 0.1
          %v9240 = vsel %vm9238, %v9237, %v9239
          %v9241 = vld [vmem:[#allocation6 + $0xf90] sm:$0xff]
          %v9242 = vld [vmem:[#allocation6 + $0xfa0] sm:$0xff]
          %v9243 = vld [vmem:[#allocation6 + $0xfb0] sm:$0xff]
          %v9244 = vld [vmem:[#allocation6 + $0xfc0] sm:$0xff]
          %v9245 = vld [vmem:[#allocation6 + $0xfd0] sm:$0xff]
          %v9246 = vld [vmem:[#allocation6 + $0xfe0] sm:$0xff]
          %v9247 = vld [vmem:[#allocation6 + $0xff0] sm:$0xff]
          %v9248 = vld [vmem:[#allocation6 + $0x1000] sm:$0xff]
          %v9249 = vld [vmem:[#allocation6 + $0x1010] ss:$0 sm:$0xff]
          %v9251 = vsel %vm7709, %v9240, 0
          %9253 = vmatprep.subr.mxu0 0.0
          %9254 = vmatpush1.msra.mxu0 %v9241
          %9255 = vmatprep.subr.mxu0 0.0
          %9256 = vmatpush1.msra.mxu0 %v9242
          %9257 = vmatprep.subr.mxu0 0.0
          %9258 = vmatpush1.msra.mxu0 %v9243
          %9259 = vmatprep.subr.mxu0 0.0
          %9260 = vmatpush1.msra.mxu0 %v9244
          %9261 = vmatprep.subr.mxu0 0.0
          %9262 = vmatpush1.msra.mxu0 %v9245
          %9263 = vmatprep.subr.mxu0 0.0
          %9264 = vmatpush1.msra.mxu0 %v9246
          %9265 = vmatprep.subr.mxu0 0.0
          %9266 = vmatpush1.msra.mxu0 %v9247
          %9267 = vmatprep.subr.mxu0 0.0
          %9268 = vmatpush1.msra.mxu0 %v9248
          %9269 = vmatprep.subr.mxu0 0.0
          %9270 = vmatpush1.msra.mxu0 0.0
          %9271 = vmatprep.subr.mxu0 0.0
          %9272 = vmatpush1.msra.mxu0 0.0
          %9273 = vmatprep.subr.mxu0 0.0
          %9274 = vmatpush1.msra.mxu0 0.0
          %9275 = vmatprep.subr.mxu0 0.0
          %9276 = vmatpush1.msra.mxu0 0.0
          %9277 = vmatprep.subr.mxu0 0.0
          %9278 = vmatpush1.msra.mxu0 0.0
          %9279 = vmatprep.subr.mxu0 0.0
          %9280 = vmatpush1.msra.mxu0 0.0
          %9281 = vmatprep.subr.mxu0 0.0
          %9282 = vmatpush1.msra.mxu0 0.0
          %9283 = vmatprep.subr.mxu0 0.0
          %9284 = vmatpush1.msra.mxu0 0.0
          %9285 = vmatprep.subr.mxu0 0.0
          %9286 = vmatpush1.msra.mxu0 0.0
          %9287 = vmatprep.subr.mxu0 0.0
          %9288 = vmatpush1.msra.mxu0 0.0
          %9289 = vmatprep.subr.mxu0 0.0
          %9290 = vmatpush1.msra.mxu0 0.0
          %9291 = vmatprep.subr.mxu0 0.0
          %9292 = vmatpush1.msra.mxu0 0.0
          %9293 = vmatprep.subr.mxu0 0.0
          %9294 = vmatpush1.msra.mxu0 0.0
          %9295 = vmatprep.subr.mxu0 0.0
          %9296 = vmatpush1.msra.mxu0 0.0
          %9297 = vmatprep.subr.mxu0 0.0
          %9298 = vmatpush1.msra.mxu0 0.0
          %9299 = vmatprep.subr.mxu0 0.0
          %9300 = vmatpush1.msra.mxu0 0.0
          %9301 = vmatprep.subr.mxu0 0.0
          %9302 = vmatpush1.msra.mxu0 0.0
          %9303 = vmatprep.subr.mxu0 0.0
          %9304 = vmatpush1.msra.mxu0 0.0
          %9305 = vmatprep.subr.mxu0 0.0
          %9306 = vmatpush1.msra.mxu0 0.0
          %9307 = vmatprep.subr.mxu0 0.0
          %9308 = vmatpush1.msra.mxu0 0.0
          %9309 = vmatprep.subr.mxu0 0.0
          %9310 = vmatpush1.msra.mxu0 0.0
          %9311 = vmatprep.subr.mxu0 0.0
          %9312 = vmatpush1.msra.mxu0 0.0
          %9313 = vmatprep.subr.mxu0 0.0
          %9314 = vmatpush1.msra.mxu0 0.0
          %9315 = vmatprep.subr.mxu0 0.0
          %9316 = vmatpush1.msra.mxu0 0.0
          %9317 = vmatprep.mubr.f32.mxu0 0.0
          %9318 = vmatmul.mubr.f32.gmra.mrb[0].mxu0 %v9251
          %v9319 = vpop.f32.mrb[0].mxu0
          %v9320 = vadd.f32 %v9249, %v9319
          %v9321 = vpop.f32.mrb[0].mxu0
          %9322 = vdwg.mxu0
          %v9323 = vld [vmem:[#allocation6 + $0x1020] ss:$0 sm:$0xff]
          %v9324 = vld [vmem:[#allocation6 + $0x1030] ss:$0 sm:$0xff]
          %v9325 = vsel %vm6995, %v9320, 0.0
          %v9326 = vrot.slane %v9325, 4
          %v9327 = vadd.f32 %v9325, %v9326
          %v9328 = vrot.slane %v9327, 2
          %v9329 = vadd.f32 %v9327, %v9328
          %v9330 = vrot.slane %v9329, 1
          %v9331 = vadd.f32 %v9329, %v9330
          %v9332 = vmul.f32 %v9331, %v6823
          %v9333 = vsub.f32 %v9320, %v9332
          %v9334 = vmul.f32 %v9333, %v9333
          %v9335 = vsel %vm6995, %v9334, 0.0
          %v9336 = vrot.slane %v9335, 4
          %v9337 = vadd.f32 %v9335, %v9336
          %v9338 = vrot.slane %v9337, 2
          %v9339 = vadd.f32 %v9337, %v9338
          %v9340 = vrot.slane %v9339, 1
          %v9341 = vadd.f32 %v9339, %v9340
          %v9342 = vmul.f32 %v9341, %v6823
          %v9343 = vadd.f32 %v9342, 1e-05
          %v9344 = vrsqrt.pop %v9343
          %v9345 = vmul.f32 %v9333, %v9344
          %v9346 = vmul.f32 %v9345, %v9323
          %v9347 = vadd.f32 %v9346, %v9324
          %vm9348 = vcmp.gt.f32.partialorder %v9347, 0.0
          %v9349 = vmul.f32 %v9347, 0.1
          %v9350 = vsel %vm9348, %v9347, %v9349
          %v9351 = vld [vmem:[#allocation6 + $0x1040] sm:$0xff]
          %v9352 = vld [vmem:[#allocation6 + $0x1050] sm:$0xff]
          %v9353 = vld [vmem:[#allocation6 + $0x1060] sm:$0xff]
          %v9354 = vld [vmem:[#allocation6 + $0x1070] sm:$0x7f]
          %v9355 = vld [vmem:[#allocation6 + $0x1080] ss:$0 sm:$0xff]
          %v9357 = vsel %vm7060, %v9350, 0
          %v9360 = vsel %vm7064, %v9354, 0
          %9362 = vmatprep.subr.mxu0 0.0
          %9363 = vmatpush1.msra.mxu0 %v9351
          %9364 = vmatprep.subr.mxu0 0.0
          %9365 = vmatpush1.msra.mxu0 %v9352
          %9366 = vmatprep.subr.mxu0 0.0
          %9367 = vmatpush1.msra.mxu0 %v9353
          %9368 = vmatprep.subr.mxu0 0.0
          %9369 = vmatpush1.msra.mxu0 %v9360
          %9370 = vmatprep.subr.mxu0 0.0
          %9371 = vmatpush1.msra.mxu0 0.0
          %9372 = vmatprep.subr.mxu0 0.0
          %9373 = vmatpush1.msra.mxu0 0.0
          %9374 = vmatprep.subr.mxu0 0.0
          %9375 = vmatpush1.msra.mxu0 0.0
          %9376 = vmatprep.subr.mxu0 0.0
          %9377 = vmatpush1.msra.mxu0 0.0
          %9378 = vmatprep.subr.mxu0 0.0
          %9379 = vmatpush1.msra.mxu0 0.0
          %9380 = vmatprep.subr.mxu0 0.0
          %9381 = vmatpush1.msra.mxu0 0.0
          %9382 = vmatprep.subr.mxu0 0.0
          %9383 = vmatpush1.msra.mxu0 0.0
          %9384 = vmatprep.subr.mxu0 0.0
          %9385 = vmatpush1.msra.mxu0 0.0
          %9386 = vmatprep.subr.mxu0 0.0
          %9387 = vmatpush1.msra.mxu0 0.0
          %9388 = vmatprep.subr.mxu0 0.0
          %9389 = vmatpush1.msra.mxu0 0.0
          %9390 = vmatprep.subr.mxu0 0.0
          %9391 = vmatpush1.msra.mxu0 0.0
          %9392 = vmatprep.subr.mxu0 0.0
          %9393 = vmatpush1.msra.mxu0 0.0
          %9394 = vmatprep.subr.mxu0 0.0
          %9395 = vmatpush1.msra.mxu0 0.0
          %9396 = vmatprep.subr.mxu0 0.0
          %9397 = vmatpush1.msra.mxu0 0.0
          %9398 = vmatprep.subr.mxu0 0.0
          %9399 = vmatpush1.msra.mxu0 0.0
          %9400 = vmatprep.subr.mxu0 0.0
          %9401 = vmatpush1.msra.mxu0 0.0
          %9402 = vmatprep.subr.mxu0 0.0
          %9403 = vmatpush1.msra.mxu0 0.0
          %9404 = vmatprep.subr.mxu0 0.0
          %9405 = vmatpush1.msra.mxu0 0.0
          %9406 = vmatprep.subr.mxu0 0.0
          %9407 = vmatpush1.msra.mxu0 0.0
          %9408 = vmatprep.subr.mxu0 0.0
          %9409 = vmatpush1.msra.mxu0 0.0
          %9410 = vmatprep.subr.mxu0 0.0
          %9411 = vmatpush1.msra.mxu0 0.0
          %9412 = vmatprep.subr.mxu0 0.0
          %9413 = vmatpush1.msra.mxu0 0.0
          %9414 = vmatprep.subr.mxu0 0.0
          %9415 = vmatpush1.msra.mxu0 0.0
          %9416 = vmatprep.subr.mxu0 0.0
          %9417 = vmatpush1.msra.mxu0 0.0
          %9418 = vmatprep.subr.mxu0 0.0
          %9419 = vmatpush1.msra.mxu0 0.0
          %9420 = vmatprep.subr.mxu0 0.0
          %9421 = vmatpush1.msra.mxu0 0.0
          %9422 = vmatprep.subr.mxu0 0.0
          %9423 = vmatpush1.msra.mxu0 0.0
          %9424 = vmatprep.subr.mxu0 0.0
          %9425 = vmatpush1.msra.mxu0 0.0
          %9426 = vmatprep.mubr.f32.mxu0 0.0
          %9427 = vmatmul.mubr.f32.gmra.mrb[0].mxu0 %v9357
          %v9428 = vpop.f32.mrb[0].mxu0
          %v9429 = vadd.f32 %v9355, %v9428
          %v9430 = vpop.f32.mrb[0].mxu0
          %9431 = vdwg.mxu0
          %v9432 = vxor.u32 %v9429, 2147483648
          %v9433 = vmul.f32 %v9432, 1.442695
          %v9434 = vpow.pop %v9433
          %v9435 = vadd.f32 %v9434, 1.0
          %v9436 = vrcp.pop %v9435
          %v9437 = vmul.f32 1.0, %v9436
          %vm9438 = vcmask 158720
          %9439 = vst.msk [vmem:[#allocation11] sm:$0xf] %vm9438, %v9437
        $region64: #{discriminator_forward.1} parent=39 // pred_fallthru
          _
        // Predicated region
        $region65: #{discriminator_forward.1} parent=39 // pred_check
          %p9440 = pneg %p150
        $region66: #{discriminator_forward.1} parent=39 // pred_check_branch
          %9442 = sbr.rel (%p9440) target = $region68
        $region67: #{discriminator_forward.1} parent=39 // pred_region
          %s9444 = ssub.s32 64, 64
          %9445 = vsyncadd [#allocation5], %s9444
          %s9447 = sshll.u32 [#allocation11], 4
          %s9448 = int_to_ptr.vmem [resolvable:$true] %s9447
          %9450 = dma.vmem_to_hbm [thread:$0]  %s9448, 64, %s5, [#allocation5]
        $region68: #{discriminator_forward.1} parent=39 // pred_fallthru
          _
        // Predicated region
        $region69: #{discriminator_forward.1} parent=39 // pred_check
          %p9451 = pneg %p150
        $region70: #{discriminator_forward.1} parent=39 // pred_check_branch
          %9453 = sbr.rel (%p9451) target = $region72
        $region71: #{discriminator_forward.1} parent=39 // pred_region
          %9454 = dma.done [#allocation5], 64
        $region72: #{discriminator_forward.1} parent=39 // pred_fallthru
          _
      $region40: #{discriminator_forward.1} parent=5 // pred_fallthru
        _
      %p9455 = scmp.le.s32.totalorder 2, %s17
      // Predicated region
      $region73: #{discriminator_forward.1} parent=5 // pred_check
        %p9456 = pneg %p9455
      $region74: #{discriminator_forward.1} parent=5 // pred_check_branch
        %9458 = sbr.rel (%p9456) target = $region76
      $region75: #{discriminator_forward.1} parent=5 // pred_region
        %s9459 = ssub.s32 %s17, 2
      $region76: #{discriminator_forward.1} parent=5 // pred_fallthru
        _
    $region6: #{discriminator_forward.1} parent=1 // loop_footer
      %s21 = sadd.s32 1, %s17
    $region7: #{discriminator_forward.1} parent=1 // loop_footer_branch
      %16 = sbr.rel target = $region3
    $region8: #{discriminator_forward.1} parent=1 // loop_exit
      _
    %9460 = vsyncpa [#allocation4], 1
    %s9461 = scalar_lea.sflag [#allocation4], 1
    %9462 = vsyncpa %s9461, 1
    %9463 = vsyncpa [#allocation7], 1
    %9464 = vsyncpa [#allocation10], 1
    %9465 = vsyncpa [#allocation5], 1
    %s9466 = scalar_lea.sflag [#allocation5], 1
    %9467 = vsyncpa %s9466, 1

</llo_original>
